<compile_context>
chip_gen: v7x
topology: tpu7x:2x2x1
jax: 0.10.0
libtpu: 0.0.40
codegen_flags: <defaults>
</compile_context>

<pallas_src>
import jax
import jax.numpy as jnp
from jax.experimental import pallas as pl
from jax.experimental.pallas import tpu as pltpu

H_IN, W_IN = 28, 28          # input spatial size implied by fc = Linear(13*13, 10)
H_CONV, W_CONV = 26, 26      # after 3x3 valid conv
H_POOL, W_POOL = 13, 13      # after 2x2 max-pool, stride 2
N_CLASSES = 10
SLOT = 32                    # sublane-aligned rows reserved per pooled row in scratch
FC_K = H_POOL * SLOT         # 416: contraction depth of the single FC matmul


def _make_lenet_kernel(compute_dtype):
    """Fused conv(1->1,3x3) + ReLU + maxpool(2,2) + Linear(169->10) kernel.

    x_ref   : (28, 28, bt) VMEM bf16 -- (h, w, batch-on-lanes)
    w_ref   : (3, 3)  SMEM f32       -- conv weight (scalars)
    b_ref   : (1,)    SMEM f32       -- conv bias
    fcw_ref : (10, 416) VMEM bf16    -- FC weight, pool-stride fold + slot padding
    fcb_ref : (10, 1) VMEM f32       -- FC bias
    o_ref   : (10, bt) VMEM f32      -- logits, batch on lanes (lane-dense)
    pool_scr: (416, bt) VMEM bf16    -- staged pooled rows (13 slots of 32 rows)
    """

    def kernel(x_ref, w_ref, b_ref, fcw_ref, fcb_ref, o_ref, pool_scr):
        x = x_ref[...]                                   # (28, 28, bt) bf16
        if x.dtype != compute_dtype:
            x = x.astype(compute_dtype)                  # f32 fallback path

        def scal(v):                                     # SMEM f32 scalar -> compute dtype
            return v.astype(compute_dtype) if v.dtype != compute_dtype else v

        # 3x3 valid conv as 9 per-tap shifted multiply-adds (VPU).  The shifts
        # are taken per tap (leading-axis slice free, sublane shift on the XLU)
        # instead of materializing three shifted slabs.
        acc = None
        for di in range(3):
            for dj in range(3):
                tap = x[di:di + H_CONV, dj:dj + W_CONV, :] * scal(w_ref[di, dj])
                acc = tap if acc is None else acc + tap
        y = jnp.maximum(acc + scal(b_ref[0]), 0.0)       # (26, 26, bt)

        # Max-pool rows/adjacent columns; stage each pooled row into a
        # sublane-aligned 32-row slot of the scratch.  The stride-2 (even
        # column) selection is folded into fcw_ref, padding rows are zeroed.
        pool_scr[...] = jnp.zeros_like(pool_scr)
        for h in range(H_POOL):
            hrow = jnp.maximum(y[2 * h], y[2 * h + 1])               # (26, bt)
            wrow = jnp.maximum(hrow[0:W_CONV - 1], hrow[1:W_CONV])   # (25, bt)
            pool_scr[h * SLOT:h * SLOT + (W_CONV - 1), :] = wrow.astype(pool_scr.dtype)

        # One MXU matmul (10, 416) x (416, bt), f32 accumulate.
        logits = jnp.dot(fcw_ref[...], pool_scr[...],
                         preferred_element_type=jnp.float32)         # (10, bt)
        o_ref[...] = logits + fcb_ref[...]

    return kernel


def _round_up(n, m):
    return ((n + m - 1) // m) * m


def lenet_forward(x, conv_w, conv_b, fc_w, fc_b, batch_block=1024):
    """x: (B, 1, 28, 28) NCHW. Returns (B, 10) f32 logits (matches PyTorch LeNet)."""
    B = x.shape[0]

    # Megacore-aware batch tile: cap at 1024 (fits v7x's 64 MiB VMEM with bf16)
    # and try to give the grid at least 2 steps so both TensorCores get work.
    cap = _round_up(max(128, min(batch_block, 1024)), 128)
    bt = min(cap, _round_up(pl.cdiv(B, 2), 128))
    B_pad = _round_up(B, bt)
    grid_b = B_pad // bt

    # Host relayout: drop the unit channel, cast to bf16 FIRST (halves the
    # pad/transpose traffic and the kernel's HBM read), batch to the lane axis.
    # TODO(synk): have the producer emit (28, 28, B) bf16 directly; this
    # pad+transpose still reads/writes the whole input once in HBM.
    xs = x[:, 0, :, :].astype(jnp.bfloat16)
    xs = jnp.pad(xs, ((0, B_pad - B), (0, 0), (0, 0)))
    xs = jnp.transpose(xs, (1, 2, 0))                          # (28, 28, B_pad)

    w33 = conv_w[0, 0].astype(jnp.float32)                     # (3, 3) SMEM scalars
    b1 = conv_b.astype(jnp.float32)                            # (1,)

    # Fold the max-pool's stride-2 column selection AND the scratch's 32-row
    # slot padding into the FC weight:
    #   fcw_pad[c, 32*h + j] = fc_w[c, h*13 + j//2] if j even and j < 25 else 0
    fcw3 = fc_w.astype(jnp.float32).reshape(N_CLASSES, H_POOL, W_POOL)
    sel = (jnp.arange(SLOT)[None, :] == 2 * jnp.arange(W_POOL)[:, None])
    fcw_pad = jnp.einsum('chw,wj->chj', fcw3, sel.astype(jnp.float32))
    fcw_pad = fcw_pad.reshape(N_CLASSES, FC_K).astype(jnp.bfloat16)   # (10, 416)
    fcb = fc_b.astype(jnp.float32).reshape(N_CLASSES, 1)              # (10, 1)

    def run(compute_dtype):
        return pl.pallas_call(
            _make_lenet_kernel(compute_dtype),
            out_shape=jax.ShapeDtypeStruct((N_CLASSES, B_pad), jnp.float32),
            grid=(grid_b,),
            in_specs=[
                pl.BlockSpec((H_IN, W_IN, bt), lambda g: (0, 0, g)),     # input tile
                pl.BlockSpec(memory_space=pltpu.MemorySpace.SMEM),       # conv w
                pl.BlockSpec(memory_space=pltpu.MemorySpace.SMEM),       # conv b
                pl.BlockSpec((N_CLASSES, FC_K), lambda g: (0, 0)),       # fc w (resident)
                pl.BlockSpec((N_CLASSES, 1), lambda g: (0, 0)),          # fc b (resident)
            ],
            out_specs=pl.BlockSpec((N_CLASSES, bt), lambda g: (0, g)),
            scratch_shapes=[pltpu.VMEM((FC_K, bt), jnp.bfloat16)],
            compiler_params=pltpu.CompilerParams(
                dimension_semantics=("parallel",),
                vmem_limit_bytes=48 * 1024 * 1024),
        )(xs, w33, b1, fcw_pad, fcb)

    try:
        out = run(jnp.bfloat16)        # bf16 taps: 2x VALU throughput on v6e/v7x
    except Exception:
        # Fallback for generations/lowerings without bf16 scalar support
        # (e.g. v5e, whose VPU has no bf16): f32 compute, bf16 only for the DMA.
        out = run(jnp.float32)

    return out.T[:B]                                            # (B, 10)


def ref_forward(x, conv_w, conv_b, fc_w, fc_b):
    """Pure-JAX f32 reference matching the PyTorch forward."""
    B = x.shape[0]
    xs = x[:, 0].astype(jnp.float32)
    y = jnp.zeros((B, H_CONV, W_CONV), jnp.float32)
    for di in range(3):
        for dj in range(3):
            y = y + xs[:, di:di + H_CONV, dj:dj + W_CONV] * conv_w[0, 0, di, dj]
    y = jnp.maximum(y + conv_b[0], 0.0)
    pooled = jnp.max(y.reshape(B, H_POOL, 2, W_POOL, 2), axis=(2, 4))
    flat = pooled.reshape(B, H_POOL * W_POOL)
    return flat @ fc_w.T + fc_b[None, :]


if __name__ == "__main__":
    key = jax.random.PRNGKey(0)
    k1, k2, k3, k4, k5 = jax.random.split(key, 5)
    # Deterministic synthetic parameters (shapes from LeNet.__init__).
    conv_w = 0.2 * jax.random.normal(k1, (1, 1, 3, 3), jnp.float32)
    conv_b = 0.2 * jax.random.normal(k2, (1,), jnp.float32)
    fc_w = 0.05 * jax.random.normal(k3, (N_CLASSES, H_POOL * W_POOL), jnp.float32)
    fc_b = 0.05 * jax.random.normal(k4, (N_CLASSES,), jnp.float32)

    x = jax.random.normal(k5, (2, 1, 28, 28), jnp.float32)

    out = jax.block_until_ready(lenet_forward(x, conv_w, conv_b, fc_w, fc_b))
    ref = ref_forward(x, conv_w, conv_b, fc_w, fc_b)
    assert out.shape == (2, N_CLASSES)
    # Tolerance loosened for bf16 input + bf16 conv taps (per review note).
    assert jnp.allclose(out, ref, atol=5e-2, rtol=5e-2), "mismatch vs reference"
    print("KERNEL_OK")
</pallas_src>

<mosaic_0001>
module attributes {stable_mosaic.version = 11 : i64} {
  func.func @kernel(%arg0: i32, %arg1: memref<28x28x128xbf16, #tpu.memory_space<vmem>>, %arg2: memref<3x3xf32, #tpu.memory_space<smem>>, %arg3: memref<1xf32, #tpu.memory_space<smem>>, %arg4: memref<10x416xbf16, #tpu.memory_space<vmem>>, %arg5: memref<10x1xf32, #tpu.memory_space<vmem>>, %arg6: memref<10x128xf32, #tpu.memory_space<vmem>>, %arg7: memref<416x128xbf16, #tpu.memory_space<vmem>>) attributes {dimension_semantics = [#tpu.dimension_semantics<parallel>], iteration_bounds = array<i64: 1>, scalar_prefetch = 0 : i64, scratch_operands = 1 : i64, tpu.core_type = #tpu.core_type<tc>, window_params = [{transform_indices = @transform_0, window_bounds = array<i64: 28, 28, 128>}, {transform_indices = @transform_1, window_bounds = array<i64: 3, 3>}, {transform_indices = @transform_2, window_bounds = array<i64: 1>}, {pipeline_mode = #tpu.pipeline_mode<synchronous>, transform_indices = @transform_3, window_bounds = array<i64: 10, 416>}, {pipeline_mode = #tpu.pipeline_mode<synchronous>, transform_indices = @transform_4, window_bounds = array<i64: 10, 1>}, {transform_indices = @transform_5, window_bounds = array<i64: 10, 128>}]} {
    %c0 = arith.constant 0 : index
    %c0_0 = arith.constant 0 : index
    %c0_1 = arith.constant 0 : index
    %0 = vector.load %arg1[%c0, %c0_0, %c0_1] : memref<28x28x128xbf16, #tpu.memory_space<vmem>>, vector<28x28x128xbf16>
    %1 = vector.extract_strided_slice %0 {offsets = [0, 0, 0], sizes = [26, 26, 128], strides = [1, 1, 1]} : vector<28x28x128xbf16> to vector<26x26x128xbf16>
    %c0_2 = arith.constant 0 : index
    %c0_3 = arith.constant 0 : index
    %2 = memref.load %arg2[%c0_2, %c0_3] : memref<3x3xf32, #tpu.memory_space<smem>>
    %3 = arith.truncf %2 : f32 to bf16
    %4 = vector.broadcast %3 : bf16 to vector<26x26x128xbf16>
    %5 = arith.mulf %1, %4 : vector<26x26x128xbf16>
    %6 = vector.extract_strided_slice %0 {offsets = [0, 1, 0], sizes = [26, 26, 128], strides = [1, 1, 1]} : vector<28x28x128xbf16> to vector<26x26x128xbf16>
    %c0_4 = arith.constant 0 : index
    %c1 = arith.constant 1 : index
    %7 = memref.load %arg2[%c0_4, %c1] : memref<3x3xf32, #tpu.memory_space<smem>>
    %8 = arith.truncf %7 : f32 to bf16
    %9 = vector.broadcast %8 : bf16 to vector<26x26x128xbf16>
    %10 = arith.mulf %6, %9 : vector<26x26x128xbf16>
    %11 = arith.addf %5, %10 : vector<26x26x128xbf16>
    %12 = vector.extract_strided_slice %0 {offsets = [0, 2, 0], sizes = [26, 26, 128], strides = [1, 1, 1]} : vector<28x28x128xbf16> to vector<26x26x128xbf16>
    %c0_5 = arith.constant 0 : index
    %c2 = arith.constant 2 : index
    %13 = memref.load %arg2[%c0_5, %c2] : memref<3x3xf32, #tpu.memory_space<smem>>
    %14 = arith.truncf %13 : f32 to bf16
    %15 = vector.broadcast %14 : bf16 to vector<26x26x128xbf16>
    %16 = arith.mulf %12, %15 : vector<26x26x128xbf16>
    %17 = arith.addf %11, %16 : vector<26x26x128xbf16>
    %18 = vector.extract_strided_slice %0 {offsets = [1, 0, 0], sizes = [26, 26, 128], strides = [1, 1, 1]} : vector<28x28x128xbf16> to vector<26x26x128xbf16>
    %c1_6 = arith.constant 1 : index
    %c0_7 = arith.constant 0 : index
    %19 = memref.load %arg2[%c1_6, %c0_7] : memref<3x3xf32, #tpu.memory_space<smem>>
    %20 = arith.truncf %19 : f32 to bf16
    %21 = vector.broadcast %20 : bf16 to vector<26x26x128xbf16>
    %22 = arith.mulf %18, %21 : vector<26x26x128xbf16>
    %23 = arith.addf %17, %22 : vector<26x26x128xbf16>
    %24 = vector.extract_strided_slice %0 {offsets = [1, 1, 0], sizes = [26, 26, 128], strides = [1, 1, 1]} : vector<28x28x128xbf16> to vector<26x26x128xbf16>
    %c1_8 = arith.constant 1 : index
    %c1_9 = arith.constant 1 : index
    %25 = memref.load %arg2[%c1_8, %c1_9] : memref<3x3xf32, #tpu.memory_space<smem>>
    %26 = arith.truncf %25 : f32 to bf16
    %27 = vector.broadcast %26 : bf16 to vector<26x26x128xbf16>
    %28 = arith.mulf %24, %27 : vector<26x26x128xbf16>
    %29 = arith.addf %23, %28 : vector<26x26x128xbf16>
    %30 = vector.extract_strided_slice %0 {offsets = [1, 2, 0], sizes = [26, 26, 128], strides = [1, 1, 1]} : vector<28x28x128xbf16> to vector<26x26x128xbf16>
    %c1_10 = arith.constant 1 : index
    %c2_11 = arith.constant 2 : index
    %31 = memref.load %arg2[%c1_10, %c2_11] : memref<3x3xf32, #tpu.memory_space<smem>>
    %32 = arith.truncf %31 : f32 to bf16
    %33 = vector.broadcast %32 : bf16 to vector<26x26x128xbf16>
    %34 = arith.mulf %30, %33 : vector<26x26x128xbf16>
    %35 = arith.addf %29, %34 : vector<26x26x128xbf16>
    %36 = vector.extract_strided_slice %0 {offsets = [2, 0, 0], sizes = [26, 26, 128], strides = [1, 1, 1]} : vector<28x28x128xbf16> to vector<26x26x128xbf16>
    %c2_12 = arith.constant 2 : index
    %c0_13 = arith.constant 0 : index
    %37 = memref.load %arg2[%c2_12, %c0_13] : memref<3x3xf32, #tpu.memory_space<smem>>
    %38 = arith.truncf %37 : f32 to bf16
    %39 = vector.broadcast %38 : bf16 to vector<26x26x128xbf16>
    %40 = arith.mulf %36, %39 : vector<26x26x128xbf16>
    %41 = arith.addf %35, %40 : vector<26x26x128xbf16>
    %42 = vector.extract_strided_slice %0 {offsets = [2, 1, 0], sizes = [26, 26, 128], strides = [1, 1, 1]} : vector<28x28x128xbf16> to vector<26x26x128xbf16>
    %c2_14 = arith.constant 2 : index
    %c1_15 = arith.constant 1 : index
    %43 = memref.load %arg2[%c2_14, %c1_15] : memref<3x3xf32, #tpu.memory_space<smem>>
    %44 = arith.truncf %43 : f32 to bf16
    %45 = vector.broadcast %44 : bf16 to vector<26x26x128xbf16>
    %46 = arith.mulf %42, %45 : vector<26x26x128xbf16>
    %47 = arith.addf %41, %46 : vector<26x26x128xbf16>
    %48 = vector.extract_strided_slice %0 {offsets = [2, 2, 0], sizes = [26, 26, 128], strides = [1, 1, 1]} : vector<28x28x128xbf16> to vector<26x26x128xbf16>
    %c2_16 = arith.constant 2 : index
    %c2_17 = arith.constant 2 : index
    %49 = memref.load %arg2[%c2_16, %c2_17] : memref<3x3xf32, #tpu.memory_space<smem>>
    %50 = arith.truncf %49 : f32 to bf16
    %51 = vector.broadcast %50 : bf16 to vector<26x26x128xbf16>
    %52 = arith.mulf %48, %51 : vector<26x26x128xbf16>
    %53 = arith.addf %47, %52 : vector<26x26x128xbf16>
    %c0_18 = arith.constant 0 : index
    %54 = memref.load %arg3[%c0_18] : memref<1xf32, #tpu.memory_space<smem>>
    %55 = arith.truncf %54 : f32 to bf16
    %56 = vector.broadcast %55 : bf16 to vector<26x26x128xbf16>
    %57 = arith.addf %53, %56 : vector<26x26x128xbf16>
    %cst = arith.constant 0.000000e+00 : bf16
    %58 = vector.broadcast %cst : bf16 to vector<26x26x128xbf16>
    %59 = arith.maximumf %57, %58 : vector<26x26x128xbf16>
    %cst_19 = arith.constant 0.000000e+00 : bf16
    %60 = vector.broadcast %cst_19 : bf16 to vector<416x128xbf16>
    %c0_20 = arith.constant 0 : index
    %c0_21 = arith.constant 0 : index
    %61 = vector.load %arg7[%c0_20, %c0_21] : memref<416x128xbf16, #tpu.memory_space<vmem>>, vector<416x128xbf16>
    tpu.vector_store %arg7[%c0_20, %c0_21], %60 {strides = array<i32>} : memref<416x128xbf16, #tpu.memory_space<vmem>>, vector<416x128xbf16>,
    %62 = vector.extract_strided_slice %59 {offsets = [0, 0, 0], sizes = [1, 26, 128], strides = [1, 1, 1]} : vector<26x26x128xbf16> to vector<1x26x128xbf16>
    %63 = vector.shape_cast %62 : vector<1x26x128xbf16> to vector<26x128xbf16>
    %64 = vector.extract_strided_slice %59 {offsets = [1, 0, 0], sizes = [1, 26, 128], strides = [1, 1, 1]} : vector<26x26x128xbf16> to vector<1x26x128xbf16>
    %65 = vector.shape_cast %64 : vector<1x26x128xbf16> to vector<26x128xbf16>
    %66 = arith.maximumf %63, %65 : vector<26x128xbf16>
    %67 = vector.extract_strided_slice %66 {offsets = [0, 0], sizes = [25, 128], strides = [1, 1]} : vector<26x128xbf16> to vector<25x128xbf16>
    %68 = vector.extract_strided_slice %66 {offsets = [1, 0], sizes = [25, 128], strides = [1, 1]} : vector<26x128xbf16> to vector<25x128xbf16>
    %69 = arith.maximumf %67, %68 : vector<25x128xbf16>
    %c0_22 = arith.constant 0 : index
    %c0_23 = arith.constant 0 : index
    %70 = vector.load %arg7[%c0_22, %c0_23] : memref<416x128xbf16, #tpu.memory_space<vmem>>, vector<25x128xbf16>
    tpu.vector_store %arg7[%c0_22, %c0_23], %69 {strides = array<i32>} : memref<416x128xbf16, #tpu.memory_space<vmem>>, vector<25x128xbf16>,
    %71 = vector.extract_strided_slice %59 {offsets = [2, 0, 0], sizes = [1, 26, 128], strides = [1, 1, 1]} : vector<26x26x128xbf16> to vector<1x26x128xbf16>
    %72 = vector.shape_cast %71 : vector<1x26x128xbf16> to vector<26x128xbf16>
    %73 = vector.extract_strided_slice %59 {offsets = [3, 0, 0], sizes = [1, 26, 128], strides = [1, 1, 1]} : vector<26x26x128xbf16> to vector<1x26x128xbf16>
    %74 = vector.shape_cast %73 : vector<1x26x128xbf16> to vector<26x128xbf16>
    %75 = arith.maximumf %72, %74 : vector<26x128xbf16>
    %76 = vector.extract_strided_slice %75 {offsets = [0, 0], sizes = [25, 128], strides = [1, 1]} : vector<26x128xbf16> to vector<25x128xbf16>
    %77 = vector.extract_strided_slice %75 {offsets = [1, 0], sizes = [25, 128], strides = [1, 1]} : vector<26x128xbf16> to vector<25x128xbf16>
    %78 = arith.maximumf %76, %77 : vector<25x128xbf16>
    %c32 = arith.constant 32 : index
    %c0_24 = arith.constant 0 : index
    %79 = vector.load %arg7[%c32, %c0_24] : memref<416x128xbf16, #tpu.memory_space<vmem>>, vector<25x128xbf16>
    tpu.vector_store %arg7[%c32, %c0_24], %78 {strides = array<i32>} : memref<416x128xbf16, #tpu.memory_space<vmem>>, vector<25x128xbf16>,
    %80 = vector.extract_strided_slice %59 {offsets = [4, 0, 0], sizes = [1, 26, 128], strides = [1, 1, 1]} : vector<26x26x128xbf16> to vector<1x26x128xbf16>
    %81 = vector.shape_cast %80 : vector<1x26x128xbf16> to vector<26x128xbf16>
    %82 = vector.extract_strided_slice %59 {offsets = [5, 0, 0], sizes = [1, 26, 128], strides = [1, 1, 1]} : vector<26x26x128xbf16> to vector<1x26x128xbf16>
    %83 = vector.shape_cast %82 : vector<1x26x128xbf16> to vector<26x128xbf16>
    %84 = arith.maximumf %81, %83 : vector<26x128xbf16>
    %85 = vector.extract_strided_slice %84 {offsets = [0, 0], sizes = [25, 128], strides = [1, 1]} : vector<26x128xbf16> to vector<25x128xbf16>
    %86 = vector.extract_strided_slice %84 {offsets = [1, 0], sizes = [25, 128], strides = [1, 1]} : vector<26x128xbf16> to vector<25x128xbf16>
    %87 = arith.maximumf %85, %86 : vector<25x128xbf16>
    %c64 = arith.constant 64 : index
    %c0_25 = arith.constant 0 : index
    %88 = vector.load %arg7[%c64, %c0_25] : memref<416x128xbf16, #tpu.memory_space<vmem>>, vector<25x128xbf16>
    tpu.vector_store %arg7[%c64, %c0_25], %87 {strides = array<i32>} : memref<416x128xbf16, #tpu.memory_space<vmem>>, vector<25x128xbf16>,
    %89 = vector.extract_strided_slice %59 {offsets = [6, 0, 0], sizes = [1, 26, 128], strides = [1, 1, 1]} : vector<26x26x128xbf16> to vector<1x26x128xbf16>
    %90 = vector.shape_cast %89 : vector<1x26x128xbf16> to vector<26x128xbf16>
    %91 = vector.extract_strided_slice %59 {offsets = [7, 0, 0], sizes = [1, 26, 128], strides = [1, 1, 1]} : vector<26x26x128xbf16> to vector<1x26x128xbf16>
    %92 = vector.shape_cast %91 : vector<1x26x128xbf16> to vector<26x128xbf16>
    %93 = arith.maximumf %90, %92 : vector<26x128xbf16>
    %94 = vector.extract_strided_slice %93 {offsets = [0, 0], sizes = [25, 128], strides = [1, 1]} : vector<26x128xbf16> to vector<25x128xbf16>
    %95 = vector.extract_strided_slice %93 {offsets = [1, 0], sizes = [25, 128], strides = [1, 1]} : vector<26x128xbf16> to vector<25x128xbf16>
    %96 = arith.maximumf %94, %95 : vector<25x128xbf16>
    %c96 = arith.constant 96 : index
    %c0_26 = arith.constant 0 : index
    %97 = vector.load %arg7[%c96, %c0_26] : memref<416x128xbf16, #tpu.memory_space<vmem>>, vector<25x128xbf16>
    tpu.vector_store %arg7[%c96, %c0_26], %96 {strides = array<i32>} : memref<416x128xbf16, #tpu.memory_space<vmem>>, vector<25x128xbf16>,
    %98 = vector.extract_strided_slice %59 {offsets = [8, 0, 0], sizes = [1, 26, 128], strides = [1, 1, 1]} : vector<26x26x128xbf16> to vector<1x26x128xbf16>
    %99 = vector.shape_cast %98 : vector<1x26x128xbf16> to vector<26x128xbf16>
    %100 = vector.extract_strided_slice %59 {offsets = [9, 0, 0], sizes = [1, 26, 128], strides = [1, 1, 1]} : vector<26x26x128xbf16> to vector<1x26x128xbf16>
    %101 = vector.shape_cast %100 : vector<1x26x128xbf16> to vector<26x128xbf16>
    %102 = arith.maximumf %99, %101 : vector<26x128xbf16>
    %103 = vector.extract_strided_slice %102 {offsets = [0, 0], sizes = [25, 128], strides = [1, 1]} : vector<26x128xbf16> to vector<25x128xbf16>
    %104 = vector.extract_strided_slice %102 {offsets = [1, 0], sizes = [25, 128], strides = [1, 1]} : vector<26x128xbf16> to vector<25x128xbf16>
    %105 = arith.maximumf %103, %104 : vector<25x128xbf16>
    %c128 = arith.constant 128 : index
    %c0_27 = arith.constant 0 : index
    %106 = vector.load %arg7[%c128, %c0_27] : memref<416x128xbf16, #tpu.memory_space<vmem>>, vector<25x128xbf16>
    tpu.vector_store %arg7[%c128, %c0_27], %105 {strides = array<i32>} : memref<416x128xbf16, #tpu.memory_space<vmem>>, vector<25x128xbf16>,
    %107 = vector.extract_strided_slice %59 {offsets = [10, 0, 0], sizes = [1, 26, 128], strides = [1, 1, 1]} : vector<26x26x128xbf16> to vector<1x26x128xbf16>
    %108 = vector.shape_cast %107 : vector<1x26x128xbf16> to vector<26x128xbf16>
    %109 = vector.extract_strided_slice %59 {offsets = [11, 0, 0], sizes = [1, 26, 128], strides = [1, 1, 1]} : vector<26x26x128xbf16> to vector<1x26x128xbf16>
    %110 = vector.shape_cast %109 : vector<1x26x128xbf16> to vector<26x128xbf16>
    %111 = arith.maximumf %108, %110 : vector<26x128xbf16>
    %112 = vector.extract_strided_slice %111 {offsets = [0, 0], sizes = [25, 128], strides = [1, 1]} : vector<26x128xbf16> to vector<25x128xbf16>
    %113 = vector.extract_strided_slice %111 {offsets = [1, 0], sizes = [25, 128], strides = [1, 1]} : vector<26x128xbf16> to vector<25x128xbf16>
    %114 = arith.maximumf %112, %113 : vector<25x128xbf16>
    %c160 = arith.constant 160 : index
    %c0_28 = arith.constant 0 : index
    %115 = vector.load %arg7[%c160, %c0_28] : memref<416x128xbf16, #tpu.memory_space<vmem>>, vector<25x128xbf16>
    tpu.vector_store %arg7[%c160, %c0_28], %114 {strides = array<i32>} : memref<416x128xbf16, #tpu.memory_space<vmem>>, vector<25x128xbf16>,
    %116 = vector.extract_strided_slice %59 {offsets = [12, 0, 0], sizes = [1, 26, 128], strides = [1, 1, 1]} : vector<26x26x128xbf16> to vector<1x26x128xbf16>
    %117 = vector.shape_cast %116 : vector<1x26x128xbf16> to vector<26x128xbf16>
    %118 = vector.extract_strided_slice %59 {offsets = [13, 0, 0], sizes = [1, 26, 128], strides = [1, 1, 1]} : vector<26x26x128xbf16> to vector<1x26x128xbf16>
    %119 = vector.shape_cast %118 : vector<1x26x128xbf16> to vector<26x128xbf16>
    %120 = arith.maximumf %117, %119 : vector<26x128xbf16>
    %121 = vector.extract_strided_slice %120 {offsets = [0, 0], sizes = [25, 128], strides = [1, 1]} : vector<26x128xbf16> to vector<25x128xbf16>
    %122 = vector.extract_strided_slice %120 {offsets = [1, 0], sizes = [25, 128], strides = [1, 1]} : vector<26x128xbf16> to vector<25x128xbf16>
    %123 = arith.maximumf %121, %122 : vector<25x128xbf16>
    %c192 = arith.constant 192 : index
    %c0_29 = arith.constant 0 : index
    %124 = vector.load %arg7[%c192, %c0_29] : memref<416x128xbf16, #tpu.memory_space<vmem>>, vector<25x128xbf16>
    tpu.vector_store %arg7[%c192, %c0_29], %123 {strides = array<i32>} : memref<416x128xbf16, #tpu.memory_space<vmem>>, vector<25x128xbf16>,
    %125 = vector.extract_strided_slice %59 {offsets = [14, 0, 0], sizes = [1, 26, 128], strides = [1, 1, 1]} : vector<26x26x128xbf16> to vector<1x26x128xbf16>
    %126 = vector.shape_cast %125 : vector<1x26x128xbf16> to vector<26x128xbf16>
    %127 = vector.extract_strided_slice %59 {offsets = [15, 0, 0], sizes = [1, 26, 128], strides = [1, 1, 1]} : vector<26x26x128xbf16> to vector<1x26x128xbf16>
    %128 = vector.shape_cast %127 : vector<1x26x128xbf16> to vector<26x128xbf16>
    %129 = arith.maximumf %126, %128 : vector<26x128xbf16>
    %130 = vector.extract_strided_slice %129 {offsets = [0, 0], sizes = [25, 128], strides = [1, 1]} : vector<26x128xbf16> to vector<25x128xbf16>
    %131 = vector.extract_strided_slice %129 {offsets = [1, 0], sizes = [25, 128], strides = [1, 1]} : vector<26x128xbf16> to vector<25x128xbf16>
    %132 = arith.maximumf %130, %131 : vector<25x128xbf16>
    %c224 = arith.constant 224 : index
    %c0_30 = arith.constant 0 : index
    %133 = vector.load %arg7[%c224, %c0_30] : memref<416x128xbf16, #tpu.memory_space<vmem>>, vector<25x128xbf16>
    tpu.vector_store %arg7[%c224, %c0_30], %132 {strides = array<i32>} : memref<416x128xbf16, #tpu.memory_space<vmem>>, vector<25x128xbf16>,
    %134 = vector.extract_strided_slice %59 {offsets = [16, 0, 0], sizes = [1, 26, 128], strides = [1, 1, 1]} : vector<26x26x128xbf16> to vector<1x26x128xbf16>
    %135 = vector.shape_cast %134 : vector<1x26x128xbf16> to vector<26x128xbf16>
    %136 = vector.extract_strided_slice %59 {offsets = [17, 0, 0], sizes = [1, 26, 128], strides = [1, 1, 1]} : vector<26x26x128xbf16> to vector<1x26x128xbf16>
    %137 = vector.shape_cast %136 : vector<1x26x128xbf16> to vector<26x128xbf16>
    %138 = arith.maximumf %135, %137 : vector<26x128xbf16>
    %139 = vector.extract_strided_slice %138 {offsets = [0, 0], sizes = [25, 128], strides = [1, 1]} : vector<26x128xbf16> to vector<25x128xbf16>
    %140 = vector.extract_strided_slice %138 {offsets = [1, 0], sizes = [25, 128], strides = [1, 1]} : vector<26x128xbf16> to vector<25x128xbf16>
    %141 = arith.maximumf %139, %140 : vector<25x128xbf16>
    %c256 = arith.constant 256 : index
    %c0_31 = arith.constant 0 : index
    %142 = vector.load %arg7[%c256, %c0_31] : memref<416x128xbf16, #tpu.memory_space<vmem>>, vector<25x128xbf16>
    tpu.vector_store %arg7[%c256, %c0_31], %141 {strides = array<i32>} : memref<416x128xbf16, #tpu.memory_space<vmem>>, vector<25x128xbf16>,
    %143 = vector.extract_strided_slice %59 {offsets = [18, 0, 0], sizes = [1, 26, 128], strides = [1, 1, 1]} : vector<26x26x128xbf16> to vector<1x26x128xbf16>
    %144 = vector.shape_cast %143 : vector<1x26x128xbf16> to vector<26x128xbf16>
    %145 = vector.extract_strided_slice %59 {offsets = [19, 0, 0], sizes = [1, 26, 128], strides = [1, 1, 1]} : vector<26x26x128xbf16> to vector<1x26x128xbf16>
    %146 = vector.shape_cast %145 : vector<1x26x128xbf16> to vector<26x128xbf16>
    %147 = arith.maximumf %144, %146 : vector<26x128xbf16>
    %148 = vector.extract_strided_slice %147 {offsets = [0, 0], sizes = [25, 128], strides = [1, 1]} : vector<26x128xbf16> to vector<25x128xbf16>
    %149 = vector.extract_strided_slice %147 {offsets = [1, 0], sizes = [25, 128], strides = [1, 1]} : vector<26x128xbf16> to vector<25x128xbf16>
    %150 = arith.maximumf %148, %149 : vector<25x128xbf16>
    %c288 = arith.constant 288 : index
    %c0_32 = arith.constant 0 : index
    %151 = vector.load %arg7[%c288, %c0_32] : memref<416x128xbf16, #tpu.memory_space<vmem>>, vector<25x128xbf16>
    tpu.vector_store %arg7[%c288, %c0_32], %150 {strides = array<i32>} : memref<416x128xbf16, #tpu.memory_space<vmem>>, vector<25x128xbf16>,
    %152 = vector.extract_strided_slice %59 {offsets = [20, 0, 0], sizes = [1, 26, 128], strides = [1, 1, 1]} : vector<26x26x128xbf16> to vector<1x26x128xbf16>
    %153 = vector.shape_cast %152 : vector<1x26x128xbf16> to vector<26x128xbf16>
    %154 = vector.extract_strided_slice %59 {offsets = [21, 0, 0], sizes = [1, 26, 128], strides = [1, 1, 1]} : vector<26x26x128xbf16> to vector<1x26x128xbf16>
    %155 = vector.shape_cast %154 : vector<1x26x128xbf16> to vector<26x128xbf16>
    %156 = arith.maximumf %153, %155 : vector<26x128xbf16>
    %157 = vector.extract_strided_slice %156 {offsets = [0, 0], sizes = [25, 128], strides = [1, 1]} : vector<26x128xbf16> to vector<25x128xbf16>
    %158 = vector.extract_strided_slice %156 {offsets = [1, 0], sizes = [25, 128], strides = [1, 1]} : vector<26x128xbf16> to vector<25x128xbf16>
    %159 = arith.maximumf %157, %158 : vector<25x128xbf16>
    %c320 = arith.constant 320 : index
    %c0_33 = arith.constant 0 : index
    %160 = vector.load %arg7[%c320, %c0_33] : memref<416x128xbf16, #tpu.memory_space<vmem>>, vector<25x128xbf16>
    tpu.vector_store %arg7[%c320, %c0_33], %159 {strides = array<i32>} : memref<416x128xbf16, #tpu.memory_space<vmem>>, vector<25x128xbf16>,
    %161 = vector.extract_strided_slice %59 {offsets = [22, 0, 0], sizes = [1, 26, 128], strides = [1, 1, 1]} : vector<26x26x128xbf16> to vector<1x26x128xbf16>
    %162 = vector.shape_cast %161 : vector<1x26x128xbf16> to vector<26x128xbf16>
    %163 = vector.extract_strided_slice %59 {offsets = [23, 0, 0], sizes = [1, 26, 128], strides = [1, 1, 1]} : vector<26x26x128xbf16> to vector<1x26x128xbf16>
    %164 = vector.shape_cast %163 : vector<1x26x128xbf16> to vector<26x128xbf16>
    %165 = arith.maximumf %162, %164 : vector<26x128xbf16>
    %166 = vector.extract_strided_slice %165 {offsets = [0, 0], sizes = [25, 128], strides = [1, 1]} : vector<26x128xbf16> to vector<25x128xbf16>
    %167 = vector.extract_strided_slice %165 {offsets = [1, 0], sizes = [25, 128], strides = [1, 1]} : vector<26x128xbf16> to vector<25x128xbf16>
    %168 = arith.maximumf %166, %167 : vector<25x128xbf16>
    %c352 = arith.constant 352 : index
    %c0_34 = arith.constant 0 : index
    %169 = vector.load %arg7[%c352, %c0_34] : memref<416x128xbf16, #tpu.memory_space<vmem>>, vector<25x128xbf16>
    tpu.vector_store %arg7[%c352, %c0_34], %168 {strides = array<i32>} : memref<416x128xbf16, #tpu.memory_space<vmem>>, vector<25x128xbf16>,
    %170 = vector.extract_strided_slice %59 {offsets = [24, 0, 0], sizes = [1, 26, 128], strides = [1, 1, 1]} : vector<26x26x128xbf16> to vector<1x26x128xbf16>
    %171 = vector.shape_cast %170 : vector<1x26x128xbf16> to vector<26x128xbf16>
    %172 = vector.extract_strided_slice %59 {offsets = [25, 0, 0], sizes = [1, 26, 128], strides = [1, 1, 1]} : vector<26x26x128xbf16> to vector<1x26x128xbf16>
    %173 = vector.shape_cast %172 : vector<1x26x128xbf16> to vector<26x128xbf16>
    %174 = arith.maximumf %171, %173 : vector<26x128xbf16>
    %175 = vector.extract_strided_slice %174 {offsets = [0, 0], sizes = [25, 128], strides = [1, 1]} : vector<26x128xbf16> to vector<25x128xbf16>
    %176 = vector.extract_strided_slice %174 {offsets = [1, 0], sizes = [25, 128], strides = [1, 1]} : vector<26x128xbf16> to vector<25x128xbf16>
    %177 = arith.maximumf %175, %176 : vector<25x128xbf16>
    %c384 = arith.constant 384 : index
    %c0_35 = arith.constant 0 : index
    %178 = vector.load %arg7[%c384, %c0_35] : memref<416x128xbf16, #tpu.memory_space<vmem>>, vector<25x128xbf16>
    tpu.vector_store %arg7[%c384, %c0_35], %177 {strides = array<i32>} : memref<416x128xbf16, #tpu.memory_space<vmem>>, vector<25x128xbf16>,
    %c0_36 = arith.constant 0 : index
    %c0_37 = arith.constant 0 : index
    %179 = vector.load %arg4[%c0_36, %c0_37] : memref<10x416xbf16, #tpu.memory_space<vmem>>, vector<10x416xbf16>
    %c0_38 = arith.constant 0 : index
    %c0_39 = arith.constant 0 : index
    %180 = vector.load %arg7[%c0_38, %c0_39] : memref<416x128xbf16, #tpu.memory_space<vmem>>, vector<416x128xbf16>
    %cst_40 = arith.constant dense<0.000000e+00> : vector<10x128xf32>
    %181 = tpu.matmul %179, %180, %cst_40 {dimension_numbers = #tpu.dot_dimension_numbers<[1], [0], [0], [1], [0, 0, 1, 1], [], []>} : vector<10x416xbf16>, vector<416x128xbf16>, vector<10x128xf32> -> vector<10x128xf32>
    %c0_41 = arith.constant 0 : index
    %c0_42 = arith.constant 0 : index
    %182 = vector.load %arg5[%c0_41, %c0_42] : memref<10x1xf32, #tpu.memory_space<vmem>>, vector<10x1xf32>
    %183 = vector.broadcast %182 : vector<10x1xf32> to vector<10x128xf32>
    %184 = arith.addf %181, %183 : vector<10x128xf32>
    %c0_43 = arith.constant 0 : index
    %c0_44 = arith.constant 0 : index
    %185 = vector.load %arg6[%c0_43, %c0_44] : memref<10x128xf32, #tpu.memory_space<vmem>>, vector<10x128xf32>
    tpu.vector_store %arg6[%c0_43, %c0_44], %184 {strides = array<i32>} : memref<10x128xf32, #tpu.memory_space<vmem>>, vector<10x128xf32>,
    return
  }
  func.func @transform_0(%arg0: i32) -> (i32, i32, i32) {
    %c0_i32 = arith.constant 0 : i32
    %c0_i32_0 = arith.constant 0 : i32
    %c0_i32_1 = arith.constant 0 : i32
    return %c0_i32, %c0_i32_0, %arg0 : i32, i32, i32
  }
  func.func @transform_1(%arg0: i32) -> (i32, i32) {
    %c0_i32 = arith.constant 0 : i32
    %c0_i32_0 = arith.constant 0 : i32
    %c0_i32_1 = arith.constant 0 : i32
    return %c0_i32, %c0_i32_0 : i32, i32
  }
  func.func @transform_2(%arg0: i32) -> i32 {
    %c0_i32 = arith.constant 0 : i32
    %c0_i32_0 = arith.constant 0 : i32
    return %c0_i32 : i32
  }
  func.func @transform_3(%arg0: i32) -> (i32, i32) {
    %c0_i32 = arith.constant 0 : i32
    %c0_i32_0 = arith.constant 0 : i32
    %c0_i32_1 = arith.constant 0 : i32
    return %c0_i32, %c0_i32_0 : i32, i32
  }
  func.func @transform_4(%arg0: i32) -> (i32, i32) {
    %c0_i32 = arith.constant 0 : i32
    %c0_i32_0 = arith.constant 0 : i32
    %c0_i32_1 = arith.constant 0 : i32
    return %c0_i32, %c0_i32_0 : i32, i32
  }
  func.func @transform_5(%arg0: i32) -> (i32, i32) {
    %c0_i32 = arith.constant 0 : i32
    %c0_i32_0 = arith.constant 0 : i32
    return %c0_i32, %arg0 : i32, i32
  }
}

module attributes {stable_mosaic.version = 11 : i64} {
  func.func @kernel(%arg0: i32, %arg1: memref<28x28x128xbf16, #tpu.memory_space<vmem>>, %arg2: memref<3x3xf32, #tpu.memory_space<smem>>, %arg3: memref<1xf32, #tpu.memory_space<smem>>, %arg4: memref<10x416xbf16, #tpu.memory_space<vmem>>, %arg5: memref<10x1xf32, #tpu.memory_space<vmem>>, %arg6: memref<10x128xf32, #tpu.memory_space<vmem>>, %arg7: memref<416x128xbf16, #tpu.memory_space<vmem>>) attributes {dimension_semantics = [#tpu.dimension_semantics<parallel>], iteration_bounds = array<i64: 1>, scalar_prefetch = 0 : i64, scratch_operands = 1 : i64, tpu.core_type = #tpu.core_type<tc>, window_params = [{transform_indices = @transform_0, window_bounds = array<i64: 28, 28, 128>}, {transform_indices = @transform_1, window_bounds = array<i64: 3, 3>}, {transform_indices = @transform_2, window_bounds = array<i64: 1>}, {pipeline_mode = #tpu.pipeline_mode<synchronous>, transform_indices = @transform_3, window_bounds = array<i64: 10, 416>}, {pipeline_mode = #tpu.pipeline_mode<synchronous>, transform_indices = @transform_4, window_bounds = array<i64: 10, 1>}, {transform_indices = @transform_5, window_bounds = array<i64: 10, 128>}]} {
    %c0 = arith.constant 0 : index
    %c0_0 = arith.constant 0 : index
    %c0_1 = arith.constant 0 : index
    %0 = vector.load %arg1[%c0, %c0_0, %c0_1] : memref<28x28x128xbf16, #tpu.memory_space<vmem>>, vector<28x28x128xbf16>
    %1 = arith.extf %0 : vector<28x28x128xbf16> to vector<28x28x128xf32>
    %2 = vector.extract_strided_slice %1 {offsets = [0, 0, 0], sizes = [26, 26, 128], strides = [1, 1, 1]} : vector<28x28x128xf32> to vector<26x26x128xf32>
    %c0_2 = arith.constant 0 : index
    %c0_3 = arith.constant 0 : index
    %3 = memref.load %arg2[%c0_2, %c0_3] : memref<3x3xf32, #tpu.memory_space<smem>>
    %4 = vector.broadcast %3 : f32 to vector<26x26x128xf32>
    %5 = arith.mulf %2, %4 : vector<26x26x128xf32>
    %6 = vector.extract_strided_slice %1 {offsets = [0, 1, 0], sizes = [26, 26, 128], strides = [1, 1, 1]} : vector<28x28x128xf32> to vector<26x26x128xf32>
    %c0_4 = arith.constant 0 : index
    %c1 = arith.constant 1 : index
    %7 = memref.load %arg2[%c0_4, %c1] : memref<3x3xf32, #tpu.memory_space<smem>>
    %8 = vector.broadcast %7 : f32 to vector<26x26x128xf32>
    %9 = arith.mulf %6, %8 : vector<26x26x128xf32>
    %10 = arith.addf %5, %9 : vector<26x26x128xf32>
    %11 = vector.extract_strided_slice %1 {offsets = [0, 2, 0], sizes = [26, 26, 128], strides = [1, 1, 1]} : vector<28x28x128xf32> to vector<26x26x128xf32>
    %c0_5 = arith.constant 0 : index
    %c2 = arith.constant 2 : index
    %12 = memref.load %arg2[%c0_5, %c2] : memref<3x3xf32, #tpu.memory_space<smem>>
    %13 = vector.broadcast %12 : f32 to vector<26x26x128xf32>
    %14 = arith.mulf %11, %13 : vector<26x26x128xf32>
    %15 = arith.addf %10, %14 : vector<26x26x128xf32>
    %16 = vector.extract_strided_slice %1 {offsets = [1, 0, 0], sizes = [26, 26, 128], strides = [1, 1, 1]} : vector<28x28x128xf32> to vector<26x26x128xf32>
    %c1_6 = arith.constant 1 : index
    %c0_7 = arith.constant 0 : index
    %17 = memref.load %arg2[%c1_6, %c0_7] : memref<3x3xf32, #tpu.memory_space<smem>>
    %18 = vector.broadcast %17 : f32 to vector<26x26x128xf32>
    %19 = arith.mulf %16, %18 : vector<26x26x128xf32>
    %20 = arith.addf %15, %19 : vector<26x26x128xf32>
    %21 = vector.extract_strided_slice %1 {offsets = [1, 1, 0], sizes = [26, 26, 128], strides = [1, 1, 1]} : vector<28x28x128xf32> to vector<26x26x128xf32>
    %c1_8 = arith.constant 1 : index
    %c1_9 = arith.constant 1 : index
    %22 = memref.load %arg2[%c1_8, %c1_9] : memref<3x3xf32, #tpu.memory_space<smem>>
    %23 = vector.broadcast %22 : f32 to vector<26x26x128xf32>
    %24 = arith.mulf %21, %23 : vector<26x26x128xf32>
    %25 = arith.addf %20, %24 : vector<26x26x128xf32>
    %26 = vector.extract_strided_slice %1 {offsets = [1, 2, 0], sizes = [26, 26, 128], strides = [1, 1, 1]} : vector<28x28x128xf32> to vector<26x26x128xf32>
    %c1_10 = arith.constant 1 : index
    %c2_11 = arith.constant 2 : index
    %27 = memref.load %arg2[%c1_10, %c2_11] : memref<3x3xf32, #tpu.memory_space<smem>>
    %28 = vector.broadcast %27 : f32 to vector<26x26x128xf32>
    %29 = arith.mulf %26, %28 : vector<26x26x128xf32>
    %30 = arith.addf %25, %29 : vector<26x26x128xf32>
    %31 = vector.extract_strided_slice %1 {offsets = [2, 0, 0], sizes = [26, 26, 128], strides = [1, 1, 1]} : vector<28x28x128xf32> to vector<26x26x128xf32>
    %c2_12 = arith.constant 2 : index
    %c0_13 = arith.constant 0 : index
    %32 = memref.load %arg2[%c2_12, %c0_13] : memref<3x3xf32, #tpu.memory_space<smem>>
    %33 = vector.broadcast %32 : f32 to vector<26x26x128xf32>
    %34 = arith.mulf %31, %33 : vector<26x26x128xf32>
    %35 = arith.addf %30, %34 : vector<26x26x128xf32>
    %36 = vector.extract_strided_slice %1 {offsets = [2, 1, 0], sizes = [26, 26, 128], strides = [1, 1, 1]} : vector<28x28x128xf32> to vector<26x26x128xf32>
    %c2_14 = arith.constant 2 : index
    %c1_15 = arith.constant 1 : index
    %37 = memref.load %arg2[%c2_14, %c1_15] : memref<3x3xf32, #tpu.memory_space<smem>>
    %38 = vector.broadcast %37 : f32 to vector<26x26x128xf32>
    %39 = arith.mulf %36, %38 : vector<26x26x128xf32>
    %40 = arith.addf %35, %39 : vector<26x26x128xf32>
    %41 = vector.extract_strided_slice %1 {offsets = [2, 2, 0], sizes = [26, 26, 128], strides = [1, 1, 1]} : vector<28x28x128xf32> to vector<26x26x128xf32>
    %c2_16 = arith.constant 2 : index
    %c2_17 = arith.constant 2 : index
    %42 = memref.load %arg2[%c2_16, %c2_17] : memref<3x3xf32, #tpu.memory_space<smem>>
    %43 = vector.broadcast %42 : f32 to vector<26x26x128xf32>
    %44 = arith.mulf %41, %43 : vector<26x26x128xf32>
    %45 = arith.addf %40, %44 : vector<26x26x128xf32>
    %c0_18 = arith.constant 0 : index
    %46 = memref.load %arg3[%c0_18] : memref<1xf32, #tpu.memory_space<smem>>
    %47 = vector.broadcast %46 : f32 to vector<26x26x128xf32>
    %48 = arith.addf %45, %47 : vector<26x26x128xf32>
    %cst = arith.constant 0.000000e+00 : f32
    %49 = vector.broadcast %cst : f32 to vector<26x26x128xf32>
    %50 = arith.maximumf %48, %49 : vector<26x26x128xf32>
    %cst_19 = arith.constant 0.000000e+00 : bf16
    %51 = vector.broadcast %cst_19 : bf16 to vector<416x128xbf16>
    %c0_20 = arith.constant 0 : index
    %c0_21 = arith.constant 0 : index
    %52 = vector.load %arg7[%c0_20, %c0_21] : memref<416x128xbf16, #tpu.memory_space<vmem>>, vector<416x128xbf16>
    tpu.vector_store %arg7[%c0_20, %c0_21], %51 {strides = array<i32>} : memref<416x128xbf16, #tpu.memory_space<vmem>>, vector<416x128xbf16>,
    %53 = vector.extract_strided_slice %50 {offsets = [0, 0, 0], sizes = [1, 26, 128], strides = [1, 1, 1]} : vector<26x26x128xf32> to vector<1x26x128xf32>
    %54 = vector.shape_cast %53 : vector<1x26x128xf32> to vector<26x128xf32>
    %55 = vector.extract_strided_slice %50 {offsets = [1, 0, 0], sizes = [1, 26, 128], strides = [1, 1, 1]} : vector<26x26x128xf32> to vector<1x26x128xf32>
    %56 = vector.shape_cast %55 : vector<1x26x128xf32> to vector<26x128xf32>
    %57 = arith.maximumf %54, %56 : vector<26x128xf32>
    %58 = vector.extract_strided_slice %57 {offsets = [0, 0], sizes = [25, 128], strides = [1, 1]} : vector<26x128xf32> to vector<25x128xf32>
    %59 = vector.extract_strided_slice %57 {offsets = [1, 0], sizes = [25, 128], strides = [1, 1]} : vector<26x128xf32> to vector<25x128xf32>
    %60 = arith.maximumf %58, %59 : vector<25x128xf32>
    %61 = arith.truncf %60 : vector<25x128xf32> to vector<25x128xbf16>
    %c0_22 = arith.constant 0 : index
    %c0_23 = arith.constant 0 : index
    %62 = vector.load %arg7[%c0_22, %c0_23] : memref<416x128xbf16, #tpu.memory_space<vmem>>, vector<25x128xbf16>
    tpu.vector_store %arg7[%c0_22, %c0_23], %61 {strides = array<i32>} : memref<416x128xbf16, #tpu.memory_space<vmem>>, vector<25x128xbf16>,
    %63 = vector.extract_strided_slice %50 {offsets = [2, 0, 0], sizes = [1, 26, 128], strides = [1, 1, 1]} : vector<26x26x128xf32> to vector<1x26x128xf32>
    %64 = vector.shape_cast %63 : vector<1x26x128xf32> to vector<26x128xf32>
    %65 = vector.extract_strided_slice %50 {offsets = [3, 0, 0], sizes = [1, 26, 128], strides = [1, 1, 1]} : vector<26x26x128xf32> to vector<1x26x128xf32>
    %66 = vector.shape_cast %65 : vector<1x26x128xf32> to vector<26x128xf32>
    %67 = arith.maximumf %64, %66 : vector<26x128xf32>
    %68 = vector.extract_strided_slice %67 {offsets = [0, 0], sizes = [25, 128], strides = [1, 1]} : vector<26x128xf32> to vector<25x128xf32>
    %69 = vector.extract_strided_slice %67 {offsets = [1, 0], sizes = [25, 128], strides = [1, 1]} : vector<26x128xf32> to vector<25x128xf32>
    %70 = arith.maximumf %68, %69 : vector<25x128xf32>
    %71 = arith.truncf %70 : vector<25x128xf32> to vector<25x128xbf16>
    %c32 = arith.constant 32 : index
    %c0_24 = arith.constant 0 : index
    %72 = vector.load %arg7[%c32, %c0_24] : memref<416x128xbf16, #tpu.memory_space<vmem>>, vector<25x128xbf16>
    tpu.vector_store %arg7[%c32, %c0_24], %71 {strides = array<i32>} : memref<416x128xbf16, #tpu.memory_space<vmem>>, vector<25x128xbf16>,
    %73 = vector.extract_strided_slice %50 {offsets = [4, 0, 0], sizes = [1, 26, 128], strides = [1, 1, 1]} : vector<26x26x128xf32> to vector<1x26x128xf32>
    %74 = vector.shape_cast %73 : vector<1x26x128xf32> to vector<26x128xf32>
    %75 = vector.extract_strided_slice %50 {offsets = [5, 0, 0], sizes = [1, 26, 128], strides = [1, 1, 1]} : vector<26x26x128xf32> to vector<1x26x128xf32>
    %76 = vector.shape_cast %75 : vector<1x26x128xf32> to vector<26x128xf32>
    %77 = arith.maximumf %74, %76 : vector<26x128xf32>
    %78 = vector.extract_strided_slice %77 {offsets = [0, 0], sizes = [25, 128], strides = [1, 1]} : vector<26x128xf32> to vector<25x128xf32>
    %79 = vector.extract_strided_slice %77 {offsets = [1, 0], sizes = [25, 128], strides = [1, 1]} : vector<26x128xf32> to vector<25x128xf32>
    %80 = arith.maximumf %78, %79 : vector<25x128xf32>
    %81 = arith.truncf %80 : vector<25x128xf32> to vector<25x128xbf16>
    %c64 = arith.constant 64 : index
    %c0_25 = arith.constant 0 : index
    %82 = vector.load %arg7[%c64, %c0_25] : memref<416x128xbf16, #tpu.memory_space<vmem>>, vector<25x128xbf16>
    tpu.vector_store %arg7[%c64, %c0_25], %81 {strides = array<i32>} : memref<416x128xbf16, #tpu.memory_space<vmem>>, vector<25x128xbf16>,
    %83 = vector.extract_strided_slice %50 {offsets = [6, 0, 0], sizes = [1, 26, 128], strides = [1, 1, 1]} : vector<26x26x128xf32> to vector<1x26x128xf32>
    %84 = vector.shape_cast %83 : vector<1x26x128xf32> to vector<26x128xf32>
    %85 = vector.extract_strided_slice %50 {offsets = [7, 0, 0], sizes = [1, 26, 128], strides = [1, 1, 1]} : vector<26x26x128xf32> to vector<1x26x128xf32>
    %86 = vector.shape_cast %85 : vector<1x26x128xf32> to vector<26x128xf32>
    %87 = arith.maximumf %84, %86 : vector<26x128xf32>
    %88 = vector.extract_strided_slice %87 {offsets = [0, 0], sizes = [25, 128], strides = [1, 1]} : vector<26x128xf32> to vector<25x128xf32>
    %89 = vector.extract_strided_slice %87 {offsets = [1, 0], sizes = [25, 128], strides = [1, 1]} : vector<26x128xf32> to vector<25x128xf32>
    %90 = arith.maximumf %88, %89 : vector<25x128xf32>
    %91 = arith.truncf %90 : vector<25x128xf32> to vector<25x128xbf16>
    %c96 = arith.constant 96 : index
    %c0_26 = arith.constant 0 : index
    %92 = vector.load %arg7[%c96, %c0_26] : memref<416x128xbf16, #tpu.memory_space<vmem>>, vector<25x128xbf16>
    tpu.vector_store %arg7[%c96, %c0_26], %91 {strides = array<i32>} : memref<416x128xbf16, #tpu.memory_space<vmem>>, vector<25x128xbf16>,
    %93 = vector.extract_strided_slice %50 {offsets = [8, 0, 0], sizes = [1, 26, 128], strides = [1, 1, 1]} : vector<26x26x128xf32> to vector<1x26x128xf32>
    %94 = vector.shape_cast %93 : vector<1x26x128xf32> to vector<26x128xf32>
    %95 = vector.extract_strided_slice %50 {offsets = [9, 0, 0], sizes = [1, 26, 128], strides = [1, 1, 1]} : vector<26x26x128xf32> to vector<1x26x128xf32>
    %96 = vector.shape_cast %95 : vector<1x26x128xf32> to vector<26x128xf32>
    %97 = arith.maximumf %94, %96 : vector<26x128xf32>
    %98 = vector.extract_strided_slice %97 {offsets = [0, 0], sizes = [25, 128], strides = [1, 1]} : vector<26x128xf32> to vector<25x128xf32>
    %99 = vector.extract_strided_slice %97 {offsets = [1, 0], sizes = [25, 128], strides = [1, 1]} : vector<26x128xf32> to vector<25x128xf32>
    %100 = arith.maximumf %98, %99 : vector<25x128xf32>
    %101 = arith.truncf %100 : vector<25x128xf32> to vector<25x128xbf16>
    %c128 = arith.constant 128 : index
    %c0_27 = arith.constant 0 : index
    %102 = vector.load %arg7[%c128, %c0_27] : memref<416x128xbf16, #tpu.memory_space<vmem>>, vector<25x128xbf16>
    tpu.vector_store %arg7[%c128, %c0_27], %101 {strides = array<i32>} : memref<416x128xbf16, #tpu.memory_space<vmem>>, vector<25x128xbf16>,
    %103 = vector.extract_strided_slice %50 {offsets = [10, 0, 0], sizes = [1, 26, 128], strides = [1, 1, 1]} : vector<26x26x128xf32> to vector<1x26x128xf32>
    %104 = vector.shape_cast %103 : vector<1x26x128xf32> to vector<26x128xf32>
    %105 = vector.extract_strided_slice %50 {offsets = [11, 0, 0], sizes = [1, 26, 128], strides = [1, 1, 1]} : vector<26x26x128xf32> to vector<1x26x128xf32>
    %106 = vector.shape_cast %105 : vector<1x26x128xf32> to vector<26x128xf32>
    %107 = arith.maximumf %104, %106 : vector<26x128xf32>
    %108 = vector.extract_strided_slice %107 {offsets = [0, 0], sizes = [25, 128], strides = [1, 1]} : vector<26x128xf32> to vector<25x128xf32>
    %109 = vector.extract_strided_slice %107 {offsets = [1, 0], sizes = [25, 128], strides = [1, 1]} : vector<26x128xf32> to vector<25x128xf32>
    %110 = arith.maximumf %108, %109 : vector<25x128xf32>
    %111 = arith.truncf %110 : vector<25x128xf32> to vector<25x128xbf16>
    %c160 = arith.constant 160 : index
    %c0_28 = arith.constant 0 : index
    %112 = vector.load %arg7[%c160, %c0_28] : memref<416x128xbf16, #tpu.memory_space<vmem>>, vector<25x128xbf16>
    tpu.vector_store %arg7[%c160, %c0_28], %111 {strides = array<i32>} : memref<416x128xbf16, #tpu.memory_space<vmem>>, vector<25x128xbf16>,
    %113 = vector.extract_strided_slice %50 {offsets = [12, 0, 0], sizes = [1, 26, 128], strides = [1, 1, 1]} : vector<26x26x128xf32> to vector<1x26x128xf32>
    %114 = vector.shape_cast %113 : vector<1x26x128xf32> to vector<26x128xf32>
    %115 = vector.extract_strided_slice %50 {offsets = [13, 0, 0], sizes = [1, 26, 128], strides = [1, 1, 1]} : vector<26x26x128xf32> to vector<1x26x128xf32>
    %116 = vector.shape_cast %115 : vector<1x26x128xf32> to vector<26x128xf32>
    %117 = arith.maximumf %114, %116 : vector<26x128xf32>
    %118 = vector.extract_strided_slice %117 {offsets = [0, 0], sizes = [25, 128], strides = [1, 1]} : vector<26x128xf32> to vector<25x128xf32>
    %119 = vector.extract_strided_slice %117 {offsets = [1, 0], sizes = [25, 128], strides = [1, 1]} : vector<26x128xf32> to vector<25x128xf32>
    %120 = arith.maximumf %118, %119 : vector<25x128xf32>
    %121 = arith.truncf %120 : vector<25x128xf32> to vector<25x128xbf16>
    %c192 = arith.constant 192 : index
    %c0_29 = arith.constant 0 : index
    %122 = vector.load %arg7[%c192, %c0_29] : memref<416x128xbf16, #tpu.memory_space<vmem>>, vector<25x128xbf16>
    tpu.vector_store %arg7[%c192, %c0_29], %121 {strides = array<i32>} : memref<416x128xbf16, #tpu.memory_space<vmem>>, vector<25x128xbf16>,
    %123 = vector.extract_strided_slice %50 {offsets = [14, 0, 0], sizes = [1, 26, 128], strides = [1, 1, 1]} : vector<26x26x128xf32> to vector<1x26x128xf32>
    %124 = vector.shape_cast %123 : vector<1x26x128xf32> to vector<26x128xf32>
    %125 = vector.extract_strided_slice %50 {offsets = [15, 0, 0], sizes = [1, 26, 128], strides = [1, 1, 1]} : vector<26x26x128xf32> to vector<1x26x128xf32>
    %126 = vector.shape_cast %125 : vector<1x26x128xf32> to vector<26x128xf32>
    %127 = arith.maximumf %124, %126 : vector<26x128xf32>
    %128 = vector.extract_strided_slice %127 {offsets = [0, 0], sizes = [25, 128], strides = [1, 1]} : vector<26x128xf32> to vector<25x128xf32>
    %129 = vector.extract_strided_slice %127 {offsets = [1, 0], sizes = [25, 128], strides = [1, 1]} : vector<26x128xf32> to vector<25x128xf32>
    %130 = arith.maximumf %128, %129 : vector<25x128xf32>
    %131 = arith.truncf %130 : vector<25x128xf32> to vector<25x128xbf16>
    %c224 = arith.constant 224 : index
    %c0_30 = arith.constant 0 : index
    %132 = vector.load %arg7[%c224, %c0_30] : memref<416x128xbf16, #tpu.memory_space<vmem>>, vector<25x128xbf16>
    tpu.vector_store %arg7[%c224, %c0_30], %131 {strides = array<i32>} : memref<416x128xbf16, #tpu.memory_space<vmem>>, vector<25x128xbf16>,
    %133 = vector.extract_strided_slice %50 {offsets = [16, 0, 0], sizes = [1, 26, 128], strides = [1, 1, 1]} : vector<26x26x128xf32> to vector<1x26x128xf32>
    %134 = vector.shape_cast %133 : vector<1x26x128xf32> to vector<26x128xf32>
    %135 = vector.extract_strided_slice %50 {offsets = [17, 0, 0], sizes = [1, 26, 128], strides = [1, 1, 1]} : vector<26x26x128xf32> to vector<1x26x128xf32>
    %136 = vector.shape_cast %135 : vector<1x26x128xf32> to vector<26x128xf32>
    %137 = arith.maximumf %134, %136 : vector<26x128xf32>
    %138 = vector.extract_strided_slice %137 {offsets = [0, 0], sizes = [25, 128], strides = [1, 1]} : vector<26x128xf32> to vector<25x128xf32>
    %139 = vector.extract_strided_slice %137 {offsets = [1, 0], sizes = [25, 128], strides = [1, 1]} : vector<26x128xf32> to vector<25x128xf32>
    %140 = arith.maximumf %138, %139 : vector<25x128xf32>
    %141 = arith.truncf %140 : vector<25x128xf32> to vector<25x128xbf16>
    %c256 = arith.constant 256 : index
    %c0_31 = arith.constant 0 : index
    %142 = vector.load %arg7[%c256, %c0_31] : memref<416x128xbf16, #tpu.memory_space<vmem>>, vector<25x128xbf16>
    tpu.vector_store %arg7[%c256, %c0_31], %141 {strides = array<i32>} : memref<416x128xbf16, #tpu.memory_space<vmem>>, vector<25x128xbf16>,
    %143 = vector.extract_strided_slice %50 {offsets = [18, 0, 0], sizes = [1, 26, 128], strides = [1, 1, 1]} : vector<26x26x128xf32> to vector<1x26x128xf32>
    %144 = vector.shape_cast %143 : vector<1x26x128xf32> to vector<26x128xf32>
    %145 = vector.extract_strided_slice %50 {offsets = [19, 0, 0], sizes = [1, 26, 128], strides = [1, 1, 1]} : vector<26x26x128xf32> to vector<1x26x128xf32>
    %146 = vector.shape_cast %145 : vector<1x26x128xf32> to vector<26x128xf32>
    %147 = arith.maximumf %144, %146 : vector<26x128xf32>
    %148 = vector.extract_strided_slice %147 {offsets = [0, 0], sizes = [25, 128], strides = [1, 1]} : vector<26x128xf32> to vector<25x128xf32>
    %149 = vector.extract_strided_slice %147 {offsets = [1, 0], sizes = [25, 128], strides = [1, 1]} : vector<26x128xf32> to vector<25x128xf32>
    %150 = arith.maximumf %148, %149 : vector<25x128xf32>
    %151 = arith.truncf %150 : vector<25x128xf32> to vector<25x128xbf16>
    %c288 = arith.constant 288 : index
    %c0_32 = arith.constant 0 : index
    %152 = vector.load %arg7[%c288, %c0_32] : memref<416x128xbf16, #tpu.memory_space<vmem>>, vector<25x128xbf16>
    tpu.vector_store %arg7[%c288, %c0_32], %151 {strides = array<i32>} : memref<416x128xbf16, #tpu.memory_space<vmem>>, vector<25x128xbf16>,
    %153 = vector.extract_strided_slice %50 {offsets = [20, 0, 0], sizes = [1, 26, 128], strides = [1, 1, 1]} : vector<26x26x128xf32> to vector<1x26x128xf32>
    %154 = vector.shape_cast %153 : vector<1x26x128xf32> to vector<26x128xf32>
    %155 = vector.extract_strided_slice %50 {offsets = [21, 0, 0], sizes = [1, 26, 128], strides = [1, 1, 1]} : vector<26x26x128xf32> to vector<1x26x128xf32>
    %156 = vector.shape_cast %155 : vector<1x26x128xf32> to vector<26x128xf32>
    %157 = arith.maximumf %154, %156 : vector<26x128xf32>
    %158 = vector.extract_strided_slice %157 {offsets = [0, 0], sizes = [25, 128], strides = [1, 1]} : vector<26x128xf32> to vector<25x128xf32>
    %159 = vector.extract_strided_slice %157 {offsets = [1, 0], sizes = [25, 128], strides = [1, 1]} : vector<26x128xf32> to vector<25x128xf32>
    %160 = arith.maximumf %158, %159 : vector<25x128xf32>
    %161 = arith.truncf %160 : vector<25x128xf32> to vector<25x128xbf16>
    %c320 = arith.constant 320 : index
    %c0_33 = arith.constant 0 : index
    %162 = vector.load %arg7[%c320, %c0_33] : memref<416x128xbf16, #tpu.memory_space<vmem>>, vector<25x128xbf16>
    tpu.vector_store %arg7[%c320, %c0_33], %161 {strides = array<i32>} : memref<416x128xbf16, #tpu.memory_space<vmem>>, vector<25x128xbf16>,
    %163 = vector.extract_strided_slice %50 {offsets = [22, 0, 0], sizes = [1, 26, 128], strides = [1, 1, 1]} : vector<26x26x128xf32> to vector<1x26x128xf32>
    %164 = vector.shape_cast %163 : vector<1x26x128xf32> to vector<26x128xf32>
    %165 = vector.extract_strided_slice %50 {offsets = [23, 0, 0], sizes = [1, 26, 128], strides = [1, 1, 1]} : vector<26x26x128xf32> to vector<1x26x128xf32>
    %166 = vector.shape_cast %165 : vector<1x26x128xf32> to vector<26x128xf32>
    %167 = arith.maximumf %164, %166 : vector<26x128xf32>
    %168 = vector.extract_strided_slice %167 {offsets = [0, 0], sizes = [25, 128], strides = [1, 1]} : vector<26x128xf32> to vector<25x128xf32>
    %169 = vector.extract_strided_slice %167 {offsets = [1, 0], sizes = [25, 128], strides = [1, 1]} : vector<26x128xf32> to vector<25x128xf32>
    %170 = arith.maximumf %168, %169 : vector<25x128xf32>
    %171 = arith.truncf %170 : vector<25x128xf32> to vector<25x128xbf16>
    %c352 = arith.constant 352 : index
    %c0_34 = arith.constant 0 : index
    %172 = vector.load %arg7[%c352, %c0_34] : memref<416x128xbf16, #tpu.memory_space<vmem>>, vector<25x128xbf16>
    tpu.vector_store %arg7[%c352, %c0_34], %171 {strides = array<i32>} : memref<416x128xbf16, #tpu.memory_space<vmem>>, vector<25x128xbf16>,
    %173 = vector.extract_strided_slice %50 {offsets = [24, 0, 0], sizes = [1, 26, 128], strides = [1, 1, 1]} : vector<26x26x128xf32> to vector<1x26x128xf32>
    %174 = vector.shape_cast %173 : vector<1x26x128xf32> to vector<26x128xf32>
    %175 = vector.extract_strided_slice %50 {offsets = [25, 0, 0], sizes = [1, 26, 128], strides = [1, 1, 1]} : vector<26x26x128xf32> to vector<1x26x128xf32>
    %176 = vector.shape_cast %175 : vector<1x26x128xf32> to vector<26x128xf32>
    %177 = arith.maximumf %174, %176 : vector<26x128xf32>
    %178 = vector.extract_strided_slice %177 {offsets = [0, 0], sizes = [25, 128], strides = [1, 1]} : vector<26x128xf32> to vector<25x128xf32>
    %179 = vector.extract_strided_slice %177 {offsets = [1, 0], sizes = [25, 128], strides = [1, 1]} : vector<26x128xf32> to vector<25x128xf32>
    %180 = arith.maximumf %178, %179 : vector<25x128xf32>
    %181 = arith.truncf %180 : vector<25x128xf32> to vector<25x128xbf16>
    %c384 = arith.constant 384 : index
    %c0_35 = arith.constant 0 : index
    %182 = vector.load %arg7[%c384, %c0_35] : memref<416x128xbf16, #tpu.memory_space<vmem>>, vector<25x128xbf16>
    tpu.vector_store %arg7[%c384, %c0_35], %181 {strides = array<i32>} : memref<416x128xbf16, #tpu.memory_space<vmem>>, vector<25x128xbf16>,
    %c0_36 = arith.constant 0 : index
    %c0_37 = arith.constant 0 : index
    %183 = vector.load %arg4[%c0_36, %c0_37] : memref<10x416xbf16, #tpu.memory_space<vmem>>, vector<10x416xbf16>
    %c0_38 = arith.constant 0 : index
    %c0_39 = arith.constant 0 : index
    %184 = vector.load %arg7[%c0_38, %c0_39] : memref<416x128xbf16, #tpu.memory_space<vmem>>, vector<416x128xbf16>
    %cst_40 = arith.constant dense<0.000000e+00> : vector<10x128xf32>
    %185 = tpu.matmul %183, %184, %cst_40 {dimension_numbers = #tpu.dot_dimension_numbers<[1], [0], [0], [1], [0, 0, 1, 1], [], []>} : vector<10x416xbf16>, vector<416x128xbf16>, vector<10x128xf32> -> vector<10x128xf32>
    %c0_41 = arith.constant 0 : index
    %c0_42 = arith.constant 0 : index
    %186 = vector.load %arg5[%c0_41, %c0_42] : memref<10x1xf32, #tpu.memory_space<vmem>>, vector<10x1xf32>
    %187 = vector.broadcast %186 : vector<10x1xf32> to vector<10x128xf32>
    %188 = arith.addf %185, %187 : vector<10x128xf32>
    %c0_43 = arith.constant 0 : index
    %c0_44 = arith.constant 0 : index
    %189 = vector.load %arg6[%c0_43, %c0_44] : memref<10x128xf32, #tpu.memory_space<vmem>>, vector<10x128xf32>
    tpu.vector_store %arg6[%c0_43, %c0_44], %188 {strides = array<i32>} : memref<10x128xf32, #tpu.memory_space<vmem>>, vector<10x128xf32>,
    return
  }
  func.func @transform_0(%arg0: i32) -> (i32, i32, i32) {
    %c0_i32 = arith.constant 0 : i32
    %c0_i32_0 = arith.constant 0 : i32
    %c0_i32_1 = arith.constant 0 : i32
    return %c0_i32, %c0_i32_0, %arg0 : i32, i32, i32
  }
  func.func @transform_1(%arg0: i32) -> (i32, i32) {
    %c0_i32 = arith.constant 0 : i32
    %c0_i32_0 = arith.constant 0 : i32
    %c0_i32_1 = arith.constant 0 : i32
    return %c0_i32, %c0_i32_0 : i32, i32
  }
  func.func @transform_2(%arg0: i32) -> i32 {
    %c0_i32 = arith.constant 0 : i32
    %c0_i32_0 = arith.constant 0 : i32
    return %c0_i32 : i32
  }
  func.func @transform_3(%arg0: i32) -> (i32, i32) {
    %c0_i32 = arith.constant 0 : i32
    %c0_i32_0 = arith.constant 0 : i32
    %c0_i32_1 = arith.constant 0 : i32
    return %c0_i32, %c0_i32_0 : i32, i32
  }
  func.func @transform_4(%arg0: i32) -> (i32, i32) {
    %c0_i32 = arith.constant 0 : i32
    %c0_i32_0 = arith.constant 0 : i32
    %c0_i32_1 = arith.constant 0 : i32
    return %c0_i32, %c0_i32_0 : i32, i32
  }
  func.func @transform_5(%arg0: i32) -> (i32, i32) {
    %c0_i32 = arith.constant 0 : i32
    %c0_i32_0 = arith.constant 0 : i32
    return %c0_i32, %arg0 : i32, i32
  }
}

</mosaic_0001>

<llo_original>
// kernel: tpu_custom_call.1
$region0: #{tpu_custom_call.1}
  #allocation0 [shape = 'u32[]', space=smem, size = 0x4, offset = 0x4, fixed_abs, tag = 'smem constant byte address 0x4 - core index']
  #allocation1 [shape = 'u32[144,128]{1,0:T(1,128)}', space=vmem, size = 0x12000, scoped, tag = 'internal scratch']
  #allocation2 [shape = 'bf16[416,128]{1,0:T(16,128)(2,1)}', space=vmem, size = 0x1a000, scoped, tag = 'scratch operand']
  #allocation3 [shape = 'f32[1]{0:T(128)S(6)}', space=smem, size = 0x200, scoped, tag = 'scoped memory for tpu_custom_call.1']
  %s0 = inlined_call_operand.hbm [shape: bf16[28,28,128], index: 0, kind: input, shape index: {}]
  %s1 = inlined_call_operand.vmem [shape: f32[3,3], index: 1, kind: input, shape index: {}]
  %s2 = inlined_call_operand.<no memory space> [shape: f32[1], index: 2, kind: input, shape index: {}]
  %s3 = inlined_call_operand.hbm [shape: bf16[10,416], index: 3, kind: input, shape index: {}]
  %s4 = inlined_call_operand.vmem [shape: f32[10,1], index: 4, kind: input, shape index: {}]
  %s5 = inlined_call_operand.hbm [shape: f32[10,128], index: 5, kind: output, shape index: {}]
  %s6 = sld [smem:[#allocation0]]
  $region42: #{tpu_custom_call.1} parent=0
    _
  %s8 = ssub.s32 1, %s6
  %s9 = scalar_select 0, %s8, %s6
  %10 = sst [smem:[#allocation3]] %s2
  $region1: #{tpu_custom_call.1} parent=0
    #allocation4 [shape = 'u8[229376]{0}', space=vmem, size = 0x38000, scoped, tag = 'input window, operand 0, single buffered']
    #allocation5 [shape = 's32[1]{0}', space=sflag, size = 0x4, scoped, tag = 'scoped memory for tpu_custom_call.1']
    #allocation6 [shape = 's32[1]{0}', space=sflag, size = 0x4, scoped, tag = 'scoped memory for tpu_custom_call.1']
    #allocation7 [shape = 's32[1]{0}', space=sflag, size = 0x4, scoped, tag = 'scoped memory for tpu_custom_call.1']
    #allocation8 [shape = 'u8[2048]{0}', space=smem, size = 0x800, scoped, tag = 'input window, operand 1, single buffered']
    #allocation9 [shape = 'u8[16384]{0}', space=vmem, size = 0x4000, scoped, tag = 'input window, operand 3, single buffered']
    #allocation10 [shape = 's32[1]{0}', space=sflag, size = 0x4, scoped, tag = 'scoped memory for tpu_custom_call.1']
    #allocation11 [shape = 'u8[8192]{0}', space=vmem, size = 0x2000, scoped, tag = 'output window, operand 0, single buffered']
    %11 = vsyncpa [#allocation5], 0
    %12 = vsyncpa [#allocation7], 0
    %13 = vsyncpa [#allocation10], 0
    %14 = vsyncpa [#allocation6], 0
    // Predicated region
    $region2: #{tpu_custom_call.1} parent=1 // pred_check
      _
    $region3: #{tpu_custom_call.1} parent=1 // pred_check_branch
      %16 = sbr.rel (0) target = $region5
    $region4: #{tpu_custom_call.1} parent=1 // pred_region
      %s18 = ssub.s32 7168, 7168
      %19 = vsyncadd [#allocation5], %s18
      %s20 = sshll.u32 [#allocation4], 4
      %s21 = int_to_ptr.vmem [resolvable:$true] %s20
      %26 = dma.hbm_to_vmem [thread:$0]  %s0, 7168, %s21, [#allocation5], 64, 64, 4
    $region5: #{tpu_custom_call.1} parent=1 // pred_fallthru
      _
    // Predicated region
    $region6: #{tpu_custom_call.1} parent=1 // pred_check
      _
    $region7: #{tpu_custom_call.1} parent=1 // pred_check_branch
      %28 = sbr.rel (0) target = $region9
    $region8: #{tpu_custom_call.1} parent=1 // pred_region
      %s30 = ssub.s32 64, 64
      %31 = vsyncadd [#allocation7], %s30
      %s33 = sshll.u32 %s1, 4
      %s34 = int_to_ptr.vmem [resolvable:$true] %s33
      %36 = dma.vmem_to_smem %s34, 64, [#allocation8], [#allocation7]
    $region9: #{tpu_custom_call.1} parent=1 // pred_fallthru
      _
    // Predicated region
    $region10: #{tpu_custom_call.1} parent=1 // pred_check
      _
    $region11: #{tpu_custom_call.1} parent=1 // pred_check_branch
      %38 = sbr.rel (0) target = $region13
    $region12: #{tpu_custom_call.1} parent=1 // pred_region
      _
    $region13: #{tpu_custom_call.1} parent=1 // pred_fallthru
      _
    // Predicated region
    $region14: #{tpu_custom_call.1} parent=1 // pred_check
      _
    $region15: #{tpu_custom_call.1} parent=1 // pred_check_branch
      %40 = sbr.rel (0) target = $region17
    $region16: #{tpu_custom_call.1} parent=1 // pred_region
      %s42 = ssub.s32 512, 512
      %43 = vsyncadd [#allocation10], %s42
      %s44 = sshll.u32 [#allocation9], 4
      %s45 = int_to_ptr.vmem [resolvable:$true] %s44
      %50 = dma.hbm_to_vmem [thread:$0]  %s3, 512, %s45, [#allocation10], 256, 256, 16
    $region17: #{tpu_custom_call.1} parent=1 // pred_fallthru
      _
    // Predicated region
    $region18: #{tpu_custom_call.1} parent=1 // pred_check
      _
    $region19: #{tpu_custom_call.1} parent=1 // pred_check_branch
      %52 = sbr.rel (0) target = $region21
    $region20: #{tpu_custom_call.1} parent=1 // pred_region
      _
    $region21: #{tpu_custom_call.1} parent=1 // pred_fallthru
      _
    // Predicated region
    $region22: #{tpu_custom_call.1} parent=1 // pred_check
      _
    $region23: #{tpu_custom_call.1} parent=1 // pred_check_branch
      %54 = sbr.rel (0) target = $region25
    $region24: #{tpu_custom_call.1} parent=1 // pred_region
      %55 = dma.done [#allocation5], 7168
    $region25: #{tpu_custom_call.1} parent=1 // pred_fallthru
      _
    // Predicated region
    $region26: #{tpu_custom_call.1} parent=1 // pred_check
      _
    $region27: #{tpu_custom_call.1} parent=1 // pred_check_branch
      %57 = sbr.rel (0) target = $region29
    $region28: #{tpu_custom_call.1} parent=1 // pred_region
      %58 = dma.done [#allocation7], 64
    $region29: #{tpu_custom_call.1} parent=1 // pred_fallthru
      _
    // Predicated region
    $region30: #{tpu_custom_call.1} parent=1 // pred_check
      _
    $region31: #{tpu_custom_call.1} parent=1 // pred_check_branch
      %60 = sbr.rel (0) target = $region33
    $region32: #{tpu_custom_call.1} parent=1 // pred_region
      %61 = dma.done [#allocation10], 512
    $region33: #{tpu_custom_call.1} parent=1 // pred_fallthru
      _
    %62 = sfence
    %v64 = vld [vmem:[#allocation4] sm:$0xf]
    %v65 = vld [vmem:[#allocation4 + $0x4] sm:$0xf]
    %v66 = vld [vmem:[#allocation4 + $0x8] sm:$0xf]
    %v67 = vld [vmem:[#allocation4 + $0xc] sm:$0x3]
    %v68 = vld [vmem:[#allocation4 + $0x10] sm:$0xf]
    %v69 = vld [vmem:[#allocation4 + $0x14] sm:$0xf]
    %v70 = vld [vmem:[#allocation4 + $0x18] sm:$0xf]
    %v71 = vld [vmem:[#allocation4 + $0x1c] sm:$0x3]
    %v72 = vld [vmem:[#allocation4 + $0x20] sm:$0xf]
    %v73 = vld [vmem:[#allocation4 + $0x24] sm:$0xf]
    %v74 = vld [vmem:[#allocation4 + $0x28] sm:$0xf]
    %v75 = vld [vmem:[#allocation4 + $0x2c] sm:$0x3]
    %v76 = vld [vmem:[#allocation4 + $0x30] sm:$0xf]
    %v77 = vld [vmem:[#allocation4 + $0x34] sm:$0xf]
    %v78 = vld [vmem:[#allocation4 + $0x38] sm:$0xf]
    %v79 = vld [vmem:[#allocation4 + $0x3c] sm:$0x3]
    %v80 = vld [vmem:[#allocation4 + $0x40] sm:$0xf]
    %v81 = vld [vmem:[#allocation4 + $0x44] sm:$0xf]
    %v82 = vld [vmem:[#allocation4 + $0x48] sm:$0xf]
    %v83 = vld [vmem:[#allocation4 + $0x4c] sm:$0x3]
    %v84 = vld [vmem:[#allocation4 + $0x50] sm:$0xf]
    %v85 = vld [vmem:[#allocation4 + $0x54] sm:$0xf]
    %v86 = vld [vmem:[#allocation4 + $0x58] sm:$0xf]
    %v87 = vld [vmem:[#allocation4 + $0x5c] sm:$0x3]
    %v88 = vld [vmem:[#allocation4 + $0x60] sm:$0xf]
    %v89 = vld [vmem:[#allocation4 + $0x64] sm:$0xf]
    %v90 = vld [vmem:[#allocation4 + $0x68] sm:$0xf]
    %v91 = vld [vmem:[#allocation4 + $0x6c] sm:$0x3]
    %v92 = vld [vmem:[#allocation4 + $0x70] sm:$0xf]
    %v93 = vld [vmem:[#allocation4 + $0x74] sm:$0xf]
    %v94 = vld [vmem:[#allocation4 + $0x78] sm:$0xf]
    %v95 = vld [vmem:[#allocation4 + $0x7c] sm:$0x3]
    %v96 = vld [vmem:[#allocation4 + $0x80] sm:$0xf]
    %v97 = vld [vmem:[#allocation4 + $0x84] sm:$0xf]
    %v98 = vld [vmem:[#allocation4 + $0x88] sm:$0xf]
    %v99 = vld [vmem:[#allocation4 + $0x8c] sm:$0x3]
    %v100 = vld [vmem:[#allocation4 + $0x90] sm:$0xf]
    %v101 = vld [vmem:[#allocation4 + $0x94] sm:$0xf]
    %v102 = vld [vmem:[#allocation4 + $0x98] sm:$0xf]
    %v103 = vld [vmem:[#allocation4 + $0x9c] sm:$0x3]
    %v104 = vld [vmem:[#allocation4 + $0xa0] sm:$0xf]
    %v105 = vld [vmem:[#allocation4 + $0xa4] sm:$0xf]
    %v106 = vld [vmem:[#allocation4 + $0xa8] sm:$0xf]
    %v107 = vld [vmem:[#allocation4 + $0xac] sm:$0x3]
    %v108 = vld [vmem:[#allocation4 + $0xb0] sm:$0xf]
    %v109 = vld [vmem:[#allocation4 + $0xb4] sm:$0xf]
    %v110 = vld [vmem:[#allocation4 + $0xb8] sm:$0xf]
    %v111 = vld [vmem:[#allocation4 + $0xbc] sm:$0x3]
    %v112 = vld [vmem:[#allocation4 + $0xc0] sm:$0xf]
    %v113 = vld [vmem:[#allocation4 + $0xc4] sm:$0xf]
    %v114 = vld [vmem:[#allocation4 + $0xc8] sm:$0xf]
    %v115 = vld [vmem:[#allocation4 + $0xcc] sm:$0x3]
    %v116 = vld [vmem:[#allocation4 + $0xd0] sm:$0xf]
    %v117 = vld [vmem:[#allocation4 + $0xd4] sm:$0xf]
    %v118 = vld [vmem:[#allocation4 + $0xd8] sm:$0xf]
    %v119 = vld [vmem:[#allocation4 + $0xdc] sm:$0x3]
    %v120 = vld [vmem:[#allocation4 + $0xe0] sm:$0xf]
    %v121 = vld [vmem:[#allocation4 + $0xe4] sm:$0xf]
    %v122 = vld [vmem:[#allocation4 + $0xe8] sm:$0xf]
    %v123 = vld [vmem:[#allocation4 + $0xec] sm:$0x3]
    %v124 = vld [vmem:[#allocation4 + $0xf0] sm:$0xf]
    %v125 = vld [vmem:[#allocation4 + $0xf4] sm:$0xf]
    %v126 = vld [vmem:[#allocation4 + $0xf8] sm:$0xf]
    %v127 = vld [vmem:[#allocation4 + $0xfc] sm:$0x3]
    %v128 = vld [vmem:[#allocation4 + $0x100] sm:$0xf]
    %v129 = vld [vmem:[#allocation4 + $0x104] sm:$0xf]
    %v130 = vld [vmem:[#allocation4 + $0x108] sm:$0xf]
    %v131 = vld [vmem:[#allocation4 + $0x10c] sm:$0x3]
    %v132 = vld [vmem:[#allocation4 + $0x110] sm:$0xf]
    %v133 = vld [vmem:[#allocation4 + $0x114] sm:$0xf]
    %v134 = vld [vmem:[#allocation4 + $0x118] sm:$0xf]
    %v135 = vld [vmem:[#allocation4 + $0x11c] sm:$0x3]
    %v136 = vld [vmem:[#allocation4 + $0x120] sm:$0xf]
    %v137 = vld [vmem:[#allocation4 + $0x124] sm:$0xf]
    %v138 = vld [vmem:[#allocation4 + $0x128] sm:$0xf]
    %v139 = vld [vmem:[#allocation4 + $0x12c] sm:$0x3]
    %v140 = vld [vmem:[#allocation4 + $0x130] sm:$0xf]
    %v141 = vld [vmem:[#allocation4 + $0x134] sm:$0xf]
    %v142 = vld [vmem:[#allocation4 + $0x138] sm:$0xf]
    %v143 = vld [vmem:[#allocation4 + $0x13c] sm:$0x3]
    %v144 = vld [vmem:[#allocation4 + $0x140] sm:$0xf]
    %v145 = vld [vmem:[#allocation4 + $0x144] sm:$0xf]
    %v146 = vld [vmem:[#allocation4 + $0x148] sm:$0xf]
    %v147 = vld [vmem:[#allocation4 + $0x14c] sm:$0x3]
    %v148 = vld [vmem:[#allocation4 + $0x150] sm:$0xf]
    %v149 = vld [vmem:[#allocation4 + $0x154] sm:$0xf]
    %v150 = vld [vmem:[#allocation4 + $0x158] sm:$0xf]
    %v151 = vld [vmem:[#allocation4 + $0x15c] sm:$0x3]
    %v152 = vld [vmem:[#allocation4 + $0x160] sm:$0xf]
    %v153 = vld [vmem:[#allocation4 + $0x164] sm:$0xf]
    %v154 = vld [vmem:[#allocation4 + $0x168] sm:$0xf]
    %v155 = vld [vmem:[#allocation4 + $0x16c] sm:$0x3]
    %v156 = vld [vmem:[#allocation4 + $0x170] sm:$0xf]
    %v157 = vld [vmem:[#allocation4 + $0x174] sm:$0xf]
    %v158 = vld [vmem:[#allocation4 + $0x178] sm:$0xf]
    %v159 = vld [vmem:[#allocation4 + $0x17c] sm:$0x3]
    %v160 = vld [vmem:[#allocation4 + $0x180] sm:$0xf]
    %v161 = vld [vmem:[#allocation4 + $0x184] sm:$0xf]
    %v162 = vld [vmem:[#allocation4 + $0x188] sm:$0xf]
    %v163 = vld [vmem:[#allocation4 + $0x18c] sm:$0x3]
    %v164 = vld [vmem:[#allocation4 + $0x190] sm:$0xf]
    %v165 = vld [vmem:[#allocation4 + $0x194] sm:$0xf]
    %v166 = vld [vmem:[#allocation4 + $0x198] sm:$0xf]
    %v167 = vld [vmem:[#allocation4 + $0x19c] sm:$0x3]
    %v168 = vld [vmem:[#allocation4 + $0x1a0] sm:$0xf]
    %v169 = vld [vmem:[#allocation4 + $0x1a4] sm:$0xf]
    %v170 = vld [vmem:[#allocation4 + $0x1a8] sm:$0xf]
    %v171 = vld [vmem:[#allocation4 + $0x1ac] sm:$0x3]
    %v172 = vld [vmem:[#allocation4 + $0x1b0] sm:$0xf]
    %v173 = vld [vmem:[#allocation4 + $0x1b4] sm:$0xf]
    %v174 = vld [vmem:[#allocation4 + $0x1b8] sm:$0xf]
    %v175 = vld [vmem:[#allocation4 + $0x1bc] sm:$0x3]
    %s176 = sld [smem:[#allocation8]]
    %p178 = scmp.ne.f32.partialorder %s176, %s176
    %s179 = sshrl.u32 %s176, 16
    %s180 = sand.u32 %s179, 1
    %s181 = sadd.s32 32767, %s180
    %s182 = sadd.s32 %s176, %s181
    %s183 = sand.u32 %s182, 4294901760
    %s184 = scalar_select %p178, 2143289344, %s183
    %s186 = sshrl.u32 %s184, 16
    %s187 = sshll.u32 %s186, 16
    %s188 = sor.u32 %s186, %s187
    %v189 = vstv %s188
    %v191 = vmul.bf16 %v64, %v189
    %v192 = vmul.bf16 %v65, %v189
    %v193 = vmul.bf16 %v66, %v189
    %v194 = vmul.bf16 %v67, %v189
    %v195 = vmul.bf16 %v68, %v189
    %v196 = vmul.bf16 %v69, %v189
    %v197 = vmul.bf16 %v70, %v189
    %v198 = vmul.bf16 %v71, %v189
    %v199 = vmul.bf16 %v72, %v189
    %v200 = vmul.bf16 %v73, %v189
    %v201 = vmul.bf16 %v74, %v189
    %v202 = vmul.bf16 %v75, %v189
    %v203 = vmul.bf16 %v76, %v189
    %v204 = vmul.bf16 %v77, %v189
    %v205 = vmul.bf16 %v78, %v189
    %v206 = vmul.bf16 %v79, %v189
    %v207 = vmul.bf16 %v80, %v189
    %v208 = vmul.bf16 %v81, %v189
    %v209 = vmul.bf16 %v82, %v189
    %v210 = vmul.bf16 %v83, %v189
    %v211 = vmul.bf16 %v84, %v189
    %v212 = vmul.bf16 %v85, %v189
    %v213 = vmul.bf16 %v86, %v189
    %v214 = vmul.bf16 %v87, %v189
    %v215 = vmul.bf16 %v88, %v189
    %v216 = vmul.bf16 %v89, %v189
    %v217 = vmul.bf16 %v90, %v189
    %v218 = vmul.bf16 %v91, %v189
    %v219 = vmul.bf16 %v92, %v189
    %v220 = vmul.bf16 %v93, %v189
    %v221 = vmul.bf16 %v94, %v189
    %v222 = vmul.bf16 %v95, %v189
    %v223 = vmul.bf16 %v96, %v189
    %v224 = vmul.bf16 %v97, %v189
    %v225 = vmul.bf16 %v98, %v189
    %v226 = vmul.bf16 %v99, %v189
    %v227 = vmul.bf16 %v100, %v189
    %v228 = vmul.bf16 %v101, %v189
    %v229 = vmul.bf16 %v102, %v189
    %v230 = vmul.bf16 %v103, %v189
    %v231 = vmul.bf16 %v104, %v189
    %v232 = vmul.bf16 %v105, %v189
    %v233 = vmul.bf16 %v106, %v189
    %v234 = vmul.bf16 %v107, %v189
    %v235 = vmul.bf16 %v108, %v189
    %v236 = vmul.bf16 %v109, %v189
    %v237 = vmul.bf16 %v110, %v189
    %v238 = vmul.bf16 %v111, %v189
    %v239 = vmul.bf16 %v112, %v189
    %v240 = vmul.bf16 %v113, %v189
    %v241 = vmul.bf16 %v114, %v189
    %v242 = vmul.bf16 %v115, %v189
    %v243 = vmul.bf16 %v116, %v189
    %v244 = vmul.bf16 %v117, %v189
    %v245 = vmul.bf16 %v118, %v189
    %v246 = vmul.bf16 %v119, %v189
    %v247 = vmul.bf16 %v120, %v189
    %v248 = vmul.bf16 %v121, %v189
    %v249 = vmul.bf16 %v122, %v189
    %v250 = vmul.bf16 %v123, %v189
    %v251 = vmul.bf16 %v124, %v189
    %v252 = vmul.bf16 %v125, %v189
    %v253 = vmul.bf16 %v126, %v189
    %v254 = vmul.bf16 %v127, %v189
    %v255 = vmul.bf16 %v128, %v189
    %v256 = vmul.bf16 %v129, %v189
    %v257 = vmul.bf16 %v130, %v189
    %v258 = vmul.bf16 %v131, %v189
    %v259 = vmul.bf16 %v132, %v189
    %v260 = vmul.bf16 %v133, %v189
    %v261 = vmul.bf16 %v134, %v189
    %v262 = vmul.bf16 %v135, %v189
    %v263 = vmul.bf16 %v136, %v189
    %v264 = vmul.bf16 %v137, %v189
    %v265 = vmul.bf16 %v138, %v189
    %v266 = vmul.bf16 %v139, %v189
    %v267 = vmul.bf16 %v140, %v189
    %v268 = vmul.bf16 %v141, %v189
    %v269 = vmul.bf16 %v142, %v189
    %v270 = vmul.bf16 %v143, %v189
    %v271 = vmul.bf16 %v144, %v189
    %v272 = vmul.bf16 %v145, %v189
    %v273 = vmul.bf16 %v146, %v189
    %v274 = vmul.bf16 %v147, %v189
    %v275 = vmul.bf16 %v148, %v189
    %v276 = vmul.bf16 %v149, %v189
    %v277 = vmul.bf16 %v150, %v189
    %v278 = vmul.bf16 %v151, %v189
    %v279 = vmul.bf16 %v152, %v189
    %v280 = vmul.bf16 %v153, %v189
    %v281 = vmul.bf16 %v154, %v189
    %v282 = vmul.bf16 %v155, %v189
    %v283 = vmul.bf16 %v156, %v189
    %v284 = vmul.bf16 %v157, %v189
    %v285 = vmul.bf16 %v158, %v189
    %v286 = vmul.bf16 %v159, %v189
    %v287 = vmul.bf16 %v160, %v189
    %v288 = vmul.bf16 %v161, %v189
    %v289 = vmul.bf16 %v162, %v189
    %v290 = vmul.bf16 %v163, %v189
    %v291 = vmul.bf16 %v164, %v189
    %v292 = vmul.bf16 %v165, %v189
    %v293 = vmul.bf16 %v166, %v189
    %v294 = vmul.bf16 %v167, %v189
    %s295 = sld [smem:[#allocation8 + $0x1]]
    %p297 = scmp.ne.f32.partialorder %s295, %s295
    %s298 = sshrl.u32 %s295, 16
    %s299 = sand.u32 %s298, 1
    %s300 = sadd.s32 32767, %s299
    %s301 = sadd.s32 %s295, %s300
    %s302 = sand.u32 %s301, 4294901760
    %s303 = scalar_select %p297, 2143289344, %s302
    %s305 = sshrl.u32 %s303, 16
    %s306 = sshll.u32 %s305, 16
    %s307 = sor.u32 %s305, %s306
    %v308 = vstv %s307
    %v310 = vmul.bf16 %v64, %v308
    %v311 = vmul.bf16 %v65, %v308
    %v312 = vmul.bf16 %v66, %v308
    %v313 = vmul.bf16 %v67, %v308
    %v314 = vmul.bf16 %v68, %v308
    %v315 = vmul.bf16 %v69, %v308
    %v316 = vmul.bf16 %v70, %v308
    %v317 = vmul.bf16 %v71, %v308
    %v318 = vmul.bf16 %v72, %v308
    %v319 = vmul.bf16 %v73, %v308
    %v320 = vmul.bf16 %v74, %v308
    %v321 = vmul.bf16 %v75, %v308
    %v322 = vmul.bf16 %v76, %v308
    %v323 = vmul.bf16 %v77, %v308
    %v324 = vmul.bf16 %v78, %v308
    %v325 = vmul.bf16 %v79, %v308
    %v326 = vmul.bf16 %v80, %v308
    %v327 = vmul.bf16 %v81, %v308
    %v328 = vmul.bf16 %v82, %v308
    %v329 = vmul.bf16 %v83, %v308
    %v330 = vmul.bf16 %v84, %v308
    %v331 = vmul.bf16 %v85, %v308
    %v332 = vmul.bf16 %v86, %v308
    %v333 = vmul.bf16 %v87, %v308
    %v334 = vmul.bf16 %v88, %v308
    %v335 = vmul.bf16 %v89, %v308
    %v336 = vmul.bf16 %v90, %v308
    %v337 = vmul.bf16 %v91, %v308
    %v338 = vmul.bf16 %v92, %v308
    %v339 = vmul.bf16 %v93, %v308
    %v340 = vmul.bf16 %v94, %v308
    %v341 = vmul.bf16 %v95, %v308
    %v342 = vmul.bf16 %v96, %v308
    %v343 = vmul.bf16 %v97, %v308
    %v344 = vmul.bf16 %v98, %v308
    %v345 = vmul.bf16 %v99, %v308
    %v346 = vmul.bf16 %v100, %v308
    %v347 = vmul.bf16 %v101, %v308
    %v348 = vmul.bf16 %v102, %v308
    %v349 = vmul.bf16 %v103, %v308
    %v350 = vmul.bf16 %v104, %v308
    %v351 = vmul.bf16 %v105, %v308
    %v352 = vmul.bf16 %v106, %v308
    %v353 = vmul.bf16 %v107, %v308
    %v354 = vmul.bf16 %v108, %v308
    %v355 = vmul.bf16 %v109, %v308
    %v356 = vmul.bf16 %v110, %v308
    %v357 = vmul.bf16 %v111, %v308
    %v358 = vmul.bf16 %v112, %v308
    %v359 = vmul.bf16 %v113, %v308
    %v360 = vmul.bf16 %v114, %v308
    %v361 = vmul.bf16 %v115, %v308
    %v362 = vmul.bf16 %v116, %v308
    %v363 = vmul.bf16 %v117, %v308
    %v364 = vmul.bf16 %v118, %v308
    %v365 = vmul.bf16 %v119, %v308
    %v366 = vmul.bf16 %v120, %v308
    %v367 = vmul.bf16 %v121, %v308
    %v368 = vmul.bf16 %v122, %v308
    %v369 = vmul.bf16 %v123, %v308
    %v370 = vmul.bf16 %v124, %v308
    %v371 = vmul.bf16 %v125, %v308
    %v372 = vmul.bf16 %v126, %v308
    %v373 = vmul.bf16 %v127, %v308
    %v374 = vmul.bf16 %v128, %v308
    %v375 = vmul.bf16 %v129, %v308
    %v376 = vmul.bf16 %v130, %v308
    %v377 = vmul.bf16 %v131, %v308
    %v378 = vmul.bf16 %v132, %v308
    %v379 = vmul.bf16 %v133, %v308
    %v380 = vmul.bf16 %v134, %v308
    %v381 = vmul.bf16 %v135, %v308
    %v382 = vmul.bf16 %v136, %v308
    %v383 = vmul.bf16 %v137, %v308
    %v384 = vmul.bf16 %v138, %v308
    %v385 = vmul.bf16 %v139, %v308
    %v386 = vmul.bf16 %v140, %v308
    %v387 = vmul.bf16 %v141, %v308
    %v388 = vmul.bf16 %v142, %v308
    %v389 = vmul.bf16 %v143, %v308
    %v390 = vmul.bf16 %v144, %v308
    %v391 = vmul.bf16 %v145, %v308
    %v392 = vmul.bf16 %v146, %v308
    %v393 = vmul.bf16 %v147, %v308
    %v394 = vmul.bf16 %v148, %v308
    %v395 = vmul.bf16 %v149, %v308
    %v396 = vmul.bf16 %v150, %v308
    %v397 = vmul.bf16 %v151, %v308
    %v398 = vmul.bf16 %v152, %v308
    %v399 = vmul.bf16 %v153, %v308
    %v400 = vmul.bf16 %v154, %v308
    %v401 = vmul.bf16 %v155, %v308
    %v402 = vmul.bf16 %v156, %v308
    %v403 = vmul.bf16 %v157, %v308
    %v404 = vmul.bf16 %v158, %v308
    %v405 = vmul.bf16 %v159, %v308
    %v406 = vmul.bf16 %v160, %v308
    %v407 = vmul.bf16 %v161, %v308
    %v408 = vmul.bf16 %v162, %v308
    %v409 = vmul.bf16 %v163, %v308
    %v410 = vmul.bf16 %v164, %v308
    %v411 = vmul.bf16 %v165, %v308
    %v412 = vmul.bf16 %v166, %v308
    %v413 = vmul.bf16 %v167, %v308
    %vm414 = vsmask.f32 3328
    %vm415 = vsmask.f32 7440
    %vm416 = vmor %vm414, %vm415
    %v418 = vshrl.u32 %v310, 16
    %v420 = vrot.slane %v418, 4
    %v421 = vshll.u32 %v310, 16
    %v423 = vrot.slane %v421, 5
    %v424 = vor.u32 %v420, %v423
    %v425 = vrot.slane %v424, 4
    %v427 = vshll.u32 %v311, 16
    %v429 = vrot.slane %v427, 5
    %v430 = vsel %vm416, %v425, %v429
    %v431 = vshrl.u32 %v311, 16
    %v433 = vrot.slane %v431, 4
    %v434 = vor.u32 %v433, %v429
    %v435 = vrot.slane %v434, 4
    %v437 = vshll.u32 %v312, 16
    %v439 = vrot.slane %v437, 5
    %v440 = vsel %vm416, %v435, %v439
    %v441 = vshrl.u32 %v312, 16
    %v443 = vrot.slane %v441, 4
    %v444 = vor.u32 %v443, %v439
    %v445 = vrot.slane %v444, 4
    %v447 = vshll.u32 %v313, 16
    %v449 = vrot.slane %v447, 5
    %v450 = vsel %vm416, %v445, %v449
    %v451 = vshrl.u32 %v313, 16
    %v453 = vrot.slane %v451, 4
    %v454 = vor.u32 %v453, %v449
    %v455 = vrot.slane %v454, 4
    %v457 = vshrl.u32 %v314, 16
    %v459 = vrot.slane %v457, 4
    %v460 = vshll.u32 %v314, 16
    %v462 = vrot.slane %v460, 5
    %v463 = vor.u32 %v459, %v462
    %v464 = vrot.slane %v463, 4
    %v466 = vshll.u32 %v315, 16
    %v468 = vrot.slane %v466, 5
    %v469 = vsel %vm416, %v464, %v468
    %v470 = vshrl.u32 %v315, 16
    %v472 = vrot.slane %v470, 4
    %v473 = vor.u32 %v472, %v468
    %v474 = vrot.slane %v473, 4
    %v476 = vshll.u32 %v316, 16
    %v478 = vrot.slane %v476, 5
    %v479 = vsel %vm416, %v474, %v478
    %v480 = vshrl.u32 %v316, 16
    %v482 = vrot.slane %v480, 4
    %v483 = vor.u32 %v482, %v478
    %v484 = vrot.slane %v483, 4
    %v486 = vshll.u32 %v317, 16
    %v488 = vrot.slane %v486, 5
    %v489 = vsel %vm416, %v484, %v488
    %v490 = vshrl.u32 %v317, 16
    %v492 = vrot.slane %v490, 4
    %v493 = vor.u32 %v492, %v488
    %v494 = vrot.slane %v493, 4
    %v496 = vshrl.u32 %v318, 16
    %v498 = vrot.slane %v496, 4
    %v499 = vshll.u32 %v318, 16
    %v501 = vrot.slane %v499, 5
    %v502 = vor.u32 %v498, %v501
    %v503 = vrot.slane %v502, 4
    %v505 = vshll.u32 %v319, 16
    %v507 = vrot.slane %v505, 5
    %v508 = vsel %vm416, %v503, %v507
    %v509 = vshrl.u32 %v319, 16
    %v511 = vrot.slane %v509, 4
    %v512 = vor.u32 %v511, %v507
    %v513 = vrot.slane %v512, 4
    %v515 = vshll.u32 %v320, 16
    %v517 = vrot.slane %v515, 5
    %v518 = vsel %vm416, %v513, %v517
    %v519 = vshrl.u32 %v320, 16
    %v521 = vrot.slane %v519, 4
    %v522 = vor.u32 %v521, %v517
    %v523 = vrot.slane %v522, 4
    %v525 = vshll.u32 %v321, 16
    %v527 = vrot.slane %v525, 5
    %v528 = vsel %vm416, %v523, %v527
    %v529 = vshrl.u32 %v321, 16
    %v531 = vrot.slane %v529, 4
    %v532 = vor.u32 %v531, %v527
    %v533 = vrot.slane %v532, 4
    %v535 = vshrl.u32 %v322, 16
    %v537 = vrot.slane %v535, 4
    %v538 = vshll.u32 %v322, 16
    %v540 = vrot.slane %v538, 5
    %v541 = vor.u32 %v537, %v540
    %v542 = vrot.slane %v541, 4
    %v544 = vshll.u32 %v323, 16
    %v546 = vrot.slane %v544, 5
    %v547 = vsel %vm416, %v542, %v546
    %v548 = vshrl.u32 %v323, 16
    %v550 = vrot.slane %v548, 4
    %v551 = vor.u32 %v550, %v546
    %v552 = vrot.slane %v551, 4
    %v554 = vshll.u32 %v324, 16
    %v556 = vrot.slane %v554, 5
    %v557 = vsel %vm416, %v552, %v556
    %v558 = vshrl.u32 %v324, 16
    %v560 = vrot.slane %v558, 4
    %v561 = vor.u32 %v560, %v556
    %v562 = vrot.slane %v561, 4
    %v564 = vshll.u32 %v325, 16
    %v566 = vrot.slane %v564, 5
    %v567 = vsel %vm416, %v562, %v566
    %v568 = vshrl.u32 %v325, 16
    %v570 = vrot.slane %v568, 4
    %v571 = vor.u32 %v570, %v566
    %v572 = vrot.slane %v571, 4
    %v574 = vshrl.u32 %v326, 16
    %v576 = vrot.slane %v574, 4
    %v577 = vshll.u32 %v326, 16
    %v579 = vrot.slane %v577, 5
    %v580 = vor.u32 %v576, %v579
    %v581 = vrot.slane %v580, 4
    %v583 = vshll.u32 %v327, 16
    %v585 = vrot.slane %v583, 5
    %v586 = vsel %vm416, %v581, %v585
    %v587 = vshrl.u32 %v327, 16
    %v589 = vrot.slane %v587, 4
    %v590 = vor.u32 %v589, %v585
    %v591 = vrot.slane %v590, 4
    %v593 = vshll.u32 %v328, 16
    %v595 = vrot.slane %v593, 5
    %v596 = vsel %vm416, %v591, %v595
    %v597 = vshrl.u32 %v328, 16
    %v599 = vrot.slane %v597, 4
    %v600 = vor.u32 %v599, %v595
    %v601 = vrot.slane %v600, 4
    %v603 = vshll.u32 %v329, 16
    %v605 = vrot.slane %v603, 5
    %v606 = vsel %vm416, %v601, %v605
    %v607 = vshrl.u32 %v329, 16
    %v609 = vrot.slane %v607, 4
    %v610 = vor.u32 %v609, %v605
    %v611 = vrot.slane %v610, 4
    %v613 = vshrl.u32 %v330, 16
    %v615 = vrot.slane %v613, 4
    %v616 = vshll.u32 %v330, 16
    %v618 = vrot.slane %v616, 5
    %v619 = vor.u32 %v615, %v618
    %v620 = vrot.slane %v619, 4
    %v622 = vshll.u32 %v331, 16
    %v624 = vrot.slane %v622, 5
    %v625 = vsel %vm416, %v620, %v624
    %v626 = vshrl.u32 %v331, 16
    %v628 = vrot.slane %v626, 4
    %v629 = vor.u32 %v628, %v624
    %v630 = vrot.slane %v629, 4
    %v632 = vshll.u32 %v332, 16
    %v634 = vrot.slane %v632, 5
    %v635 = vsel %vm416, %v630, %v634
    %v636 = vshrl.u32 %v332, 16
    %v638 = vrot.slane %v636, 4
    %v639 = vor.u32 %v638, %v634
    %v640 = vrot.slane %v639, 4
    %v642 = vshll.u32 %v333, 16
    %v644 = vrot.slane %v642, 5
    %v645 = vsel %vm416, %v640, %v644
    %v646 = vshrl.u32 %v333, 16
    %v648 = vrot.slane %v646, 4
    %v649 = vor.u32 %v648, %v644
    %v650 = vrot.slane %v649, 4
    %v652 = vshrl.u32 %v334, 16
    %v654 = vrot.slane %v652, 4
    %v655 = vshll.u32 %v334, 16
    %v657 = vrot.slane %v655, 5
    %v658 = vor.u32 %v654, %v657
    %v659 = vrot.slane %v658, 4
    %v661 = vshll.u32 %v335, 16
    %v663 = vrot.slane %v661, 5
    %v664 = vsel %vm416, %v659, %v663
    %v665 = vshrl.u32 %v335, 16
    %v667 = vrot.slane %v665, 4
    %v668 = vor.u32 %v667, %v663
    %v669 = vrot.slane %v668, 4
    %v671 = vshll.u32 %v336, 16
    %v673 = vrot.slane %v671, 5
    %v674 = vsel %vm416, %v669, %v673
    %v675 = vshrl.u32 %v336, 16
    %v677 = vrot.slane %v675, 4
    %v678 = vor.u32 %v677, %v673
    %v679 = vrot.slane %v678, 4
    %v681 = vshll.u32 %v337, 16
    %v683 = vrot.slane %v681, 5
    %v684 = vsel %vm416, %v679, %v683
    %v685 = vshrl.u32 %v337, 16
    %v687 = vrot.slane %v685, 4
    %v688 = vor.u32 %v687, %v683
    %v689 = vrot.slane %v688, 4
    %v691 = vshrl.u32 %v338, 16
    %v693 = vrot.slane %v691, 4
    %v694 = vshll.u32 %v338, 16
    %v696 = vrot.slane %v694, 5
    %v697 = vor.u32 %v693, %v696
    %v698 = vrot.slane %v697, 4
    %v700 = vshll.u32 %v339, 16
    %v702 = vrot.slane %v700, 5
    %v703 = vsel %vm416, %v698, %v702
    %v704 = vshrl.u32 %v339, 16
    %v706 = vrot.slane %v704, 4
    %v707 = vor.u32 %v706, %v702
    %v708 = vrot.slane %v707, 4
    %v710 = vshll.u32 %v340, 16
    %v712 = vrot.slane %v710, 5
    %v713 = vsel %vm416, %v708, %v712
    %v714 = vshrl.u32 %v340, 16
    %v716 = vrot.slane %v714, 4
    %v717 = vor.u32 %v716, %v712
    %v718 = vrot.slane %v717, 4
    %v720 = vshll.u32 %v341, 16
    %v722 = vrot.slane %v720, 5
    %v723 = vsel %vm416, %v718, %v722
    %v724 = vshrl.u32 %v341, 16
    %v726 = vrot.slane %v724, 4
    %v727 = vor.u32 %v726, %v722
    %v728 = vrot.slane %v727, 4
    %v730 = vshrl.u32 %v342, 16
    %v732 = vrot.slane %v730, 4
    %v733 = vshll.u32 %v342, 16
    %v735 = vrot.slane %v733, 5
    %v736 = vor.u32 %v732, %v735
    %v737 = vrot.slane %v736, 4
    %v739 = vshll.u32 %v343, 16
    %v741 = vrot.slane %v739, 5
    %v742 = vsel %vm416, %v737, %v741
    %v743 = vshrl.u32 %v343, 16
    %v745 = vrot.slane %v743, 4
    %v746 = vor.u32 %v745, %v741
    %v747 = vrot.slane %v746, 4
    %v749 = vshll.u32 %v344, 16
    %v751 = vrot.slane %v749, 5
    %v752 = vsel %vm416, %v747, %v751
    %v753 = vshrl.u32 %v344, 16
    %v755 = vrot.slane %v753, 4
    %v756 = vor.u32 %v755, %v751
    %v757 = vrot.slane %v756, 4
    %v759 = vshll.u32 %v345, 16
    %v761 = vrot.slane %v759, 5
    %v762 = vsel %vm416, %v757, %v761
    %v763 = vshrl.u32 %v345, 16
    %v765 = vrot.slane %v763, 4
    %v766 = vor.u32 %v765, %v761
    %v767 = vrot.slane %v766, 4
    %v769 = vshrl.u32 %v346, 16
    %v771 = vrot.slane %v769, 4
    %v772 = vshll.u32 %v346, 16
    %v774 = vrot.slane %v772, 5
    %v775 = vor.u32 %v771, %v774
    %v776 = vrot.slane %v775, 4
    %v778 = vshll.u32 %v347, 16
    %v780 = vrot.slane %v778, 5
    %v781 = vsel %vm416, %v776, %v780
    %v782 = vshrl.u32 %v347, 16
    %v784 = vrot.slane %v782, 4
    %v785 = vor.u32 %v784, %v780
    %v786 = vrot.slane %v785, 4
    %v788 = vshll.u32 %v348, 16
    %v790 = vrot.slane %v788, 5
    %v791 = vsel %vm416, %v786, %v790
    %v792 = vshrl.u32 %v348, 16
    %v794 = vrot.slane %v792, 4
    %v795 = vor.u32 %v794, %v790
    %v796 = vrot.slane %v795, 4
    %v798 = vshll.u32 %v349, 16
    %v800 = vrot.slane %v798, 5
    %v801 = vsel %vm416, %v796, %v800
    %v802 = vshrl.u32 %v349, 16
    %v804 = vrot.slane %v802, 4
    %v805 = vor.u32 %v804, %v800
    %v806 = vrot.slane %v805, 4
    %v808 = vshrl.u32 %v350, 16
    %v810 = vrot.slane %v808, 4
    %v811 = vshll.u32 %v350, 16
    %v813 = vrot.slane %v811, 5
    %v814 = vor.u32 %v810, %v813
    %v815 = vrot.slane %v814, 4
    %v817 = vshll.u32 %v351, 16
    %v819 = vrot.slane %v817, 5
    %v820 = vsel %vm416, %v815, %v819
    %v821 = vshrl.u32 %v351, 16
    %v823 = vrot.slane %v821, 4
    %v824 = vor.u32 %v823, %v819
    %v825 = vrot.slane %v824, 4
    %v827 = vshll.u32 %v352, 16
    %v829 = vrot.slane %v827, 5
    %v830 = vsel %vm416, %v825, %v829
    %v831 = vshrl.u32 %v352, 16
    %v833 = vrot.slane %v831, 4
    %v834 = vor.u32 %v833, %v829
    %v835 = vrot.slane %v834, 4
    %v837 = vshll.u32 %v353, 16
    %v839 = vrot.slane %v837, 5
    %v840 = vsel %vm416, %v835, %v839
    %v841 = vshrl.u32 %v353, 16
    %v843 = vrot.slane %v841, 4
    %v844 = vor.u32 %v843, %v839
    %v845 = vrot.slane %v844, 4
    %v847 = vshrl.u32 %v354, 16
    %v849 = vrot.slane %v847, 4
    %v850 = vshll.u32 %v354, 16
    %v852 = vrot.slane %v850, 5
    %v853 = vor.u32 %v849, %v852
    %v854 = vrot.slane %v853, 4
    %v856 = vshll.u32 %v355, 16
    %v858 = vrot.slane %v856, 5
    %v859 = vsel %vm416, %v854, %v858
    %v860 = vshrl.u32 %v355, 16
    %v862 = vrot.slane %v860, 4
    %v863 = vor.u32 %v862, %v858
    %v864 = vrot.slane %v863, 4
    %v866 = vshll.u32 %v356, 16
    %v868 = vrot.slane %v866, 5
    %v869 = vsel %vm416, %v864, %v868
    %v870 = vshrl.u32 %v356, 16
    %v872 = vrot.slane %v870, 4
    %v873 = vor.u32 %v872, %v868
    %v874 = vrot.slane %v873, 4
    %v876 = vshll.u32 %v357, 16
    %v878 = vrot.slane %v876, 5
    %v879 = vsel %vm416, %v874, %v878
    %v880 = vshrl.u32 %v357, 16
    %v882 = vrot.slane %v880, 4
    %v883 = vor.u32 %v882, %v878
    %v884 = vrot.slane %v883, 4
    %v886 = vshrl.u32 %v358, 16
    %v888 = vrot.slane %v886, 4
    %v889 = vshll.u32 %v358, 16
    %v891 = vrot.slane %v889, 5
    %v892 = vor.u32 %v888, %v891
    %v893 = vrot.slane %v892, 4
    %v895 = vshll.u32 %v359, 16
    %v897 = vrot.slane %v895, 5
    %v898 = vsel %vm416, %v893, %v897
    %v899 = vshrl.u32 %v359, 16
    %v901 = vrot.slane %v899, 4
    %v902 = vor.u32 %v901, %v897
    %v903 = vrot.slane %v902, 4
    %v905 = vshll.u32 %v360, 16
    %v907 = vrot.slane %v905, 5
    %v908 = vsel %vm416, %v903, %v907
    %v909 = vshrl.u32 %v360, 16
    %v911 = vrot.slane %v909, 4
    %v912 = vor.u32 %v911, %v907
    %v913 = vrot.slane %v912, 4
    %v915 = vshll.u32 %v361, 16
    %v917 = vrot.slane %v915, 5
    %v918 = vsel %vm416, %v913, %v917
    %v919 = vshrl.u32 %v361, 16
    %v921 = vrot.slane %v919, 4
    %v922 = vor.u32 %v921, %v917
    %v923 = vrot.slane %v922, 4
    %v925 = vshrl.u32 %v362, 16
    %v927 = vrot.slane %v925, 4
    %v928 = vshll.u32 %v362, 16
    %v930 = vrot.slane %v928, 5
    %v931 = vor.u32 %v927, %v930
    %v932 = vrot.slane %v931, 4
    %v934 = vshll.u32 %v363, 16
    %v936 = vrot.slane %v934, 5
    %v937 = vsel %vm416, %v932, %v936
    %v938 = vshrl.u32 %v363, 16
    %v940 = vrot.slane %v938, 4
    %v941 = vor.u32 %v940, %v936
    %v942 = vrot.slane %v941, 4
    %v944 = vshll.u32 %v364, 16
    %v946 = vrot.slane %v944, 5
    %v947 = vsel %vm416, %v942, %v946
    %v948 = vshrl.u32 %v364, 16
    %v950 = vrot.slane %v948, 4
    %v951 = vor.u32 %v950, %v946
    %v952 = vrot.slane %v951, 4
    %v954 = vshll.u32 %v365, 16
    %v956 = vrot.slane %v954, 5
    %v957 = vsel %vm416, %v952, %v956
    %v958 = vshrl.u32 %v365, 16
    %v960 = vrot.slane %v958, 4
    %v961 = vor.u32 %v960, %v956
    %v962 = vrot.slane %v961, 4
    %v964 = vshrl.u32 %v366, 16
    %v966 = vrot.slane %v964, 4
    %v967 = vshll.u32 %v366, 16
    %v969 = vrot.slane %v967, 5
    %v970 = vor.u32 %v966, %v969
    %v971 = vrot.slane %v970, 4
    %v973 = vshll.u32 %v367, 16
    %v975 = vrot.slane %v973, 5
    %v976 = vsel %vm416, %v971, %v975
    %v977 = vshrl.u32 %v367, 16
    %v979 = vrot.slane %v977, 4
    %v980 = vor.u32 %v979, %v975
    %v981 = vrot.slane %v980, 4
    %v983 = vshll.u32 %v368, 16
    %v985 = vrot.slane %v983, 5
    %v986 = vsel %vm416, %v981, %v985
    %v987 = vshrl.u32 %v368, 16
    %v989 = vrot.slane %v987, 4
    %v990 = vor.u32 %v989, %v985
    %v991 = vrot.slane %v990, 4
    %v993 = vshll.u32 %v369, 16
    %v995 = vrot.slane %v993, 5
    %v996 = vsel %vm416, %v991, %v995
    %v997 = vshrl.u32 %v369, 16
    %v999 = vrot.slane %v997, 4
    %v1000 = vor.u32 %v999, %v995
    %v1001 = vrot.slane %v1000, 4
    %v1003 = vshrl.u32 %v370, 16
    %v1005 = vrot.slane %v1003, 4
    %v1006 = vshll.u32 %v370, 16
    %v1008 = vrot.slane %v1006, 5
    %v1009 = vor.u32 %v1005, %v1008
    %v1010 = vrot.slane %v1009, 4
    %v1012 = vshll.u32 %v371, 16
    %v1014 = vrot.slane %v1012, 5
    %v1015 = vsel %vm416, %v1010, %v1014
    %v1016 = vshrl.u32 %v371, 16
    %v1018 = vrot.slane %v1016, 4
    %v1019 = vor.u32 %v1018, %v1014
    %v1020 = vrot.slane %v1019, 4
    %v1022 = vshll.u32 %v372, 16
    %v1024 = vrot.slane %v1022, 5
    %v1025 = vsel %vm416, %v1020, %v1024
    %v1026 = vshrl.u32 %v372, 16
    %v1028 = vrot.slane %v1026, 4
    %v1029 = vor.u32 %v1028, %v1024
    %v1030 = vrot.slane %v1029, 4
    %v1032 = vshll.u32 %v373, 16
    %v1034 = vrot.slane %v1032, 5
    %v1035 = vsel %vm416, %v1030, %v1034
    %v1036 = vshrl.u32 %v373, 16
    %v1038 = vrot.slane %v1036, 4
    %v1039 = vor.u32 %v1038, %v1034
    %v1040 = vrot.slane %v1039, 4
    %v1042 = vshrl.u32 %v374, 16
    %v1044 = vrot.slane %v1042, 4
    %v1045 = vshll.u32 %v374, 16
    %v1047 = vrot.slane %v1045, 5
    %v1048 = vor.u32 %v1044, %v1047
    %v1049 = vrot.slane %v1048, 4
    %v1051 = vshll.u32 %v375, 16
    %v1053 = vrot.slane %v1051, 5
    %v1054 = vsel %vm416, %v1049, %v1053
    %v1055 = vshrl.u32 %v375, 16
    %v1057 = vrot.slane %v1055, 4
    %v1058 = vor.u32 %v1057, %v1053
    %v1059 = vrot.slane %v1058, 4
    %v1061 = vshll.u32 %v376, 16
    %v1063 = vrot.slane %v1061, 5
    %v1064 = vsel %vm416, %v1059, %v1063
    %v1065 = vshrl.u32 %v376, 16
    %v1067 = vrot.slane %v1065, 4
    %v1068 = vor.u32 %v1067, %v1063
    %v1069 = vrot.slane %v1068, 4
    %v1071 = vshll.u32 %v377, 16
    %v1073 = vrot.slane %v1071, 5
    %v1074 = vsel %vm416, %v1069, %v1073
    %v1075 = vshrl.u32 %v377, 16
    %v1077 = vrot.slane %v1075, 4
    %v1078 = vor.u32 %v1077, %v1073
    %v1079 = vrot.slane %v1078, 4
    %v1081 = vshrl.u32 %v378, 16
    %v1083 = vrot.slane %v1081, 4
    %v1084 = vshll.u32 %v378, 16
    %v1086 = vrot.slane %v1084, 5
    %v1087 = vor.u32 %v1083, %v1086
    %v1088 = vrot.slane %v1087, 4
    %v1090 = vshll.u32 %v379, 16
    %v1092 = vrot.slane %v1090, 5
    %v1093 = vsel %vm416, %v1088, %v1092
    %v1094 = vshrl.u32 %v379, 16
    %v1096 = vrot.slane %v1094, 4
    %v1097 = vor.u32 %v1096, %v1092
    %v1098 = vrot.slane %v1097, 4
    %v1100 = vshll.u32 %v380, 16
    %v1102 = vrot.slane %v1100, 5
    %v1103 = vsel %vm416, %v1098, %v1102
    %v1104 = vshrl.u32 %v380, 16
    %v1106 = vrot.slane %v1104, 4
    %v1107 = vor.u32 %v1106, %v1102
    %v1108 = vrot.slane %v1107, 4
    %v1110 = vshll.u32 %v381, 16
    %v1112 = vrot.slane %v1110, 5
    %v1113 = vsel %vm416, %v1108, %v1112
    %v1114 = vshrl.u32 %v381, 16
    %v1116 = vrot.slane %v1114, 4
    %v1117 = vor.u32 %v1116, %v1112
    %v1118 = vrot.slane %v1117, 4
    %v1120 = vshrl.u32 %v382, 16
    %v1122 = vrot.slane %v1120, 4
    %v1123 = vshll.u32 %v382, 16
    %v1125 = vrot.slane %v1123, 5
    %v1126 = vor.u32 %v1122, %v1125
    %v1127 = vrot.slane %v1126, 4
    %v1129 = vshll.u32 %v383, 16
    %v1131 = vrot.slane %v1129, 5
    %v1132 = vsel %vm416, %v1127, %v1131
    %v1133 = vshrl.u32 %v383, 16
    %v1135 = vrot.slane %v1133, 4
    %v1136 = vor.u32 %v1135, %v1131
    %v1137 = vrot.slane %v1136, 4
    %v1139 = vshll.u32 %v384, 16
    %v1141 = vrot.slane %v1139, 5
    %v1142 = vsel %vm416, %v1137, %v1141
    %v1143 = vshrl.u32 %v384, 16
    %v1145 = vrot.slane %v1143, 4
    %v1146 = vor.u32 %v1145, %v1141
    %v1147 = vrot.slane %v1146, 4
    %v1149 = vshll.u32 %v385, 16
    %v1151 = vrot.slane %v1149, 5
    %v1152 = vsel %vm416, %v1147, %v1151
    %v1153 = vshrl.u32 %v385, 16
    %v1155 = vrot.slane %v1153, 4
    %v1156 = vor.u32 %v1155, %v1151
    %v1157 = vrot.slane %v1156, 4
    %v1159 = vshrl.u32 %v386, 16
    %v1161 = vrot.slane %v1159, 4
    %v1162 = vshll.u32 %v386, 16
    %v1164 = vrot.slane %v1162, 5
    %v1165 = vor.u32 %v1161, %v1164
    %v1166 = vrot.slane %v1165, 4
    %v1168 = vshll.u32 %v387, 16
    %v1170 = vrot.slane %v1168, 5
    %v1171 = vsel %vm416, %v1166, %v1170
    %v1172 = vshrl.u32 %v387, 16
    %v1174 = vrot.slane %v1172, 4
    %v1175 = vor.u32 %v1174, %v1170
    %v1176 = vrot.slane %v1175, 4
    %v1178 = vshll.u32 %v388, 16
    %v1180 = vrot.slane %v1178, 5
    %v1181 = vsel %vm416, %v1176, %v1180
    %v1182 = vshrl.u32 %v388, 16
    %v1184 = vrot.slane %v1182, 4
    %v1185 = vor.u32 %v1184, %v1180
    %v1186 = vrot.slane %v1185, 4
    %v1188 = vshll.u32 %v389, 16
    %v1190 = vrot.slane %v1188, 5
    %v1191 = vsel %vm416, %v1186, %v1190
    %v1192 = vshrl.u32 %v389, 16
    %v1194 = vrot.slane %v1192, 4
    %v1195 = vor.u32 %v1194, %v1190
    %v1196 = vrot.slane %v1195, 4
    %v1198 = vshrl.u32 %v390, 16
    %v1200 = vrot.slane %v1198, 4
    %v1201 = vshll.u32 %v390, 16
    %v1203 = vrot.slane %v1201, 5
    %v1204 = vor.u32 %v1200, %v1203
    %v1205 = vrot.slane %v1204, 4
    %v1207 = vshll.u32 %v391, 16
    %v1209 = vrot.slane %v1207, 5
    %v1210 = vsel %vm416, %v1205, %v1209
    %v1211 = vshrl.u32 %v391, 16
    %v1213 = vrot.slane %v1211, 4
    %v1214 = vor.u32 %v1213, %v1209
    %v1215 = vrot.slane %v1214, 4
    %v1217 = vshll.u32 %v392, 16
    %v1219 = vrot.slane %v1217, 5
    %v1220 = vsel %vm416, %v1215, %v1219
    %v1221 = vshrl.u32 %v392, 16
    %v1223 = vrot.slane %v1221, 4
    %v1224 = vor.u32 %v1223, %v1219
    %v1225 = vrot.slane %v1224, 4
    %v1227 = vshll.u32 %v393, 16
    %v1229 = vrot.slane %v1227, 5
    %v1230 = vsel %vm416, %v1225, %v1229
    %v1231 = vshrl.u32 %v393, 16
    %v1233 = vrot.slane %v1231, 4
    %v1234 = vor.u32 %v1233, %v1229
    %v1235 = vrot.slane %v1234, 4
    %v1237 = vshrl.u32 %v394, 16
    %v1239 = vrot.slane %v1237, 4
    %v1240 = vshll.u32 %v394, 16
    %v1242 = vrot.slane %v1240, 5
    %v1243 = vor.u32 %v1239, %v1242
    %v1244 = vrot.slane %v1243, 4
    %v1246 = vshll.u32 %v395, 16
    %v1248 = vrot.slane %v1246, 5
    %v1249 = vsel %vm416, %v1244, %v1248
    %v1250 = vshrl.u32 %v395, 16
    %v1252 = vrot.slane %v1250, 4
    %v1253 = vor.u32 %v1252, %v1248
    %v1254 = vrot.slane %v1253, 4
    %v1256 = vshll.u32 %v396, 16
    %v1258 = vrot.slane %v1256, 5
    %v1259 = vsel %vm416, %v1254, %v1258
    %v1260 = vshrl.u32 %v396, 16
    %v1262 = vrot.slane %v1260, 4
    %v1263 = vor.u32 %v1262, %v1258
    %v1264 = vrot.slane %v1263, 4
    %v1266 = vshll.u32 %v397, 16
    %v1268 = vrot.slane %v1266, 5
    %v1269 = vsel %vm416, %v1264, %v1268
    %v1270 = vshrl.u32 %v397, 16
    %v1272 = vrot.slane %v1270, 4
    %v1273 = vor.u32 %v1272, %v1268
    %v1274 = vrot.slane %v1273, 4
    %v1276 = vshrl.u32 %v398, 16
    %v1278 = vrot.slane %v1276, 4
    %v1279 = vshll.u32 %v398, 16
    %v1281 = vrot.slane %v1279, 5
    %v1282 = vor.u32 %v1278, %v1281
    %v1283 = vrot.slane %v1282, 4
    %v1285 = vshll.u32 %v399, 16
    %v1287 = vrot.slane %v1285, 5
    %v1288 = vsel %vm416, %v1283, %v1287
    %v1289 = vshrl.u32 %v399, 16
    %v1291 = vrot.slane %v1289, 4
    %v1292 = vor.u32 %v1291, %v1287
    %v1293 = vrot.slane %v1292, 4
    %v1295 = vshll.u32 %v400, 16
    %v1297 = vrot.slane %v1295, 5
    %v1298 = vsel %vm416, %v1293, %v1297
    %v1299 = vshrl.u32 %v400, 16
    %v1301 = vrot.slane %v1299, 4
    %v1302 = vor.u32 %v1301, %v1297
    %v1303 = vrot.slane %v1302, 4
    %v1305 = vshll.u32 %v401, 16
    %v1307 = vrot.slane %v1305, 5
    %v1308 = vsel %vm416, %v1303, %v1307
    %v1309 = vshrl.u32 %v401, 16
    %v1311 = vrot.slane %v1309, 4
    %v1312 = vor.u32 %v1311, %v1307
    %v1313 = vrot.slane %v1312, 4
    %v1315 = vshrl.u32 %v402, 16
    %v1317 = vrot.slane %v1315, 4
    %v1318 = vshll.u32 %v402, 16
    %v1320 = vrot.slane %v1318, 5
    %v1321 = vor.u32 %v1317, %v1320
    %v1322 = vrot.slane %v1321, 4
    %v1324 = vshll.u32 %v403, 16
    %v1326 = vrot.slane %v1324, 5
    %v1327 = vsel %vm416, %v1322, %v1326
    %v1328 = vshrl.u32 %v403, 16
    %v1330 = vrot.slane %v1328, 4
    %v1331 = vor.u32 %v1330, %v1326
    %v1332 = vrot.slane %v1331, 4
    %v1334 = vshll.u32 %v404, 16
    %v1336 = vrot.slane %v1334, 5
    %v1337 = vsel %vm416, %v1332, %v1336
    %v1338 = vshrl.u32 %v404, 16
    %v1340 = vrot.slane %v1338, 4
    %v1341 = vor.u32 %v1340, %v1336
    %v1342 = vrot.slane %v1341, 4
    %v1344 = vshll.u32 %v405, 16
    %v1346 = vrot.slane %v1344, 5
    %v1347 = vsel %vm416, %v1342, %v1346
    %v1348 = vshrl.u32 %v405, 16
    %v1350 = vrot.slane %v1348, 4
    %v1351 = vor.u32 %v1350, %v1346
    %v1352 = vrot.slane %v1351, 4
    %v1354 = vshrl.u32 %v406, 16
    %v1356 = vrot.slane %v1354, 4
    %v1357 = vshll.u32 %v406, 16
    %v1359 = vrot.slane %v1357, 5
    %v1360 = vor.u32 %v1356, %v1359
    %v1361 = vrot.slane %v1360, 4
    %v1363 = vshll.u32 %v407, 16
    %v1365 = vrot.slane %v1363, 5
    %v1366 = vsel %vm416, %v1361, %v1365
    %v1367 = vshrl.u32 %v407, 16
    %v1369 = vrot.slane %v1367, 4
    %v1370 = vor.u32 %v1369, %v1365
    %v1371 = vrot.slane %v1370, 4
    %v1373 = vshll.u32 %v408, 16
    %v1375 = vrot.slane %v1373, 5
    %v1376 = vsel %vm416, %v1371, %v1375
    %v1377 = vshrl.u32 %v408, 16
    %v1379 = vrot.slane %v1377, 4
    %v1380 = vor.u32 %v1379, %v1375
    %v1381 = vrot.slane %v1380, 4
    %v1383 = vshll.u32 %v409, 16
    %v1385 = vrot.slane %v1383, 5
    %v1386 = vsel %vm416, %v1381, %v1385
    %v1387 = vshrl.u32 %v409, 16
    %v1389 = vrot.slane %v1387, 4
    %v1390 = vor.u32 %v1389, %v1385
    %v1391 = vrot.slane %v1390, 4
    %v1393 = vshrl.u32 %v410, 16
    %v1395 = vrot.slane %v1393, 4
    %v1396 = vshll.u32 %v410, 16
    %v1398 = vrot.slane %v1396, 5
    %v1399 = vor.u32 %v1395, %v1398
    %v1400 = vrot.slane %v1399, 4
    %v1402 = vshll.u32 %v411, 16
    %v1404 = vrot.slane %v1402, 5
    %v1405 = vsel %vm416, %v1400, %v1404
    %v1406 = vshrl.u32 %v411, 16
    %v1408 = vrot.slane %v1406, 4
    %v1409 = vor.u32 %v1408, %v1404
    %v1410 = vrot.slane %v1409, 4
    %v1412 = vshll.u32 %v412, 16
    %v1414 = vrot.slane %v1412, 5
    %v1415 = vsel %vm416, %v1410, %v1414
    %v1416 = vshrl.u32 %v412, 16
    %v1418 = vrot.slane %v1416, 4
    %v1419 = vor.u32 %v1418, %v1414
    %v1420 = vrot.slane %v1419, 4
    %v1422 = vshll.u32 %v413, 16
    %v1424 = vrot.slane %v1422, 5
    %v1425 = vsel %vm416, %v1420, %v1424
    %v1426 = vshrl.u32 %v413, 16
    %v1428 = vrot.slane %v1426, 4
    %v1429 = vor.u32 %v1428, %v1424
    %v1430 = vrot.slane %v1429, 4
    %v1535 = vadd.bf16 %v191, %v430
    %v1536 = vadd.bf16 %v192, %v440
    %v1537 = vadd.bf16 %v193, %v450
    %v1538 = vadd.bf16 %v194, %v455
    %v1539 = vadd.bf16 %v195, %v469
    %v1540 = vadd.bf16 %v196, %v479
    %v1541 = vadd.bf16 %v197, %v489
    %v1542 = vadd.bf16 %v198, %v494
    %v1543 = vadd.bf16 %v199, %v508
    %v1544 = vadd.bf16 %v200, %v518
    %v1545 = vadd.bf16 %v201, %v528
    %v1546 = vadd.bf16 %v202, %v533
    %v1547 = vadd.bf16 %v203, %v547
    %v1548 = vadd.bf16 %v204, %v557
    %v1549 = vadd.bf16 %v205, %v567
    %v1550 = vadd.bf16 %v206, %v572
    %v1551 = vadd.bf16 %v207, %v586
    %v1552 = vadd.bf16 %v208, %v596
    %v1553 = vadd.bf16 %v209, %v606
    %v1554 = vadd.bf16 %v210, %v611
    %v1555 = vadd.bf16 %v211, %v625
    %v1556 = vadd.bf16 %v212, %v635
    %v1557 = vadd.bf16 %v213, %v645
    %v1558 = vadd.bf16 %v214, %v650
    %v1559 = vadd.bf16 %v215, %v664
    %v1560 = vadd.bf16 %v216, %v674
    %v1561 = vadd.bf16 %v217, %v684
    %v1562 = vadd.bf16 %v218, %v689
    %v1563 = vadd.bf16 %v219, %v703
    %v1564 = vadd.bf16 %v220, %v713
    %v1565 = vadd.bf16 %v221, %v723
    %v1566 = vadd.bf16 %v222, %v728
    %v1567 = vadd.bf16 %v223, %v742
    %v1568 = vadd.bf16 %v224, %v752
    %v1569 = vadd.bf16 %v225, %v762
    %v1570 = vadd.bf16 %v226, %v767
    %v1571 = vadd.bf16 %v227, %v781
    %v1572 = vadd.bf16 %v228, %v791
    %v1573 = vadd.bf16 %v229, %v801
    %v1574 = vadd.bf16 %v230, %v806
    %v1575 = vadd.bf16 %v231, %v820
    %v1576 = vadd.bf16 %v232, %v830
    %v1577 = vadd.bf16 %v233, %v840
    %v1578 = vadd.bf16 %v234, %v845
    %v1579 = vadd.bf16 %v235, %v859
    %v1580 = vadd.bf16 %v236, %v869
    %v1581 = vadd.bf16 %v237, %v879
    %v1582 = vadd.bf16 %v238, %v884
    %v1583 = vadd.bf16 %v239, %v898
    %v1584 = vadd.bf16 %v240, %v908
    %v1585 = vadd.bf16 %v241, %v918
    %v1586 = vadd.bf16 %v242, %v923
    %v1587 = vadd.bf16 %v243, %v937
    %v1588 = vadd.bf16 %v244, %v947
    %v1589 = vadd.bf16 %v245, %v957
    %v1590 = vadd.bf16 %v246, %v962
    %v1591 = vadd.bf16 %v247, %v976
    %v1592 = vadd.bf16 %v248, %v986
    %v1593 = vadd.bf16 %v249, %v996
    %v1594 = vadd.bf16 %v250, %v1001
    %v1595 = vadd.bf16 %v251, %v1015
    %v1596 = vadd.bf16 %v252, %v1025
    %v1597 = vadd.bf16 %v253, %v1035
    %v1598 = vadd.bf16 %v254, %v1040
    %v1599 = vadd.bf16 %v255, %v1054
    %v1600 = vadd.bf16 %v256, %v1064
    %v1601 = vadd.bf16 %v257, %v1074
    %v1602 = vadd.bf16 %v258, %v1079
    %v1603 = vadd.bf16 %v259, %v1093
    %v1604 = vadd.bf16 %v260, %v1103
    %v1605 = vadd.bf16 %v261, %v1113
    %v1606 = vadd.bf16 %v262, %v1118
    %v1607 = vadd.bf16 %v263, %v1132
    %v1608 = vadd.bf16 %v264, %v1142
    %v1609 = vadd.bf16 %v265, %v1152
    %v1610 = vadd.bf16 %v266, %v1157
    %v1611 = vadd.bf16 %v267, %v1171
    %v1612 = vadd.bf16 %v268, %v1181
    %v1613 = vadd.bf16 %v269, %v1191
    %v1614 = vadd.bf16 %v270, %v1196
    %v1615 = vadd.bf16 %v271, %v1210
    %v1616 = vadd.bf16 %v272, %v1220
    %v1617 = vadd.bf16 %v273, %v1230
    %v1618 = vadd.bf16 %v274, %v1235
    %v1619 = vadd.bf16 %v275, %v1249
    %v1620 = vadd.bf16 %v276, %v1259
    %v1621 = vadd.bf16 %v277, %v1269
    %v1622 = vadd.bf16 %v278, %v1274
    %v1623 = vadd.bf16 %v279, %v1288
    %v1624 = vadd.bf16 %v280, %v1298
    %v1625 = vadd.bf16 %v281, %v1308
    %v1626 = vadd.bf16 %v282, %v1313
    %v1627 = vadd.bf16 %v283, %v1327
    %v1628 = vadd.bf16 %v284, %v1337
    %v1629 = vadd.bf16 %v285, %v1347
    %v1630 = vadd.bf16 %v286, %v1352
    %v1631 = vadd.bf16 %v287, %v1366
    %v1632 = vadd.bf16 %v288, %v1376
    %v1633 = vadd.bf16 %v289, %v1386
    %v1634 = vadd.bf16 %v290, %v1391
    %v1635 = vadd.bf16 %v291, %v1405
    %v1636 = vadd.bf16 %v292, %v1415
    %v1637 = vadd.bf16 %v293, %v1425
    %v1638 = vadd.bf16 %v294, %v1430
    %s1639 = sld [smem:[#allocation8 + $0x2]]
    %p1641 = scmp.ne.f32.partialorder %s1639, %s1639
    %s1642 = sshrl.u32 %s1639, 16
    %s1643 = sand.u32 %s1642, 1
    %s1644 = sadd.s32 32767, %s1643
    %s1645 = sadd.s32 %s1639, %s1644
    %s1646 = sand.u32 %s1645, 4294901760
    %s1647 = scalar_select %p1641, 2143289344, %s1646
    %s1649 = sshrl.u32 %s1647, 16
    %s1650 = sshll.u32 %s1649, 16
    %s1651 = sor.u32 %s1649, %s1650
    %v1652 = vstv %s1651
    %v1654 = vmul.bf16 %v64, %v1652
    %v1655 = vmul.bf16 %v65, %v1652
    %v1656 = vmul.bf16 %v66, %v1652
    %v1657 = vmul.bf16 %v67, %v1652
    %v1658 = vmul.bf16 %v68, %v1652
    %v1659 = vmul.bf16 %v69, %v1652
    %v1660 = vmul.bf16 %v70, %v1652
    %v1661 = vmul.bf16 %v71, %v1652
    %v1662 = vmul.bf16 %v72, %v1652
    %v1663 = vmul.bf16 %v73, %v1652
    %v1664 = vmul.bf16 %v74, %v1652
    %v1665 = vmul.bf16 %v75, %v1652
    %v1666 = vmul.bf16 %v76, %v1652
    %v1667 = vmul.bf16 %v77, %v1652
    %v1668 = vmul.bf16 %v78, %v1652
    %v1669 = vmul.bf16 %v79, %v1652
    %v1670 = vmul.bf16 %v80, %v1652
    %v1671 = vmul.bf16 %v81, %v1652
    %v1672 = vmul.bf16 %v82, %v1652
    %v1673 = vmul.bf16 %v83, %v1652
    %v1674 = vmul.bf16 %v84, %v1652
    %v1675 = vmul.bf16 %v85, %v1652
    %v1676 = vmul.bf16 %v86, %v1652
    %v1677 = vmul.bf16 %v87, %v1652
    %v1678 = vmul.bf16 %v88, %v1652
    %v1679 = vmul.bf16 %v89, %v1652
    %v1680 = vmul.bf16 %v90, %v1652
    %v1681 = vmul.bf16 %v91, %v1652
    %v1682 = vmul.bf16 %v92, %v1652
    %v1683 = vmul.bf16 %v93, %v1652
    %v1684 = vmul.bf16 %v94, %v1652
    %v1685 = vmul.bf16 %v95, %v1652
    %v1686 = vmul.bf16 %v96, %v1652
    %v1687 = vmul.bf16 %v97, %v1652
    %v1688 = vmul.bf16 %v98, %v1652
    %v1689 = vmul.bf16 %v99, %v1652
    %v1690 = vmul.bf16 %v100, %v1652
    %v1691 = vmul.bf16 %v101, %v1652
    %v1692 = vmul.bf16 %v102, %v1652
    %v1693 = vmul.bf16 %v103, %v1652
    %v1694 = vmul.bf16 %v104, %v1652
    %v1695 = vmul.bf16 %v105, %v1652
    %v1696 = vmul.bf16 %v106, %v1652
    %v1697 = vmul.bf16 %v107, %v1652
    %v1698 = vmul.bf16 %v108, %v1652
    %v1699 = vmul.bf16 %v109, %v1652
    %v1700 = vmul.bf16 %v110, %v1652
    %v1701 = vmul.bf16 %v111, %v1652
    %v1702 = vmul.bf16 %v112, %v1652
    %v1703 = vmul.bf16 %v113, %v1652
    %v1704 = vmul.bf16 %v114, %v1652
    %v1705 = vmul.bf16 %v115, %v1652
    %v1706 = vmul.bf16 %v116, %v1652
    %v1707 = vmul.bf16 %v117, %v1652
    %v1708 = vmul.bf16 %v118, %v1652
    %v1709 = vmul.bf16 %v119, %v1652
    %v1710 = vmul.bf16 %v120, %v1652
    %v1711 = vmul.bf16 %v121, %v1652
    %v1712 = vmul.bf16 %v122, %v1652
    %v1713 = vmul.bf16 %v123, %v1652
    %v1714 = vmul.bf16 %v124, %v1652
    %v1715 = vmul.bf16 %v125, %v1652
    %v1716 = vmul.bf16 %v126, %v1652
    %v1717 = vmul.bf16 %v127, %v1652
    %v1718 = vmul.bf16 %v128, %v1652
    %v1719 = vmul.bf16 %v129, %v1652
    %v1720 = vmul.bf16 %v130, %v1652
    %v1721 = vmul.bf16 %v131, %v1652
    %v1722 = vmul.bf16 %v132, %v1652
    %v1723 = vmul.bf16 %v133, %v1652
    %v1724 = vmul.bf16 %v134, %v1652
    %v1725 = vmul.bf16 %v135, %v1652
    %v1726 = vmul.bf16 %v136, %v1652
    %v1727 = vmul.bf16 %v137, %v1652
    %v1728 = vmul.bf16 %v138, %v1652
    %v1729 = vmul.bf16 %v139, %v1652
    %v1730 = vmul.bf16 %v140, %v1652
    %v1731 = vmul.bf16 %v141, %v1652
    %v1732 = vmul.bf16 %v142, %v1652
    %v1733 = vmul.bf16 %v143, %v1652
    %v1734 = vmul.bf16 %v144, %v1652
    %v1735 = vmul.bf16 %v145, %v1652
    %v1736 = vmul.bf16 %v146, %v1652
    %v1737 = vmul.bf16 %v147, %v1652
    %v1738 = vmul.bf16 %v148, %v1652
    %v1739 = vmul.bf16 %v149, %v1652
    %v1740 = vmul.bf16 %v150, %v1652
    %v1741 = vmul.bf16 %v151, %v1652
    %v1742 = vmul.bf16 %v152, %v1652
    %v1743 = vmul.bf16 %v153, %v1652
    %v1744 = vmul.bf16 %v154, %v1652
    %v1745 = vmul.bf16 %v155, %v1652
    %v1746 = vmul.bf16 %v156, %v1652
    %v1747 = vmul.bf16 %v157, %v1652
    %v1748 = vmul.bf16 %v158, %v1652
    %v1749 = vmul.bf16 %v159, %v1652
    %v1750 = vmul.bf16 %v160, %v1652
    %v1751 = vmul.bf16 %v161, %v1652
    %v1752 = vmul.bf16 %v162, %v1652
    %v1753 = vmul.bf16 %v163, %v1652
    %v1754 = vmul.bf16 %v164, %v1652
    %v1755 = vmul.bf16 %v165, %v1652
    %v1756 = vmul.bf16 %v166, %v1652
    %v1757 = vmul.bf16 %v167, %v1652
    %vm1862 = vcmask 1042432
    %vm1863 = vcmask 1046532
    %vm1864 = vmor %vm1862, %vm1863
    %v1865 = vrot.slane %v1654, 5
    %v1866 = vrot.slane %v1865, 4
    %v1867 = vrot.slane %v1655, 5
    %v1868 = vsel %vm1864, %v1866, %v1867
    %v1869 = vrot.slane %v1867, 4
    %v1870 = vrot.slane %v1656, 5
    %v1871 = vsel %vm1864, %v1869, %v1870
    %v1872 = vrot.slane %v1870, 4
    %v1873 = vrot.slane %v1657, 5
    %v1874 = vsel %vm1864, %v1872, %v1873
    %v1875 = vrot.slane %v1873, 4
    %v1876 = vrot.slane %v1658, 5
    %v1877 = vrot.slane %v1876, 4
    %v1878 = vrot.slane %v1659, 5
    %v1879 = vsel %vm1864, %v1877, %v1878
    %v1880 = vrot.slane %v1878, 4
    %v1881 = vrot.slane %v1660, 5
    %v1882 = vsel %vm1864, %v1880, %v1881
    %v1883 = vrot.slane %v1881, 4
    %v1884 = vrot.slane %v1661, 5
    %v1885 = vsel %vm1864, %v1883, %v1884
    %v1886 = vrot.slane %v1884, 4
    %v1887 = vrot.slane %v1662, 5
    %v1888 = vrot.slane %v1887, 4
    %v1889 = vrot.slane %v1663, 5
    %v1890 = vsel %vm1864, %v1888, %v1889
    %v1891 = vrot.slane %v1889, 4
    %v1892 = vrot.slane %v1664, 5
    %v1893 = vsel %vm1864, %v1891, %v1892
    %v1894 = vrot.slane %v1892, 4
    %v1895 = vrot.slane %v1665, 5
    %v1896 = vsel %vm1864, %v1894, %v1895
    %v1897 = vrot.slane %v1895, 4
    %v1898 = vrot.slane %v1666, 5
    %v1899 = vrot.slane %v1898, 4
    %v1900 = vrot.slane %v1667, 5
    %v1901 = vsel %vm1864, %v1899, %v1900
    %v1902 = vrot.slane %v1900, 4
    %v1903 = vrot.slane %v1668, 5
    %v1904 = vsel %vm1864, %v1902, %v1903
    %v1905 = vrot.slane %v1903, 4
    %v1906 = vrot.slane %v1669, 5
    %v1907 = vsel %vm1864, %v1905, %v1906
    %v1908 = vrot.slane %v1906, 4
    %v1909 = vrot.slane %v1670, 5
    %v1910 = vrot.slane %v1909, 4
    %v1911 = vrot.slane %v1671, 5
    %v1912 = vsel %vm1864, %v1910, %v1911
    %v1913 = vrot.slane %v1911, 4
    %v1914 = vrot.slane %v1672, 5
    %v1915 = vsel %vm1864, %v1913, %v1914
    %v1916 = vrot.slane %v1914, 4
    %v1917 = vrot.slane %v1673, 5
    %v1918 = vsel %vm1864, %v1916, %v1917
    %v1919 = vrot.slane %v1917, 4
    %v1920 = vrot.slane %v1674, 5
    %v1921 = vrot.slane %v1920, 4
    %v1922 = vrot.slane %v1675, 5
    %v1923 = vsel %vm1864, %v1921, %v1922
    %v1924 = vrot.slane %v1922, 4
    %v1925 = vrot.slane %v1676, 5
    %v1926 = vsel %vm1864, %v1924, %v1925
    %v1927 = vrot.slane %v1925, 4
    %v1928 = vrot.slane %v1677, 5
    %v1929 = vsel %vm1864, %v1927, %v1928
    %v1930 = vrot.slane %v1928, 4
    %v1931 = vrot.slane %v1678, 5
    %v1932 = vrot.slane %v1931, 4
    %v1933 = vrot.slane %v1679, 5
    %v1934 = vsel %vm1864, %v1932, %v1933
    %v1935 = vrot.slane %v1933, 4
    %v1936 = vrot.slane %v1680, 5
    %v1937 = vsel %vm1864, %v1935, %v1936
    %v1938 = vrot.slane %v1936, 4
    %v1939 = vrot.slane %v1681, 5
    %v1940 = vsel %vm1864, %v1938, %v1939
    %v1941 = vrot.slane %v1939, 4
    %v1942 = vrot.slane %v1682, 5
    %v1943 = vrot.slane %v1942, 4
    %v1944 = vrot.slane %v1683, 5
    %v1945 = vsel %vm1864, %v1943, %v1944
    %v1946 = vrot.slane %v1944, 4
    %v1947 = vrot.slane %v1684, 5
    %v1948 = vsel %vm1864, %v1946, %v1947
    %v1949 = vrot.slane %v1947, 4
    %v1950 = vrot.slane %v1685, 5
    %v1951 = vsel %vm1864, %v1949, %v1950
    %v1952 = vrot.slane %v1950, 4
    %v1953 = vrot.slane %v1686, 5
    %v1954 = vrot.slane %v1953, 4
    %v1955 = vrot.slane %v1687, 5
    %v1956 = vsel %vm1864, %v1954, %v1955
    %v1957 = vrot.slane %v1955, 4
    %v1958 = vrot.slane %v1688, 5
    %v1959 = vsel %vm1864, %v1957, %v1958
    %v1960 = vrot.slane %v1958, 4
    %v1961 = vrot.slane %v1689, 5
    %v1962 = vsel %vm1864, %v1960, %v1961
    %v1963 = vrot.slane %v1961, 4
    %v1964 = vrot.slane %v1690, 5
    %v1965 = vrot.slane %v1964, 4
    %v1966 = vrot.slane %v1691, 5
    %v1967 = vsel %vm1864, %v1965, %v1966
    %v1968 = vrot.slane %v1966, 4
    %v1969 = vrot.slane %v1692, 5
    %v1970 = vsel %vm1864, %v1968, %v1969
    %v1971 = vrot.slane %v1969, 4
    %v1972 = vrot.slane %v1693, 5
    %v1973 = vsel %vm1864, %v1971, %v1972
    %v1974 = vrot.slane %v1972, 4
    %v1975 = vrot.slane %v1694, 5
    %v1976 = vrot.slane %v1975, 4
    %v1977 = vrot.slane %v1695, 5
    %v1978 = vsel %vm1864, %v1976, %v1977
    %v1979 = vrot.slane %v1977, 4
    %v1980 = vrot.slane %v1696, 5
    %v1981 = vsel %vm1864, %v1979, %v1980
    %v1982 = vrot.slane %v1980, 4
    %v1983 = vrot.slane %v1697, 5
    %v1984 = vsel %vm1864, %v1982, %v1983
    %v1985 = vrot.slane %v1983, 4
    %v1986 = vrot.slane %v1698, 5
    %v1987 = vrot.slane %v1986, 4
    %v1988 = vrot.slane %v1699, 5
    %v1989 = vsel %vm1864, %v1987, %v1988
    %v1990 = vrot.slane %v1988, 4
    %v1991 = vrot.slane %v1700, 5
    %v1992 = vsel %vm1864, %v1990, %v1991
    %v1993 = vrot.slane %v1991, 4
    %v1994 = vrot.slane %v1701, 5
    %v1995 = vsel %vm1864, %v1993, %v1994
    %v1996 = vrot.slane %v1994, 4
    %v1997 = vrot.slane %v1702, 5
    %v1998 = vrot.slane %v1997, 4
    %v1999 = vrot.slane %v1703, 5
    %v2000 = vsel %vm1864, %v1998, %v1999
    %v2001 = vrot.slane %v1999, 4
    %v2002 = vrot.slane %v1704, 5
    %v2003 = vsel %vm1864, %v2001, %v2002
    %v2004 = vrot.slane %v2002, 4
    %v2005 = vrot.slane %v1705, 5
    %v2006 = vsel %vm1864, %v2004, %v2005
    %v2007 = vrot.slane %v2005, 4
    %v2008 = vrot.slane %v1706, 5
    %v2009 = vrot.slane %v2008, 4
    %v2010 = vrot.slane %v1707, 5
    %v2011 = vsel %vm1864, %v2009, %v2010
    %v2012 = vrot.slane %v2010, 4
    %v2013 = vrot.slane %v1708, 5
    %v2014 = vsel %vm1864, %v2012, %v2013
    %v2015 = vrot.slane %v2013, 4
    %v2016 = vrot.slane %v1709, 5
    %v2017 = vsel %vm1864, %v2015, %v2016
    %v2018 = vrot.slane %v2016, 4
    %v2019 = vrot.slane %v1710, 5
    %v2020 = vrot.slane %v2019, 4
    %v2021 = vrot.slane %v1711, 5
    %v2022 = vsel %vm1864, %v2020, %v2021
    %v2023 = vrot.slane %v2021, 4
    %v2024 = vrot.slane %v1712, 5
    %v2025 = vsel %vm1864, %v2023, %v2024
    %v2026 = vrot.slane %v2024, 4
    %v2027 = vrot.slane %v1713, 5
    %v2028 = vsel %vm1864, %v2026, %v2027
    %v2029 = vrot.slane %v2027, 4
    %v2030 = vrot.slane %v1714, 5
    %v2031 = vrot.slane %v2030, 4
    %v2032 = vrot.slane %v1715, 5
    %v2033 = vsel %vm1864, %v2031, %v2032
    %v2034 = vrot.slane %v2032, 4
    %v2035 = vrot.slane %v1716, 5
    %v2036 = vsel %vm1864, %v2034, %v2035
    %v2037 = vrot.slane %v2035, 4
    %v2038 = vrot.slane %v1717, 5
    %v2039 = vsel %vm1864, %v2037, %v2038
    %v2040 = vrot.slane %v2038, 4
    %v2041 = vrot.slane %v1718, 5
    %v2042 = vrot.slane %v2041, 4
    %v2043 = vrot.slane %v1719, 5
    %v2044 = vsel %vm1864, %v2042, %v2043
    %v2045 = vrot.slane %v2043, 4
    %v2046 = vrot.slane %v1720, 5
    %v2047 = vsel %vm1864, %v2045, %v2046
    %v2048 = vrot.slane %v2046, 4
    %v2049 = vrot.slane %v1721, 5
    %v2050 = vsel %vm1864, %v2048, %v2049
    %v2051 = vrot.slane %v2049, 4
    %v2052 = vrot.slane %v1722, 5
    %v2053 = vrot.slane %v2052, 4
    %v2054 = vrot.slane %v1723, 5
    %v2055 = vsel %vm1864, %v2053, %v2054
    %v2056 = vrot.slane %v2054, 4
    %v2057 = vrot.slane %v1724, 5
    %v2058 = vsel %vm1864, %v2056, %v2057
    %v2059 = vrot.slane %v2057, 4
    %v2060 = vrot.slane %v1725, 5
    %v2061 = vsel %vm1864, %v2059, %v2060
    %v2062 = vrot.slane %v2060, 4
    %v2063 = vrot.slane %v1726, 5
    %v2064 = vrot.slane %v2063, 4
    %v2065 = vrot.slane %v1727, 5
    %v2066 = vsel %vm1864, %v2064, %v2065
    %v2067 = vrot.slane %v2065, 4
    %v2068 = vrot.slane %v1728, 5
    %v2069 = vsel %vm1864, %v2067, %v2068
    %v2070 = vrot.slane %v2068, 4
    %v2071 = vrot.slane %v1729, 5
    %v2072 = vsel %vm1864, %v2070, %v2071
    %v2073 = vrot.slane %v2071, 4
    %v2074 = vrot.slane %v1730, 5
    %v2075 = vrot.slane %v2074, 4
    %v2076 = vrot.slane %v1731, 5
    %v2077 = vsel %vm1864, %v2075, %v2076
    %v2078 = vrot.slane %v2076, 4
    %v2079 = vrot.slane %v1732, 5
    %v2080 = vsel %vm1864, %v2078, %v2079
    %v2081 = vrot.slane %v2079, 4
    %v2082 = vrot.slane %v1733, 5
    %v2083 = vsel %vm1864, %v2081, %v2082
    %v2084 = vrot.slane %v2082, 4
    %v2085 = vrot.slane %v1734, 5
    %v2086 = vrot.slane %v2085, 4
    %v2087 = vrot.slane %v1735, 5
    %v2088 = vsel %vm1864, %v2086, %v2087
    %v2089 = vrot.slane %v2087, 4
    %v2090 = vrot.slane %v1736, 5
    %v2091 = vsel %vm1864, %v2089, %v2090
    %v2092 = vrot.slane %v2090, 4
    %v2093 = vrot.slane %v1737, 5
    %v2094 = vsel %vm1864, %v2092, %v2093
    %v2095 = vrot.slane %v2093, 4
    %v2096 = vrot.slane %v1738, 5
    %v2097 = vrot.slane %v2096, 4
    %v2098 = vrot.slane %v1739, 5
    %v2099 = vsel %vm1864, %v2097, %v2098
    %v2100 = vrot.slane %v2098, 4
    %v2101 = vrot.slane %v1740, 5
    %v2102 = vsel %vm1864, %v2100, %v2101
    %v2103 = vrot.slane %v2101, 4
    %v2104 = vrot.slane %v1741, 5
    %v2105 = vsel %vm1864, %v2103, %v2104
    %v2106 = vrot.slane %v2104, 4
    %v2107 = vrot.slane %v1742, 5
    %v2108 = vrot.slane %v2107, 4
    %v2109 = vrot.slane %v1743, 5
    %v2110 = vsel %vm1864, %v2108, %v2109
    %v2111 = vrot.slane %v2109, 4
    %v2112 = vrot.slane %v1744, 5
    %v2113 = vsel %vm1864, %v2111, %v2112
    %v2114 = vrot.slane %v2112, 4
    %v2115 = vrot.slane %v1745, 5
    %v2116 = vsel %vm1864, %v2114, %v2115
    %v2117 = vrot.slane %v2115, 4
    %v2118 = vrot.slane %v1746, 5
    %v2119 = vrot.slane %v2118, 4
    %v2120 = vrot.slane %v1747, 5
    %v2121 = vsel %vm1864, %v2119, %v2120
    %v2122 = vrot.slane %v2120, 4
    %v2123 = vrot.slane %v1748, 5
    %v2124 = vsel %vm1864, %v2122, %v2123
    %v2125 = vrot.slane %v2123, 4
    %v2126 = vrot.slane %v1749, 5
    %v2127 = vsel %vm1864, %v2125, %v2126
    %v2128 = vrot.slane %v2126, 4
    %v2129 = vrot.slane %v1750, 5
    %v2130 = vrot.slane %v2129, 4
    %v2131 = vrot.slane %v1751, 5
    %v2132 = vsel %vm1864, %v2130, %v2131
    %v2133 = vrot.slane %v2131, 4
    %v2134 = vrot.slane %v1752, 5
    %v2135 = vsel %vm1864, %v2133, %v2134
    %v2136 = vrot.slane %v2134, 4
    %v2137 = vrot.slane %v1753, 5
    %v2138 = vsel %vm1864, %v2136, %v2137
    %v2139 = vrot.slane %v2137, 4
    %v2140 = vrot.slane %v1754, 5
    %v2141 = vrot.slane %v2140, 4
    %v2142 = vrot.slane %v1755, 5
    %v2143 = vsel %vm1864, %v2141, %v2142
    %v2144 = vrot.slane %v2142, 4
    %v2145 = vrot.slane %v1756, 5
    %v2146 = vsel %vm1864, %v2144, %v2145
    %v2147 = vrot.slane %v2145, 4
    %v2148 = vrot.slane %v1757, 5
    %v2149 = vsel %vm1864, %v2147, %v2148
    %v2150 = vrot.slane %v2148, 4
    %v2255 = vadd.bf16 %v1535, %v1868
    %v2256 = vadd.bf16 %v1536, %v1871
    %v2257 = vadd.bf16 %v1537, %v1874
    %v2258 = vadd.bf16 %v1538, %v1875
    %v2259 = vadd.bf16 %v1539, %v1879
    %v2260 = vadd.bf16 %v1540, %v1882
    %v2261 = vadd.bf16 %v1541, %v1885
    %v2262 = vadd.bf16 %v1542, %v1886
    %v2263 = vadd.bf16 %v1543, %v1890
    %v2264 = vadd.bf16 %v1544, %v1893
    %v2265 = vadd.bf16 %v1545, %v1896
    %v2266 = vadd.bf16 %v1546, %v1897
    %v2267 = vadd.bf16 %v1547, %v1901
    %v2268 = vadd.bf16 %v1548, %v1904
    %v2269 = vadd.bf16 %v1549, %v1907
    %v2270 = vadd.bf16 %v1550, %v1908
    %v2271 = vadd.bf16 %v1551, %v1912
    %v2272 = vadd.bf16 %v1552, %v1915
    %v2273 = vadd.bf16 %v1553, %v1918
    %v2274 = vadd.bf16 %v1554, %v1919
    %v2275 = vadd.bf16 %v1555, %v1923
    %v2276 = vadd.bf16 %v1556, %v1926
    %v2277 = vadd.bf16 %v1557, %v1929
    %v2278 = vadd.bf16 %v1558, %v1930
    %v2279 = vadd.bf16 %v1559, %v1934
    %v2280 = vadd.bf16 %v1560, %v1937
    %v2281 = vadd.bf16 %v1561, %v1940
    %v2282 = vadd.bf16 %v1562, %v1941
    %v2283 = vadd.bf16 %v1563, %v1945
    %v2284 = vadd.bf16 %v1564, %v1948
    %v2285 = vadd.bf16 %v1565, %v1951
    %v2286 = vadd.bf16 %v1566, %v1952
    %v2287 = vadd.bf16 %v1567, %v1956
    %v2288 = vadd.bf16 %v1568, %v1959
    %v2289 = vadd.bf16 %v1569, %v1962
    %v2290 = vadd.bf16 %v1570, %v1963
    %v2291 = vadd.bf16 %v1571, %v1967
    %v2292 = vadd.bf16 %v1572, %v1970
    %v2293 = vadd.bf16 %v1573, %v1973
    %v2294 = vadd.bf16 %v1574, %v1974
    %v2295 = vadd.bf16 %v1575, %v1978
    %v2296 = vadd.bf16 %v1576, %v1981
    %v2297 = vadd.bf16 %v1577, %v1984
    %v2298 = vadd.bf16 %v1578, %v1985
    %v2299 = vadd.bf16 %v1579, %v1989
    %v2300 = vadd.bf16 %v1580, %v1992
    %v2301 = vadd.bf16 %v1581, %v1995
    %v2302 = vadd.bf16 %v1582, %v1996
    %v2303 = vadd.bf16 %v1583, %v2000
    %v2304 = vadd.bf16 %v1584, %v2003
    %v2305 = vadd.bf16 %v1585, %v2006
    %v2306 = vadd.bf16 %v1586, %v2007
    %v2307 = vadd.bf16 %v1587, %v2011
    %v2308 = vadd.bf16 %v1588, %v2014
    %v2309 = vadd.bf16 %v1589, %v2017
    %v2310 = vadd.bf16 %v1590, %v2018
    %v2311 = vadd.bf16 %v1591, %v2022
    %v2312 = vadd.bf16 %v1592, %v2025
    %v2313 = vadd.bf16 %v1593, %v2028
    %v2314 = vadd.bf16 %v1594, %v2029
    %v2315 = vadd.bf16 %v1595, %v2033
    %v2316 = vadd.bf16 %v1596, %v2036
    %v2317 = vadd.bf16 %v1597, %v2039
    %v2318 = vadd.bf16 %v1598, %v2040
    %v2319 = vadd.bf16 %v1599, %v2044
    %v2320 = vadd.bf16 %v1600, %v2047
    %v2321 = vadd.bf16 %v1601, %v2050
    %v2322 = vadd.bf16 %v1602, %v2051
    %v2323 = vadd.bf16 %v1603, %v2055
    %v2324 = vadd.bf16 %v1604, %v2058
    %v2325 = vadd.bf16 %v1605, %v2061
    %v2326 = vadd.bf16 %v1606, %v2062
    %v2327 = vadd.bf16 %v1607, %v2066
    %v2328 = vadd.bf16 %v1608, %v2069
    %v2329 = vadd.bf16 %v1609, %v2072
    %v2330 = vadd.bf16 %v1610, %v2073
    %v2331 = vadd.bf16 %v1611, %v2077
    %v2332 = vadd.bf16 %v1612, %v2080
    %v2333 = vadd.bf16 %v1613, %v2083
    %v2334 = vadd.bf16 %v1614, %v2084
    %v2335 = vadd.bf16 %v1615, %v2088
    %v2336 = vadd.bf16 %v1616, %v2091
    %v2337 = vadd.bf16 %v1617, %v2094
    %v2338 = vadd.bf16 %v1618, %v2095
    %v2339 = vadd.bf16 %v1619, %v2099
    %v2340 = vadd.bf16 %v1620, %v2102
    %v2341 = vadd.bf16 %v1621, %v2105
    %v2342 = vadd.bf16 %v1622, %v2106
    %v2343 = vadd.bf16 %v1623, %v2110
    %v2344 = vadd.bf16 %v1624, %v2113
    %v2345 = vadd.bf16 %v1625, %v2116
    %v2346 = vadd.bf16 %v1626, %v2117
    %v2347 = vadd.bf16 %v1627, %v2121
    %v2348 = vadd.bf16 %v1628, %v2124
    %v2349 = vadd.bf16 %v1629, %v2127
    %v2350 = vadd.bf16 %v1630, %v2128
    %v2351 = vadd.bf16 %v1631, %v2132
    %v2352 = vadd.bf16 %v1632, %v2135
    %v2353 = vadd.bf16 %v1633, %v2138
    %v2354 = vadd.bf16 %v1634, %v2139
    %v2355 = vadd.bf16 %v1635, %v2143
    %v2356 = vadd.bf16 %v1636, %v2146
    %v2357 = vadd.bf16 %v1637, %v2149
    %v2358 = vadd.bf16 %v1638, %v2150
    %s2359 = sld [smem:[#allocation8 + $0x80]]
    %p2361 = scmp.ne.f32.partialorder %s2359, %s2359
    %s2362 = sshrl.u32 %s2359, 16
    %s2363 = sand.u32 %s2362, 1
    %s2364 = sadd.s32 32767, %s2363
    %s2365 = sadd.s32 %s2359, %s2364
    %s2366 = sand.u32 %s2365, 4294901760
    %s2367 = scalar_select %p2361, 2143289344, %s2366
    %s2369 = sshrl.u32 %s2367, 16
    %s2370 = sshll.u32 %s2369, 16
    %s2371 = sor.u32 %s2369, %s2370
    %v2372 = vstv %s2371
    %v2374 = vmul.bf16 %v68, %v2372
    %v2375 = vmul.bf16 %v69, %v2372
    %v2376 = vmul.bf16 %v70, %v2372
    %v2377 = vmul.bf16 %v71, %v2372
    %v2378 = vmul.bf16 %v72, %v2372
    %v2379 = vmul.bf16 %v73, %v2372
    %v2380 = vmul.bf16 %v74, %v2372
    %v2381 = vmul.bf16 %v75, %v2372
    %v2382 = vmul.bf16 %v76, %v2372
    %v2383 = vmul.bf16 %v77, %v2372
    %v2384 = vmul.bf16 %v78, %v2372
    %v2385 = vmul.bf16 %v79, %v2372
    %v2386 = vmul.bf16 %v80, %v2372
    %v2387 = vmul.bf16 %v81, %v2372
    %v2388 = vmul.bf16 %v82, %v2372
    %v2389 = vmul.bf16 %v83, %v2372
    %v2390 = vmul.bf16 %v84, %v2372
    %v2391 = vmul.bf16 %v85, %v2372
    %v2392 = vmul.bf16 %v86, %v2372
    %v2393 = vmul.bf16 %v87, %v2372
    %v2394 = vmul.bf16 %v88, %v2372
    %v2395 = vmul.bf16 %v89, %v2372
    %v2396 = vmul.bf16 %v90, %v2372
    %v2397 = vmul.bf16 %v91, %v2372
    %v2398 = vmul.bf16 %v92, %v2372
    %v2399 = vmul.bf16 %v93, %v2372
    %v2400 = vmul.bf16 %v94, %v2372
    %v2401 = vmul.bf16 %v95, %v2372
    %v2402 = vmul.bf16 %v96, %v2372
    %v2403 = vmul.bf16 %v97, %v2372
    %v2404 = vmul.bf16 %v98, %v2372
    %v2405 = vmul.bf16 %v99, %v2372
    %v2406 = vmul.bf16 %v100, %v2372
    %v2407 = vmul.bf16 %v101, %v2372
    %v2408 = vmul.bf16 %v102, %v2372
    %v2409 = vmul.bf16 %v103, %v2372
    %v2410 = vmul.bf16 %v104, %v2372
    %v2411 = vmul.bf16 %v105, %v2372
    %v2412 = vmul.bf16 %v106, %v2372
    %v2413 = vmul.bf16 %v107, %v2372
    %v2414 = vmul.bf16 %v108, %v2372
    %v2415 = vmul.bf16 %v109, %v2372
    %v2416 = vmul.bf16 %v110, %v2372
    %v2417 = vmul.bf16 %v111, %v2372
    %v2418 = vmul.bf16 %v112, %v2372
    %v2419 = vmul.bf16 %v113, %v2372
    %v2420 = vmul.bf16 %v114, %v2372
    %v2421 = vmul.bf16 %v115, %v2372
    %v2422 = vmul.bf16 %v116, %v2372
    %v2423 = vmul.bf16 %v117, %v2372
    %v2424 = vmul.bf16 %v118, %v2372
    %v2425 = vmul.bf16 %v119, %v2372
    %v2426 = vmul.bf16 %v120, %v2372
    %v2427 = vmul.bf16 %v121, %v2372
    %v2428 = vmul.bf16 %v122, %v2372
    %v2429 = vmul.bf16 %v123, %v2372
    %v2430 = vmul.bf16 %v124, %v2372
    %v2431 = vmul.bf16 %v125, %v2372
    %v2432 = vmul.bf16 %v126, %v2372
    %v2433 = vmul.bf16 %v127, %v2372
    %v2434 = vmul.bf16 %v128, %v2372
    %v2435 = vmul.bf16 %v129, %v2372
    %v2436 = vmul.bf16 %v130, %v2372
    %v2437 = vmul.bf16 %v131, %v2372
    %v2438 = vmul.bf16 %v132, %v2372
    %v2439 = vmul.bf16 %v133, %v2372
    %v2440 = vmul.bf16 %v134, %v2372
    %v2441 = vmul.bf16 %v135, %v2372
    %v2442 = vmul.bf16 %v136, %v2372
    %v2443 = vmul.bf16 %v137, %v2372
    %v2444 = vmul.bf16 %v138, %v2372
    %v2445 = vmul.bf16 %v139, %v2372
    %v2446 = vmul.bf16 %v140, %v2372
    %v2447 = vmul.bf16 %v141, %v2372
    %v2448 = vmul.bf16 %v142, %v2372
    %v2449 = vmul.bf16 %v143, %v2372
    %v2450 = vmul.bf16 %v144, %v2372
    %v2451 = vmul.bf16 %v145, %v2372
    %v2452 = vmul.bf16 %v146, %v2372
    %v2453 = vmul.bf16 %v147, %v2372
    %v2454 = vmul.bf16 %v148, %v2372
    %v2455 = vmul.bf16 %v149, %v2372
    %v2456 = vmul.bf16 %v150, %v2372
    %v2457 = vmul.bf16 %v151, %v2372
    %v2458 = vmul.bf16 %v152, %v2372
    %v2459 = vmul.bf16 %v153, %v2372
    %v2460 = vmul.bf16 %v154, %v2372
    %v2461 = vmul.bf16 %v155, %v2372
    %v2462 = vmul.bf16 %v156, %v2372
    %v2463 = vmul.bf16 %v157, %v2372
    %v2464 = vmul.bf16 %v158, %v2372
    %v2465 = vmul.bf16 %v159, %v2372
    %v2466 = vmul.bf16 %v160, %v2372
    %v2467 = vmul.bf16 %v161, %v2372
    %v2468 = vmul.bf16 %v162, %v2372
    %v2469 = vmul.bf16 %v163, %v2372
    %v2470 = vmul.bf16 %v164, %v2372
    %v2471 = vmul.bf16 %v165, %v2372
    %v2472 = vmul.bf16 %v166, %v2372
    %v2473 = vmul.bf16 %v167, %v2372
    %v2474 = vmul.bf16 %v168, %v2372
    %v2475 = vmul.bf16 %v169, %v2372
    %v2476 = vmul.bf16 %v170, %v2372
    %v2477 = vmul.bf16 %v171, %v2372
    %v2478 = vadd.bf16 %v2255, %v2374
    %v2479 = vadd.bf16 %v2256, %v2375
    %v2480 = vadd.bf16 %v2257, %v2376
    %v2481 = vadd.bf16 %v2258, %v2377
    %v2482 = vadd.bf16 %v2259, %v2378
    %v2483 = vadd.bf16 %v2260, %v2379
    %v2484 = vadd.bf16 %v2261, %v2380
    %v2485 = vadd.bf16 %v2262, %v2381
    %v2486 = vadd.bf16 %v2263, %v2382
    %v2487 = vadd.bf16 %v2264, %v2383
    %v2488 = vadd.bf16 %v2265, %v2384
    %v2489 = vadd.bf16 %v2266, %v2385
    %v2490 = vadd.bf16 %v2267, %v2386
    %v2491 = vadd.bf16 %v2268, %v2387
    %v2492 = vadd.bf16 %v2269, %v2388
    %v2493 = vadd.bf16 %v2270, %v2389
    %v2494 = vadd.bf16 %v2271, %v2390
    %v2495 = vadd.bf16 %v2272, %v2391
    %v2496 = vadd.bf16 %v2273, %v2392
    %v2497 = vadd.bf16 %v2274, %v2393
    %v2498 = vadd.bf16 %v2275, %v2394
    %v2499 = vadd.bf16 %v2276, %v2395
    %v2500 = vadd.bf16 %v2277, %v2396
    %v2501 = vadd.bf16 %v2278, %v2397
    %v2502 = vadd.bf16 %v2279, %v2398
    %v2503 = vadd.bf16 %v2280, %v2399
    %v2504 = vadd.bf16 %v2281, %v2400
    %v2505 = vadd.bf16 %v2282, %v2401
    %v2506 = vadd.bf16 %v2283, %v2402
    %v2507 = vadd.bf16 %v2284, %v2403
    %v2508 = vadd.bf16 %v2285, %v2404
    %v2509 = vadd.bf16 %v2286, %v2405
    %v2510 = vadd.bf16 %v2287, %v2406
    %v2511 = vadd.bf16 %v2288, %v2407
    %v2512 = vadd.bf16 %v2289, %v2408
    %v2513 = vadd.bf16 %v2290, %v2409
    %v2514 = vadd.bf16 %v2291, %v2410
    %v2515 = vadd.bf16 %v2292, %v2411
    %v2516 = vadd.bf16 %v2293, %v2412
    %v2517 = vadd.bf16 %v2294, %v2413
    %v2518 = vadd.bf16 %v2295, %v2414
    %v2519 = vadd.bf16 %v2296, %v2415
    %v2520 = vadd.bf16 %v2297, %v2416
    %v2521 = vadd.bf16 %v2298, %v2417
    %v2522 = vadd.bf16 %v2299, %v2418
    %v2523 = vadd.bf16 %v2300, %v2419
    %v2524 = vadd.bf16 %v2301, %v2420
    %v2525 = vadd.bf16 %v2302, %v2421
    %v2526 = vadd.bf16 %v2303, %v2422
    %v2527 = vadd.bf16 %v2304, %v2423
    %v2528 = vadd.bf16 %v2305, %v2424
    %v2529 = vadd.bf16 %v2306, %v2425
    %v2530 = vadd.bf16 %v2307, %v2426
    %v2531 = vadd.bf16 %v2308, %v2427
    %v2532 = vadd.bf16 %v2309, %v2428
    %v2533 = vadd.bf16 %v2310, %v2429
    %v2534 = vadd.bf16 %v2311, %v2430
    %v2535 = vadd.bf16 %v2312, %v2431
    %v2536 = vadd.bf16 %v2313, %v2432
    %v2537 = vadd.bf16 %v2314, %v2433
    %v2538 = vadd.bf16 %v2315, %v2434
    %v2539 = vadd.bf16 %v2316, %v2435
    %v2540 = vadd.bf16 %v2317, %v2436
    %v2541 = vadd.bf16 %v2318, %v2437
    %v2542 = vadd.bf16 %v2319, %v2438
    %v2543 = vadd.bf16 %v2320, %v2439
    %v2544 = vadd.bf16 %v2321, %v2440
    %v2545 = vadd.bf16 %v2322, %v2441
    %v2546 = vadd.bf16 %v2323, %v2442
    %v2547 = vadd.bf16 %v2324, %v2443
    %v2548 = vadd.bf16 %v2325, %v2444
    %v2549 = vadd.bf16 %v2326, %v2445
    %v2550 = vadd.bf16 %v2327, %v2446
    %v2551 = vadd.bf16 %v2328, %v2447
    %v2552 = vadd.bf16 %v2329, %v2448
    %v2553 = vadd.bf16 %v2330, %v2449
    %v2554 = vadd.bf16 %v2331, %v2450
    %v2555 = vadd.bf16 %v2332, %v2451
    %v2556 = vadd.bf16 %v2333, %v2452
    %v2557 = vadd.bf16 %v2334, %v2453
    %v2558 = vadd.bf16 %v2335, %v2454
    %v2559 = vadd.bf16 %v2336, %v2455
    %v2560 = vadd.bf16 %v2337, %v2456
    %v2561 = vadd.bf16 %v2338, %v2457
    %v2562 = vadd.bf16 %v2339, %v2458
    %v2563 = vadd.bf16 %v2340, %v2459
    %v2564 = vadd.bf16 %v2341, %v2460
    %v2565 = vadd.bf16 %v2342, %v2461
    %v2566 = vadd.bf16 %v2343, %v2462
    %v2567 = vadd.bf16 %v2344, %v2463
    %v2568 = vadd.bf16 %v2345, %v2464
    %v2569 = vadd.bf16 %v2346, %v2465
    %v2570 = vadd.bf16 %v2347, %v2466
    %v2571 = vadd.bf16 %v2348, %v2467
    %v2572 = vadd.bf16 %v2349, %v2468
    %v2573 = vadd.bf16 %v2350, %v2469
    %v2574 = vadd.bf16 %v2351, %v2470
    %v2575 = vadd.bf16 %v2352, %v2471
    %v2576 = vadd.bf16 %v2353, %v2472
    %v2577 = vadd.bf16 %v2354, %v2473
    %v2578 = vadd.bf16 %v2355, %v2474
    %v2579 = vadd.bf16 %v2356, %v2475
    %v2580 = vadd.bf16 %v2357, %v2476
    %v2581 = vadd.bf16 %v2358, %v2477
    %s2582 = sld [smem:[#allocation8 + $0x81]]
    %p2584 = scmp.ne.f32.partialorder %s2582, %s2582
    %s2585 = sshrl.u32 %s2582, 16
    %s2586 = sand.u32 %s2585, 1
    %s2587 = sadd.s32 32767, %s2586
    %s2588 = sadd.s32 %s2582, %s2587
    %s2589 = sand.u32 %s2588, 4294901760
    %s2590 = scalar_select %p2584, 2143289344, %s2589
    %s2592 = sshrl.u32 %s2590, 16
    %s2593 = sshll.u32 %s2592, 16
    %s2594 = sor.u32 %s2592, %s2593
    %v2595 = vstv %s2594
    %v2597 = vmul.bf16 %v68, %v2595
    %v2598 = vmul.bf16 %v69, %v2595
    %v2599 = vmul.bf16 %v70, %v2595
    %v2600 = vmul.bf16 %v71, %v2595
    %v2601 = vmul.bf16 %v72, %v2595
    %v2602 = vmul.bf16 %v73, %v2595
    %v2603 = vmul.bf16 %v74, %v2595
    %v2604 = vmul.bf16 %v75, %v2595
    %v2605 = vmul.bf16 %v76, %v2595
    %v2606 = vmul.bf16 %v77, %v2595
    %v2607 = vmul.bf16 %v78, %v2595
    %v2608 = vmul.bf16 %v79, %v2595
    %v2609 = vmul.bf16 %v80, %v2595
    %v2610 = vmul.bf16 %v81, %v2595
    %v2611 = vmul.bf16 %v82, %v2595
    %v2612 = vmul.bf16 %v83, %v2595
    %v2613 = vmul.bf16 %v84, %v2595
    %v2614 = vmul.bf16 %v85, %v2595
    %v2615 = vmul.bf16 %v86, %v2595
    %v2616 = vmul.bf16 %v87, %v2595
    %v2617 = vmul.bf16 %v88, %v2595
    %v2618 = vmul.bf16 %v89, %v2595
    %v2619 = vmul.bf16 %v90, %v2595
    %v2620 = vmul.bf16 %v91, %v2595
    %v2621 = vmul.bf16 %v92, %v2595
    %v2622 = vmul.bf16 %v93, %v2595
    %v2623 = vmul.bf16 %v94, %v2595
    %v2624 = vmul.bf16 %v95, %v2595
    %v2625 = vmul.bf16 %v96, %v2595
    %v2626 = vmul.bf16 %v97, %v2595
    %v2627 = vmul.bf16 %v98, %v2595
    %v2628 = vmul.bf16 %v99, %v2595
    %v2629 = vmul.bf16 %v100, %v2595
    %v2630 = vmul.bf16 %v101, %v2595
    %v2631 = vmul.bf16 %v102, %v2595
    %v2632 = vmul.bf16 %v103, %v2595
    %v2633 = vmul.bf16 %v104, %v2595
    %v2634 = vmul.bf16 %v105, %v2595
    %v2635 = vmul.bf16 %v106, %v2595
    %v2636 = vmul.bf16 %v107, %v2595
    %v2637 = vmul.bf16 %v108, %v2595
    %v2638 = vmul.bf16 %v109, %v2595
    %v2639 = vmul.bf16 %v110, %v2595
    %v2640 = vmul.bf16 %v111, %v2595
    %v2641 = vmul.bf16 %v112, %v2595
    %v2642 = vmul.bf16 %v113, %v2595
    %v2643 = vmul.bf16 %v114, %v2595
    %v2644 = vmul.bf16 %v115, %v2595
    %v2645 = vmul.bf16 %v116, %v2595
    %v2646 = vmul.bf16 %v117, %v2595
    %v2647 = vmul.bf16 %v118, %v2595
    %v2648 = vmul.bf16 %v119, %v2595
    %v2649 = vmul.bf16 %v120, %v2595
    %v2650 = vmul.bf16 %v121, %v2595
    %v2651 = vmul.bf16 %v122, %v2595
    %v2652 = vmul.bf16 %v123, %v2595
    %v2653 = vmul.bf16 %v124, %v2595
    %v2654 = vmul.bf16 %v125, %v2595
    %v2655 = vmul.bf16 %v126, %v2595
    %v2656 = vmul.bf16 %v127, %v2595
    %v2657 = vmul.bf16 %v128, %v2595
    %v2658 = vmul.bf16 %v129, %v2595
    %v2659 = vmul.bf16 %v130, %v2595
    %v2660 = vmul.bf16 %v131, %v2595
    %v2661 = vmul.bf16 %v132, %v2595
    %v2662 = vmul.bf16 %v133, %v2595
    %v2663 = vmul.bf16 %v134, %v2595
    %v2664 = vmul.bf16 %v135, %v2595
    %v2665 = vmul.bf16 %v136, %v2595
    %v2666 = vmul.bf16 %v137, %v2595
    %v2667 = vmul.bf16 %v138, %v2595
    %v2668 = vmul.bf16 %v139, %v2595
    %v2669 = vmul.bf16 %v140, %v2595
    %v2670 = vmul.bf16 %v141, %v2595
    %v2671 = vmul.bf16 %v142, %v2595
    %v2672 = vmul.bf16 %v143, %v2595
    %v2673 = vmul.bf16 %v144, %v2595
    %v2674 = vmul.bf16 %v145, %v2595
    %v2675 = vmul.bf16 %v146, %v2595
    %v2676 = vmul.bf16 %v147, %v2595
    %v2677 = vmul.bf16 %v148, %v2595
    %v2678 = vmul.bf16 %v149, %v2595
    %v2679 = vmul.bf16 %v150, %v2595
    %v2680 = vmul.bf16 %v151, %v2595
    %v2681 = vmul.bf16 %v152, %v2595
    %v2682 = vmul.bf16 %v153, %v2595
    %v2683 = vmul.bf16 %v154, %v2595
    %v2684 = vmul.bf16 %v155, %v2595
    %v2685 = vmul.bf16 %v156, %v2595
    %v2686 = vmul.bf16 %v157, %v2595
    %v2687 = vmul.bf16 %v158, %v2595
    %v2688 = vmul.bf16 %v159, %v2595
    %v2689 = vmul.bf16 %v160, %v2595
    %v2690 = vmul.bf16 %v161, %v2595
    %v2691 = vmul.bf16 %v162, %v2595
    %v2692 = vmul.bf16 %v163, %v2595
    %v2693 = vmul.bf16 %v164, %v2595
    %v2694 = vmul.bf16 %v165, %v2595
    %v2695 = vmul.bf16 %v166, %v2595
    %v2696 = vmul.bf16 %v167, %v2595
    %v2697 = vmul.bf16 %v168, %v2595
    %v2698 = vmul.bf16 %v169, %v2595
    %v2699 = vmul.bf16 %v170, %v2595
    %v2700 = vmul.bf16 %v171, %v2595
    %v2702 = vshrl.u32 %v2597, 16
    %v2704 = vrot.slane %v2702, 4
    %v2705 = vshll.u32 %v2597, 16
    %v2707 = vrot.slane %v2705, 5
    %v2708 = vor.u32 %v2704, %v2707
    %v2709 = vrot.slane %v2708, 4
    %v2711 = vshll.u32 %v2598, 16
    %v2713 = vrot.slane %v2711, 5
    %v2714 = vsel %vm416, %v2709, %v2713
    %v2715 = vshrl.u32 %v2598, 16
    %v2717 = vrot.slane %v2715, 4
    %v2718 = vor.u32 %v2717, %v2713
    %v2719 = vrot.slane %v2718, 4
    %v2721 = vshll.u32 %v2599, 16
    %v2723 = vrot.slane %v2721, 5
    %v2724 = vsel %vm416, %v2719, %v2723
    %v2725 = vshrl.u32 %v2599, 16
    %v2727 = vrot.slane %v2725, 4
    %v2728 = vor.u32 %v2727, %v2723
    %v2729 = vrot.slane %v2728, 4
    %v2731 = vshll.u32 %v2600, 16
    %v2733 = vrot.slane %v2731, 5
    %v2734 = vsel %vm416, %v2729, %v2733
    %v2735 = vshrl.u32 %v2600, 16
    %v2737 = vrot.slane %v2735, 4
    %v2738 = vor.u32 %v2737, %v2733
    %v2739 = vrot.slane %v2738, 4
    %v2741 = vshrl.u32 %v2601, 16
    %v2743 = vrot.slane %v2741, 4
    %v2744 = vshll.u32 %v2601, 16
    %v2746 = vrot.slane %v2744, 5
    %v2747 = vor.u32 %v2743, %v2746
    %v2748 = vrot.slane %v2747, 4
    %v2750 = vshll.u32 %v2602, 16
    %v2752 = vrot.slane %v2750, 5
    %v2753 = vsel %vm416, %v2748, %v2752
    %v2754 = vshrl.u32 %v2602, 16
    %v2756 = vrot.slane %v2754, 4
    %v2757 = vor.u32 %v2756, %v2752
    %v2758 = vrot.slane %v2757, 4
    %v2760 = vshll.u32 %v2603, 16
    %v2762 = vrot.slane %v2760, 5
    %v2763 = vsel %vm416, %v2758, %v2762
    %v2764 = vshrl.u32 %v2603, 16
    %v2766 = vrot.slane %v2764, 4
    %v2767 = vor.u32 %v2766, %v2762
    %v2768 = vrot.slane %v2767, 4
    %v2770 = vshll.u32 %v2604, 16
    %v2772 = vrot.slane %v2770, 5
    %v2773 = vsel %vm416, %v2768, %v2772
    %v2774 = vshrl.u32 %v2604, 16
    %v2776 = vrot.slane %v2774, 4
    %v2777 = vor.u32 %v2776, %v2772
    %v2778 = vrot.slane %v2777, 4
    %v2780 = vshrl.u32 %v2605, 16
    %v2782 = vrot.slane %v2780, 4
    %v2783 = vshll.u32 %v2605, 16
    %v2785 = vrot.slane %v2783, 5
    %v2786 = vor.u32 %v2782, %v2785
    %v2787 = vrot.slane %v2786, 4
    %v2789 = vshll.u32 %v2606, 16
    %v2791 = vrot.slane %v2789, 5
    %v2792 = vsel %vm416, %v2787, %v2791
    %v2793 = vshrl.u32 %v2606, 16
    %v2795 = vrot.slane %v2793, 4
    %v2796 = vor.u32 %v2795, %v2791
    %v2797 = vrot.slane %v2796, 4
    %v2799 = vshll.u32 %v2607, 16
    %v2801 = vrot.slane %v2799, 5
    %v2802 = vsel %vm416, %v2797, %v2801
    %v2803 = vshrl.u32 %v2607, 16
    %v2805 = vrot.slane %v2803, 4
    %v2806 = vor.u32 %v2805, %v2801
    %v2807 = vrot.slane %v2806, 4
    %v2809 = vshll.u32 %v2608, 16
    %v2811 = vrot.slane %v2809, 5
    %v2812 = vsel %vm416, %v2807, %v2811
    %v2813 = vshrl.u32 %v2608, 16
    %v2815 = vrot.slane %v2813, 4
    %v2816 = vor.u32 %v2815, %v2811
    %v2817 = vrot.slane %v2816, 4
    %v2819 = vshrl.u32 %v2609, 16
    %v2821 = vrot.slane %v2819, 4
    %v2822 = vshll.u32 %v2609, 16
    %v2824 = vrot.slane %v2822, 5
    %v2825 = vor.u32 %v2821, %v2824
    %v2826 = vrot.slane %v2825, 4
    %v2828 = vshll.u32 %v2610, 16
    %v2830 = vrot.slane %v2828, 5
    %v2831 = vsel %vm416, %v2826, %v2830
    %v2832 = vshrl.u32 %v2610, 16
    %v2834 = vrot.slane %v2832, 4
    %v2835 = vor.u32 %v2834, %v2830
    %v2836 = vrot.slane %v2835, 4
    %v2838 = vshll.u32 %v2611, 16
    %v2840 = vrot.slane %v2838, 5
    %v2841 = vsel %vm416, %v2836, %v2840
    %v2842 = vshrl.u32 %v2611, 16
    %v2844 = vrot.slane %v2842, 4
    %v2845 = vor.u32 %v2844, %v2840
    %v2846 = vrot.slane %v2845, 4
    %v2848 = vshll.u32 %v2612, 16
    %v2850 = vrot.slane %v2848, 5
    %v2851 = vsel %vm416, %v2846, %v2850
    %v2852 = vshrl.u32 %v2612, 16
    %v2854 = vrot.slane %v2852, 4
    %v2855 = vor.u32 %v2854, %v2850
    %v2856 = vrot.slane %v2855, 4
    %v2858 = vshrl.u32 %v2613, 16
    %v2860 = vrot.slane %v2858, 4
    %v2861 = vshll.u32 %v2613, 16
    %v2863 = vrot.slane %v2861, 5
    %v2864 = vor.u32 %v2860, %v2863
    %v2865 = vrot.slane %v2864, 4
    %v2867 = vshll.u32 %v2614, 16
    %v2869 = vrot.slane %v2867, 5
    %v2870 = vsel %vm416, %v2865, %v2869
    %v2871 = vshrl.u32 %v2614, 16
    %v2873 = vrot.slane %v2871, 4
    %v2874 = vor.u32 %v2873, %v2869
    %v2875 = vrot.slane %v2874, 4
    %v2877 = vshll.u32 %v2615, 16
    %v2879 = vrot.slane %v2877, 5
    %v2880 = vsel %vm416, %v2875, %v2879
    %v2881 = vshrl.u32 %v2615, 16
    %v2883 = vrot.slane %v2881, 4
    %v2884 = vor.u32 %v2883, %v2879
    %v2885 = vrot.slane %v2884, 4
    %v2887 = vshll.u32 %v2616, 16
    %v2889 = vrot.slane %v2887, 5
    %v2890 = vsel %vm416, %v2885, %v2889
    %v2891 = vshrl.u32 %v2616, 16
    %v2893 = vrot.slane %v2891, 4
    %v2894 = vor.u32 %v2893, %v2889
    %v2895 = vrot.slane %v2894, 4
    %v2897 = vshrl.u32 %v2617, 16
    %v2899 = vrot.slane %v2897, 4
    %v2900 = vshll.u32 %v2617, 16
    %v2902 = vrot.slane %v2900, 5
    %v2903 = vor.u32 %v2899, %v2902
    %v2904 = vrot.slane %v2903, 4
    %v2906 = vshll.u32 %v2618, 16
    %v2908 = vrot.slane %v2906, 5
    %v2909 = vsel %vm416, %v2904, %v2908
    %v2910 = vshrl.u32 %v2618, 16
    %v2912 = vrot.slane %v2910, 4
    %v2913 = vor.u32 %v2912, %v2908
    %v2914 = vrot.slane %v2913, 4
    %v2916 = vshll.u32 %v2619, 16
    %v2918 = vrot.slane %v2916, 5
    %v2919 = vsel %vm416, %v2914, %v2918
    %v2920 = vshrl.u32 %v2619, 16
    %v2922 = vrot.slane %v2920, 4
    %v2923 = vor.u32 %v2922, %v2918
    %v2924 = vrot.slane %v2923, 4
    %v2926 = vshll.u32 %v2620, 16
    %v2928 = vrot.slane %v2926, 5
    %v2929 = vsel %vm416, %v2924, %v2928
    %v2930 = vshrl.u32 %v2620, 16
    %v2932 = vrot.slane %v2930, 4
    %v2933 = vor.u32 %v2932, %v2928
    %v2934 = vrot.slane %v2933, 4
    %v2936 = vshrl.u32 %v2621, 16
    %v2938 = vrot.slane %v2936, 4
    %v2939 = vshll.u32 %v2621, 16
    %v2941 = vrot.slane %v2939, 5
    %v2942 = vor.u32 %v2938, %v2941
    %v2943 = vrot.slane %v2942, 4
    %v2945 = vshll.u32 %v2622, 16
    %v2947 = vrot.slane %v2945, 5
    %v2948 = vsel %vm416, %v2943, %v2947
    %v2949 = vshrl.u32 %v2622, 16
    %v2951 = vrot.slane %v2949, 4
    %v2952 = vor.u32 %v2951, %v2947
    %v2953 = vrot.slane %v2952, 4
    %v2955 = vshll.u32 %v2623, 16
    %v2957 = vrot.slane %v2955, 5
    %v2958 = vsel %vm416, %v2953, %v2957
    %v2959 = vshrl.u32 %v2623, 16
    %v2961 = vrot.slane %v2959, 4
    %v2962 = vor.u32 %v2961, %v2957
    %v2963 = vrot.slane %v2962, 4
    %v2965 = vshll.u32 %v2624, 16
    %v2967 = vrot.slane %v2965, 5
    %v2968 = vsel %vm416, %v2963, %v2967
    %v2969 = vshrl.u32 %v2624, 16
    %v2971 = vrot.slane %v2969, 4
    %v2972 = vor.u32 %v2971, %v2967
    %v2973 = vrot.slane %v2972, 4
    %v2975 = vshrl.u32 %v2625, 16
    %v2977 = vrot.slane %v2975, 4
    %v2978 = vshll.u32 %v2625, 16
    %v2980 = vrot.slane %v2978, 5
    %v2981 = vor.u32 %v2977, %v2980
    %v2982 = vrot.slane %v2981, 4
    %v2984 = vshll.u32 %v2626, 16
    %v2986 = vrot.slane %v2984, 5
    %v2987 = vsel %vm416, %v2982, %v2986
    %v2988 = vshrl.u32 %v2626, 16
    %v2990 = vrot.slane %v2988, 4
    %v2991 = vor.u32 %v2990, %v2986
    %v2992 = vrot.slane %v2991, 4
    %v2994 = vshll.u32 %v2627, 16
    %v2996 = vrot.slane %v2994, 5
    %v2997 = vsel %vm416, %v2992, %v2996
    %v2998 = vshrl.u32 %v2627, 16
    %v3000 = vrot.slane %v2998, 4
    %v3001 = vor.u32 %v3000, %v2996
    %v3002 = vrot.slane %v3001, 4
    %v3004 = vshll.u32 %v2628, 16
    %v3006 = vrot.slane %v3004, 5
    %v3007 = vsel %vm416, %v3002, %v3006
    %v3008 = vshrl.u32 %v2628, 16
    %v3010 = vrot.slane %v3008, 4
    %v3011 = vor.u32 %v3010, %v3006
    %v3012 = vrot.slane %v3011, 4
    %v3014 = vshrl.u32 %v2629, 16
    %v3016 = vrot.slane %v3014, 4
    %v3017 = vshll.u32 %v2629, 16
    %v3019 = vrot.slane %v3017, 5
    %v3020 = vor.u32 %v3016, %v3019
    %v3021 = vrot.slane %v3020, 4
    %v3023 = vshll.u32 %v2630, 16
    %v3025 = vrot.slane %v3023, 5
    %v3026 = vsel %vm416, %v3021, %v3025
    %v3027 = vshrl.u32 %v2630, 16
    %v3029 = vrot.slane %v3027, 4
    %v3030 = vor.u32 %v3029, %v3025
    %v3031 = vrot.slane %v3030, 4
    %v3033 = vshll.u32 %v2631, 16
    %v3035 = vrot.slane %v3033, 5
    %v3036 = vsel %vm416, %v3031, %v3035
    %v3037 = vshrl.u32 %v2631, 16
    %v3039 = vrot.slane %v3037, 4
    %v3040 = vor.u32 %v3039, %v3035
    %v3041 = vrot.slane %v3040, 4
    %v3043 = vshll.u32 %v2632, 16
    %v3045 = vrot.slane %v3043, 5
    %v3046 = vsel %vm416, %v3041, %v3045
    %v3047 = vshrl.u32 %v2632, 16
    %v3049 = vrot.slane %v3047, 4
    %v3050 = vor.u32 %v3049, %v3045
    %v3051 = vrot.slane %v3050, 4
    %v3053 = vshrl.u32 %v2633, 16
    %v3055 = vrot.slane %v3053, 4
    %v3056 = vshll.u32 %v2633, 16
    %v3058 = vrot.slane %v3056, 5
    %v3059 = vor.u32 %v3055, %v3058
    %v3060 = vrot.slane %v3059, 4
    %v3062 = vshll.u32 %v2634, 16
    %v3064 = vrot.slane %v3062, 5
    %v3065 = vsel %vm416, %v3060, %v3064
    %v3066 = vshrl.u32 %v2634, 16
    %v3068 = vrot.slane %v3066, 4
    %v3069 = vor.u32 %v3068, %v3064
    %v3070 = vrot.slane %v3069, 4
    %v3072 = vshll.u32 %v2635, 16
    %v3074 = vrot.slane %v3072, 5
    %v3075 = vsel %vm416, %v3070, %v3074
    %v3076 = vshrl.u32 %v2635, 16
    %v3078 = vrot.slane %v3076, 4
    %v3079 = vor.u32 %v3078, %v3074
    %v3080 = vrot.slane %v3079, 4
    %v3082 = vshll.u32 %v2636, 16
    %v3084 = vrot.slane %v3082, 5
    %v3085 = vsel %vm416, %v3080, %v3084
    %v3086 = vshrl.u32 %v2636, 16
    %v3088 = vrot.slane %v3086, 4
    %v3089 = vor.u32 %v3088, %v3084
    %v3090 = vrot.slane %v3089, 4
    %v3092 = vshrl.u32 %v2637, 16
    %v3094 = vrot.slane %v3092, 4
    %v3095 = vshll.u32 %v2637, 16
    %v3097 = vrot.slane %v3095, 5
    %v3098 = vor.u32 %v3094, %v3097
    %v3099 = vrot.slane %v3098, 4
    %v3101 = vshll.u32 %v2638, 16
    %v3103 = vrot.slane %v3101, 5
    %v3104 = vsel %vm416, %v3099, %v3103
    %v3105 = vshrl.u32 %v2638, 16
    %v3107 = vrot.slane %v3105, 4
    %v3108 = vor.u32 %v3107, %v3103
    %v3109 = vrot.slane %v3108, 4
    %v3111 = vshll.u32 %v2639, 16
    %v3113 = vrot.slane %v3111, 5
    %v3114 = vsel %vm416, %v3109, %v3113
    %v3115 = vshrl.u32 %v2639, 16
    %v3117 = vrot.slane %v3115, 4
    %v3118 = vor.u32 %v3117, %v3113
    %v3119 = vrot.slane %v3118, 4
    %v3121 = vshll.u32 %v2640, 16
    %v3123 = vrot.slane %v3121, 5
    %v3124 = vsel %vm416, %v3119, %v3123
    %v3125 = vshrl.u32 %v2640, 16
    %v3127 = vrot.slane %v3125, 4
    %v3128 = vor.u32 %v3127, %v3123
    %v3129 = vrot.slane %v3128, 4
    %v3131 = vshrl.u32 %v2641, 16
    %v3133 = vrot.slane %v3131, 4
    %v3134 = vshll.u32 %v2641, 16
    %v3136 = vrot.slane %v3134, 5
    %v3137 = vor.u32 %v3133, %v3136
    %v3138 = vrot.slane %v3137, 4
    %v3140 = vshll.u32 %v2642, 16
    %v3142 = vrot.slane %v3140, 5
    %v3143 = vsel %vm416, %v3138, %v3142
    %v3144 = vshrl.u32 %v2642, 16
    %v3146 = vrot.slane %v3144, 4
    %v3147 = vor.u32 %v3146, %v3142
    %v3148 = vrot.slane %v3147, 4
    %v3150 = vshll.u32 %v2643, 16
    %v3152 = vrot.slane %v3150, 5
    %v3153 = vsel %vm416, %v3148, %v3152
    %v3154 = vshrl.u32 %v2643, 16
    %v3156 = vrot.slane %v3154, 4
    %v3157 = vor.u32 %v3156, %v3152
    %v3158 = vrot.slane %v3157, 4
    %v3160 = vshll.u32 %v2644, 16
    %v3162 = vrot.slane %v3160, 5
    %v3163 = vsel %vm416, %v3158, %v3162
    %v3164 = vshrl.u32 %v2644, 16
    %v3166 = vrot.slane %v3164, 4
    %v3167 = vor.u32 %v3166, %v3162
    %v3168 = vrot.slane %v3167, 4
    %v3170 = vshrl.u32 %v2645, 16
    %v3172 = vrot.slane %v3170, 4
    %v3173 = vshll.u32 %v2645, 16
    %v3175 = vrot.slane %v3173, 5
    %v3176 = vor.u32 %v3172, %v3175
    %v3177 = vrot.slane %v3176, 4
    %v3179 = vshll.u32 %v2646, 16
    %v3181 = vrot.slane %v3179, 5
    %v3182 = vsel %vm416, %v3177, %v3181
    %v3183 = vshrl.u32 %v2646, 16
    %v3185 = vrot.slane %v3183, 4
    %v3186 = vor.u32 %v3185, %v3181
    %v3187 = vrot.slane %v3186, 4
    %v3189 = vshll.u32 %v2647, 16
    %v3191 = vrot.slane %v3189, 5
    %v3192 = vsel %vm416, %v3187, %v3191
    %v3193 = vshrl.u32 %v2647, 16
    %v3195 = vrot.slane %v3193, 4
    %v3196 = vor.u32 %v3195, %v3191
    %v3197 = vrot.slane %v3196, 4
    %v3199 = vshll.u32 %v2648, 16
    %v3201 = vrot.slane %v3199, 5
    %v3202 = vsel %vm416, %v3197, %v3201
    %v3203 = vshrl.u32 %v2648, 16
    %v3205 = vrot.slane %v3203, 4
    %v3206 = vor.u32 %v3205, %v3201
    %v3207 = vrot.slane %v3206, 4
    %v3209 = vshrl.u32 %v2649, 16
    %v3211 = vrot.slane %v3209, 4
    %v3212 = vshll.u32 %v2649, 16
    %v3214 = vrot.slane %v3212, 5
    %v3215 = vor.u32 %v3211, %v3214
    %v3216 = vrot.slane %v3215, 4
    %v3218 = vshll.u32 %v2650, 16
    %v3220 = vrot.slane %v3218, 5
    %v3221 = vsel %vm416, %v3216, %v3220
    %v3222 = vshrl.u32 %v2650, 16
    %v3224 = vrot.slane %v3222, 4
    %v3225 = vor.u32 %v3224, %v3220
    %v3226 = vrot.slane %v3225, 4
    %v3228 = vshll.u32 %v2651, 16
    %v3230 = vrot.slane %v3228, 5
    %v3231 = vsel %vm416, %v3226, %v3230
    %v3232 = vshrl.u32 %v2651, 16
    %v3234 = vrot.slane %v3232, 4
    %v3235 = vor.u32 %v3234, %v3230
    %v3236 = vrot.slane %v3235, 4
    %v3238 = vshll.u32 %v2652, 16
    %v3240 = vrot.slane %v3238, 5
    %v3241 = vsel %vm416, %v3236, %v3240
    %v3242 = vshrl.u32 %v2652, 16
    %v3244 = vrot.slane %v3242, 4
    %v3245 = vor.u32 %v3244, %v3240
    %v3246 = vrot.slane %v3245, 4
    %v3248 = vshrl.u32 %v2653, 16
    %v3250 = vrot.slane %v3248, 4
    %v3251 = vshll.u32 %v2653, 16
    %v3253 = vrot.slane %v3251, 5
    %v3254 = vor.u32 %v3250, %v3253
    %v3255 = vrot.slane %v3254, 4
    %v3257 = vshll.u32 %v2654, 16
    %v3259 = vrot.slane %v3257, 5
    %v3260 = vsel %vm416, %v3255, %v3259
    %v3261 = vshrl.u32 %v2654, 16
    %v3263 = vrot.slane %v3261, 4
    %v3264 = vor.u32 %v3263, %v3259
    %v3265 = vrot.slane %v3264, 4
    %v3267 = vshll.u32 %v2655, 16
    %v3269 = vrot.slane %v3267, 5
    %v3270 = vsel %vm416, %v3265, %v3269
    %v3271 = vshrl.u32 %v2655, 16
    %v3273 = vrot.slane %v3271, 4
    %v3274 = vor.u32 %v3273, %v3269
    %v3275 = vrot.slane %v3274, 4
    %v3277 = vshll.u32 %v2656, 16
    %v3279 = vrot.slane %v3277, 5
    %v3280 = vsel %vm416, %v3275, %v3279
    %v3281 = vshrl.u32 %v2656, 16
    %v3283 = vrot.slane %v3281, 4
    %v3284 = vor.u32 %v3283, %v3279
    %v3285 = vrot.slane %v3284, 4
    %v3287 = vshrl.u32 %v2657, 16
    %v3289 = vrot.slane %v3287, 4
    %v3290 = vshll.u32 %v2657, 16
    %v3292 = vrot.slane %v3290, 5
    %v3293 = vor.u32 %v3289, %v3292
    %v3294 = vrot.slane %v3293, 4
    %v3296 = vshll.u32 %v2658, 16
    %v3298 = vrot.slane %v3296, 5
    %v3299 = vsel %vm416, %v3294, %v3298
    %v3300 = vshrl.u32 %v2658, 16
    %v3302 = vrot.slane %v3300, 4
    %v3303 = vor.u32 %v3302, %v3298
    %v3304 = vrot.slane %v3303, 4
    %v3306 = vshll.u32 %v2659, 16
    %v3308 = vrot.slane %v3306, 5
    %v3309 = vsel %vm416, %v3304, %v3308
    %v3310 = vshrl.u32 %v2659, 16
    %v3312 = vrot.slane %v3310, 4
    %v3313 = vor.u32 %v3312, %v3308
    %v3314 = vrot.slane %v3313, 4
    %v3316 = vshll.u32 %v2660, 16
    %v3318 = vrot.slane %v3316, 5
    %v3319 = vsel %vm416, %v3314, %v3318
    %v3320 = vshrl.u32 %v2660, 16
    %v3322 = vrot.slane %v3320, 4
    %v3323 = vor.u32 %v3322, %v3318
    %v3324 = vrot.slane %v3323, 4
    %v3326 = vshrl.u32 %v2661, 16
    %v3328 = vrot.slane %v3326, 4
    %v3329 = vshll.u32 %v2661, 16
    %v3331 = vrot.slane %v3329, 5
    %v3332 = vor.u32 %v3328, %v3331
    %v3333 = vrot.slane %v3332, 4
    %v3335 = vshll.u32 %v2662, 16
    %v3337 = vrot.slane %v3335, 5
    %v3338 = vsel %vm416, %v3333, %v3337
    %v3339 = vshrl.u32 %v2662, 16
    %v3341 = vrot.slane %v3339, 4
    %v3342 = vor.u32 %v3341, %v3337
    %v3343 = vrot.slane %v3342, 4
    %v3345 = vshll.u32 %v2663, 16
    %v3347 = vrot.slane %v3345, 5
    %v3348 = vsel %vm416, %v3343, %v3347
    %v3349 = vshrl.u32 %v2663, 16
    %v3351 = vrot.slane %v3349, 4
    %v3352 = vor.u32 %v3351, %v3347
    %v3353 = vrot.slane %v3352, 4
    %v3355 = vshll.u32 %v2664, 16
    %v3357 = vrot.slane %v3355, 5
    %v3358 = vsel %vm416, %v3353, %v3357
    %v3359 = vshrl.u32 %v2664, 16
    %v3361 = vrot.slane %v3359, 4
    %v3362 = vor.u32 %v3361, %v3357
    %v3363 = vrot.slane %v3362, 4
    %v3365 = vshrl.u32 %v2665, 16
    %v3367 = vrot.slane %v3365, 4
    %v3368 = vshll.u32 %v2665, 16
    %v3370 = vrot.slane %v3368, 5
    %v3371 = vor.u32 %v3367, %v3370
    %v3372 = vrot.slane %v3371, 4
    %v3374 = vshll.u32 %v2666, 16
    %v3376 = vrot.slane %v3374, 5
    %v3377 = vsel %vm416, %v3372, %v3376
    %v3378 = vshrl.u32 %v2666, 16
    %v3380 = vrot.slane %v3378, 4
    %v3381 = vor.u32 %v3380, %v3376
    %v3382 = vrot.slane %v3381, 4
    %v3384 = vshll.u32 %v2667, 16
    %v3386 = vrot.slane %v3384, 5
    %v3387 = vsel %vm416, %v3382, %v3386
    %v3388 = vshrl.u32 %v2667, 16
    %v3390 = vrot.slane %v3388, 4
    %v3391 = vor.u32 %v3390, %v3386
    %v3392 = vrot.slane %v3391, 4
    %v3394 = vshll.u32 %v2668, 16
    %v3396 = vrot.slane %v3394, 5
    %v3397 = vsel %vm416, %v3392, %v3396
    %v3398 = vshrl.u32 %v2668, 16
    %v3400 = vrot.slane %v3398, 4
    %v3401 = vor.u32 %v3400, %v3396
    %v3402 = vrot.slane %v3401, 4
    %v3404 = vshrl.u32 %v2669, 16
    %v3406 = vrot.slane %v3404, 4
    %v3407 = vshll.u32 %v2669, 16
    %v3409 = vrot.slane %v3407, 5
    %v3410 = vor.u32 %v3406, %v3409
    %v3411 = vrot.slane %v3410, 4
    %v3413 = vshll.u32 %v2670, 16
    %v3415 = vrot.slane %v3413, 5
    %v3416 = vsel %vm416, %v3411, %v3415
    %v3417 = vshrl.u32 %v2670, 16
    %v3419 = vrot.slane %v3417, 4
    %v3420 = vor.u32 %v3419, %v3415
    %v3421 = vrot.slane %v3420, 4
    %v3423 = vshll.u32 %v2671, 16
    %v3425 = vrot.slane %v3423, 5
    %v3426 = vsel %vm416, %v3421, %v3425
    %v3427 = vshrl.u32 %v2671, 16
    %v3429 = vrot.slane %v3427, 4
    %v3430 = vor.u32 %v3429, %v3425
    %v3431 = vrot.slane %v3430, 4
    %v3433 = vshll.u32 %v2672, 16
    %v3435 = vrot.slane %v3433, 5
    %v3436 = vsel %vm416, %v3431, %v3435
    %v3437 = vshrl.u32 %v2672, 16
    %v3439 = vrot.slane %v3437, 4
    %v3440 = vor.u32 %v3439, %v3435
    %v3441 = vrot.slane %v3440, 4
    %v3443 = vshrl.u32 %v2673, 16
    %v3445 = vrot.slane %v3443, 4
    %v3446 = vshll.u32 %v2673, 16
    %v3448 = vrot.slane %v3446, 5
    %v3449 = vor.u32 %v3445, %v3448
    %v3450 = vrot.slane %v3449, 4
    %v3452 = vshll.u32 %v2674, 16
    %v3454 = vrot.slane %v3452, 5
    %v3455 = vsel %vm416, %v3450, %v3454
    %v3456 = vshrl.u32 %v2674, 16
    %v3458 = vrot.slane %v3456, 4
    %v3459 = vor.u32 %v3458, %v3454
    %v3460 = vrot.slane %v3459, 4
    %v3462 = vshll.u32 %v2675, 16
    %v3464 = vrot.slane %v3462, 5
    %v3465 = vsel %vm416, %v3460, %v3464
    %v3466 = vshrl.u32 %v2675, 16
    %v3468 = vrot.slane %v3466, 4
    %v3469 = vor.u32 %v3468, %v3464
    %v3470 = vrot.slane %v3469, 4
    %v3472 = vshll.u32 %v2676, 16
    %v3474 = vrot.slane %v3472, 5
    %v3475 = vsel %vm416, %v3470, %v3474
    %v3476 = vshrl.u32 %v2676, 16
    %v3478 = vrot.slane %v3476, 4
    %v3479 = vor.u32 %v3478, %v3474
    %v3480 = vrot.slane %v3479, 4
    %v3482 = vshrl.u32 %v2677, 16
    %v3484 = vrot.slane %v3482, 4
    %v3485 = vshll.u32 %v2677, 16
    %v3487 = vrot.slane %v3485, 5
    %v3488 = vor.u32 %v3484, %v3487
    %v3489 = vrot.slane %v3488, 4
    %v3491 = vshll.u32 %v2678, 16
    %v3493 = vrot.slane %v3491, 5
    %v3494 = vsel %vm416, %v3489, %v3493
    %v3495 = vshrl.u32 %v2678, 16
    %v3497 = vrot.slane %v3495, 4
    %v3498 = vor.u32 %v3497, %v3493
    %v3499 = vrot.slane %v3498, 4
    %v3501 = vshll.u32 %v2679, 16
    %v3503 = vrot.slane %v3501, 5
    %v3504 = vsel %vm416, %v3499, %v3503
    %v3505 = vshrl.u32 %v2679, 16
    %v3507 = vrot.slane %v3505, 4
    %v3508 = vor.u32 %v3507, %v3503
    %v3509 = vrot.slane %v3508, 4
    %v3511 = vshll.u32 %v2680, 16
    %v3513 = vrot.slane %v3511, 5
    %v3514 = vsel %vm416, %v3509, %v3513
    %v3515 = vshrl.u32 %v2680, 16
    %v3517 = vrot.slane %v3515, 4
    %v3518 = vor.u32 %v3517, %v3513
    %v3519 = vrot.slane %v3518, 4
    %v3521 = vshrl.u32 %v2681, 16
    %v3523 = vrot.slane %v3521, 4
    %v3524 = vshll.u32 %v2681, 16
    %v3526 = vrot.slane %v3524, 5
    %v3527 = vor.u32 %v3523, %v3526
    %v3528 = vrot.slane %v3527, 4
    %v3530 = vshll.u32 %v2682, 16
    %v3532 = vrot.slane %v3530, 5
    %v3533 = vsel %vm416, %v3528, %v3532
    %v3534 = vshrl.u32 %v2682, 16
    %v3536 = vrot.slane %v3534, 4
    %v3537 = vor.u32 %v3536, %v3532
    %v3538 = vrot.slane %v3537, 4
    %v3540 = vshll.u32 %v2683, 16
    %v3542 = vrot.slane %v3540, 5
    %v3543 = vsel %vm416, %v3538, %v3542
    %v3544 = vshrl.u32 %v2683, 16
    %v3546 = vrot.slane %v3544, 4
    %v3547 = vor.u32 %v3546, %v3542
    %v3548 = vrot.slane %v3547, 4
    %v3550 = vshll.u32 %v2684, 16
    %v3552 = vrot.slane %v3550, 5
    %v3553 = vsel %vm416, %v3548, %v3552
    %v3554 = vshrl.u32 %v2684, 16
    %v3556 = vrot.slane %v3554, 4
    %v3557 = vor.u32 %v3556, %v3552
    %v3558 = vrot.slane %v3557, 4
    %v3560 = vshrl.u32 %v2685, 16
    %v3562 = vrot.slane %v3560, 4
    %v3563 = vshll.u32 %v2685, 16
    %v3565 = vrot.slane %v3563, 5
    %v3566 = vor.u32 %v3562, %v3565
    %v3567 = vrot.slane %v3566, 4
    %v3569 = vshll.u32 %v2686, 16
    %v3571 = vrot.slane %v3569, 5
    %v3572 = vsel %vm416, %v3567, %v3571
    %v3573 = vshrl.u32 %v2686, 16
    %v3575 = vrot.slane %v3573, 4
    %v3576 = vor.u32 %v3575, %v3571
    %v3577 = vrot.slane %v3576, 4
    %v3579 = vshll.u32 %v2687, 16
    %v3581 = vrot.slane %v3579, 5
    %v3582 = vsel %vm416, %v3577, %v3581
    %v3583 = vshrl.u32 %v2687, 16
    %v3585 = vrot.slane %v3583, 4
    %v3586 = vor.u32 %v3585, %v3581
    %v3587 = vrot.slane %v3586, 4
    %v3589 = vshll.u32 %v2688, 16
    %v3591 = vrot.slane %v3589, 5
    %v3592 = vsel %vm416, %v3587, %v3591
    %v3593 = vshrl.u32 %v2688, 16
    %v3595 = vrot.slane %v3593, 4
    %v3596 = vor.u32 %v3595, %v3591
    %v3597 = vrot.slane %v3596, 4
    %v3599 = vshrl.u32 %v2689, 16
    %v3601 = vrot.slane %v3599, 4
    %v3602 = vshll.u32 %v2689, 16
    %v3604 = vrot.slane %v3602, 5
    %v3605 = vor.u32 %v3601, %v3604
    %v3606 = vrot.slane %v3605, 4
    %v3608 = vshll.u32 %v2690, 16
    %v3610 = vrot.slane %v3608, 5
    %v3611 = vsel %vm416, %v3606, %v3610
    %v3612 = vshrl.u32 %v2690, 16
    %v3614 = vrot.slane %v3612, 4
    %v3615 = vor.u32 %v3614, %v3610
    %v3616 = vrot.slane %v3615, 4
    %v3618 = vshll.u32 %v2691, 16
    %v3620 = vrot.slane %v3618, 5
    %v3621 = vsel %vm416, %v3616, %v3620
    %v3622 = vshrl.u32 %v2691, 16
    %v3624 = vrot.slane %v3622, 4
    %v3625 = vor.u32 %v3624, %v3620
    %v3626 = vrot.slane %v3625, 4
    %v3628 = vshll.u32 %v2692, 16
    %v3630 = vrot.slane %v3628, 5
    %v3631 = vsel %vm416, %v3626, %v3630
    %v3632 = vshrl.u32 %v2692, 16
    %v3634 = vrot.slane %v3632, 4
    %v3635 = vor.u32 %v3634, %v3630
    %v3636 = vrot.slane %v3635, 4
    %v3638 = vshrl.u32 %v2693, 16
    %v3640 = vrot.slane %v3638, 4
    %v3641 = vshll.u32 %v2693, 16
    %v3643 = vrot.slane %v3641, 5
    %v3644 = vor.u32 %v3640, %v3643
    %v3645 = vrot.slane %v3644, 4
    %v3647 = vshll.u32 %v2694, 16
    %v3649 = vrot.slane %v3647, 5
    %v3650 = vsel %vm416, %v3645, %v3649
    %v3651 = vshrl.u32 %v2694, 16
    %v3653 = vrot.slane %v3651, 4
    %v3654 = vor.u32 %v3653, %v3649
    %v3655 = vrot.slane %v3654, 4
    %v3657 = vshll.u32 %v2695, 16
    %v3659 = vrot.slane %v3657, 5
    %v3660 = vsel %vm416, %v3655, %v3659
    %v3661 = vshrl.u32 %v2695, 16
    %v3663 = vrot.slane %v3661, 4
    %v3664 = vor.u32 %v3663, %v3659
    %v3665 = vrot.slane %v3664, 4
    %v3667 = vshll.u32 %v2696, 16
    %v3669 = vrot.slane %v3667, 5
    %v3670 = vsel %vm416, %v3665, %v3669
    %v3671 = vshrl.u32 %v2696, 16
    %v3673 = vrot.slane %v3671, 4
    %v3674 = vor.u32 %v3673, %v3669
    %v3675 = vrot.slane %v3674, 4
    %v3677 = vshrl.u32 %v2697, 16
    %v3679 = vrot.slane %v3677, 4
    %v3680 = vshll.u32 %v2697, 16
    %v3682 = vrot.slane %v3680, 5
    %v3683 = vor.u32 %v3679, %v3682
    %v3684 = vrot.slane %v3683, 4
    %v3686 = vshll.u32 %v2698, 16
    %v3688 = vrot.slane %v3686, 5
    %v3689 = vsel %vm416, %v3684, %v3688
    %v3690 = vshrl.u32 %v2698, 16
    %v3692 = vrot.slane %v3690, 4
    %v3693 = vor.u32 %v3692, %v3688
    %v3694 = vrot.slane %v3693, 4
    %v3696 = vshll.u32 %v2699, 16
    %v3698 = vrot.slane %v3696, 5
    %v3699 = vsel %vm416, %v3694, %v3698
    %v3700 = vshrl.u32 %v2699, 16
    %v3702 = vrot.slane %v3700, 4
    %v3703 = vor.u32 %v3702, %v3698
    %v3704 = vrot.slane %v3703, 4
    %v3706 = vshll.u32 %v2700, 16
    %v3708 = vrot.slane %v3706, 5
    %v3709 = vsel %vm416, %v3704, %v3708
    %v3710 = vshrl.u32 %v2700, 16
    %v3712 = vrot.slane %v3710, 4
    %v3713 = vor.u32 %v3712, %v3708
    %v3714 = vrot.slane %v3713, 4
    %v3819 = vadd.bf16 %v2478, %v2714
    %v3820 = vadd.bf16 %v2479, %v2724
    %v3821 = vadd.bf16 %v2480, %v2734
    %v3822 = vadd.bf16 %v2481, %v2739
    %v3823 = vadd.bf16 %v2482, %v2753
    %v3824 = vadd.bf16 %v2483, %v2763
    %v3825 = vadd.bf16 %v2484, %v2773
    %v3826 = vadd.bf16 %v2485, %v2778
    %v3827 = vadd.bf16 %v2486, %v2792
    %v3828 = vadd.bf16 %v2487, %v2802
    %v3829 = vadd.bf16 %v2488, %v2812
    %v3830 = vadd.bf16 %v2489, %v2817
    %v3831 = vadd.bf16 %v2490, %v2831
    %v3832 = vadd.bf16 %v2491, %v2841
    %v3833 = vadd.bf16 %v2492, %v2851
    %v3834 = vadd.bf16 %v2493, %v2856
    %v3835 = vadd.bf16 %v2494, %v2870
    %v3836 = vadd.bf16 %v2495, %v2880
    %v3837 = vadd.bf16 %v2496, %v2890
    %v3838 = vadd.bf16 %v2497, %v2895
    %v3839 = vadd.bf16 %v2498, %v2909
    %v3840 = vadd.bf16 %v2499, %v2919
    %v3841 = vadd.bf16 %v2500, %v2929
    %v3842 = vadd.bf16 %v2501, %v2934
    %v3843 = vadd.bf16 %v2502, %v2948
    %v3844 = vadd.bf16 %v2503, %v2958
    %v3845 = vadd.bf16 %v2504, %v2968
    %v3846 = vadd.bf16 %v2505, %v2973
    %v3847 = vadd.bf16 %v2506, %v2987
    %v3848 = vadd.bf16 %v2507, %v2997
    %v3849 = vadd.bf16 %v2508, %v3007
    %v3850 = vadd.bf16 %v2509, %v3012
    %v3851 = vadd.bf16 %v2510, %v3026
    %v3852 = vadd.bf16 %v2511, %v3036
    %v3853 = vadd.bf16 %v2512, %v3046
    %v3854 = vadd.bf16 %v2513, %v3051
    %v3855 = vadd.bf16 %v2514, %v3065
    %v3856 = vadd.bf16 %v2515, %v3075
    %v3857 = vadd.bf16 %v2516, %v3085
    %v3858 = vadd.bf16 %v2517, %v3090
    %v3859 = vadd.bf16 %v2518, %v3104
    %v3860 = vadd.bf16 %v2519, %v3114
    %v3861 = vadd.bf16 %v2520, %v3124
    %v3862 = vadd.bf16 %v2521, %v3129
    %v3863 = vadd.bf16 %v2522, %v3143
    %v3864 = vadd.bf16 %v2523, %v3153
    %v3865 = vadd.bf16 %v2524, %v3163
    %v3866 = vadd.bf16 %v2525, %v3168
    %v3867 = vadd.bf16 %v2526, %v3182
    %v3868 = vadd.bf16 %v2527, %v3192
    %v3869 = vadd.bf16 %v2528, %v3202
    %v3870 = vadd.bf16 %v2529, %v3207
    %v3871 = vadd.bf16 %v2530, %v3221
    %v3872 = vadd.bf16 %v2531, %v3231
    %v3873 = vadd.bf16 %v2532, %v3241
    %v3874 = vadd.bf16 %v2533, %v3246
    %v3875 = vadd.bf16 %v2534, %v3260
    %v3876 = vadd.bf16 %v2535, %v3270
    %v3877 = vadd.bf16 %v2536, %v3280
    %v3878 = vadd.bf16 %v2537, %v3285
    %v3879 = vadd.bf16 %v2538, %v3299
    %v3880 = vadd.bf16 %v2539, %v3309
    %v3881 = vadd.bf16 %v2540, %v3319
    %v3882 = vadd.bf16 %v2541, %v3324
    %v3883 = vadd.bf16 %v2542, %v3338
    %v3884 = vadd.bf16 %v2543, %v3348
    %v3885 = vadd.bf16 %v2544, %v3358
    %v3886 = vadd.bf16 %v2545, %v3363
    %v3887 = vadd.bf16 %v2546, %v3377
    %v3888 = vadd.bf16 %v2547, %v3387
    %v3889 = vadd.bf16 %v2548, %v3397
    %v3890 = vadd.bf16 %v2549, %v3402
    %v3891 = vadd.bf16 %v2550, %v3416
    %v3892 = vadd.bf16 %v2551, %v3426
    %v3893 = vadd.bf16 %v2552, %v3436
    %v3894 = vadd.bf16 %v2553, %v3441
    %v3895 = vadd.bf16 %v2554, %v3455
    %v3896 = vadd.bf16 %v2555, %v3465
    %v3897 = vadd.bf16 %v2556, %v3475
    %v3898 = vadd.bf16 %v2557, %v3480
    %v3899 = vadd.bf16 %v2558, %v3494
    %v3900 = vadd.bf16 %v2559, %v3504
    %v3901 = vadd.bf16 %v2560, %v3514
    %v3902 = vadd.bf16 %v2561, %v3519
    %v3903 = vadd.bf16 %v2562, %v3533
    %v3904 = vadd.bf16 %v2563, %v3543
    %v3905 = vadd.bf16 %v2564, %v3553
    %v3906 = vadd.bf16 %v2565, %v3558
    %v3907 = vadd.bf16 %v2566, %v3572
    %v3908 = vadd.bf16 %v2567, %v3582
    %v3909 = vadd.bf16 %v2568, %v3592
    %v3910 = vadd.bf16 %v2569, %v3597
    %v3911 = vadd.bf16 %v2570, %v3611
    %v3912 = vadd.bf16 %v2571, %v3621
    %v3913 = vadd.bf16 %v2572, %v3631
    %v3914 = vadd.bf16 %v2573, %v3636
    %v3915 = vadd.bf16 %v2574, %v3650
    %v3916 = vadd.bf16 %v2575, %v3660
    %v3917 = vadd.bf16 %v2576, %v3670
    %v3918 = vadd.bf16 %v2577, %v3675
    %v3919 = vadd.bf16 %v2578, %v3689
    %v3920 = vadd.bf16 %v2579, %v3699
    %v3921 = vadd.bf16 %v2580, %v3709
    %v3922 = vadd.bf16 %v2581, %v3714
    %s3923 = sld [smem:[#allocation8 + $0x82]]
    %p3925 = scmp.ne.f32.partialorder %s3923, %s3923
    %s3926 = sshrl.u32 %s3923, 16
    %s3927 = sand.u32 %s3926, 1
    %s3928 = sadd.s32 32767, %s3927
    %s3929 = sadd.s32 %s3923, %s3928
    %s3930 = sand.u32 %s3929, 4294901760
    %s3931 = scalar_select %p3925, 2143289344, %s3930
    %s3933 = sshrl.u32 %s3931, 16
    %s3934 = sshll.u32 %s3933, 16
    %s3935 = sor.u32 %s3933, %s3934
    %v3936 = vstv %s3935
    %v3938 = vmul.bf16 %v68, %v3936
    %v3939 = vmul.bf16 %v69, %v3936
    %v3940 = vmul.bf16 %v70, %v3936
    %v3941 = vmul.bf16 %v71, %v3936
    %v3942 = vmul.bf16 %v72, %v3936
    %v3943 = vmul.bf16 %v73, %v3936
    %v3944 = vmul.bf16 %v74, %v3936
    %v3945 = vmul.bf16 %v75, %v3936
    %v3946 = vmul.bf16 %v76, %v3936
    %v3947 = vmul.bf16 %v77, %v3936
    %v3948 = vmul.bf16 %v78, %v3936
    %v3949 = vmul.bf16 %v79, %v3936
    %v3950 = vmul.bf16 %v80, %v3936
    %v3951 = vmul.bf16 %v81, %v3936
    %v3952 = vmul.bf16 %v82, %v3936
    %v3953 = vmul.bf16 %v83, %v3936
    %v3954 = vmul.bf16 %v84, %v3936
    %v3955 = vmul.bf16 %v85, %v3936
    %v3956 = vmul.bf16 %v86, %v3936
    %v3957 = vmul.bf16 %v87, %v3936
    %v3958 = vmul.bf16 %v88, %v3936
    %v3959 = vmul.bf16 %v89, %v3936
    %v3960 = vmul.bf16 %v90, %v3936
    %v3961 = vmul.bf16 %v91, %v3936
    %v3962 = vmul.bf16 %v92, %v3936
    %v3963 = vmul.bf16 %v93, %v3936
    %v3964 = vmul.bf16 %v94, %v3936
    %v3965 = vmul.bf16 %v95, %v3936
    %v3966 = vmul.bf16 %v96, %v3936
    %v3967 = vmul.bf16 %v97, %v3936
    %v3968 = vmul.bf16 %v98, %v3936
    %v3969 = vmul.bf16 %v99, %v3936
    %v3970 = vmul.bf16 %v100, %v3936
    %v3971 = vmul.bf16 %v101, %v3936
    %v3972 = vmul.bf16 %v102, %v3936
    %v3973 = vmul.bf16 %v103, %v3936
    %v3974 = vmul.bf16 %v104, %v3936
    %v3975 = vmul.bf16 %v105, %v3936
    %v3976 = vmul.bf16 %v106, %v3936
    %v3977 = vmul.bf16 %v107, %v3936
    %v3978 = vmul.bf16 %v108, %v3936
    %v3979 = vmul.bf16 %v109, %v3936
    %v3980 = vmul.bf16 %v110, %v3936
    %v3981 = vmul.bf16 %v111, %v3936
    %v3982 = vmul.bf16 %v112, %v3936
    %v3983 = vmul.bf16 %v113, %v3936
    %v3984 = vmul.bf16 %v114, %v3936
    %v3985 = vmul.bf16 %v115, %v3936
    %v3986 = vmul.bf16 %v116, %v3936
    %v3987 = vmul.bf16 %v117, %v3936
    %v3988 = vmul.bf16 %v118, %v3936
    %v3989 = vmul.bf16 %v119, %v3936
    %v3990 = vmul.bf16 %v120, %v3936
    %v3991 = vmul.bf16 %v121, %v3936
    %v3992 = vmul.bf16 %v122, %v3936
    %v3993 = vmul.bf16 %v123, %v3936
    %v3994 = vmul.bf16 %v124, %v3936
    %v3995 = vmul.bf16 %v125, %v3936
    %v3996 = vmul.bf16 %v126, %v3936
    %v3997 = vmul.bf16 %v127, %v3936
    %v3998 = vmul.bf16 %v128, %v3936
    %v3999 = vmul.bf16 %v129, %v3936
    %v4000 = vmul.bf16 %v130, %v3936
    %v4001 = vmul.bf16 %v131, %v3936
    %v4002 = vmul.bf16 %v132, %v3936
    %v4003 = vmul.bf16 %v133, %v3936
    %v4004 = vmul.bf16 %v134, %v3936
    %v4005 = vmul.bf16 %v135, %v3936
    %v4006 = vmul.bf16 %v136, %v3936
    %v4007 = vmul.bf16 %v137, %v3936
    %v4008 = vmul.bf16 %v138, %v3936
    %v4009 = vmul.bf16 %v139, %v3936
    %v4010 = vmul.bf16 %v140, %v3936
    %v4011 = vmul.bf16 %v141, %v3936
    %v4012 = vmul.bf16 %v142, %v3936
    %v4013 = vmul.bf16 %v143, %v3936
    %v4014 = vmul.bf16 %v144, %v3936
    %v4015 = vmul.bf16 %v145, %v3936
    %v4016 = vmul.bf16 %v146, %v3936
    %v4017 = vmul.bf16 %v147, %v3936
    %v4018 = vmul.bf16 %v148, %v3936
    %v4019 = vmul.bf16 %v149, %v3936
    %v4020 = vmul.bf16 %v150, %v3936
    %v4021 = vmul.bf16 %v151, %v3936
    %v4022 = vmul.bf16 %v152, %v3936
    %v4023 = vmul.bf16 %v153, %v3936
    %v4024 = vmul.bf16 %v154, %v3936
    %v4025 = vmul.bf16 %v155, %v3936
    %v4026 = vmul.bf16 %v156, %v3936
    %v4027 = vmul.bf16 %v157, %v3936
    %v4028 = vmul.bf16 %v158, %v3936
    %v4029 = vmul.bf16 %v159, %v3936
    %v4030 = vmul.bf16 %v160, %v3936
    %v4031 = vmul.bf16 %v161, %v3936
    %v4032 = vmul.bf16 %v162, %v3936
    %v4033 = vmul.bf16 %v163, %v3936
    %v4034 = vmul.bf16 %v164, %v3936
    %v4035 = vmul.bf16 %v165, %v3936
    %v4036 = vmul.bf16 %v166, %v3936
    %v4037 = vmul.bf16 %v167, %v3936
    %v4038 = vmul.bf16 %v168, %v3936
    %v4039 = vmul.bf16 %v169, %v3936
    %v4040 = vmul.bf16 %v170, %v3936
    %v4041 = vmul.bf16 %v171, %v3936
    %v4146 = vrot.slane %v3938, 5
    %v4147 = vrot.slane %v4146, 4
    %v4148 = vrot.slane %v3939, 5
    %v4149 = vsel %vm1864, %v4147, %v4148
    %v4150 = vrot.slane %v4148, 4
    %v4151 = vrot.slane %v3940, 5
    %v4152 = vsel %vm1864, %v4150, %v4151
    %v4153 = vrot.slane %v4151, 4
    %v4154 = vrot.slane %v3941, 5
    %v4155 = vsel %vm1864, %v4153, %v4154
    %v4156 = vrot.slane %v4154, 4
    %v4157 = vrot.slane %v3942, 5
    %v4158 = vrot.slane %v4157, 4
    %v4159 = vrot.slane %v3943, 5
    %v4160 = vsel %vm1864, %v4158, %v4159
    %v4161 = vrot.slane %v4159, 4
    %v4162 = vrot.slane %v3944, 5
    %v4163 = vsel %vm1864, %v4161, %v4162
    %v4164 = vrot.slane %v4162, 4
    %v4165 = vrot.slane %v3945, 5
    %v4166 = vsel %vm1864, %v4164, %v4165
    %v4167 = vrot.slane %v4165, 4
    %v4168 = vrot.slane %v3946, 5
    %v4169 = vrot.slane %v4168, 4
    %v4170 = vrot.slane %v3947, 5
    %v4171 = vsel %vm1864, %v4169, %v4170
    %v4172 = vrot.slane %v4170, 4
    %v4173 = vrot.slane %v3948, 5
    %v4174 = vsel %vm1864, %v4172, %v4173
    %v4175 = vrot.slane %v4173, 4
    %v4176 = vrot.slane %v3949, 5
    %v4177 = vsel %vm1864, %v4175, %v4176
    %v4178 = vrot.slane %v4176, 4
    %v4179 = vrot.slane %v3950, 5
    %v4180 = vrot.slane %v4179, 4
    %v4181 = vrot.slane %v3951, 5
    %v4182 = vsel %vm1864, %v4180, %v4181
    %v4183 = vrot.slane %v4181, 4
    %v4184 = vrot.slane %v3952, 5
    %v4185 = vsel %vm1864, %v4183, %v4184
    %v4186 = vrot.slane %v4184, 4
    %v4187 = vrot.slane %v3953, 5
    %v4188 = vsel %vm1864, %v4186, %v4187
    %v4189 = vrot.slane %v4187, 4
    %v4190 = vrot.slane %v3954, 5
    %v4191 = vrot.slane %v4190, 4
    %v4192 = vrot.slane %v3955, 5
    %v4193 = vsel %vm1864, %v4191, %v4192
    %v4194 = vrot.slane %v4192, 4
    %v4195 = vrot.slane %v3956, 5
    %v4196 = vsel %vm1864, %v4194, %v4195
    %v4197 = vrot.slane %v4195, 4
    %v4198 = vrot.slane %v3957, 5
    %v4199 = vsel %vm1864, %v4197, %v4198
    %v4200 = vrot.slane %v4198, 4
    %v4201 = vrot.slane %v3958, 5
    %v4202 = vrot.slane %v4201, 4
    %v4203 = vrot.slane %v3959, 5
    %v4204 = vsel %vm1864, %v4202, %v4203
    %v4205 = vrot.slane %v4203, 4
    %v4206 = vrot.slane %v3960, 5
    %v4207 = vsel %vm1864, %v4205, %v4206
    %v4208 = vrot.slane %v4206, 4
    %v4209 = vrot.slane %v3961, 5
    %v4210 = vsel %vm1864, %v4208, %v4209
    %v4211 = vrot.slane %v4209, 4
    %v4212 = vrot.slane %v3962, 5
    %v4213 = vrot.slane %v4212, 4
    %v4214 = vrot.slane %v3963, 5
    %v4215 = vsel %vm1864, %v4213, %v4214
    %v4216 = vrot.slane %v4214, 4
    %v4217 = vrot.slane %v3964, 5
    %v4218 = vsel %vm1864, %v4216, %v4217
    %v4219 = vrot.slane %v4217, 4
    %v4220 = vrot.slane %v3965, 5
    %v4221 = vsel %vm1864, %v4219, %v4220
    %v4222 = vrot.slane %v4220, 4
    %v4223 = vrot.slane %v3966, 5
    %v4224 = vrot.slane %v4223, 4
    %v4225 = vrot.slane %v3967, 5
    %v4226 = vsel %vm1864, %v4224, %v4225
    %v4227 = vrot.slane %v4225, 4
    %v4228 = vrot.slane %v3968, 5
    %v4229 = vsel %vm1864, %v4227, %v4228
    %v4230 = vrot.slane %v4228, 4
    %v4231 = vrot.slane %v3969, 5
    %v4232 = vsel %vm1864, %v4230, %v4231
    %v4233 = vrot.slane %v4231, 4
    %v4234 = vrot.slane %v3970, 5
    %v4235 = vrot.slane %v4234, 4
    %v4236 = vrot.slane %v3971, 5
    %v4237 = vsel %vm1864, %v4235, %v4236
    %v4238 = vrot.slane %v4236, 4
    %v4239 = vrot.slane %v3972, 5
    %v4240 = vsel %vm1864, %v4238, %v4239
    %v4241 = vrot.slane %v4239, 4
    %v4242 = vrot.slane %v3973, 5
    %v4243 = vsel %vm1864, %v4241, %v4242
    %v4244 = vrot.slane %v4242, 4
    %v4245 = vrot.slane %v3974, 5
    %v4246 = vrot.slane %v4245, 4
    %v4247 = vrot.slane %v3975, 5
    %v4248 = vsel %vm1864, %v4246, %v4247
    %v4249 = vrot.slane %v4247, 4
    %v4250 = vrot.slane %v3976, 5
    %v4251 = vsel %vm1864, %v4249, %v4250
    %v4252 = vrot.slane %v4250, 4
    %v4253 = vrot.slane %v3977, 5
    %v4254 = vsel %vm1864, %v4252, %v4253
    %v4255 = vrot.slane %v4253, 4
    %v4256 = vrot.slane %v3978, 5
    %v4257 = vrot.slane %v4256, 4
    %v4258 = vrot.slane %v3979, 5
    %v4259 = vsel %vm1864, %v4257, %v4258
    %v4260 = vrot.slane %v4258, 4
    %v4261 = vrot.slane %v3980, 5
    %v4262 = vsel %vm1864, %v4260, %v4261
    %v4263 = vrot.slane %v4261, 4
    %v4264 = vrot.slane %v3981, 5
    %v4265 = vsel %vm1864, %v4263, %v4264
    %v4266 = vrot.slane %v4264, 4
    %v4267 = vrot.slane %v3982, 5
    %v4268 = vrot.slane %v4267, 4
    %v4269 = vrot.slane %v3983, 5
    %v4270 = vsel %vm1864, %v4268, %v4269
    %v4271 = vrot.slane %v4269, 4
    %v4272 = vrot.slane %v3984, 5
    %v4273 = vsel %vm1864, %v4271, %v4272
    %v4274 = vrot.slane %v4272, 4
    %v4275 = vrot.slane %v3985, 5
    %v4276 = vsel %vm1864, %v4274, %v4275
    %v4277 = vrot.slane %v4275, 4
    %v4278 = vrot.slane %v3986, 5
    %v4279 = vrot.slane %v4278, 4
    %v4280 = vrot.slane %v3987, 5
    %v4281 = vsel %vm1864, %v4279, %v4280
    %v4282 = vrot.slane %v4280, 4
    %v4283 = vrot.slane %v3988, 5
    %v4284 = vsel %vm1864, %v4282, %v4283
    %v4285 = vrot.slane %v4283, 4
    %v4286 = vrot.slane %v3989, 5
    %v4287 = vsel %vm1864, %v4285, %v4286
    %v4288 = vrot.slane %v4286, 4
    %v4289 = vrot.slane %v3990, 5
    %v4290 = vrot.slane %v4289, 4
    %v4291 = vrot.slane %v3991, 5
    %v4292 = vsel %vm1864, %v4290, %v4291
    %v4293 = vrot.slane %v4291, 4
    %v4294 = vrot.slane %v3992, 5
    %v4295 = vsel %vm1864, %v4293, %v4294
    %v4296 = vrot.slane %v4294, 4
    %v4297 = vrot.slane %v3993, 5
    %v4298 = vsel %vm1864, %v4296, %v4297
    %v4299 = vrot.slane %v4297, 4
    %v4300 = vrot.slane %v3994, 5
    %v4301 = vrot.slane %v4300, 4
    %v4302 = vrot.slane %v3995, 5
    %v4303 = vsel %vm1864, %v4301, %v4302
    %v4304 = vrot.slane %v4302, 4
    %v4305 = vrot.slane %v3996, 5
    %v4306 = vsel %vm1864, %v4304, %v4305
    %v4307 = vrot.slane %v4305, 4
    %v4308 = vrot.slane %v3997, 5
    %v4309 = vsel %vm1864, %v4307, %v4308
    %v4310 = vrot.slane %v4308, 4
    %v4311 = vrot.slane %v3998, 5
    %v4312 = vrot.slane %v4311, 4
    %v4313 = vrot.slane %v3999, 5
    %v4314 = vsel %vm1864, %v4312, %v4313
    %v4315 = vrot.slane %v4313, 4
    %v4316 = vrot.slane %v4000, 5
    %v4317 = vsel %vm1864, %v4315, %v4316
    %v4318 = vrot.slane %v4316, 4
    %v4319 = vrot.slane %v4001, 5
    %v4320 = vsel %vm1864, %v4318, %v4319
    %v4321 = vrot.slane %v4319, 4
    %v4322 = vrot.slane %v4002, 5
    %v4323 = vrot.slane %v4322, 4
    %v4324 = vrot.slane %v4003, 5
    %v4325 = vsel %vm1864, %v4323, %v4324
    %v4326 = vrot.slane %v4324, 4
    %v4327 = vrot.slane %v4004, 5
    %v4328 = vsel %vm1864, %v4326, %v4327
    %v4329 = vrot.slane %v4327, 4
    %v4330 = vrot.slane %v4005, 5
    %v4331 = vsel %vm1864, %v4329, %v4330
    %v4332 = vrot.slane %v4330, 4
    %v4333 = vrot.slane %v4006, 5
    %v4334 = vrot.slane %v4333, 4
    %v4335 = vrot.slane %v4007, 5
    %v4336 = vsel %vm1864, %v4334, %v4335
    %v4337 = vrot.slane %v4335, 4
    %v4338 = vrot.slane %v4008, 5
    %v4339 = vsel %vm1864, %v4337, %v4338
    %v4340 = vrot.slane %v4338, 4
    %v4341 = vrot.slane %v4009, 5
    %v4342 = vsel %vm1864, %v4340, %v4341
    %v4343 = vrot.slane %v4341, 4
    %v4344 = vrot.slane %v4010, 5
    %v4345 = vrot.slane %v4344, 4
    %v4346 = vrot.slane %v4011, 5
    %v4347 = vsel %vm1864, %v4345, %v4346
    %v4348 = vrot.slane %v4346, 4
    %v4349 = vrot.slane %v4012, 5
    %v4350 = vsel %vm1864, %v4348, %v4349
    %v4351 = vrot.slane %v4349, 4
    %v4352 = vrot.slane %v4013, 5
    %v4353 = vsel %vm1864, %v4351, %v4352
    %v4354 = vrot.slane %v4352, 4
    %v4355 = vrot.slane %v4014, 5
    %v4356 = vrot.slane %v4355, 4
    %v4357 = vrot.slane %v4015, 5
    %v4358 = vsel %vm1864, %v4356, %v4357
    %v4359 = vrot.slane %v4357, 4
    %v4360 = vrot.slane %v4016, 5
    %v4361 = vsel %vm1864, %v4359, %v4360
    %v4362 = vrot.slane %v4360, 4
    %v4363 = vrot.slane %v4017, 5
    %v4364 = vsel %vm1864, %v4362, %v4363
    %v4365 = vrot.slane %v4363, 4
    %v4366 = vrot.slane %v4018, 5
    %v4367 = vrot.slane %v4366, 4
    %v4368 = vrot.slane %v4019, 5
    %v4369 = vsel %vm1864, %v4367, %v4368
    %v4370 = vrot.slane %v4368, 4
    %v4371 = vrot.slane %v4020, 5
    %v4372 = vsel %vm1864, %v4370, %v4371
    %v4373 = vrot.slane %v4371, 4
    %v4374 = vrot.slane %v4021, 5
    %v4375 = vsel %vm1864, %v4373, %v4374
    %v4376 = vrot.slane %v4374, 4
    %v4377 = vrot.slane %v4022, 5
    %v4378 = vrot.slane %v4377, 4
    %v4379 = vrot.slane %v4023, 5
    %v4380 = vsel %vm1864, %v4378, %v4379
    %v4381 = vrot.slane %v4379, 4
    %v4382 = vrot.slane %v4024, 5
    %v4383 = vsel %vm1864, %v4381, %v4382
    %v4384 = vrot.slane %v4382, 4
    %v4385 = vrot.slane %v4025, 5
    %v4386 = vsel %vm1864, %v4384, %v4385
    %v4387 = vrot.slane %v4385, 4
    %v4388 = vrot.slane %v4026, 5
    %v4389 = vrot.slane %v4388, 4
    %v4390 = vrot.slane %v4027, 5
    %v4391 = vsel %vm1864, %v4389, %v4390
    %v4392 = vrot.slane %v4390, 4
    %v4393 = vrot.slane %v4028, 5
    %v4394 = vsel %vm1864, %v4392, %v4393
    %v4395 = vrot.slane %v4393, 4
    %v4396 = vrot.slane %v4029, 5
    %v4397 = vsel %vm1864, %v4395, %v4396
    %v4398 = vrot.slane %v4396, 4
    %v4399 = vrot.slane %v4030, 5
    %v4400 = vrot.slane %v4399, 4
    %v4401 = vrot.slane %v4031, 5
    %v4402 = vsel %vm1864, %v4400, %v4401
    %v4403 = vrot.slane %v4401, 4
    %v4404 = vrot.slane %v4032, 5
    %v4405 = vsel %vm1864, %v4403, %v4404
    %v4406 = vrot.slane %v4404, 4
    %v4407 = vrot.slane %v4033, 5
    %v4408 = vsel %vm1864, %v4406, %v4407
    %v4409 = vrot.slane %v4407, 4
    %v4410 = vrot.slane %v4034, 5
    %v4411 = vrot.slane %v4410, 4
    %v4412 = vrot.slane %v4035, 5
    %v4413 = vsel %vm1864, %v4411, %v4412
    %v4414 = vrot.slane %v4412, 4
    %v4415 = vrot.slane %v4036, 5
    %v4416 = vsel %vm1864, %v4414, %v4415
    %v4417 = vrot.slane %v4415, 4
    %v4418 = vrot.slane %v4037, 5
    %v4419 = vsel %vm1864, %v4417, %v4418
    %v4420 = vrot.slane %v4418, 4
    %v4421 = vrot.slane %v4038, 5
    %v4422 = vrot.slane %v4421, 4
    %v4423 = vrot.slane %v4039, 5
    %v4424 = vsel %vm1864, %v4422, %v4423
    %v4425 = vrot.slane %v4423, 4
    %v4426 = vrot.slane %v4040, 5
    %v4427 = vsel %vm1864, %v4425, %v4426
    %v4428 = vrot.slane %v4426, 4
    %v4429 = vrot.slane %v4041, 5
    %v4430 = vsel %vm1864, %v4428, %v4429
    %v4431 = vrot.slane %v4429, 4
    %v4536 = vadd.bf16 %v3819, %v4149
    %v4537 = vadd.bf16 %v3820, %v4152
    %v4538 = vadd.bf16 %v3821, %v4155
    %v4539 = vadd.bf16 %v3822, %v4156
    %v4540 = vadd.bf16 %v3823, %v4160
    %v4541 = vadd.bf16 %v3824, %v4163
    %v4542 = vadd.bf16 %v3825, %v4166
    %v4543 = vadd.bf16 %v3826, %v4167
    %v4544 = vadd.bf16 %v3827, %v4171
    %v4545 = vadd.bf16 %v3828, %v4174
    %v4546 = vadd.bf16 %v3829, %v4177
    %v4547 = vadd.bf16 %v3830, %v4178
    %v4548 = vadd.bf16 %v3831, %v4182
    %v4549 = vadd.bf16 %v3832, %v4185
    %v4550 = vadd.bf16 %v3833, %v4188
    %v4551 = vadd.bf16 %v3834, %v4189
    %v4552 = vadd.bf16 %v3835, %v4193
    %v4553 = vadd.bf16 %v3836, %v4196
    %v4554 = vadd.bf16 %v3837, %v4199
    %v4555 = vadd.bf16 %v3838, %v4200
    %v4556 = vadd.bf16 %v3839, %v4204
    %v4557 = vadd.bf16 %v3840, %v4207
    %v4558 = vadd.bf16 %v3841, %v4210
    %v4559 = vadd.bf16 %v3842, %v4211
    %v4560 = vadd.bf16 %v3843, %v4215
    %v4561 = vadd.bf16 %v3844, %v4218
    %v4562 = vadd.bf16 %v3845, %v4221
    %v4563 = vadd.bf16 %v3846, %v4222
    %v4564 = vadd.bf16 %v3847, %v4226
    %v4565 = vadd.bf16 %v3848, %v4229
    %v4566 = vadd.bf16 %v3849, %v4232
    %v4567 = vadd.bf16 %v3850, %v4233
    %v4568 = vadd.bf16 %v3851, %v4237
    %v4569 = vadd.bf16 %v3852, %v4240
    %v4570 = vadd.bf16 %v3853, %v4243
    %v4571 = vadd.bf16 %v3854, %v4244
    %v4572 = vadd.bf16 %v3855, %v4248
    %v4573 = vadd.bf16 %v3856, %v4251
    %v4574 = vadd.bf16 %v3857, %v4254
    %v4575 = vadd.bf16 %v3858, %v4255
    %v4576 = vadd.bf16 %v3859, %v4259
    %v4577 = vadd.bf16 %v3860, %v4262
    %v4578 = vadd.bf16 %v3861, %v4265
    %v4579 = vadd.bf16 %v3862, %v4266
    %v4580 = vadd.bf16 %v3863, %v4270
    %v4581 = vadd.bf16 %v3864, %v4273
    %v4582 = vadd.bf16 %v3865, %v4276
    %v4583 = vadd.bf16 %v3866, %v4277
    %v4584 = vadd.bf16 %v3867, %v4281
    %v4585 = vadd.bf16 %v3868, %v4284
    %v4586 = vadd.bf16 %v3869, %v4287
    %v4587 = vadd.bf16 %v3870, %v4288
    %v4588 = vadd.bf16 %v3871, %v4292
    %v4589 = vadd.bf16 %v3872, %v4295
    %v4590 = vadd.bf16 %v3873, %v4298
    %v4591 = vadd.bf16 %v3874, %v4299
    %v4592 = vadd.bf16 %v3875, %v4303
    %v4593 = vadd.bf16 %v3876, %v4306
    %v4594 = vadd.bf16 %v3877, %v4309
    %v4595 = vadd.bf16 %v3878, %v4310
    %v4596 = vadd.bf16 %v3879, %v4314
    %v4597 = vadd.bf16 %v3880, %v4317
    %v4598 = vadd.bf16 %v3881, %v4320
    %v4599 = vadd.bf16 %v3882, %v4321
    %v4600 = vadd.bf16 %v3883, %v4325
    %v4601 = vadd.bf16 %v3884, %v4328
    %v4602 = vadd.bf16 %v3885, %v4331
    %v4603 = vadd.bf16 %v3886, %v4332
    %v4604 = vadd.bf16 %v3887, %v4336
    %v4605 = vadd.bf16 %v3888, %v4339
    %v4606 = vadd.bf16 %v3889, %v4342
    %v4607 = vadd.bf16 %v3890, %v4343
    %v4608 = vadd.bf16 %v3891, %v4347
    %v4609 = vadd.bf16 %v3892, %v4350
    %v4610 = vadd.bf16 %v3893, %v4353
    %v4611 = vadd.bf16 %v3894, %v4354
    %v4612 = vadd.bf16 %v3895, %v4358
    %v4613 = vadd.bf16 %v3896, %v4361
    %v4614 = vadd.bf16 %v3897, %v4364
    %v4615 = vadd.bf16 %v3898, %v4365
    %v4616 = vadd.bf16 %v3899, %v4369
    %v4617 = vadd.bf16 %v3900, %v4372
    %v4618 = vadd.bf16 %v3901, %v4375
    %v4619 = vadd.bf16 %v3902, %v4376
    %v4620 = vadd.bf16 %v3903, %v4380
    %v4621 = vadd.bf16 %v3904, %v4383
    %v4622 = vadd.bf16 %v3905, %v4386
    %v4623 = vadd.bf16 %v3906, %v4387
    %v4624 = vadd.bf16 %v3907, %v4391
    %v4625 = vadd.bf16 %v3908, %v4394
    %v4626 = vadd.bf16 %v3909, %v4397
    %v4627 = vadd.bf16 %v3910, %v4398
    %v4628 = vadd.bf16 %v3911, %v4402
    %v4629 = vadd.bf16 %v3912, %v4405
    %v4630 = vadd.bf16 %v3913, %v4408
    %v4631 = vadd.bf16 %v3914, %v4409
    %v4632 = vadd.bf16 %v3915, %v4413
    %v4633 = vadd.bf16 %v3916, %v4416
    %v4634 = vadd.bf16 %v3917, %v4419
    %v4635 = vadd.bf16 %v3918, %v4420
    %v4636 = vadd.bf16 %v3919, %v4424
    %v4637 = vadd.bf16 %v3920, %v4427
    %v4638 = vadd.bf16 %v3921, %v4430
    %v4639 = vadd.bf16 %v3922, %v4431
    %s4640 = sld [smem:[#allocation8 + $0x100]]
    %p4642 = scmp.ne.f32.partialorder %s4640, %s4640
    %s4643 = sshrl.u32 %s4640, 16
    %s4644 = sand.u32 %s4643, 1
    %s4645 = sadd.s32 32767, %s4644
    %s4646 = sadd.s32 %s4640, %s4645
    %s4647 = sand.u32 %s4646, 4294901760
    %s4648 = scalar_select %p4642, 2143289344, %s4647
    %s4650 = sshrl.u32 %s4648, 16
    %s4651 = sshll.u32 %s4650, 16
    %s4652 = sor.u32 %s4650, %s4651
    %v4653 = vstv %s4652
    %v4655 = vmul.bf16 %v72, %v4653
    %v4656 = vmul.bf16 %v73, %v4653
    %v4657 = vmul.bf16 %v74, %v4653
    %v4658 = vmul.bf16 %v75, %v4653
    %v4659 = vmul.bf16 %v76, %v4653
    %v4660 = vmul.bf16 %v77, %v4653
    %v4661 = vmul.bf16 %v78, %v4653
    %v4662 = vmul.bf16 %v79, %v4653
    %v4663 = vmul.bf16 %v80, %v4653
    %v4664 = vmul.bf16 %v81, %v4653
    %v4665 = vmul.bf16 %v82, %v4653
    %v4666 = vmul.bf16 %v83, %v4653
    %v4667 = vmul.bf16 %v84, %v4653
    %v4668 = vmul.bf16 %v85, %v4653
    %v4669 = vmul.bf16 %v86, %v4653
    %v4670 = vmul.bf16 %v87, %v4653
    %v4671 = vmul.bf16 %v88, %v4653
    %v4672 = vmul.bf16 %v89, %v4653
    %v4673 = vmul.bf16 %v90, %v4653
    %v4674 = vmul.bf16 %v91, %v4653
    %v4675 = vmul.bf16 %v92, %v4653
    %v4676 = vmul.bf16 %v93, %v4653
    %v4677 = vmul.bf16 %v94, %v4653
    %v4678 = vmul.bf16 %v95, %v4653
    %v4679 = vmul.bf16 %v96, %v4653
    %v4680 = vmul.bf16 %v97, %v4653
    %v4681 = vmul.bf16 %v98, %v4653
    %v4682 = vmul.bf16 %v99, %v4653
    %v4683 = vmul.bf16 %v100, %v4653
    %v4684 = vmul.bf16 %v101, %v4653
    %v4685 = vmul.bf16 %v102, %v4653
    %v4686 = vmul.bf16 %v103, %v4653
    %v4687 = vmul.bf16 %v104, %v4653
    %v4688 = vmul.bf16 %v105, %v4653
    %v4689 = vmul.bf16 %v106, %v4653
    %v4690 = vmul.bf16 %v107, %v4653
    %v4691 = vmul.bf16 %v108, %v4653
    %v4692 = vmul.bf16 %v109, %v4653
    %v4693 = vmul.bf16 %v110, %v4653
    %v4694 = vmul.bf16 %v111, %v4653
    %v4695 = vmul.bf16 %v112, %v4653
    %v4696 = vmul.bf16 %v113, %v4653
    %v4697 = vmul.bf16 %v114, %v4653
    %v4698 = vmul.bf16 %v115, %v4653
    %v4699 = vmul.bf16 %v116, %v4653
    %v4700 = vmul.bf16 %v117, %v4653
    %v4701 = vmul.bf16 %v118, %v4653
    %v4702 = vmul.bf16 %v119, %v4653
    %v4703 = vmul.bf16 %v120, %v4653
    %v4704 = vmul.bf16 %v121, %v4653
    %v4705 = vmul.bf16 %v122, %v4653
    %v4706 = vmul.bf16 %v123, %v4653
    %v4707 = vmul.bf16 %v124, %v4653
    %v4708 = vmul.bf16 %v125, %v4653
    %v4709 = vmul.bf16 %v126, %v4653
    %v4710 = vmul.bf16 %v127, %v4653
    %v4711 = vmul.bf16 %v128, %v4653
    %v4712 = vmul.bf16 %v129, %v4653
    %v4713 = vmul.bf16 %v130, %v4653
    %v4714 = vmul.bf16 %v131, %v4653
    %v4715 = vmul.bf16 %v132, %v4653
    %v4716 = vmul.bf16 %v133, %v4653
    %v4717 = vmul.bf16 %v134, %v4653
    %v4718 = vmul.bf16 %v135, %v4653
    %v4719 = vmul.bf16 %v136, %v4653
    %v4720 = vmul.bf16 %v137, %v4653
    %v4721 = vmul.bf16 %v138, %v4653
    %v4722 = vmul.bf16 %v139, %v4653
    %v4723 = vmul.bf16 %v140, %v4653
    %v4724 = vmul.bf16 %v141, %v4653
    %v4725 = vmul.bf16 %v142, %v4653
    %v4726 = vmul.bf16 %v143, %v4653
    %v4727 = vmul.bf16 %v144, %v4653
    %v4728 = vmul.bf16 %v145, %v4653
    %v4729 = vmul.bf16 %v146, %v4653
    %v4730 = vmul.bf16 %v147, %v4653
    %v4731 = vmul.bf16 %v148, %v4653
    %v4732 = vmul.bf16 %v149, %v4653
    %v4733 = vmul.bf16 %v150, %v4653
    %v4734 = vmul.bf16 %v151, %v4653
    %v4735 = vmul.bf16 %v152, %v4653
    %v4736 = vmul.bf16 %v153, %v4653
    %v4737 = vmul.bf16 %v154, %v4653
    %v4738 = vmul.bf16 %v155, %v4653
    %v4739 = vmul.bf16 %v156, %v4653
    %v4740 = vmul.bf16 %v157, %v4653
    %v4741 = vmul.bf16 %v158, %v4653
    %v4742 = vmul.bf16 %v159, %v4653
    %v4743 = vmul.bf16 %v160, %v4653
    %v4744 = vmul.bf16 %v161, %v4653
    %v4745 = vmul.bf16 %v162, %v4653
    %v4746 = vmul.bf16 %v163, %v4653
    %v4747 = vmul.bf16 %v164, %v4653
    %v4748 = vmul.bf16 %v165, %v4653
    %v4749 = vmul.bf16 %v166, %v4653
    %v4750 = vmul.bf16 %v167, %v4653
    %v4751 = vmul.bf16 %v168, %v4653
    %v4752 = vmul.bf16 %v169, %v4653
    %v4753 = vmul.bf16 %v170, %v4653
    %v4754 = vmul.bf16 %v171, %v4653
    %v4755 = vmul.bf16 %v172, %v4653
    %v4756 = vmul.bf16 %v173, %v4653
    %v4757 = vmul.bf16 %v174, %v4653
    %v4758 = vmul.bf16 %v175, %v4653
    %v4759 = vadd.bf16 %v4536, %v4655
    %v4760 = vadd.bf16 %v4537, %v4656
    %v4761 = vadd.bf16 %v4538, %v4657
    %v4762 = vadd.bf16 %v4539, %v4658
    %v4763 = vadd.bf16 %v4540, %v4659
    %v4764 = vadd.bf16 %v4541, %v4660
    %v4765 = vadd.bf16 %v4542, %v4661
    %v4766 = vadd.bf16 %v4543, %v4662
    %v4767 = vadd.bf16 %v4544, %v4663
    %v4768 = vadd.bf16 %v4545, %v4664
    %v4769 = vadd.bf16 %v4546, %v4665
    %v4770 = vadd.bf16 %v4547, %v4666
    %v4771 = vadd.bf16 %v4548, %v4667
    %v4772 = vadd.bf16 %v4549, %v4668
    %v4773 = vadd.bf16 %v4550, %v4669
    %v4774 = vadd.bf16 %v4551, %v4670
    %v4775 = vadd.bf16 %v4552, %v4671
    %v4776 = vadd.bf16 %v4553, %v4672
    %v4777 = vadd.bf16 %v4554, %v4673
    %v4778 = vadd.bf16 %v4555, %v4674
    %v4779 = vadd.bf16 %v4556, %v4675
    %v4780 = vadd.bf16 %v4557, %v4676
    %v4781 = vadd.bf16 %v4558, %v4677
    %v4782 = vadd.bf16 %v4559, %v4678
    %v4783 = vadd.bf16 %v4560, %v4679
    %v4784 = vadd.bf16 %v4561, %v4680
    %v4785 = vadd.bf16 %v4562, %v4681
    %v4786 = vadd.bf16 %v4563, %v4682
    %v4787 = vadd.bf16 %v4564, %v4683
    %v4788 = vadd.bf16 %v4565, %v4684
    %v4789 = vadd.bf16 %v4566, %v4685
    %v4790 = vadd.bf16 %v4567, %v4686
    %v4791 = vadd.bf16 %v4568, %v4687
    %v4792 = vadd.bf16 %v4569, %v4688
    %v4793 = vadd.bf16 %v4570, %v4689
    %v4794 = vadd.bf16 %v4571, %v4690
    %v4795 = vadd.bf16 %v4572, %v4691
    %v4796 = vadd.bf16 %v4573, %v4692
    %v4797 = vadd.bf16 %v4574, %v4693
    %v4798 = vadd.bf16 %v4575, %v4694
    %v4799 = vadd.bf16 %v4576, %v4695
    %v4800 = vadd.bf16 %v4577, %v4696
    %v4801 = vadd.bf16 %v4578, %v4697
    %v4802 = vadd.bf16 %v4579, %v4698
    %v4803 = vadd.bf16 %v4580, %v4699
    %v4804 = vadd.bf16 %v4581, %v4700
    %v4805 = vadd.bf16 %v4582, %v4701
    %v4806 = vadd.bf16 %v4583, %v4702
    %v4807 = vadd.bf16 %v4584, %v4703
    %v4808 = vadd.bf16 %v4585, %v4704
    %v4809 = vadd.bf16 %v4586, %v4705
    %v4810 = vadd.bf16 %v4587, %v4706
    %v4811 = vadd.bf16 %v4588, %v4707
    %v4812 = vadd.bf16 %v4589, %v4708
    %v4813 = vadd.bf16 %v4590, %v4709
    %v4814 = vadd.bf16 %v4591, %v4710
    %v4815 = vadd.bf16 %v4592, %v4711
    %v4816 = vadd.bf16 %v4593, %v4712
    %v4817 = vadd.bf16 %v4594, %v4713
    %v4818 = vadd.bf16 %v4595, %v4714
    %v4819 = vadd.bf16 %v4596, %v4715
    %v4820 = vadd.bf16 %v4597, %v4716
    %v4821 = vadd.bf16 %v4598, %v4717
    %v4822 = vadd.bf16 %v4599, %v4718
    %v4823 = vadd.bf16 %v4600, %v4719
    %v4824 = vadd.bf16 %v4601, %v4720
    %v4825 = vadd.bf16 %v4602, %v4721
    %v4826 = vadd.bf16 %v4603, %v4722
    %v4827 = vadd.bf16 %v4604, %v4723
    %v4828 = vadd.bf16 %v4605, %v4724
    %v4829 = vadd.bf16 %v4606, %v4725
    %v4830 = vadd.bf16 %v4607, %v4726
    %v4831 = vadd.bf16 %v4608, %v4727
    %v4832 = vadd.bf16 %v4609, %v4728
    %v4833 = vadd.bf16 %v4610, %v4729
    %v4834 = vadd.bf16 %v4611, %v4730
    %v4835 = vadd.bf16 %v4612, %v4731
    %v4836 = vadd.bf16 %v4613, %v4732
    %v4837 = vadd.bf16 %v4614, %v4733
    %v4838 = vadd.bf16 %v4615, %v4734
    %v4839 = vadd.bf16 %v4616, %v4735
    %v4840 = vadd.bf16 %v4617, %v4736
    %v4841 = vadd.bf16 %v4618, %v4737
    %v4842 = vadd.bf16 %v4619, %v4738
    %v4843 = vadd.bf16 %v4620, %v4739
    %v4844 = vadd.bf16 %v4621, %v4740
    %v4845 = vadd.bf16 %v4622, %v4741
    %v4846 = vadd.bf16 %v4623, %v4742
    %v4847 = vadd.bf16 %v4624, %v4743
    %v4848 = vadd.bf16 %v4625, %v4744
    %v4849 = vadd.bf16 %v4626, %v4745
    %v4850 = vadd.bf16 %v4627, %v4746
    %v4851 = vadd.bf16 %v4628, %v4747
    %v4852 = vadd.bf16 %v4629, %v4748
    %v4853 = vadd.bf16 %v4630, %v4749
    %v4854 = vadd.bf16 %v4631, %v4750
    %v4855 = vadd.bf16 %v4632, %v4751
    %v4856 = vadd.bf16 %v4633, %v4752
    %v4857 = vadd.bf16 %v4634, %v4753
    %v4858 = vadd.bf16 %v4635, %v4754
    %v4859 = vadd.bf16 %v4636, %v4755
    %v4860 = vadd.bf16 %v4637, %v4756
    %v4861 = vadd.bf16 %v4638, %v4757
    %v4862 = vadd.bf16 %v4639, %v4758
    %s4863 = sld [smem:[#allocation8 + $0x101]]
    %p4865 = scmp.ne.f32.partialorder %s4863, %s4863
    %s4866 = sshrl.u32 %s4863, 16
    %s4867 = sand.u32 %s4866, 1
    %s4868 = sadd.s32 32767, %s4867
    %s4869 = sadd.s32 %s4863, %s4868
    %s4870 = sand.u32 %s4869, 4294901760
    %s4871 = scalar_select %p4865, 2143289344, %s4870
    %s4873 = sshrl.u32 %s4871, 16
    %s4874 = sshll.u32 %s4873, 16
    %s4875 = sor.u32 %s4873, %s4874
    %v4876 = vstv %s4875
    %v4878 = vmul.bf16 %v72, %v4876
    %v4879 = vmul.bf16 %v73, %v4876
    %v4880 = vmul.bf16 %v74, %v4876
    %v4881 = vmul.bf16 %v75, %v4876
    %v4882 = vmul.bf16 %v76, %v4876
    %v4883 = vmul.bf16 %v77, %v4876
    %v4884 = vmul.bf16 %v78, %v4876
    %v4885 = vmul.bf16 %v79, %v4876
    %v4886 = vmul.bf16 %v80, %v4876
    %v4887 = vmul.bf16 %v81, %v4876
    %v4888 = vmul.bf16 %v82, %v4876
    %v4889 = vmul.bf16 %v83, %v4876
    %v4890 = vmul.bf16 %v84, %v4876
    %v4891 = vmul.bf16 %v85, %v4876
    %v4892 = vmul.bf16 %v86, %v4876
    %v4893 = vmul.bf16 %v87, %v4876
    %v4894 = vmul.bf16 %v88, %v4876
    %v4895 = vmul.bf16 %v89, %v4876
    %v4896 = vmul.bf16 %v90, %v4876
    %v4897 = vmul.bf16 %v91, %v4876
    %v4898 = vmul.bf16 %v92, %v4876
    %v4899 = vmul.bf16 %v93, %v4876
    %v4900 = vmul.bf16 %v94, %v4876
    %v4901 = vmul.bf16 %v95, %v4876
    %v4902 = vmul.bf16 %v96, %v4876
    %v4903 = vmul.bf16 %v97, %v4876
    %v4904 = vmul.bf16 %v98, %v4876
    %v4905 = vmul.bf16 %v99, %v4876
    %v4906 = vmul.bf16 %v100, %v4876
    %v4907 = vmul.bf16 %v101, %v4876
    %v4908 = vmul.bf16 %v102, %v4876
    %v4909 = vmul.bf16 %v103, %v4876
    %v4910 = vmul.bf16 %v104, %v4876
    %v4911 = vmul.bf16 %v105, %v4876
    %v4912 = vmul.bf16 %v106, %v4876
    %v4913 = vmul.bf16 %v107, %v4876
    %v4914 = vmul.bf16 %v108, %v4876
    %v4915 = vmul.bf16 %v109, %v4876
    %v4916 = vmul.bf16 %v110, %v4876
    %v4917 = vmul.bf16 %v111, %v4876
    %v4918 = vmul.bf16 %v112, %v4876
    %v4919 = vmul.bf16 %v113, %v4876
    %v4920 = vmul.bf16 %v114, %v4876
    %v4921 = vmul.bf16 %v115, %v4876
    %v4922 = vmul.bf16 %v116, %v4876
    %v4923 = vmul.bf16 %v117, %v4876
    %v4924 = vmul.bf16 %v118, %v4876
    %v4925 = vmul.bf16 %v119, %v4876
    %v4926 = vmul.bf16 %v120, %v4876
    %v4927 = vmul.bf16 %v121, %v4876
    %v4928 = vmul.bf16 %v122, %v4876
    %v4929 = vmul.bf16 %v123, %v4876
    %v4930 = vmul.bf16 %v124, %v4876
    %v4931 = vmul.bf16 %v125, %v4876
    %v4932 = vmul.bf16 %v126, %v4876
    %v4933 = vmul.bf16 %v127, %v4876
    %v4934 = vmul.bf16 %v128, %v4876
    %v4935 = vmul.bf16 %v129, %v4876
    %v4936 = vmul.bf16 %v130, %v4876
    %v4937 = vmul.bf16 %v131, %v4876
    %v4938 = vmul.bf16 %v132, %v4876
    %v4939 = vmul.bf16 %v133, %v4876
    %v4940 = vmul.bf16 %v134, %v4876
    %v4941 = vmul.bf16 %v135, %v4876
    %v4942 = vmul.bf16 %v136, %v4876
    %v4943 = vmul.bf16 %v137, %v4876
    %v4944 = vmul.bf16 %v138, %v4876
    %v4945 = vmul.bf16 %v139, %v4876
    %v4946 = vmul.bf16 %v140, %v4876
    %v4947 = vmul.bf16 %v141, %v4876
    %v4948 = vmul.bf16 %v142, %v4876
    %v4949 = vmul.bf16 %v143, %v4876
    %v4950 = vmul.bf16 %v144, %v4876
    %v4951 = vmul.bf16 %v145, %v4876
    %v4952 = vmul.bf16 %v146, %v4876
    %v4953 = vmul.bf16 %v147, %v4876
    %v4954 = vmul.bf16 %v148, %v4876
    %v4955 = vmul.bf16 %v149, %v4876
    %v4956 = vmul.bf16 %v150, %v4876
    %v4957 = vmul.bf16 %v151, %v4876
    %v4958 = vmul.bf16 %v152, %v4876
    %v4959 = vmul.bf16 %v153, %v4876
    %v4960 = vmul.bf16 %v154, %v4876
    %v4961 = vmul.bf16 %v155, %v4876
    %v4962 = vmul.bf16 %v156, %v4876
    %v4963 = vmul.bf16 %v157, %v4876
    %v4964 = vmul.bf16 %v158, %v4876
    %v4965 = vmul.bf16 %v159, %v4876
    %v4966 = vmul.bf16 %v160, %v4876
    %v4967 = vmul.bf16 %v161, %v4876
    %v4968 = vmul.bf16 %v162, %v4876
    %v4969 = vmul.bf16 %v163, %v4876
    %v4970 = vmul.bf16 %v164, %v4876
    %v4971 = vmul.bf16 %v165, %v4876
    %v4972 = vmul.bf16 %v166, %v4876
    %v4973 = vmul.bf16 %v167, %v4876
    %v4974 = vmul.bf16 %v168, %v4876
    %v4975 = vmul.bf16 %v169, %v4876
    %v4976 = vmul.bf16 %v170, %v4876
    %v4977 = vmul.bf16 %v171, %v4876
    %v4978 = vmul.bf16 %v172, %v4876
    %v4979 = vmul.bf16 %v173, %v4876
    %v4980 = vmul.bf16 %v174, %v4876
    %v4981 = vmul.bf16 %v175, %v4876
    %v4983 = vshrl.u32 %v4878, 16
    %v4985 = vrot.slane %v4983, 4
    %v4986 = vshll.u32 %v4878, 16
    %v4988 = vrot.slane %v4986, 5
    %v4989 = vor.u32 %v4985, %v4988
    %v4990 = vrot.slane %v4989, 4
    %v4992 = vshll.u32 %v4879, 16
    %v4994 = vrot.slane %v4992, 5
    %v4995 = vsel %vm416, %v4990, %v4994
    %v4996 = vshrl.u32 %v4879, 16
    %v4998 = vrot.slane %v4996, 4
    %v4999 = vor.u32 %v4998, %v4994
    %v5000 = vrot.slane %v4999, 4
    %v5002 = vshll.u32 %v4880, 16
    %v5004 = vrot.slane %v5002, 5
    %v5005 = vsel %vm416, %v5000, %v5004
    %v5006 = vshrl.u32 %v4880, 16
    %v5008 = vrot.slane %v5006, 4
    %v5009 = vor.u32 %v5008, %v5004
    %v5010 = vrot.slane %v5009, 4
    %v5012 = vshll.u32 %v4881, 16
    %v5014 = vrot.slane %v5012, 5
    %v5015 = vsel %vm416, %v5010, %v5014
    %v5016 = vshrl.u32 %v4881, 16
    %v5018 = vrot.slane %v5016, 4
    %v5019 = vor.u32 %v5018, %v5014
    %v5020 = vrot.slane %v5019, 4
    %v5022 = vshrl.u32 %v4882, 16
    %v5024 = vrot.slane %v5022, 4
    %v5025 = vshll.u32 %v4882, 16
    %v5027 = vrot.slane %v5025, 5
    %v5028 = vor.u32 %v5024, %v5027
    %v5029 = vrot.slane %v5028, 4
    %v5031 = vshll.u32 %v4883, 16
    %v5033 = vrot.slane %v5031, 5
    %v5034 = vsel %vm416, %v5029, %v5033
    %v5035 = vshrl.u32 %v4883, 16
    %v5037 = vrot.slane %v5035, 4
    %v5038 = vor.u32 %v5037, %v5033
    %v5039 = vrot.slane %v5038, 4
    %v5041 = vshll.u32 %v4884, 16
    %v5043 = vrot.slane %v5041, 5
    %v5044 = vsel %vm416, %v5039, %v5043
    %v5045 = vshrl.u32 %v4884, 16
    %v5047 = vrot.slane %v5045, 4
    %v5048 = vor.u32 %v5047, %v5043
    %v5049 = vrot.slane %v5048, 4
    %v5051 = vshll.u32 %v4885, 16
    %v5053 = vrot.slane %v5051, 5
    %v5054 = vsel %vm416, %v5049, %v5053
    %v5055 = vshrl.u32 %v4885, 16
    %v5057 = vrot.slane %v5055, 4
    %v5058 = vor.u32 %v5057, %v5053
    %v5059 = vrot.slane %v5058, 4
    %v5061 = vshrl.u32 %v4886, 16
    %v5063 = vrot.slane %v5061, 4
    %v5064 = vshll.u32 %v4886, 16
    %v5066 = vrot.slane %v5064, 5
    %v5067 = vor.u32 %v5063, %v5066
    %v5068 = vrot.slane %v5067, 4
    %v5070 = vshll.u32 %v4887, 16
    %v5072 = vrot.slane %v5070, 5
    %v5073 = vsel %vm416, %v5068, %v5072
    %v5074 = vshrl.u32 %v4887, 16
    %v5076 = vrot.slane %v5074, 4
    %v5077 = vor.u32 %v5076, %v5072
    %v5078 = vrot.slane %v5077, 4
    %v5080 = vshll.u32 %v4888, 16
    %v5082 = vrot.slane %v5080, 5
    %v5083 = vsel %vm416, %v5078, %v5082
    %v5084 = vshrl.u32 %v4888, 16
    %v5086 = vrot.slane %v5084, 4
    %v5087 = vor.u32 %v5086, %v5082
    %v5088 = vrot.slane %v5087, 4
    %v5090 = vshll.u32 %v4889, 16
    %v5092 = vrot.slane %v5090, 5
    %v5093 = vsel %vm416, %v5088, %v5092
    %v5094 = vshrl.u32 %v4889, 16
    %v5096 = vrot.slane %v5094, 4
    %v5097 = vor.u32 %v5096, %v5092
    %v5098 = vrot.slane %v5097, 4
    %v5100 = vshrl.u32 %v4890, 16
    %v5102 = vrot.slane %v5100, 4
    %v5103 = vshll.u32 %v4890, 16
    %v5105 = vrot.slane %v5103, 5
    %v5106 = vor.u32 %v5102, %v5105
    %v5107 = vrot.slane %v5106, 4
    %v5109 = vshll.u32 %v4891, 16
    %v5111 = vrot.slane %v5109, 5
    %v5112 = vsel %vm416, %v5107, %v5111
    %v5113 = vshrl.u32 %v4891, 16
    %v5115 = vrot.slane %v5113, 4
    %v5116 = vor.u32 %v5115, %v5111
    %v5117 = vrot.slane %v5116, 4
    %v5119 = vshll.u32 %v4892, 16
    %v5121 = vrot.slane %v5119, 5
    %v5122 = vsel %vm416, %v5117, %v5121
    %v5123 = vshrl.u32 %v4892, 16
    %v5125 = vrot.slane %v5123, 4
    %v5126 = vor.u32 %v5125, %v5121
    %v5127 = vrot.slane %v5126, 4
    %v5129 = vshll.u32 %v4893, 16
    %v5131 = vrot.slane %v5129, 5
    %v5132 = vsel %vm416, %v5127, %v5131
    %v5133 = vshrl.u32 %v4893, 16
    %v5135 = vrot.slane %v5133, 4
    %v5136 = vor.u32 %v5135, %v5131
    %v5137 = vrot.slane %v5136, 4
    %v5139 = vshrl.u32 %v4894, 16
    %v5141 = vrot.slane %v5139, 4
    %v5142 = vshll.u32 %v4894, 16
    %v5144 = vrot.slane %v5142, 5
    %v5145 = vor.u32 %v5141, %v5144
    %v5146 = vrot.slane %v5145, 4
    %v5148 = vshll.u32 %v4895, 16
    %v5150 = vrot.slane %v5148, 5
    %v5151 = vsel %vm416, %v5146, %v5150
    %v5152 = vshrl.u32 %v4895, 16
    %v5154 = vrot.slane %v5152, 4
    %v5155 = vor.u32 %v5154, %v5150
    %v5156 = vrot.slane %v5155, 4
    %v5158 = vshll.u32 %v4896, 16
    %v5160 = vrot.slane %v5158, 5
    %v5161 = vsel %vm416, %v5156, %v5160
    %v5162 = vshrl.u32 %v4896, 16
    %v5164 = vrot.slane %v5162, 4
    %v5165 = vor.u32 %v5164, %v5160
    %v5166 = vrot.slane %v5165, 4
    %v5168 = vshll.u32 %v4897, 16
    %v5170 = vrot.slane %v5168, 5
    %v5171 = vsel %vm416, %v5166, %v5170
    %v5172 = vshrl.u32 %v4897, 16
    %v5174 = vrot.slane %v5172, 4
    %v5175 = vor.u32 %v5174, %v5170
    %v5176 = vrot.slane %v5175, 4
    %v5178 = vshrl.u32 %v4898, 16
    %v5180 = vrot.slane %v5178, 4
    %v5181 = vshll.u32 %v4898, 16
    %v5183 = vrot.slane %v5181, 5
    %v5184 = vor.u32 %v5180, %v5183
    %v5185 = vrot.slane %v5184, 4
    %v5187 = vshll.u32 %v4899, 16
    %v5189 = vrot.slane %v5187, 5
    %v5190 = vsel %vm416, %v5185, %v5189
    %v5191 = vshrl.u32 %v4899, 16
    %v5193 = vrot.slane %v5191, 4
    %v5194 = vor.u32 %v5193, %v5189
    %v5195 = vrot.slane %v5194, 4
    %v5197 = vshll.u32 %v4900, 16
    %v5199 = vrot.slane %v5197, 5
    %v5200 = vsel %vm416, %v5195, %v5199
    %v5201 = vshrl.u32 %v4900, 16
    %v5203 = vrot.slane %v5201, 4
    %v5204 = vor.u32 %v5203, %v5199
    %v5205 = vrot.slane %v5204, 4
    %v5207 = vshll.u32 %v4901, 16
    %v5209 = vrot.slane %v5207, 5
    %v5210 = vsel %vm416, %v5205, %v5209
    %v5211 = vshrl.u32 %v4901, 16
    %v5213 = vrot.slane %v5211, 4
    %v5214 = vor.u32 %v5213, %v5209
    %v5215 = vrot.slane %v5214, 4
    %v5217 = vshrl.u32 %v4902, 16
    %v5219 = vrot.slane %v5217, 4
    %v5220 = vshll.u32 %v4902, 16
    %v5222 = vrot.slane %v5220, 5
    %v5223 = vor.u32 %v5219, %v5222
    %v5224 = vrot.slane %v5223, 4
    %v5226 = vshll.u32 %v4903, 16
    %v5228 = vrot.slane %v5226, 5
    %v5229 = vsel %vm416, %v5224, %v5228
    %v5230 = vshrl.u32 %v4903, 16
    %v5232 = vrot.slane %v5230, 4
    %v5233 = vor.u32 %v5232, %v5228
    %v5234 = vrot.slane %v5233, 4
    %v5236 = vshll.u32 %v4904, 16
    %v5238 = vrot.slane %v5236, 5
    %v5239 = vsel %vm416, %v5234, %v5238
    %v5240 = vshrl.u32 %v4904, 16
    %v5242 = vrot.slane %v5240, 4
    %v5243 = vor.u32 %v5242, %v5238
    %v5244 = vrot.slane %v5243, 4
    %v5246 = vshll.u32 %v4905, 16
    %v5248 = vrot.slane %v5246, 5
    %v5249 = vsel %vm416, %v5244, %v5248
    %v5250 = vshrl.u32 %v4905, 16
    %v5252 = vrot.slane %v5250, 4
    %v5253 = vor.u32 %v5252, %v5248
    %v5254 = vrot.slane %v5253, 4
    %v5256 = vshrl.u32 %v4906, 16
    %v5258 = vrot.slane %v5256, 4
    %v5259 = vshll.u32 %v4906, 16
    %v5261 = vrot.slane %v5259, 5
    %v5262 = vor.u32 %v5258, %v5261
    %v5263 = vrot.slane %v5262, 4
    %v5265 = vshll.u32 %v4907, 16
    %v5267 = vrot.slane %v5265, 5
    %v5268 = vsel %vm416, %v5263, %v5267
    %v5269 = vshrl.u32 %v4907, 16
    %v5271 = vrot.slane %v5269, 4
    %v5272 = vor.u32 %v5271, %v5267
    %v5273 = vrot.slane %v5272, 4
    %v5275 = vshll.u32 %v4908, 16
    %v5277 = vrot.slane %v5275, 5
    %v5278 = vsel %vm416, %v5273, %v5277
    %v5279 = vshrl.u32 %v4908, 16
    %v5281 = vrot.slane %v5279, 4
    %v5282 = vor.u32 %v5281, %v5277
    %v5283 = vrot.slane %v5282, 4
    %v5285 = vshll.u32 %v4909, 16
    %v5287 = vrot.slane %v5285, 5
    %v5288 = vsel %vm416, %v5283, %v5287
    %v5289 = vshrl.u32 %v4909, 16
    %v5291 = vrot.slane %v5289, 4
    %v5292 = vor.u32 %v5291, %v5287
    %v5293 = vrot.slane %v5292, 4
    %v5295 = vshrl.u32 %v4910, 16
    %v5297 = vrot.slane %v5295, 4
    %v5298 = vshll.u32 %v4910, 16
    %v5300 = vrot.slane %v5298, 5
    %v5301 = vor.u32 %v5297, %v5300
    %v5302 = vrot.slane %v5301, 4
    %v5304 = vshll.u32 %v4911, 16
    %v5306 = vrot.slane %v5304, 5
    %v5307 = vsel %vm416, %v5302, %v5306
    %v5308 = vshrl.u32 %v4911, 16
    %v5310 = vrot.slane %v5308, 4
    %v5311 = vor.u32 %v5310, %v5306
    %v5312 = vrot.slane %v5311, 4
    %v5314 = vshll.u32 %v4912, 16
    %v5316 = vrot.slane %v5314, 5
    %v5317 = vsel %vm416, %v5312, %v5316
    %v5318 = vshrl.u32 %v4912, 16
    %v5320 = vrot.slane %v5318, 4
    %v5321 = vor.u32 %v5320, %v5316
    %v5322 = vrot.slane %v5321, 4
    %v5324 = vshll.u32 %v4913, 16
    %v5326 = vrot.slane %v5324, 5
    %v5327 = vsel %vm416, %v5322, %v5326
    %v5328 = vshrl.u32 %v4913, 16
    %v5330 = vrot.slane %v5328, 4
    %v5331 = vor.u32 %v5330, %v5326
    %v5332 = vrot.slane %v5331, 4
    %v5334 = vshrl.u32 %v4914, 16
    %v5336 = vrot.slane %v5334, 4
    %v5337 = vshll.u32 %v4914, 16
    %v5339 = vrot.slane %v5337, 5
    %v5340 = vor.u32 %v5336, %v5339
    %v5341 = vrot.slane %v5340, 4
    %v5343 = vshll.u32 %v4915, 16
    %v5345 = vrot.slane %v5343, 5
    %v5346 = vsel %vm416, %v5341, %v5345
    %v5347 = vshrl.u32 %v4915, 16
    %v5349 = vrot.slane %v5347, 4
    %v5350 = vor.u32 %v5349, %v5345
    %v5351 = vrot.slane %v5350, 4
    %v5353 = vshll.u32 %v4916, 16
    %v5355 = vrot.slane %v5353, 5
    %v5356 = vsel %vm416, %v5351, %v5355
    %v5357 = vshrl.u32 %v4916, 16
    %v5359 = vrot.slane %v5357, 4
    %v5360 = vor.u32 %v5359, %v5355
    %v5361 = vrot.slane %v5360, 4
    %v5363 = vshll.u32 %v4917, 16
    %v5365 = vrot.slane %v5363, 5
    %v5366 = vsel %vm416, %v5361, %v5365
    %v5367 = vshrl.u32 %v4917, 16
    %v5369 = vrot.slane %v5367, 4
    %v5370 = vor.u32 %v5369, %v5365
    %v5371 = vrot.slane %v5370, 4
    %v5373 = vshrl.u32 %v4918, 16
    %v5375 = vrot.slane %v5373, 4
    %v5376 = vshll.u32 %v4918, 16
    %v5378 = vrot.slane %v5376, 5
    %v5379 = vor.u32 %v5375, %v5378
    %v5380 = vrot.slane %v5379, 4
    %v5382 = vshll.u32 %v4919, 16
    %v5384 = vrot.slane %v5382, 5
    %v5385 = vsel %vm416, %v5380, %v5384
    %v5386 = vshrl.u32 %v4919, 16
    %v5388 = vrot.slane %v5386, 4
    %v5389 = vor.u32 %v5388, %v5384
    %v5390 = vrot.slane %v5389, 4
    %v5392 = vshll.u32 %v4920, 16
    %v5394 = vrot.slane %v5392, 5
    %v5395 = vsel %vm416, %v5390, %v5394
    %v5396 = vshrl.u32 %v4920, 16
    %v5398 = vrot.slane %v5396, 4
    %v5399 = vor.u32 %v5398, %v5394
    %v5400 = vrot.slane %v5399, 4
    %v5402 = vshll.u32 %v4921, 16
    %v5404 = vrot.slane %v5402, 5
    %v5405 = vsel %vm416, %v5400, %v5404
    %v5406 = vshrl.u32 %v4921, 16
    %v5408 = vrot.slane %v5406, 4
    %v5409 = vor.u32 %v5408, %v5404
    %v5410 = vrot.slane %v5409, 4
    %v5412 = vshrl.u32 %v4922, 16
    %v5414 = vrot.slane %v5412, 4
    %v5415 = vshll.u32 %v4922, 16
    %v5417 = vrot.slane %v5415, 5
    %v5418 = vor.u32 %v5414, %v5417
    %v5419 = vrot.slane %v5418, 4
    %v5421 = vshll.u32 %v4923, 16
    %v5423 = vrot.slane %v5421, 5
    %v5424 = vsel %vm416, %v5419, %v5423
    %v5425 = vshrl.u32 %v4923, 16
    %v5427 = vrot.slane %v5425, 4
    %v5428 = vor.u32 %v5427, %v5423
    %v5429 = vrot.slane %v5428, 4
    %v5431 = vshll.u32 %v4924, 16
    %v5433 = vrot.slane %v5431, 5
    %v5434 = vsel %vm416, %v5429, %v5433
    %v5435 = vshrl.u32 %v4924, 16
    %v5437 = vrot.slane %v5435, 4
    %v5438 = vor.u32 %v5437, %v5433
    %v5439 = vrot.slane %v5438, 4
    %v5441 = vshll.u32 %v4925, 16
    %v5443 = vrot.slane %v5441, 5
    %v5444 = vsel %vm416, %v5439, %v5443
    %v5445 = vshrl.u32 %v4925, 16
    %v5447 = vrot.slane %v5445, 4
    %v5448 = vor.u32 %v5447, %v5443
    %v5449 = vrot.slane %v5448, 4
    %v5451 = vshrl.u32 %v4926, 16
    %v5453 = vrot.slane %v5451, 4
    %v5454 = vshll.u32 %v4926, 16
    %v5456 = vrot.slane %v5454, 5
    %v5457 = vor.u32 %v5453, %v5456
    %v5458 = vrot.slane %v5457, 4
    %v5460 = vshll.u32 %v4927, 16
    %v5462 = vrot.slane %v5460, 5
    %v5463 = vsel %vm416, %v5458, %v5462
    %v5464 = vshrl.u32 %v4927, 16
    %v5466 = vrot.slane %v5464, 4
    %v5467 = vor.u32 %v5466, %v5462
    %v5468 = vrot.slane %v5467, 4
    %v5470 = vshll.u32 %v4928, 16
    %v5472 = vrot.slane %v5470, 5
    %v5473 = vsel %vm416, %v5468, %v5472
    %v5474 = vshrl.u32 %v4928, 16
    %v5476 = vrot.slane %v5474, 4
    %v5477 = vor.u32 %v5476, %v5472
    %v5478 = vrot.slane %v5477, 4
    %v5480 = vshll.u32 %v4929, 16
    %v5482 = vrot.slane %v5480, 5
    %v5483 = vsel %vm416, %v5478, %v5482
    %v5484 = vshrl.u32 %v4929, 16
    %v5486 = vrot.slane %v5484, 4
    %v5487 = vor.u32 %v5486, %v5482
    %v5488 = vrot.slane %v5487, 4
    %v5490 = vshrl.u32 %v4930, 16
    %v5492 = vrot.slane %v5490, 4
    %v5493 = vshll.u32 %v4930, 16
    %v5495 = vrot.slane %v5493, 5
    %v5496 = vor.u32 %v5492, %v5495
    %v5497 = vrot.slane %v5496, 4
    %v5499 = vshll.u32 %v4931, 16
    %v5501 = vrot.slane %v5499, 5
    %v5502 = vsel %vm416, %v5497, %v5501
    %v5503 = vshrl.u32 %v4931, 16
    %v5505 = vrot.slane %v5503, 4
    %v5506 = vor.u32 %v5505, %v5501
    %v5507 = vrot.slane %v5506, 4
    %v5509 = vshll.u32 %v4932, 16
    %v5511 = vrot.slane %v5509, 5
    %v5512 = vsel %vm416, %v5507, %v5511
    %v5513 = vshrl.u32 %v4932, 16
    %v5515 = vrot.slane %v5513, 4
    %v5516 = vor.u32 %v5515, %v5511
    %v5517 = vrot.slane %v5516, 4
    %v5519 = vshll.u32 %v4933, 16
    %v5521 = vrot.slane %v5519, 5
    %v5522 = vsel %vm416, %v5517, %v5521
    %v5523 = vshrl.u32 %v4933, 16
    %v5525 = vrot.slane %v5523, 4
    %v5526 = vor.u32 %v5525, %v5521
    %v5527 = vrot.slane %v5526, 4
    %v5529 = vshrl.u32 %v4934, 16
    %v5531 = vrot.slane %v5529, 4
    %v5532 = vshll.u32 %v4934, 16
    %v5534 = vrot.slane %v5532, 5
    %v5535 = vor.u32 %v5531, %v5534
    %v5536 = vrot.slane %v5535, 4
    %v5538 = vshll.u32 %v4935, 16
    %v5540 = vrot.slane %v5538, 5
    %v5541 = vsel %vm416, %v5536, %v5540
    %v5542 = vshrl.u32 %v4935, 16
    %v5544 = vrot.slane %v5542, 4
    %v5545 = vor.u32 %v5544, %v5540
    %v5546 = vrot.slane %v5545, 4
    %v5548 = vshll.u32 %v4936, 16
    %v5550 = vrot.slane %v5548, 5
    %v5551 = vsel %vm416, %v5546, %v5550
    %v5552 = vshrl.u32 %v4936, 16
    %v5554 = vrot.slane %v5552, 4
    %v5555 = vor.u32 %v5554, %v5550
    %v5556 = vrot.slane %v5555, 4
    %v5558 = vshll.u32 %v4937, 16
    %v5560 = vrot.slane %v5558, 5
    %v5561 = vsel %vm416, %v5556, %v5560
    %v5562 = vshrl.u32 %v4937, 16
    %v5564 = vrot.slane %v5562, 4
    %v5565 = vor.u32 %v5564, %v5560
    %v5566 = vrot.slane %v5565, 4
    %v5568 = vshrl.u32 %v4938, 16
    %v5570 = vrot.slane %v5568, 4
    %v5571 = vshll.u32 %v4938, 16
    %v5573 = vrot.slane %v5571, 5
    %v5574 = vor.u32 %v5570, %v5573
    %v5575 = vrot.slane %v5574, 4
    %v5577 = vshll.u32 %v4939, 16
    %v5579 = vrot.slane %v5577, 5
    %v5580 = vsel %vm416, %v5575, %v5579
    %v5581 = vshrl.u32 %v4939, 16
    %v5583 = vrot.slane %v5581, 4
    %v5584 = vor.u32 %v5583, %v5579
    %v5585 = vrot.slane %v5584, 4
    %v5587 = vshll.u32 %v4940, 16
    %v5589 = vrot.slane %v5587, 5
    %v5590 = vsel %vm416, %v5585, %v5589
    %v5591 = vshrl.u32 %v4940, 16
    %v5593 = vrot.slane %v5591, 4
    %v5594 = vor.u32 %v5593, %v5589
    %v5595 = vrot.slane %v5594, 4
    %v5597 = vshll.u32 %v4941, 16
    %v5599 = vrot.slane %v5597, 5
    %v5600 = vsel %vm416, %v5595, %v5599
    %v5601 = vshrl.u32 %v4941, 16
    %v5603 = vrot.slane %v5601, 4
    %v5604 = vor.u32 %v5603, %v5599
    %v5605 = vrot.slane %v5604, 4
    %v5607 = vshrl.u32 %v4942, 16
    %v5609 = vrot.slane %v5607, 4
    %v5610 = vshll.u32 %v4942, 16
    %v5612 = vrot.slane %v5610, 5
    %v5613 = vor.u32 %v5609, %v5612
    %v5614 = vrot.slane %v5613, 4
    %v5616 = vshll.u32 %v4943, 16
    %v5618 = vrot.slane %v5616, 5
    %v5619 = vsel %vm416, %v5614, %v5618
    %v5620 = vshrl.u32 %v4943, 16
    %v5622 = vrot.slane %v5620, 4
    %v5623 = vor.u32 %v5622, %v5618
    %v5624 = vrot.slane %v5623, 4
    %v5626 = vshll.u32 %v4944, 16
    %v5628 = vrot.slane %v5626, 5
    %v5629 = vsel %vm416, %v5624, %v5628
    %v5630 = vshrl.u32 %v4944, 16
    %v5632 = vrot.slane %v5630, 4
    %v5633 = vor.u32 %v5632, %v5628
    %v5634 = vrot.slane %v5633, 4
    %v5636 = vshll.u32 %v4945, 16
    %v5638 = vrot.slane %v5636, 5
    %v5639 = vsel %vm416, %v5634, %v5638
    %v5640 = vshrl.u32 %v4945, 16
    %v5642 = vrot.slane %v5640, 4
    %v5643 = vor.u32 %v5642, %v5638
    %v5644 = vrot.slane %v5643, 4
    %v5646 = vshrl.u32 %v4946, 16
    %v5648 = vrot.slane %v5646, 4
    %v5649 = vshll.u32 %v4946, 16
    %v5651 = vrot.slane %v5649, 5
    %v5652 = vor.u32 %v5648, %v5651
    %v5653 = vrot.slane %v5652, 4
    %v5655 = vshll.u32 %v4947, 16
    %v5657 = vrot.slane %v5655, 5
    %v5658 = vsel %vm416, %v5653, %v5657
    %v5659 = vshrl.u32 %v4947, 16
    %v5661 = vrot.slane %v5659, 4
    %v5662 = vor.u32 %v5661, %v5657
    %v5663 = vrot.slane %v5662, 4
    %v5665 = vshll.u32 %v4948, 16
    %v5667 = vrot.slane %v5665, 5
    %v5668 = vsel %vm416, %v5663, %v5667
    %v5669 = vshrl.u32 %v4948, 16
    %v5671 = vrot.slane %v5669, 4
    %v5672 = vor.u32 %v5671, %v5667
    %v5673 = vrot.slane %v5672, 4
    %v5675 = vshll.u32 %v4949, 16
    %v5677 = vrot.slane %v5675, 5
    %v5678 = vsel %vm416, %v5673, %v5677
    %v5679 = vshrl.u32 %v4949, 16
    %v5681 = vrot.slane %v5679, 4
    %v5682 = vor.u32 %v5681, %v5677
    %v5683 = vrot.slane %v5682, 4
    %v5685 = vshrl.u32 %v4950, 16
    %v5687 = vrot.slane %v5685, 4
    %v5688 = vshll.u32 %v4950, 16
    %v5690 = vrot.slane %v5688, 5
    %v5691 = vor.u32 %v5687, %v5690
    %v5692 = vrot.slane %v5691, 4
    %v5694 = vshll.u32 %v4951, 16
    %v5696 = vrot.slane %v5694, 5
    %v5697 = vsel %vm416, %v5692, %v5696
    %v5698 = vshrl.u32 %v4951, 16
    %v5700 = vrot.slane %v5698, 4
    %v5701 = vor.u32 %v5700, %v5696
    %v5702 = vrot.slane %v5701, 4
    %v5704 = vshll.u32 %v4952, 16
    %v5706 = vrot.slane %v5704, 5
    %v5707 = vsel %vm416, %v5702, %v5706
    %v5708 = vshrl.u32 %v4952, 16
    %v5710 = vrot.slane %v5708, 4
    %v5711 = vor.u32 %v5710, %v5706
    %v5712 = vrot.slane %v5711, 4
    %v5714 = vshll.u32 %v4953, 16
    %v5716 = vrot.slane %v5714, 5
    %v5717 = vsel %vm416, %v5712, %v5716
    %v5718 = vshrl.u32 %v4953, 16
    %v5720 = vrot.slane %v5718, 4
    %v5721 = vor.u32 %v5720, %v5716
    %v5722 = vrot.slane %v5721, 4
    %v5724 = vshrl.u32 %v4954, 16
    %v5726 = vrot.slane %v5724, 4
    %v5727 = vshll.u32 %v4954, 16
    %v5729 = vrot.slane %v5727, 5
    %v5730 = vor.u32 %v5726, %v5729
    %v5731 = vrot.slane %v5730, 4
    %v5733 = vshll.u32 %v4955, 16
    %v5735 = vrot.slane %v5733, 5
    %v5736 = vsel %vm416, %v5731, %v5735
    %v5737 = vshrl.u32 %v4955, 16
    %v5739 = vrot.slane %v5737, 4
    %v5740 = vor.u32 %v5739, %v5735
    %v5741 = vrot.slane %v5740, 4
    %v5743 = vshll.u32 %v4956, 16
    %v5745 = vrot.slane %v5743, 5
    %v5746 = vsel %vm416, %v5741, %v5745
    %v5747 = vshrl.u32 %v4956, 16
    %v5749 = vrot.slane %v5747, 4
    %v5750 = vor.u32 %v5749, %v5745
    %v5751 = vrot.slane %v5750, 4
    %v5753 = vshll.u32 %v4957, 16
    %v5755 = vrot.slane %v5753, 5
    %v5756 = vsel %vm416, %v5751, %v5755
    %v5757 = vshrl.u32 %v4957, 16
    %v5759 = vrot.slane %v5757, 4
    %v5760 = vor.u32 %v5759, %v5755
    %v5761 = vrot.slane %v5760, 4
    %v5763 = vshrl.u32 %v4958, 16
    %v5765 = vrot.slane %v5763, 4
    %v5766 = vshll.u32 %v4958, 16
    %v5768 = vrot.slane %v5766, 5
    %v5769 = vor.u32 %v5765, %v5768
    %v5770 = vrot.slane %v5769, 4
    %v5772 = vshll.u32 %v4959, 16
    %v5774 = vrot.slane %v5772, 5
    %v5775 = vsel %vm416, %v5770, %v5774
    %v5776 = vshrl.u32 %v4959, 16
    %v5778 = vrot.slane %v5776, 4
    %v5779 = vor.u32 %v5778, %v5774
    %v5780 = vrot.slane %v5779, 4
    %v5782 = vshll.u32 %v4960, 16
    %v5784 = vrot.slane %v5782, 5
    %v5785 = vsel %vm416, %v5780, %v5784
    %v5786 = vshrl.u32 %v4960, 16
    %v5788 = vrot.slane %v5786, 4
    %v5789 = vor.u32 %v5788, %v5784
    %v5790 = vrot.slane %v5789, 4
    %v5792 = vshll.u32 %v4961, 16
    %v5794 = vrot.slane %v5792, 5
    %v5795 = vsel %vm416, %v5790, %v5794
    %v5796 = vshrl.u32 %v4961, 16
    %v5798 = vrot.slane %v5796, 4
    %v5799 = vor.u32 %v5798, %v5794
    %v5800 = vrot.slane %v5799, 4
    %v5802 = vshrl.u32 %v4962, 16
    %v5804 = vrot.slane %v5802, 4
    %v5805 = vshll.u32 %v4962, 16
    %v5807 = vrot.slane %v5805, 5
    %v5808 = vor.u32 %v5804, %v5807
    %v5809 = vrot.slane %v5808, 4
    %v5811 = vshll.u32 %v4963, 16
    %v5813 = vrot.slane %v5811, 5
    %v5814 = vsel %vm416, %v5809, %v5813
    %v5815 = vshrl.u32 %v4963, 16
    %v5817 = vrot.slane %v5815, 4
    %v5818 = vor.u32 %v5817, %v5813
    %v5819 = vrot.slane %v5818, 4
    %v5821 = vshll.u32 %v4964, 16
    %v5823 = vrot.slane %v5821, 5
    %v5824 = vsel %vm416, %v5819, %v5823
    %v5825 = vshrl.u32 %v4964, 16
    %v5827 = vrot.slane %v5825, 4
    %v5828 = vor.u32 %v5827, %v5823
    %v5829 = vrot.slane %v5828, 4
    %v5831 = vshll.u32 %v4965, 16
    %v5833 = vrot.slane %v5831, 5
    %v5834 = vsel %vm416, %v5829, %v5833
    %v5835 = vshrl.u32 %v4965, 16
    %v5837 = vrot.slane %v5835, 4
    %v5838 = vor.u32 %v5837, %v5833
    %v5839 = vrot.slane %v5838, 4
    %v5841 = vshrl.u32 %v4966, 16
    %v5843 = vrot.slane %v5841, 4
    %v5844 = vshll.u32 %v4966, 16
    %v5846 = vrot.slane %v5844, 5
    %v5847 = vor.u32 %v5843, %v5846
    %v5848 = vrot.slane %v5847, 4
    %v5850 = vshll.u32 %v4967, 16
    %v5852 = vrot.slane %v5850, 5
    %v5853 = vsel %vm416, %v5848, %v5852
    %v5854 = vshrl.u32 %v4967, 16
    %v5856 = vrot.slane %v5854, 4
    %v5857 = vor.u32 %v5856, %v5852
    %v5858 = vrot.slane %v5857, 4
    %v5860 = vshll.u32 %v4968, 16
    %v5862 = vrot.slane %v5860, 5
    %v5863 = vsel %vm416, %v5858, %v5862
    %v5864 = vshrl.u32 %v4968, 16
    %v5866 = vrot.slane %v5864, 4
    %v5867 = vor.u32 %v5866, %v5862
    %v5868 = vrot.slane %v5867, 4
    %v5870 = vshll.u32 %v4969, 16
    %v5872 = vrot.slane %v5870, 5
    %v5873 = vsel %vm416, %v5868, %v5872
    %v5874 = vshrl.u32 %v4969, 16
    %v5876 = vrot.slane %v5874, 4
    %v5877 = vor.u32 %v5876, %v5872
    %v5878 = vrot.slane %v5877, 4
    %v5880 = vshrl.u32 %v4970, 16
    %v5882 = vrot.slane %v5880, 4
    %v5883 = vshll.u32 %v4970, 16
    %v5885 = vrot.slane %v5883, 5
    %v5886 = vor.u32 %v5882, %v5885
    %v5887 = vrot.slane %v5886, 4
    %v5889 = vshll.u32 %v4971, 16
    %v5891 = vrot.slane %v5889, 5
    %v5892 = vsel %vm416, %v5887, %v5891
    %v5893 = vshrl.u32 %v4971, 16
    %v5895 = vrot.slane %v5893, 4
    %v5896 = vor.u32 %v5895, %v5891
    %v5897 = vrot.slane %v5896, 4
    %v5899 = vshll.u32 %v4972, 16
    %v5901 = vrot.slane %v5899, 5
    %v5902 = vsel %vm416, %v5897, %v5901
    %v5903 = vshrl.u32 %v4972, 16
    %v5905 = vrot.slane %v5903, 4
    %v5906 = vor.u32 %v5905, %v5901
    %v5907 = vrot.slane %v5906, 4
    %v5909 = vshll.u32 %v4973, 16
    %v5911 = vrot.slane %v5909, 5
    %v5912 = vsel %vm416, %v5907, %v5911
    %v5913 = vshrl.u32 %v4973, 16
    %v5915 = vrot.slane %v5913, 4
    %v5916 = vor.u32 %v5915, %v5911
    %v5917 = vrot.slane %v5916, 4
    %v5919 = vshrl.u32 %v4974, 16
    %v5921 = vrot.slane %v5919, 4
    %v5922 = vshll.u32 %v4974, 16
    %v5924 = vrot.slane %v5922, 5
    %v5925 = vor.u32 %v5921, %v5924
    %v5926 = vrot.slane %v5925, 4
    %v5928 = vshll.u32 %v4975, 16
    %v5930 = vrot.slane %v5928, 5
    %v5931 = vsel %vm416, %v5926, %v5930
    %v5932 = vshrl.u32 %v4975, 16
    %v5934 = vrot.slane %v5932, 4
    %v5935 = vor.u32 %v5934, %v5930
    %v5936 = vrot.slane %v5935, 4
    %v5938 = vshll.u32 %v4976, 16
    %v5940 = vrot.slane %v5938, 5
    %v5941 = vsel %vm416, %v5936, %v5940
    %v5942 = vshrl.u32 %v4976, 16
    %v5944 = vrot.slane %v5942, 4
    %v5945 = vor.u32 %v5944, %v5940
    %v5946 = vrot.slane %v5945, 4
    %v5948 = vshll.u32 %v4977, 16
    %v5950 = vrot.slane %v5948, 5
    %v5951 = vsel %vm416, %v5946, %v5950
    %v5952 = vshrl.u32 %v4977, 16
    %v5954 = vrot.slane %v5952, 4
    %v5955 = vor.u32 %v5954, %v5950
    %v5956 = vrot.slane %v5955, 4
    %v5958 = vshrl.u32 %v4978, 16
    %v5960 = vrot.slane %v5958, 4
    %v5961 = vshll.u32 %v4978, 16
    %v5963 = vrot.slane %v5961, 5
    %v5964 = vor.u32 %v5960, %v5963
    %v5965 = vrot.slane %v5964, 4
    %v5967 = vshll.u32 %v4979, 16
    %v5969 = vrot.slane %v5967, 5
    %v5970 = vsel %vm416, %v5965, %v5969
    %v5971 = vshrl.u32 %v4979, 16
    %v5973 = vrot.slane %v5971, 4
    %v5974 = vor.u32 %v5973, %v5969
    %v5975 = vrot.slane %v5974, 4
    %v5977 = vshll.u32 %v4980, 16
    %v5979 = vrot.slane %v5977, 5
    %v5980 = vsel %vm416, %v5975, %v5979
    %v5981 = vshrl.u32 %v4980, 16
    %v5983 = vrot.slane %v5981, 4
    %v5984 = vor.u32 %v5983, %v5979
    %v5985 = vrot.slane %v5984, 4
    %v5987 = vshll.u32 %v4981, 16
    %v5989 = vrot.slane %v5987, 5
    %v5990 = vsel %vm416, %v5985, %v5989
    %v5991 = vshrl.u32 %v4981, 16
    %v5993 = vrot.slane %v5991, 4
    %v5994 = vor.u32 %v5993, %v5989
    %v5995 = vrot.slane %v5994, 4
    %v6100 = vadd.bf16 %v4759, %v4995
    %v6101 = vadd.bf16 %v4760, %v5005
    %v6102 = vadd.bf16 %v4761, %v5015
    %v6103 = vadd.bf16 %v4762, %v5020
    %v6104 = vadd.bf16 %v4763, %v5034
    %v6105 = vadd.bf16 %v4764, %v5044
    %v6106 = vadd.bf16 %v4765, %v5054
    %v6107 = vadd.bf16 %v4766, %v5059
    %v6108 = vadd.bf16 %v4767, %v5073
    %v6109 = vadd.bf16 %v4768, %v5083
    %v6110 = vadd.bf16 %v4769, %v5093
    %v6111 = vadd.bf16 %v4770, %v5098
    %v6112 = vadd.bf16 %v4771, %v5112
    %v6113 = vadd.bf16 %v4772, %v5122
    %v6114 = vadd.bf16 %v4773, %v5132
    %v6115 = vadd.bf16 %v4774, %v5137
    %v6116 = vadd.bf16 %v4775, %v5151
    %v6117 = vadd.bf16 %v4776, %v5161
    %v6118 = vadd.bf16 %v4777, %v5171
    %v6119 = vadd.bf16 %v4778, %v5176
    %v6120 = vadd.bf16 %v4779, %v5190
    %v6121 = vadd.bf16 %v4780, %v5200
    %v6122 = vadd.bf16 %v4781, %v5210
    %v6123 = vadd.bf16 %v4782, %v5215
    %v6124 = vadd.bf16 %v4783, %v5229
    %v6125 = vadd.bf16 %v4784, %v5239
    %v6126 = vadd.bf16 %v4785, %v5249
    %v6127 = vadd.bf16 %v4786, %v5254
    %v6128 = vadd.bf16 %v4787, %v5268
    %v6129 = vadd.bf16 %v4788, %v5278
    %v6130 = vadd.bf16 %v4789, %v5288
    %v6131 = vadd.bf16 %v4790, %v5293
    %v6132 = vadd.bf16 %v4791, %v5307
    %v6133 = vadd.bf16 %v4792, %v5317
    %v6134 = vadd.bf16 %v4793, %v5327
    %v6135 = vadd.bf16 %v4794, %v5332
    %v6136 = vadd.bf16 %v4795, %v5346
    %v6137 = vadd.bf16 %v4796, %v5356
    %v6138 = vadd.bf16 %v4797, %v5366
    %v6139 = vadd.bf16 %v4798, %v5371
    %v6140 = vadd.bf16 %v4799, %v5385
    %v6141 = vadd.bf16 %v4800, %v5395
    %v6142 = vadd.bf16 %v4801, %v5405
    %v6143 = vadd.bf16 %v4802, %v5410
    %v6144 = vadd.bf16 %v4803, %v5424
    %v6145 = vadd.bf16 %v4804, %v5434
    %v6146 = vadd.bf16 %v4805, %v5444
    %v6147 = vadd.bf16 %v4806, %v5449
    %v6148 = vadd.bf16 %v4807, %v5463
    %v6149 = vadd.bf16 %v4808, %v5473
    %v6150 = vadd.bf16 %v4809, %v5483
    %v6151 = vadd.bf16 %v4810, %v5488
    %v6152 = vadd.bf16 %v4811, %v5502
    %v6153 = vadd.bf16 %v4812, %v5512
    %v6154 = vadd.bf16 %v4813, %v5522
    %v6155 = vadd.bf16 %v4814, %v5527
    %v6156 = vadd.bf16 %v4815, %v5541
    %v6157 = vadd.bf16 %v4816, %v5551
    %v6158 = vadd.bf16 %v4817, %v5561
    %v6159 = vadd.bf16 %v4818, %v5566
    %v6160 = vadd.bf16 %v4819, %v5580
    %v6161 = vadd.bf16 %v4820, %v5590
    %v6162 = vadd.bf16 %v4821, %v5600
    %v6163 = vadd.bf16 %v4822, %v5605
    %v6164 = vadd.bf16 %v4823, %v5619
    %v6165 = vadd.bf16 %v4824, %v5629
    %v6166 = vadd.bf16 %v4825, %v5639
    %v6167 = vadd.bf16 %v4826, %v5644
    %v6168 = vadd.bf16 %v4827, %v5658
    %v6169 = vadd.bf16 %v4828, %v5668
    %v6170 = vadd.bf16 %v4829, %v5678
    %v6171 = vadd.bf16 %v4830, %v5683
    %v6172 = vadd.bf16 %v4831, %v5697
    %v6173 = vadd.bf16 %v4832, %v5707
    %v6174 = vadd.bf16 %v4833, %v5717
    %v6175 = vadd.bf16 %v4834, %v5722
    %v6176 = vadd.bf16 %v4835, %v5736
    %v6177 = vadd.bf16 %v4836, %v5746
    %v6178 = vadd.bf16 %v4837, %v5756
    %v6179 = vadd.bf16 %v4838, %v5761
    %v6180 = vadd.bf16 %v4839, %v5775
    %v6181 = vadd.bf16 %v4840, %v5785
    %v6182 = vadd.bf16 %v4841, %v5795
    %v6183 = vadd.bf16 %v4842, %v5800
    %v6184 = vadd.bf16 %v4843, %v5814
    %v6185 = vadd.bf16 %v4844, %v5824
    %v6186 = vadd.bf16 %v4845, %v5834
    %v6187 = vadd.bf16 %v4846, %v5839
    %v6188 = vadd.bf16 %v4847, %v5853
    %v6189 = vadd.bf16 %v4848, %v5863
    %v6190 = vadd.bf16 %v4849, %v5873
    %v6191 = vadd.bf16 %v4850, %v5878
    %v6192 = vadd.bf16 %v4851, %v5892
    %v6193 = vadd.bf16 %v4852, %v5902
    %v6194 = vadd.bf16 %v4853, %v5912
    %v6195 = vadd.bf16 %v4854, %v5917
    %v6196 = vadd.bf16 %v4855, %v5931
    %v6197 = vadd.bf16 %v4856, %v5941
    %v6198 = vadd.bf16 %v4857, %v5951
    %v6199 = vadd.bf16 %v4858, %v5956
    %v6200 = vadd.bf16 %v4859, %v5970
    %v6201 = vadd.bf16 %v4860, %v5980
    %v6202 = vadd.bf16 %v4861, %v5990
    %v6203 = vadd.bf16 %v4862, %v5995
    %s6204 = sld [smem:[#allocation8 + $0x102]]
    %p6206 = scmp.ne.f32.partialorder %s6204, %s6204
    %s6207 = sshrl.u32 %s6204, 16
    %s6208 = sand.u32 %s6207, 1
    %s6209 = sadd.s32 32767, %s6208
    %s6210 = sadd.s32 %s6204, %s6209
    %s6211 = sand.u32 %s6210, 4294901760
    %s6212 = scalar_select %p6206, 2143289344, %s6211
    %s6214 = sshrl.u32 %s6212, 16
    %s6215 = sshll.u32 %s6214, 16
    %s6216 = sor.u32 %s6214, %s6215
    %v6217 = vstv %s6216
    %v6219 = vmul.bf16 %v72, %v6217
    %v6220 = vmul.bf16 %v73, %v6217
    %v6221 = vmul.bf16 %v74, %v6217
    %v6222 = vmul.bf16 %v75, %v6217
    %v6223 = vmul.bf16 %v76, %v6217
    %v6224 = vmul.bf16 %v77, %v6217
    %v6225 = vmul.bf16 %v78, %v6217
    %v6226 = vmul.bf16 %v79, %v6217
    %v6227 = vmul.bf16 %v80, %v6217
    %v6228 = vmul.bf16 %v81, %v6217
    %v6229 = vmul.bf16 %v82, %v6217
    %v6230 = vmul.bf16 %v83, %v6217
    %v6231 = vmul.bf16 %v84, %v6217
    %v6232 = vmul.bf16 %v85, %v6217
    %v6233 = vmul.bf16 %v86, %v6217
    %v6234 = vmul.bf16 %v87, %v6217
    %v6235 = vmul.bf16 %v88, %v6217
    %v6236 = vmul.bf16 %v89, %v6217
    %v6237 = vmul.bf16 %v90, %v6217
    %v6238 = vmul.bf16 %v91, %v6217
    %v6239 = vmul.bf16 %v92, %v6217
    %v6240 = vmul.bf16 %v93, %v6217
    %v6241 = vmul.bf16 %v94, %v6217
    %v6242 = vmul.bf16 %v95, %v6217
    %v6243 = vmul.bf16 %v96, %v6217
    %v6244 = vmul.bf16 %v97, %v6217
    %v6245 = vmul.bf16 %v98, %v6217
    %v6246 = vmul.bf16 %v99, %v6217
    %v6247 = vmul.bf16 %v100, %v6217
    %v6248 = vmul.bf16 %v101, %v6217
    %v6249 = vmul.bf16 %v102, %v6217
    %v6250 = vmul.bf16 %v103, %v6217
    %v6251 = vmul.bf16 %v104, %v6217
    %v6252 = vmul.bf16 %v105, %v6217
    %v6253 = vmul.bf16 %v106, %v6217
    %v6254 = vmul.bf16 %v107, %v6217
    %v6255 = vmul.bf16 %v108, %v6217
    %v6256 = vmul.bf16 %v109, %v6217
    %v6257 = vmul.bf16 %v110, %v6217
    %v6258 = vmul.bf16 %v111, %v6217
    %v6259 = vmul.bf16 %v112, %v6217
    %v6260 = vmul.bf16 %v113, %v6217
    %v6261 = vmul.bf16 %v114, %v6217
    %v6262 = vmul.bf16 %v115, %v6217
    %v6263 = vmul.bf16 %v116, %v6217
    %v6264 = vmul.bf16 %v117, %v6217
    %v6265 = vmul.bf16 %v118, %v6217
    %v6266 = vmul.bf16 %v119, %v6217
    %v6267 = vmul.bf16 %v120, %v6217
    %v6268 = vmul.bf16 %v121, %v6217
    %v6269 = vmul.bf16 %v122, %v6217
    %v6270 = vmul.bf16 %v123, %v6217
    %v6271 = vmul.bf16 %v124, %v6217
    %v6272 = vmul.bf16 %v125, %v6217
    %v6273 = vmul.bf16 %v126, %v6217
    %v6274 = vmul.bf16 %v127, %v6217
    %v6275 = vmul.bf16 %v128, %v6217
    %v6276 = vmul.bf16 %v129, %v6217
    %v6277 = vmul.bf16 %v130, %v6217
    %v6278 = vmul.bf16 %v131, %v6217
    %v6279 = vmul.bf16 %v132, %v6217
    %v6280 = vmul.bf16 %v133, %v6217
    %v6281 = vmul.bf16 %v134, %v6217
    %v6282 = vmul.bf16 %v135, %v6217
    %v6283 = vmul.bf16 %v136, %v6217
    %v6284 = vmul.bf16 %v137, %v6217
    %v6285 = vmul.bf16 %v138, %v6217
    %v6286 = vmul.bf16 %v139, %v6217
    %v6287 = vmul.bf16 %v140, %v6217
    %v6288 = vmul.bf16 %v141, %v6217
    %v6289 = vmul.bf16 %v142, %v6217
    %v6290 = vmul.bf16 %v143, %v6217
    %v6291 = vmul.bf16 %v144, %v6217
    %v6292 = vmul.bf16 %v145, %v6217
    %v6293 = vmul.bf16 %v146, %v6217
    %v6294 = vmul.bf16 %v147, %v6217
    %v6295 = vmul.bf16 %v148, %v6217
    %v6296 = vmul.bf16 %v149, %v6217
    %v6297 = vmul.bf16 %v150, %v6217
    %v6298 = vmul.bf16 %v151, %v6217
    %v6299 = vmul.bf16 %v152, %v6217
    %v6300 = vmul.bf16 %v153, %v6217
    %v6301 = vmul.bf16 %v154, %v6217
    %v6302 = vmul.bf16 %v155, %v6217
    %v6303 = vmul.bf16 %v156, %v6217
    %v6304 = vmul.bf16 %v157, %v6217
    %v6305 = vmul.bf16 %v158, %v6217
    %v6306 = vmul.bf16 %v159, %v6217
    %v6307 = vmul.bf16 %v160, %v6217
    %v6308 = vmul.bf16 %v161, %v6217
    %v6309 = vmul.bf16 %v162, %v6217
    %v6310 = vmul.bf16 %v163, %v6217
    %v6311 = vmul.bf16 %v164, %v6217
    %v6312 = vmul.bf16 %v165, %v6217
    %v6313 = vmul.bf16 %v166, %v6217
    %v6314 = vmul.bf16 %v167, %v6217
    %v6315 = vmul.bf16 %v168, %v6217
    %v6316 = vmul.bf16 %v169, %v6217
    %v6317 = vmul.bf16 %v170, %v6217
    %v6318 = vmul.bf16 %v171, %v6217
    %v6319 = vmul.bf16 %v172, %v6217
    %v6320 = vmul.bf16 %v173, %v6217
    %v6321 = vmul.bf16 %v174, %v6217
    %v6322 = vmul.bf16 %v175, %v6217
    %v6427 = vrot.slane %v6219, 5
    %v6428 = vrot.slane %v6427, 4
    %v6429 = vrot.slane %v6220, 5
    %v6430 = vsel %vm1864, %v6428, %v6429
    %v6431 = vrot.slane %v6429, 4
    %v6432 = vrot.slane %v6221, 5
    %v6433 = vsel %vm1864, %v6431, %v6432
    %v6434 = vrot.slane %v6432, 4
    %v6435 = vrot.slane %v6222, 5
    %v6436 = vsel %vm1864, %v6434, %v6435
    %v6437 = vrot.slane %v6435, 4
    %v6438 = vrot.slane %v6223, 5
    %v6439 = vrot.slane %v6438, 4
    %v6440 = vrot.slane %v6224, 5
    %v6441 = vsel %vm1864, %v6439, %v6440
    %v6442 = vrot.slane %v6440, 4
    %v6443 = vrot.slane %v6225, 5
    %v6444 = vsel %vm1864, %v6442, %v6443
    %v6445 = vrot.slane %v6443, 4
    %v6446 = vrot.slane %v6226, 5
    %v6447 = vsel %vm1864, %v6445, %v6446
    %v6448 = vrot.slane %v6446, 4
    %v6449 = vrot.slane %v6227, 5
    %v6450 = vrot.slane %v6449, 4
    %v6451 = vrot.slane %v6228, 5
    %v6452 = vsel %vm1864, %v6450, %v6451
    %v6453 = vrot.slane %v6451, 4
    %v6454 = vrot.slane %v6229, 5
    %v6455 = vsel %vm1864, %v6453, %v6454
    %v6456 = vrot.slane %v6454, 4
    %v6457 = vrot.slane %v6230, 5
    %v6458 = vsel %vm1864, %v6456, %v6457
    %v6459 = vrot.slane %v6457, 4
    %v6460 = vrot.slane %v6231, 5
    %v6461 = vrot.slane %v6460, 4
    %v6462 = vrot.slane %v6232, 5
    %v6463 = vsel %vm1864, %v6461, %v6462
    %v6464 = vrot.slane %v6462, 4
    %v6465 = vrot.slane %v6233, 5
    %v6466 = vsel %vm1864, %v6464, %v6465
    %v6467 = vrot.slane %v6465, 4
    %v6468 = vrot.slane %v6234, 5
    %v6469 = vsel %vm1864, %v6467, %v6468
    %v6470 = vrot.slane %v6468, 4
    %v6471 = vrot.slane %v6235, 5
    %v6472 = vrot.slane %v6471, 4
    %v6473 = vrot.slane %v6236, 5
    %v6474 = vsel %vm1864, %v6472, %v6473
    %v6475 = vrot.slane %v6473, 4
    %v6476 = vrot.slane %v6237, 5
    %v6477 = vsel %vm1864, %v6475, %v6476
    %v6478 = vrot.slane %v6476, 4
    %v6479 = vrot.slane %v6238, 5
    %v6480 = vsel %vm1864, %v6478, %v6479
    %v6481 = vrot.slane %v6479, 4
    %v6482 = vrot.slane %v6239, 5
    %v6483 = vrot.slane %v6482, 4
    %v6484 = vrot.slane %v6240, 5
    %v6485 = vsel %vm1864, %v6483, %v6484
    %v6486 = vrot.slane %v6484, 4
    %v6487 = vrot.slane %v6241, 5
    %v6488 = vsel %vm1864, %v6486, %v6487
    %v6489 = vrot.slane %v6487, 4
    %v6490 = vrot.slane %v6242, 5
    %v6491 = vsel %vm1864, %v6489, %v6490
    %v6492 = vrot.slane %v6490, 4
    %v6493 = vrot.slane %v6243, 5
    %v6494 = vrot.slane %v6493, 4
    %v6495 = vrot.slane %v6244, 5
    %v6496 = vsel %vm1864, %v6494, %v6495
    %v6497 = vrot.slane %v6495, 4
    %v6498 = vrot.slane %v6245, 5
    %v6499 = vsel %vm1864, %v6497, %v6498
    %v6500 = vrot.slane %v6498, 4
    %v6501 = vrot.slane %v6246, 5
    %v6502 = vsel %vm1864, %v6500, %v6501
    %v6503 = vrot.slane %v6501, 4
    %v6504 = vrot.slane %v6247, 5
    %v6505 = vrot.slane %v6504, 4
    %v6506 = vrot.slane %v6248, 5
    %v6507 = vsel %vm1864, %v6505, %v6506
    %v6508 = vrot.slane %v6506, 4
    %v6509 = vrot.slane %v6249, 5
    %v6510 = vsel %vm1864, %v6508, %v6509
    %v6511 = vrot.slane %v6509, 4
    %v6512 = vrot.slane %v6250, 5
    %v6513 = vsel %vm1864, %v6511, %v6512
    %v6514 = vrot.slane %v6512, 4
    %v6515 = vrot.slane %v6251, 5
    %v6516 = vrot.slane %v6515, 4
    %v6517 = vrot.slane %v6252, 5
    %v6518 = vsel %vm1864, %v6516, %v6517
    %v6519 = vrot.slane %v6517, 4
    %v6520 = vrot.slane %v6253, 5
    %v6521 = vsel %vm1864, %v6519, %v6520
    %v6522 = vrot.slane %v6520, 4
    %v6523 = vrot.slane %v6254, 5
    %v6524 = vsel %vm1864, %v6522, %v6523
    %v6525 = vrot.slane %v6523, 4
    %v6526 = vrot.slane %v6255, 5
    %v6527 = vrot.slane %v6526, 4
    %v6528 = vrot.slane %v6256, 5
    %v6529 = vsel %vm1864, %v6527, %v6528
    %v6530 = vrot.slane %v6528, 4
    %v6531 = vrot.slane %v6257, 5
    %v6532 = vsel %vm1864, %v6530, %v6531
    %v6533 = vrot.slane %v6531, 4
    %v6534 = vrot.slane %v6258, 5
    %v6535 = vsel %vm1864, %v6533, %v6534
    %v6536 = vrot.slane %v6534, 4
    %v6537 = vrot.slane %v6259, 5
    %v6538 = vrot.slane %v6537, 4
    %v6539 = vrot.slane %v6260, 5
    %v6540 = vsel %vm1864, %v6538, %v6539
    %v6541 = vrot.slane %v6539, 4
    %v6542 = vrot.slane %v6261, 5
    %v6543 = vsel %vm1864, %v6541, %v6542
    %v6544 = vrot.slane %v6542, 4
    %v6545 = vrot.slane %v6262, 5
    %v6546 = vsel %vm1864, %v6544, %v6545
    %v6547 = vrot.slane %v6545, 4
    %v6548 = vrot.slane %v6263, 5
    %v6549 = vrot.slane %v6548, 4
    %v6550 = vrot.slane %v6264, 5
    %v6551 = vsel %vm1864, %v6549, %v6550
    %v6552 = vrot.slane %v6550, 4
    %v6553 = vrot.slane %v6265, 5
    %v6554 = vsel %vm1864, %v6552, %v6553
    %v6555 = vrot.slane %v6553, 4
    %v6556 = vrot.slane %v6266, 5
    %v6557 = vsel %vm1864, %v6555, %v6556
    %v6558 = vrot.slane %v6556, 4
    %v6559 = vrot.slane %v6267, 5
    %v6560 = vrot.slane %v6559, 4
    %v6561 = vrot.slane %v6268, 5
    %v6562 = vsel %vm1864, %v6560, %v6561
    %v6563 = vrot.slane %v6561, 4
    %v6564 = vrot.slane %v6269, 5
    %v6565 = vsel %vm1864, %v6563, %v6564
    %v6566 = vrot.slane %v6564, 4
    %v6567 = vrot.slane %v6270, 5
    %v6568 = vsel %vm1864, %v6566, %v6567
    %v6569 = vrot.slane %v6567, 4
    %v6570 = vrot.slane %v6271, 5
    %v6571 = vrot.slane %v6570, 4
    %v6572 = vrot.slane %v6272, 5
    %v6573 = vsel %vm1864, %v6571, %v6572
    %v6574 = vrot.slane %v6572, 4
    %v6575 = vrot.slane %v6273, 5
    %v6576 = vsel %vm1864, %v6574, %v6575
    %v6577 = vrot.slane %v6575, 4
    %v6578 = vrot.slane %v6274, 5
    %v6579 = vsel %vm1864, %v6577, %v6578
    %v6580 = vrot.slane %v6578, 4
    %v6581 = vrot.slane %v6275, 5
    %v6582 = vrot.slane %v6581, 4
    %v6583 = vrot.slane %v6276, 5
    %v6584 = vsel %vm1864, %v6582, %v6583
    %v6585 = vrot.slane %v6583, 4
    %v6586 = vrot.slane %v6277, 5
    %v6587 = vsel %vm1864, %v6585, %v6586
    %v6588 = vrot.slane %v6586, 4
    %v6589 = vrot.slane %v6278, 5
    %v6590 = vsel %vm1864, %v6588, %v6589
    %v6591 = vrot.slane %v6589, 4
    %v6592 = vrot.slane %v6279, 5
    %v6593 = vrot.slane %v6592, 4
    %v6594 = vrot.slane %v6280, 5
    %v6595 = vsel %vm1864, %v6593, %v6594
    %v6596 = vrot.slane %v6594, 4
    %v6597 = vrot.slane %v6281, 5
    %v6598 = vsel %vm1864, %v6596, %v6597
    %v6599 = vrot.slane %v6597, 4
    %v6600 = vrot.slane %v6282, 5
    %v6601 = vsel %vm1864, %v6599, %v6600
    %v6602 = vrot.slane %v6600, 4
    %v6603 = vrot.slane %v6283, 5
    %v6604 = vrot.slane %v6603, 4
    %v6605 = vrot.slane %v6284, 5
    %v6606 = vsel %vm1864, %v6604, %v6605
    %v6607 = vrot.slane %v6605, 4
    %v6608 = vrot.slane %v6285, 5
    %v6609 = vsel %vm1864, %v6607, %v6608
    %v6610 = vrot.slane %v6608, 4
    %v6611 = vrot.slane %v6286, 5
    %v6612 = vsel %vm1864, %v6610, %v6611
    %v6613 = vrot.slane %v6611, 4
    %v6614 = vrot.slane %v6287, 5
    %v6615 = vrot.slane %v6614, 4
    %v6616 = vrot.slane %v6288, 5
    %v6617 = vsel %vm1864, %v6615, %v6616
    %v6618 = vrot.slane %v6616, 4
    %v6619 = vrot.slane %v6289, 5
    %v6620 = vsel %vm1864, %v6618, %v6619
    %v6621 = vrot.slane %v6619, 4
    %v6622 = vrot.slane %v6290, 5
    %v6623 = vsel %vm1864, %v6621, %v6622
    %v6624 = vrot.slane %v6622, 4
    %v6625 = vrot.slane %v6291, 5
    %v6626 = vrot.slane %v6625, 4
    %v6627 = vrot.slane %v6292, 5
    %v6628 = vsel %vm1864, %v6626, %v6627
    %v6629 = vrot.slane %v6627, 4
    %v6630 = vrot.slane %v6293, 5
    %v6631 = vsel %vm1864, %v6629, %v6630
    %v6632 = vrot.slane %v6630, 4
    %v6633 = vrot.slane %v6294, 5
    %v6634 = vsel %vm1864, %v6632, %v6633
    %v6635 = vrot.slane %v6633, 4
    %v6636 = vrot.slane %v6295, 5
    %v6637 = vrot.slane %v6636, 4
    %v6638 = vrot.slane %v6296, 5
    %v6639 = vsel %vm1864, %v6637, %v6638
    %v6640 = vrot.slane %v6638, 4
    %v6641 = vrot.slane %v6297, 5
    %v6642 = vsel %vm1864, %v6640, %v6641
    %v6643 = vrot.slane %v6641, 4
    %v6644 = vrot.slane %v6298, 5
    %v6645 = vsel %vm1864, %v6643, %v6644
    %v6646 = vrot.slane %v6644, 4
    %v6647 = vrot.slane %v6299, 5
    %v6648 = vrot.slane %v6647, 4
    %v6649 = vrot.slane %v6300, 5
    %v6650 = vsel %vm1864, %v6648, %v6649
    %v6651 = vrot.slane %v6649, 4
    %v6652 = vrot.slane %v6301, 5
    %v6653 = vsel %vm1864, %v6651, %v6652
    %v6654 = vrot.slane %v6652, 4
    %v6655 = vrot.slane %v6302, 5
    %v6656 = vsel %vm1864, %v6654, %v6655
    %v6657 = vrot.slane %v6655, 4
    %v6658 = vrot.slane %v6303, 5
    %v6659 = vrot.slane %v6658, 4
    %v6660 = vrot.slane %v6304, 5
    %v6661 = vsel %vm1864, %v6659, %v6660
    %v6662 = vrot.slane %v6660, 4
    %v6663 = vrot.slane %v6305, 5
    %v6664 = vsel %vm1864, %v6662, %v6663
    %v6665 = vrot.slane %v6663, 4
    %v6666 = vrot.slane %v6306, 5
    %v6667 = vsel %vm1864, %v6665, %v6666
    %v6668 = vrot.slane %v6666, 4
    %v6669 = vrot.slane %v6307, 5
    %v6670 = vrot.slane %v6669, 4
    %v6671 = vrot.slane %v6308, 5
    %v6672 = vsel %vm1864, %v6670, %v6671
    %v6673 = vrot.slane %v6671, 4
    %v6674 = vrot.slane %v6309, 5
    %v6675 = vsel %vm1864, %v6673, %v6674
    %v6676 = vrot.slane %v6674, 4
    %v6677 = vrot.slane %v6310, 5
    %v6678 = vsel %vm1864, %v6676, %v6677
    %v6679 = vrot.slane %v6677, 4
    %v6680 = vrot.slane %v6311, 5
    %v6681 = vrot.slane %v6680, 4
    %v6682 = vrot.slane %v6312, 5
    %v6683 = vsel %vm1864, %v6681, %v6682
    %v6684 = vrot.slane %v6682, 4
    %v6685 = vrot.slane %v6313, 5
    %v6686 = vsel %vm1864, %v6684, %v6685
    %v6687 = vrot.slane %v6685, 4
    %v6688 = vrot.slane %v6314, 5
    %v6689 = vsel %vm1864, %v6687, %v6688
    %v6690 = vrot.slane %v6688, 4
    %v6691 = vrot.slane %v6315, 5
    %v6692 = vrot.slane %v6691, 4
    %v6693 = vrot.slane %v6316, 5
    %v6694 = vsel %vm1864, %v6692, %v6693
    %v6695 = vrot.slane %v6693, 4
    %v6696 = vrot.slane %v6317, 5
    %v6697 = vsel %vm1864, %v6695, %v6696
    %v6698 = vrot.slane %v6696, 4
    %v6699 = vrot.slane %v6318, 5
    %v6700 = vsel %vm1864, %v6698, %v6699
    %v6701 = vrot.slane %v6699, 4
    %v6702 = vrot.slane %v6319, 5
    %v6703 = vrot.slane %v6702, 4
    %v6704 = vrot.slane %v6320, 5
    %v6705 = vsel %vm1864, %v6703, %v6704
    %v6706 = vrot.slane %v6704, 4
    %v6707 = vrot.slane %v6321, 5
    %v6708 = vsel %vm1864, %v6706, %v6707
    %v6709 = vrot.slane %v6707, 4
    %v6710 = vrot.slane %v6322, 5
    %v6711 = vsel %vm1864, %v6709, %v6710
    %v6712 = vrot.slane %v6710, 4
    %v6817 = vadd.bf16 %v6100, %v6430
    %v6818 = vadd.bf16 %v6101, %v6433
    %v6819 = vadd.bf16 %v6102, %v6436
    %v6820 = vadd.bf16 %v6103, %v6437
    %v6821 = vadd.bf16 %v6104, %v6441
    %v6822 = vadd.bf16 %v6105, %v6444
    %v6823 = vadd.bf16 %v6106, %v6447
    %v6824 = vadd.bf16 %v6107, %v6448
    %v6825 = vadd.bf16 %v6108, %v6452
    %v6826 = vadd.bf16 %v6109, %v6455
    %v6827 = vadd.bf16 %v6110, %v6458
    %v6828 = vadd.bf16 %v6111, %v6459
    %v6829 = vadd.bf16 %v6112, %v6463
    %v6830 = vadd.bf16 %v6113, %v6466
    %v6831 = vadd.bf16 %v6114, %v6469
    %v6832 = vadd.bf16 %v6115, %v6470
    %v6833 = vadd.bf16 %v6116, %v6474
    %v6834 = vadd.bf16 %v6117, %v6477
    %v6835 = vadd.bf16 %v6118, %v6480
    %v6836 = vadd.bf16 %v6119, %v6481
    %v6837 = vadd.bf16 %v6120, %v6485
    %v6838 = vadd.bf16 %v6121, %v6488
    %v6839 = vadd.bf16 %v6122, %v6491
    %v6840 = vadd.bf16 %v6123, %v6492
    %v6841 = vadd.bf16 %v6124, %v6496
    %v6842 = vadd.bf16 %v6125, %v6499
    %v6843 = vadd.bf16 %v6126, %v6502
    %v6844 = vadd.bf16 %v6127, %v6503
    %v6845 = vadd.bf16 %v6128, %v6507
    %v6846 = vadd.bf16 %v6129, %v6510
    %v6847 = vadd.bf16 %v6130, %v6513
    %v6848 = vadd.bf16 %v6131, %v6514
    %v6849 = vadd.bf16 %v6132, %v6518
    %v6850 = vadd.bf16 %v6133, %v6521
    %v6851 = vadd.bf16 %v6134, %v6524
    %v6852 = vadd.bf16 %v6135, %v6525
    %v6853 = vadd.bf16 %v6136, %v6529
    %v6854 = vadd.bf16 %v6137, %v6532
    %v6855 = vadd.bf16 %v6138, %v6535
    %v6856 = vadd.bf16 %v6139, %v6536
    %v6857 = vadd.bf16 %v6140, %v6540
    %v6858 = vadd.bf16 %v6141, %v6543
    %v6859 = vadd.bf16 %v6142, %v6546
    %v6860 = vadd.bf16 %v6143, %v6547
    %v6861 = vadd.bf16 %v6144, %v6551
    %v6862 = vadd.bf16 %v6145, %v6554
    %v6863 = vadd.bf16 %v6146, %v6557
    %v6864 = vadd.bf16 %v6147, %v6558
    %v6865 = vadd.bf16 %v6148, %v6562
    %v6866 = vadd.bf16 %v6149, %v6565
    %v6867 = vadd.bf16 %v6150, %v6568
    %v6868 = vadd.bf16 %v6151, %v6569
    %v6869 = vadd.bf16 %v6152, %v6573
    %v6870 = vadd.bf16 %v6153, %v6576
    %v6871 = vadd.bf16 %v6154, %v6579
    %v6872 = vadd.bf16 %v6155, %v6580
    %v6873 = vadd.bf16 %v6156, %v6584
    %v6874 = vadd.bf16 %v6157, %v6587
    %v6875 = vadd.bf16 %v6158, %v6590
    %v6876 = vadd.bf16 %v6159, %v6591
    %v6877 = vadd.bf16 %v6160, %v6595
    %v6878 = vadd.bf16 %v6161, %v6598
    %v6879 = vadd.bf16 %v6162, %v6601
    %v6880 = vadd.bf16 %v6163, %v6602
    %v6881 = vadd.bf16 %v6164, %v6606
    %v6882 = vadd.bf16 %v6165, %v6609
    %v6883 = vadd.bf16 %v6166, %v6612
    %v6884 = vadd.bf16 %v6167, %v6613
    %v6885 = vadd.bf16 %v6168, %v6617
    %v6886 = vadd.bf16 %v6169, %v6620
    %v6887 = vadd.bf16 %v6170, %v6623
    %v6888 = vadd.bf16 %v6171, %v6624
    %v6889 = vadd.bf16 %v6172, %v6628
    %v6890 = vadd.bf16 %v6173, %v6631
    %v6891 = vadd.bf16 %v6174, %v6634
    %v6892 = vadd.bf16 %v6175, %v6635
    %v6893 = vadd.bf16 %v6176, %v6639
    %v6894 = vadd.bf16 %v6177, %v6642
    %v6895 = vadd.bf16 %v6178, %v6645
    %v6896 = vadd.bf16 %v6179, %v6646
    %v6897 = vadd.bf16 %v6180, %v6650
    %v6898 = vadd.bf16 %v6181, %v6653
    %v6899 = vadd.bf16 %v6182, %v6656
    %v6900 = vadd.bf16 %v6183, %v6657
    %v6901 = vadd.bf16 %v6184, %v6661
    %v6902 = vadd.bf16 %v6185, %v6664
    %v6903 = vadd.bf16 %v6186, %v6667
    %v6904 = vadd.bf16 %v6187, %v6668
    %v6905 = vadd.bf16 %v6188, %v6672
    %v6906 = vadd.bf16 %v6189, %v6675
    %v6907 = vadd.bf16 %v6190, %v6678
    %v6908 = vadd.bf16 %v6191, %v6679
    %v6909 = vadd.bf16 %v6192, %v6683
    %v6910 = vadd.bf16 %v6193, %v6686
    %v6911 = vadd.bf16 %v6194, %v6689
    %v6912 = vadd.bf16 %v6195, %v6690
    %v6913 = vadd.bf16 %v6196, %v6694
    %v6914 = vadd.bf16 %v6197, %v6697
    %v6915 = vadd.bf16 %v6198, %v6700
    %v6916 = vadd.bf16 %v6199, %v6701
    %v6917 = vadd.bf16 %v6200, %v6705
    %v6918 = vadd.bf16 %v6201, %v6708
    %v6919 = vadd.bf16 %v6202, %v6711
    %v6920 = vadd.bf16 %v6203, %v6712
    %s6921 = sld [smem:[#allocation3]]
    %p6923 = scmp.ne.f32.partialorder %s6921, %s6921
    %s6924 = sshrl.u32 %s6921, 16
    %s6925 = sand.u32 %s6924, 1
    %s6926 = sadd.s32 32767, %s6925
    %s6927 = sadd.s32 %s6921, %s6926
    %s6928 = sand.u32 %s6927, 4294901760
    %s6929 = scalar_select %p6923, 2143289344, %s6928
    %s6931 = sshrl.u32 %s6929, 16
    %s6932 = sshll.u32 %s6931, 16
    %s6933 = sor.u32 %s6931, %s6932
    %v6934 = vstv %s6933
    %v6936 = vadd.bf16 %v6817, %v6934
    %v6937 = vadd.bf16 %v6818, %v6934
    %v6938 = vadd.bf16 %v6819, %v6934
    %v6939 = vadd.bf16 %v6820, %v6934
    %v6940 = vadd.bf16 %v6821, %v6934
    %v6941 = vadd.bf16 %v6822, %v6934
    %v6942 = vadd.bf16 %v6823, %v6934
    %v6943 = vadd.bf16 %v6824, %v6934
    %v6944 = vadd.bf16 %v6825, %v6934
    %v6945 = vadd.bf16 %v6826, %v6934
    %v6946 = vadd.bf16 %v6827, %v6934
    %v6947 = vadd.bf16 %v6828, %v6934
    %v6948 = vadd.bf16 %v6829, %v6934
    %v6949 = vadd.bf16 %v6830, %v6934
    %v6950 = vadd.bf16 %v6831, %v6934
    %v6951 = vadd.bf16 %v6832, %v6934
    %v6952 = vadd.bf16 %v6833, %v6934
    %v6953 = vadd.bf16 %v6834, %v6934
    %v6954 = vadd.bf16 %v6835, %v6934
    %v6955 = vadd.bf16 %v6836, %v6934
    %v6956 = vadd.bf16 %v6837, %v6934
    %v6957 = vadd.bf16 %v6838, %v6934
    %v6958 = vadd.bf16 %v6839, %v6934
    %v6959 = vadd.bf16 %v6840, %v6934
    %v6960 = vadd.bf16 %v6841, %v6934
    %v6961 = vadd.bf16 %v6842, %v6934
    %v6962 = vadd.bf16 %v6843, %v6934
    %v6963 = vadd.bf16 %v6844, %v6934
    %v6964 = vadd.bf16 %v6845, %v6934
    %v6965 = vadd.bf16 %v6846, %v6934
    %v6966 = vadd.bf16 %v6847, %v6934
    %v6967 = vadd.bf16 %v6848, %v6934
    %v6968 = vadd.bf16 %v6849, %v6934
    %v6969 = vadd.bf16 %v6850, %v6934
    %v6970 = vadd.bf16 %v6851, %v6934
    %v6971 = vadd.bf16 %v6852, %v6934
    %v6972 = vadd.bf16 %v6853, %v6934
    %v6973 = vadd.bf16 %v6854, %v6934
    %v6974 = vadd.bf16 %v6855, %v6934
    %v6975 = vadd.bf16 %v6856, %v6934
    %v6976 = vadd.bf16 %v6857, %v6934
    %v6977 = vadd.bf16 %v6858, %v6934
    %v6978 = vadd.bf16 %v6859, %v6934
    %v6979 = vadd.bf16 %v6860, %v6934
    %v6980 = vadd.bf16 %v6861, %v6934
    %v6981 = vadd.bf16 %v6862, %v6934
    %v6982 = vadd.bf16 %v6863, %v6934
    %v6983 = vadd.bf16 %v6864, %v6934
    %v6984 = vadd.bf16 %v6865, %v6934
    %v6985 = vadd.bf16 %v6866, %v6934
    %v6986 = vadd.bf16 %v6867, %v6934
    %v6987 = vadd.bf16 %v6868, %v6934
    %v6988 = vadd.bf16 %v6869, %v6934
    %v6989 = vadd.bf16 %v6870, %v6934
    %v6990 = vadd.bf16 %v6871, %v6934
    %v6991 = vadd.bf16 %v6872, %v6934
    %v6992 = vadd.bf16 %v6873, %v6934
    %v6993 = vadd.bf16 %v6874, %v6934
    %v6994 = vadd.bf16 %v6875, %v6934
    %v6995 = vadd.bf16 %v6876, %v6934
    %v6996 = vadd.bf16 %v6877, %v6934
    %v6997 = vadd.bf16 %v6878, %v6934
    %v6998 = vadd.bf16 %v6879, %v6934
    %v6999 = vadd.bf16 %v6880, %v6934
    %v7000 = vadd.bf16 %v6881, %v6934
    %v7001 = vadd.bf16 %v6882, %v6934
    %v7002 = vadd.bf16 %v6883, %v6934
    %v7003 = vadd.bf16 %v6884, %v6934
    %v7004 = vadd.bf16 %v6885, %v6934
    %v7005 = vadd.bf16 %v6886, %v6934
    %v7006 = vadd.bf16 %v6887, %v6934
    %v7007 = vadd.bf16 %v6888, %v6934
    %v7008 = vadd.bf16 %v6889, %v6934
    %v7009 = vadd.bf16 %v6890, %v6934
    %v7010 = vadd.bf16 %v6891, %v6934
    %v7011 = vadd.bf16 %v6892, %v6934
    %v7012 = vadd.bf16 %v6893, %v6934
    %v7013 = vadd.bf16 %v6894, %v6934
    %v7014 = vadd.bf16 %v6895, %v6934
    %v7015 = vadd.bf16 %v6896, %v6934
    %v7016 = vadd.bf16 %v6897, %v6934
    %v7017 = vadd.bf16 %v6898, %v6934
    %v7018 = vadd.bf16 %v6899, %v6934
    %v7019 = vadd.bf16 %v6900, %v6934
    %v7020 = vadd.bf16 %v6901, %v6934
    %v7021 = vadd.bf16 %v6902, %v6934
    %v7022 = vadd.bf16 %v6903, %v6934
    %v7023 = vadd.bf16 %v6904, %v6934
    %v7024 = vadd.bf16 %v6905, %v6934
    %v7025 = vadd.bf16 %v6906, %v6934
    %v7026 = vadd.bf16 %v6907, %v6934
    %v7027 = vadd.bf16 %v6908, %v6934
    %v7028 = vadd.bf16 %v6909, %v6934
    %v7029 = vadd.bf16 %v6910, %v6934
    %v7030 = vadd.bf16 %v6911, %v6934
    %v7031 = vadd.bf16 %v6912, %v6934
    %v7032 = vadd.bf16 %v6913, %v6934
    %v7033 = vadd.bf16 %v6914, %v6934
    %v7034 = vadd.bf16 %v6915, %v6934
    %v7035 = vadd.bf16 %v6916, %v6934
    %v7036 = vadd.bf16 %v6917, %v6934
    %v7037 = vadd.bf16 %v6918, %v6934
    %v7038 = vadd.bf16 %v6919, %v6934
    %v7039 = vadd.bf16 %v6920, %v6934
    %v7040 = vmax.bf16 %v6936, 0
    %v7041 = vmax.bf16 %v6937, 0
    %v7042 = vmax.bf16 %v6938, 0
    %v7043 = vmax.bf16 %v6939, 0
    %v7044 = vmax.bf16 %v6940, 0
    %v7045 = vmax.bf16 %v6941, 0
    %v7046 = vmax.bf16 %v6942, 0
    %v7047 = vmax.bf16 %v6943, 0
    %v7048 = vmax.bf16 %v6944, 0
    %v7049 = vmax.bf16 %v6945, 0
    %v7050 = vmax.bf16 %v6946, 0
    %v7051 = vmax.bf16 %v6947, 0
    %v7052 = vmax.bf16 %v6948, 0
    %v7053 = vmax.bf16 %v6949, 0
    %v7054 = vmax.bf16 %v6950, 0
    %v7055 = vmax.bf16 %v6951, 0
    %v7056 = vmax.bf16 %v6952, 0
    %v7057 = vmax.bf16 %v6953, 0
    %v7058 = vmax.bf16 %v6954, 0
    %v7059 = vmax.bf16 %v6955, 0
    %v7060 = vmax.bf16 %v6956, 0
    %v7061 = vmax.bf16 %v6957, 0
    %v7062 = vmax.bf16 %v6958, 0
    %v7063 = vmax.bf16 %v6959, 0
    %v7064 = vmax.bf16 %v6960, 0
    %v7065 = vmax.bf16 %v6961, 0
    %v7066 = vmax.bf16 %v6962, 0
    %v7067 = vmax.bf16 %v6963, 0
    %v7068 = vmax.bf16 %v6964, 0
    %v7069 = vmax.bf16 %v6965, 0
    %v7070 = vmax.bf16 %v6966, 0
    %v7071 = vmax.bf16 %v6967, 0
    %v7072 = vmax.bf16 %v6968, 0
    %v7073 = vmax.bf16 %v6969, 0
    %v7074 = vmax.bf16 %v6970, 0
    %v7075 = vmax.bf16 %v6971, 0
    %v7076 = vmax.bf16 %v6972, 0
    %v7077 = vmax.bf16 %v6973, 0
    %v7078 = vmax.bf16 %v6974, 0
    %v7079 = vmax.bf16 %v6975, 0
    %v7080 = vmax.bf16 %v6976, 0
    %v7081 = vmax.bf16 %v6977, 0
    %v7082 = vmax.bf16 %v6978, 0
    %v7083 = vmax.bf16 %v6979, 0
    %v7084 = vmax.bf16 %v6980, 0
    %v7085 = vmax.bf16 %v6981, 0
    %v7086 = vmax.bf16 %v6982, 0
    %v7087 = vmax.bf16 %v6983, 0
    %v7088 = vmax.bf16 %v6984, 0
    %v7089 = vmax.bf16 %v6985, 0
    %v7090 = vmax.bf16 %v6986, 0
    %v7091 = vmax.bf16 %v6987, 0
    %v7092 = vmax.bf16 %v6988, 0
    %v7093 = vmax.bf16 %v6989, 0
    %v7094 = vmax.bf16 %v6990, 0
    %v7095 = vmax.bf16 %v6991, 0
    %v7096 = vmax.bf16 %v6992, 0
    %v7097 = vmax.bf16 %v6993, 0
    %v7098 = vmax.bf16 %v6994, 0
    %v7099 = vmax.bf16 %v6995, 0
    %v7100 = vmax.bf16 %v6996, 0
    %v7101 = vmax.bf16 %v6997, 0
    %v7102 = vmax.bf16 %v6998, 0
    %v7103 = vmax.bf16 %v6999, 0
    %v7104 = vmax.bf16 %v7000, 0
    %v7105 = vmax.bf16 %v7001, 0
    %v7106 = vmax.bf16 %v7002, 0
    %v7107 = vmax.bf16 %v7003, 0
    %v7108 = vmax.bf16 %v7004, 0
    %v7109 = vmax.bf16 %v7005, 0
    %v7110 = vmax.bf16 %v7006, 0
    %v7111 = vmax.bf16 %v7007, 0
    %v7112 = vmax.bf16 %v7008, 0
    %v7113 = vmax.bf16 %v7009, 0
    %v7114 = vmax.bf16 %v7010, 0
    %v7115 = vmax.bf16 %v7011, 0
    %v7116 = vmax.bf16 %v7012, 0
    %v7117 = vmax.bf16 %v7013, 0
    %v7118 = vmax.bf16 %v7014, 0
    %v7119 = vmax.bf16 %v7015, 0
    %v7120 = vmax.bf16 %v7016, 0
    %v7121 = vmax.bf16 %v7017, 0
    %v7122 = vmax.bf16 %v7018, 0
    %v7123 = vmax.bf16 %v7019, 0
    %v7124 = vmax.bf16 %v7020, 0
    %v7125 = vmax.bf16 %v7021, 0
    %v7126 = vmax.bf16 %v7022, 0
    %v7127 = vmax.bf16 %v7023, 0
    %v7128 = vmax.bf16 %v7024, 0
    %v7129 = vmax.bf16 %v7025, 0
    %v7130 = vmax.bf16 %v7026, 0
    %v7131 = vmax.bf16 %v7027, 0
    %v7132 = vmax.bf16 %v7028, 0
    %v7133 = vmax.bf16 %v7029, 0
    %v7134 = vmax.bf16 %v7030, 0
    %v7135 = vmax.bf16 %v7031, 0
    %v7136 = vmax.bf16 %v7032, 0
    %v7137 = vmax.bf16 %v7033, 0
    %v7138 = vmax.bf16 %v7034, 0
    %v7139 = vmax.bf16 %v7035, 0
    %v7140 = vmax.bf16 %v7036, 0
    %v7141 = vmax.bf16 %v7037, 0
    %v7142 = vmax.bf16 %v7038, 0
    %v7143 = vmax.bf16 %v7039, 0
    %7144 = vst [vmem:[#allocation2] sm:$0xff] 0
    %7145 = vst [vmem:[#allocation2 + $0x8] sm:$0xff] 0
    %7146 = vst [vmem:[#allocation2 + $0x10] sm:$0xff] 0
    %7147 = vst [vmem:[#allocation2 + $0x18] sm:$0xff] 0
    %7148 = vst [vmem:[#allocation2 + $0x20] sm:$0xff] 0
    %7149 = vst [vmem:[#allocation2 + $0x28] sm:$0xff] 0
    %7150 = vst [vmem:[#allocation2 + $0x30] sm:$0xff] 0
    %7151 = vst [vmem:[#allocation2 + $0x38] sm:$0xff] 0
    %7152 = vst [vmem:[#allocation2 + $0x40] sm:$0xff] 0
    %7153 = vst [vmem:[#allocation2 + $0x48] sm:$0xff] 0
    %7154 = vst [vmem:[#allocation2 + $0x50] sm:$0xff] 0
    %7155 = vst [vmem:[#allocation2 + $0x58] sm:$0xff] 0
    %7156 = vst [vmem:[#allocation2 + $0x60] sm:$0xff] 0
    %7157 = vst [vmem:[#allocation2 + $0x68] sm:$0xff] 0
    %7158 = vst [vmem:[#allocation2 + $0x70] sm:$0xff] 0
    %7159 = vst [vmem:[#allocation2 + $0x78] sm:$0xff] 0
    %7160 = vst [vmem:[#allocation2 + $0x80] sm:$0xff] 0
    %7161 = vst [vmem:[#allocation2 + $0x88] sm:$0xff] 0
    %7162 = vst [vmem:[#allocation2 + $0x90] sm:$0xff] 0
    %7163 = vst [vmem:[#allocation2 + $0x98] sm:$0xff] 0
    %7164 = vst [vmem:[#allocation2 + $0xa0] sm:$0xff] 0
    %7165 = vst [vmem:[#allocation2 + $0xa8] sm:$0xff] 0
    %7166 = vst [vmem:[#allocation2 + $0xb0] sm:$0xff] 0
    %7167 = vst [vmem:[#allocation2 + $0xb8] sm:$0xff] 0
    %7168 = vst [vmem:[#allocation2 + $0xc0] sm:$0xff] 0
    %7169 = vst [vmem:[#allocation2 + $0xc8] sm:$0xff] 0
    %v7170 = vmax.bf16 %v7040, %v7044
    %v7171 = vmax.bf16 %v7041, %v7045
    %v7172 = vmax.bf16 %v7042, %v7046
    %v7173 = vmax.bf16 %v7043, %v7047
    %v7175 = vshrl.u32 %v7170, 16
    %v7177 = vrot.slane %v7175, 4
    %v7178 = vshll.u32 %v7170, 16
    %v7180 = vrot.slane %v7178, 5
    %v7181 = vor.u32 %v7177, %v7180
    %v7182 = vrot.slane %v7181, 4
    %v7184 = vshll.u32 %v7171, 16
    %v7186 = vrot.slane %v7184, 5
    %v7187 = vsel %vm416, %v7182, %v7186
    %v7188 = vshrl.u32 %v7171, 16
    %v7190 = vrot.slane %v7188, 4
    %v7191 = vor.u32 %v7190, %v7186
    %v7192 = vrot.slane %v7191, 4
    %v7194 = vshll.u32 %v7172, 16
    %v7196 = vrot.slane %v7194, 5
    %v7197 = vsel %vm416, %v7192, %v7196
    %v7198 = vshrl.u32 %v7172, 16
    %v7200 = vrot.slane %v7198, 4
    %v7201 = vor.u32 %v7200, %v7196
    %v7202 = vrot.slane %v7201, 4
    %v7204 = vshll.u32 %v7173, 16
    %v7206 = vrot.slane %v7204, 5
    %v7207 = vsel %vm416, %v7202, %v7206
    %v7208 = vshrl.u32 %v7173, 16
    %v7210 = vrot.slane %v7208, 4
    %v7211 = vrot.slane %v7210, 4
    %v7216 = vmax.bf16 %v7170, %v7187
    %v7217 = vmax.bf16 %v7171, %v7197
    %v7218 = vmax.bf16 %v7172, %v7207
    %v7219 = vmax.bf16 %v7173, %v7211
    %v7224 = vunpack.c.l.b16 %v7216
    %v7225 = vunpack.c.l.b16 %v7217
    %v7226 = vunpack.c.l.b16 %v7218
    %v7227 = vunpack.c.l.b16 %v7219
    %v7228 = vpack.c.b16 %v7225, %v7224
    %v7229 = vpack.c.b16 %v7227, %v7226
    %7232 = vst [vmem:[#allocation2] sm:$0xff] %v7228
    %vm7233 = vcmask 1044480
    %vm7234 = vsmask.f32 4352
    %vm7235 = vmand %vm7233, %vm7234
    %v7236 = vld [vmem:[#allocation2 + $0x8] sm:$0x1f]
    %v7237 = vsel %vm7235, %v7229, %v7236
    %7238 = vst [vmem:[#allocation2 + $0x8] sm:$0x1f] %v7237
    %v7239 = vmax.bf16 %v7048, %v7052
    %v7240 = vmax.bf16 %v7049, %v7053
    %v7241 = vmax.bf16 %v7050, %v7054
    %v7242 = vmax.bf16 %v7051, %v7055
    %v7244 = vshrl.u32 %v7239, 16
    %v7246 = vrot.slane %v7244, 4
    %v7247 = vshll.u32 %v7239, 16
    %v7249 = vrot.slane %v7247, 5
    %v7250 = vor.u32 %v7246, %v7249
    %v7251 = vrot.slane %v7250, 4
    %v7253 = vshll.u32 %v7240, 16
    %v7255 = vrot.slane %v7253, 5
    %v7256 = vsel %vm416, %v7251, %v7255
    %v7257 = vshrl.u32 %v7240, 16
    %v7259 = vrot.slane %v7257, 4
    %v7260 = vor.u32 %v7259, %v7255
    %v7261 = vrot.slane %v7260, 4
    %v7263 = vshll.u32 %v7241, 16
    %v7265 = vrot.slane %v7263, 5
    %v7266 = vsel %vm416, %v7261, %v7265
    %v7267 = vshrl.u32 %v7241, 16
    %v7269 = vrot.slane %v7267, 4
    %v7270 = vor.u32 %v7269, %v7265
    %v7271 = vrot.slane %v7270, 4
    %v7273 = vshll.u32 %v7242, 16
    %v7275 = vrot.slane %v7273, 5
    %v7276 = vsel %vm416, %v7271, %v7275
    %v7277 = vshrl.u32 %v7242, 16
    %v7279 = vrot.slane %v7277, 4
    %v7280 = vrot.slane %v7279, 4
    %v7285 = vmax.bf16 %v7239, %v7256
    %v7286 = vmax.bf16 %v7240, %v7266
    %v7287 = vmax.bf16 %v7241, %v7276
    %v7288 = vmax.bf16 %v7242, %v7280
    %v7293 = vunpack.c.l.b16 %v7285
    %v7294 = vunpack.c.l.b16 %v7286
    %v7295 = vunpack.c.l.b16 %v7287
    %v7296 = vunpack.c.l.b16 %v7288
    %v7297 = vpack.c.b16 %v7294, %v7293
    %v7298 = vpack.c.b16 %v7296, %v7295
    %7301 = vst [vmem:[#allocation2 + $0x10] sm:$0xff] %v7297
    %v7302 = vld [vmem:[#allocation2 + $0x18] sm:$0x1f]
    %v7303 = vsel %vm7235, %v7298, %v7302
    %7304 = vst [vmem:[#allocation2 + $0x18] sm:$0x1f] %v7303
    %v7305 = vmax.bf16 %v7056, %v7060
    %v7306 = vmax.bf16 %v7057, %v7061
    %v7307 = vmax.bf16 %v7058, %v7062
    %v7308 = vmax.bf16 %v7059, %v7063
    %v7310 = vshrl.u32 %v7305, 16
    %v7312 = vrot.slane %v7310, 4
    %v7313 = vshll.u32 %v7305, 16
    %v7315 = vrot.slane %v7313, 5
    %v7316 = vor.u32 %v7312, %v7315
    %v7317 = vrot.slane %v7316, 4
    %v7319 = vshll.u32 %v7306, 16
    %v7321 = vrot.slane %v7319, 5
    %v7322 = vsel %vm416, %v7317, %v7321
    %v7323 = vshrl.u32 %v7306, 16
    %v7325 = vrot.slane %v7323, 4
    %v7326 = vor.u32 %v7325, %v7321
    %v7327 = vrot.slane %v7326, 4
    %v7329 = vshll.u32 %v7307, 16
    %v7331 = vrot.slane %v7329, 5
    %v7332 = vsel %vm416, %v7327, %v7331
    %v7333 = vshrl.u32 %v7307, 16
    %v7335 = vrot.slane %v7333, 4
    %v7336 = vor.u32 %v7335, %v7331
    %v7337 = vrot.slane %v7336, 4
    %v7339 = vshll.u32 %v7308, 16
    %v7341 = vrot.slane %v7339, 5
    %v7342 = vsel %vm416, %v7337, %v7341
    %v7343 = vshrl.u32 %v7308, 16
    %v7345 = vrot.slane %v7343, 4
    %v7346 = vrot.slane %v7345, 4
    %v7351 = vmax.bf16 %v7305, %v7322
    %v7352 = vmax.bf16 %v7306, %v7332
    %v7353 = vmax.bf16 %v7307, %v7342
    %v7354 = vmax.bf16 %v7308, %v7346
    %v7359 = vunpack.c.l.b16 %v7351
    %v7360 = vunpack.c.l.b16 %v7352
    %v7361 = vunpack.c.l.b16 %v7353
    %v7362 = vunpack.c.l.b16 %v7354
    %v7363 = vpack.c.b16 %v7360, %v7359
    %v7364 = vpack.c.b16 %v7362, %v7361
    %7367 = vst [vmem:[#allocation2 + $0x20] sm:$0xff] %v7363
    %v7368 = vld [vmem:[#allocation2 + $0x28] sm:$0x1f]
    %v7369 = vsel %vm7235, %v7364, %v7368
    %7370 = vst [vmem:[#allocation2 + $0x28] sm:$0x1f] %v7369
    %v7371 = vmax.bf16 %v7064, %v7068
    %v7372 = vmax.bf16 %v7065, %v7069
    %v7373 = vmax.bf16 %v7066, %v7070
    %v7374 = vmax.bf16 %v7067, %v7071
    %v7376 = vshrl.u32 %v7371, 16
    %v7378 = vrot.slane %v7376, 4
    %v7379 = vshll.u32 %v7371, 16
    %v7381 = vrot.slane %v7379, 5
    %v7382 = vor.u32 %v7378, %v7381
    %v7383 = vrot.slane %v7382, 4
    %v7385 = vshll.u32 %v7372, 16
    %v7387 = vrot.slane %v7385, 5
    %v7388 = vsel %vm416, %v7383, %v7387
    %v7389 = vshrl.u32 %v7372, 16
    %v7391 = vrot.slane %v7389, 4
    %v7392 = vor.u32 %v7391, %v7387
    %v7393 = vrot.slane %v7392, 4
    %v7395 = vshll.u32 %v7373, 16
    %v7397 = vrot.slane %v7395, 5
    %v7398 = vsel %vm416, %v7393, %v7397
    %v7399 = vshrl.u32 %v7373, 16
    %v7401 = vrot.slane %v7399, 4
    %v7402 = vor.u32 %v7401, %v7397
    %v7403 = vrot.slane %v7402, 4
    %v7405 = vshll.u32 %v7374, 16
    %v7407 = vrot.slane %v7405, 5
    %v7408 = vsel %vm416, %v7403, %v7407
    %v7409 = vshrl.u32 %v7374, 16
    %v7411 = vrot.slane %v7409, 4
    %v7412 = vrot.slane %v7411, 4
    %v7417 = vmax.bf16 %v7371, %v7388
    %v7418 = vmax.bf16 %v7372, %v7398
    %v7419 = vmax.bf16 %v7373, %v7408
    %v7420 = vmax.bf16 %v7374, %v7412
    %v7425 = vunpack.c.l.b16 %v7417
    %v7426 = vunpack.c.l.b16 %v7418
    %v7427 = vunpack.c.l.b16 %v7419
    %v7428 = vunpack.c.l.b16 %v7420
    %v7429 = vpack.c.b16 %v7426, %v7425
    %v7430 = vpack.c.b16 %v7428, %v7427
    %7433 = vst [vmem:[#allocation2 + $0x30] sm:$0xff] %v7429
    %v7434 = vld [vmem:[#allocation2 + $0x38] sm:$0x1f]
    %v7435 = vsel %vm7235, %v7430, %v7434
    %7436 = vst [vmem:[#allocation2 + $0x38] sm:$0x1f] %v7435
    %v7437 = vmax.bf16 %v7072, %v7076
    %v7438 = vmax.bf16 %v7073, %v7077
    %v7439 = vmax.bf16 %v7074, %v7078
    %v7440 = vmax.bf16 %v7075, %v7079
    %v7442 = vshrl.u32 %v7437, 16
    %v7444 = vrot.slane %v7442, 4
    %v7445 = vshll.u32 %v7437, 16
    %v7447 = vrot.slane %v7445, 5
    %v7448 = vor.u32 %v7444, %v7447
    %v7449 = vrot.slane %v7448, 4
    %v7451 = vshll.u32 %v7438, 16
    %v7453 = vrot.slane %v7451, 5
    %v7454 = vsel %vm416, %v7449, %v7453
    %v7455 = vshrl.u32 %v7438, 16
    %v7457 = vrot.slane %v7455, 4
    %v7458 = vor.u32 %v7457, %v7453
    %v7459 = vrot.slane %v7458, 4
    %v7461 = vshll.u32 %v7439, 16
    %v7463 = vrot.slane %v7461, 5
    %v7464 = vsel %vm416, %v7459, %v7463
    %v7465 = vshrl.u32 %v7439, 16
    %v7467 = vrot.slane %v7465, 4
    %v7468 = vor.u32 %v7467, %v7463
    %v7469 = vrot.slane %v7468, 4
    %v7471 = vshll.u32 %v7440, 16
    %v7473 = vrot.slane %v7471, 5
    %v7474 = vsel %vm416, %v7469, %v7473
    %v7475 = vshrl.u32 %v7440, 16
    %v7477 = vrot.slane %v7475, 4
    %v7478 = vrot.slane %v7477, 4
    %v7483 = vmax.bf16 %v7437, %v7454
    %v7484 = vmax.bf16 %v7438, %v7464
    %v7485 = vmax.bf16 %v7439, %v7474
    %v7486 = vmax.bf16 %v7440, %v7478
    %v7491 = vunpack.c.l.b16 %v7483
    %v7492 = vunpack.c.l.b16 %v7484
    %v7493 = vunpack.c.l.b16 %v7485
    %v7494 = vunpack.c.l.b16 %v7486
    %v7495 = vpack.c.b16 %v7492, %v7491
    %v7496 = vpack.c.b16 %v7494, %v7493
    %7499 = vst [vmem:[#allocation2 + $0x40] sm:$0xff] %v7495
    %v7500 = vld [vmem:[#allocation2 + $0x48] sm:$0x1f]
    %v7501 = vsel %vm7235, %v7496, %v7500
    %7502 = vst [vmem:[#allocation2 + $0x48] sm:$0x1f] %v7501
    %v7503 = vmax.bf16 %v7080, %v7084
    %v7504 = vmax.bf16 %v7081, %v7085
    %v7505 = vmax.bf16 %v7082, %v7086
    %v7506 = vmax.bf16 %v7083, %v7087
    %v7508 = vshrl.u32 %v7503, 16
    %v7510 = vrot.slane %v7508, 4
    %v7511 = vshll.u32 %v7503, 16
    %v7513 = vrot.slane %v7511, 5
    %v7514 = vor.u32 %v7510, %v7513
    %v7515 = vrot.slane %v7514, 4
    %v7517 = vshll.u32 %v7504, 16
    %v7519 = vrot.slane %v7517, 5
    %v7520 = vsel %vm416, %v7515, %v7519
    %v7521 = vshrl.u32 %v7504, 16
    %v7523 = vrot.slane %v7521, 4
    %v7524 = vor.u32 %v7523, %v7519
    %v7525 = vrot.slane %v7524, 4
    %v7527 = vshll.u32 %v7505, 16
    %v7529 = vrot.slane %v7527, 5
    %v7530 = vsel %vm416, %v7525, %v7529
    %v7531 = vshrl.u32 %v7505, 16
    %v7533 = vrot.slane %v7531, 4
    %v7534 = vor.u32 %v7533, %v7529
    %v7535 = vrot.slane %v7534, 4
    %v7537 = vshll.u32 %v7506, 16
    %v7539 = vrot.slane %v7537, 5
    %v7540 = vsel %vm416, %v7535, %v7539
    %v7541 = vshrl.u32 %v7506, 16
    %v7543 = vrot.slane %v7541, 4
    %v7544 = vrot.slane %v7543, 4
    %v7549 = vmax.bf16 %v7503, %v7520
    %v7550 = vmax.bf16 %v7504, %v7530
    %v7551 = vmax.bf16 %v7505, %v7540
    %v7552 = vmax.bf16 %v7506, %v7544
    %v7557 = vunpack.c.l.b16 %v7549
    %v7558 = vunpack.c.l.b16 %v7550
    %v7559 = vunpack.c.l.b16 %v7551
    %v7560 = vunpack.c.l.b16 %v7552
    %v7561 = vpack.c.b16 %v7558, %v7557
    %v7562 = vpack.c.b16 %v7560, %v7559
    %7565 = vst [vmem:[#allocation2 + $0x50] sm:$0xff] %v7561
    %v7566 = vld [vmem:[#allocation2 + $0x58] sm:$0x1f]
    %v7567 = vsel %vm7235, %v7562, %v7566
    %7568 = vst [vmem:[#allocation2 + $0x58] sm:$0x1f] %v7567
    %v7569 = vmax.bf16 %v7088, %v7092
    %v7570 = vmax.bf16 %v7089, %v7093
    %v7571 = vmax.bf16 %v7090, %v7094
    %v7572 = vmax.bf16 %v7091, %v7095
    %v7574 = vshrl.u32 %v7569, 16
    %v7576 = vrot.slane %v7574, 4
    %v7577 = vshll.u32 %v7569, 16
    %v7579 = vrot.slane %v7577, 5
    %v7580 = vor.u32 %v7576, %v7579
    %v7581 = vrot.slane %v7580, 4
    %v7583 = vshll.u32 %v7570, 16
    %v7585 = vrot.slane %v7583, 5
    %v7586 = vsel %vm416, %v7581, %v7585
    %v7587 = vshrl.u32 %v7570, 16
    %v7589 = vrot.slane %v7587, 4
    %v7590 = vor.u32 %v7589, %v7585
    %v7591 = vrot.slane %v7590, 4
    %v7593 = vshll.u32 %v7571, 16
    %v7595 = vrot.slane %v7593, 5
    %v7596 = vsel %vm416, %v7591, %v7595
    %v7597 = vshrl.u32 %v7571, 16
    %v7599 = vrot.slane %v7597, 4
    %v7600 = vor.u32 %v7599, %v7595
    %v7601 = vrot.slane %v7600, 4
    %v7603 = vshll.u32 %v7572, 16
    %v7605 = vrot.slane %v7603, 5
    %v7606 = vsel %vm416, %v7601, %v7605
    %v7607 = vshrl.u32 %v7572, 16
    %v7609 = vrot.slane %v7607, 4
    %v7610 = vrot.slane %v7609, 4
    %v7615 = vmax.bf16 %v7569, %v7586
    %v7616 = vmax.bf16 %v7570, %v7596
    %v7617 = vmax.bf16 %v7571, %v7606
    %v7618 = vmax.bf16 %v7572, %v7610
    %v7623 = vunpack.c.l.b16 %v7615
    %v7624 = vunpack.c.l.b16 %v7616
    %v7625 = vunpack.c.l.b16 %v7617
    %v7626 = vunpack.c.l.b16 %v7618
    %v7627 = vpack.c.b16 %v7624, %v7623
    %v7628 = vpack.c.b16 %v7626, %v7625
    %7631 = vst [vmem:[#allocation2 + $0x60] sm:$0xff] %v7627
    %v7632 = vld [vmem:[#allocation2 + $0x68] sm:$0x1f]
    %v7633 = vsel %vm7235, %v7628, %v7632
    %7634 = vst [vmem:[#allocation2 + $0x68] sm:$0x1f] %v7633
    %v7635 = vmax.bf16 %v7096, %v7100
    %v7636 = vmax.bf16 %v7097, %v7101
    %v7637 = vmax.bf16 %v7098, %v7102
    %v7638 = vmax.bf16 %v7099, %v7103
    %v7640 = vshrl.u32 %v7635, 16
    %v7642 = vrot.slane %v7640, 4
    %v7643 = vshll.u32 %v7635, 16
    %v7645 = vrot.slane %v7643, 5
    %v7646 = vor.u32 %v7642, %v7645
    %v7647 = vrot.slane %v7646, 4
    %v7649 = vshll.u32 %v7636, 16
    %v7651 = vrot.slane %v7649, 5
    %v7652 = vsel %vm416, %v7647, %v7651
    %v7653 = vshrl.u32 %v7636, 16
    %v7655 = vrot.slane %v7653, 4
    %v7656 = vor.u32 %v7655, %v7651
    %v7657 = vrot.slane %v7656, 4
    %v7659 = vshll.u32 %v7637, 16
    %v7661 = vrot.slane %v7659, 5
    %v7662 = vsel %vm416, %v7657, %v7661
    %v7663 = vshrl.u32 %v7637, 16
    %v7665 = vrot.slane %v7663, 4
    %v7666 = vor.u32 %v7665, %v7661
    %v7667 = vrot.slane %v7666, 4
    %v7669 = vshll.u32 %v7638, 16
    %v7671 = vrot.slane %v7669, 5
    %v7672 = vsel %vm416, %v7667, %v7671
    %v7673 = vshrl.u32 %v7638, 16
    %v7675 = vrot.slane %v7673, 4
    %v7676 = vrot.slane %v7675, 4
    %v7681 = vmax.bf16 %v7635, %v7652
    %v7682 = vmax.bf16 %v7636, %v7662
    %v7683 = vmax.bf16 %v7637, %v7672
    %v7684 = vmax.bf16 %v7638, %v7676
    %v7689 = vunpack.c.l.b16 %v7681
    %v7690 = vunpack.c.l.b16 %v7682
    %v7691 = vunpack.c.l.b16 %v7683
    %v7692 = vunpack.c.l.b16 %v7684
    %v7693 = vpack.c.b16 %v7690, %v7689
    %v7694 = vpack.c.b16 %v7692, %v7691
    %7697 = vst [vmem:[#allocation2 + $0x70] sm:$0xff] %v7693
    %v7698 = vld [vmem:[#allocation2 + $0x78] sm:$0x1f]
    %v7699 = vsel %vm7235, %v7694, %v7698
    %7700 = vst [vmem:[#allocation2 + $0x78] sm:$0x1f] %v7699
    %v7701 = vmax.bf16 %v7104, %v7108
    %v7702 = vmax.bf16 %v7105, %v7109
    %v7703 = vmax.bf16 %v7106, %v7110
    %v7704 = vmax.bf16 %v7107, %v7111
    %v7706 = vshrl.u32 %v7701, 16
    %v7708 = vrot.slane %v7706, 4
    %v7709 = vshll.u32 %v7701, 16
    %v7711 = vrot.slane %v7709, 5
    %v7712 = vor.u32 %v7708, %v7711
    %v7713 = vrot.slane %v7712, 4
    %v7715 = vshll.u32 %v7702, 16
    %v7717 = vrot.slane %v7715, 5
    %v7718 = vsel %vm416, %v7713, %v7717
    %v7719 = vshrl.u32 %v7702, 16
    %v7721 = vrot.slane %v7719, 4
    %v7722 = vor.u32 %v7721, %v7717
    %v7723 = vrot.slane %v7722, 4
    %v7725 = vshll.u32 %v7703, 16
    %v7727 = vrot.slane %v7725, 5
    %v7728 = vsel %vm416, %v7723, %v7727
    %v7729 = vshrl.u32 %v7703, 16
    %v7731 = vrot.slane %v7729, 4
    %v7732 = vor.u32 %v7731, %v7727
    %v7733 = vrot.slane %v7732, 4
    %v7735 = vshll.u32 %v7704, 16
    %v7737 = vrot.slane %v7735, 5
    %v7738 = vsel %vm416, %v7733, %v7737
    %v7739 = vshrl.u32 %v7704, 16
    %v7741 = vrot.slane %v7739, 4
    %v7742 = vrot.slane %v7741, 4
    %v7747 = vmax.bf16 %v7701, %v7718
    %v7748 = vmax.bf16 %v7702, %v7728
    %v7749 = vmax.bf16 %v7703, %v7738
    %v7750 = vmax.bf16 %v7704, %v7742
    %v7755 = vunpack.c.l.b16 %v7747
    %v7756 = vunpack.c.l.b16 %v7748
    %v7757 = vunpack.c.l.b16 %v7749
    %v7758 = vunpack.c.l.b16 %v7750
    %v7759 = vpack.c.b16 %v7756, %v7755
    %v7760 = vpack.c.b16 %v7758, %v7757
    %7763 = vst [vmem:[#allocation2 + $0x80] sm:$0xff] %v7759
    %v7764 = vld [vmem:[#allocation2 + $0x88] sm:$0x1f]
    %v7765 = vsel %vm7235, %v7760, %v7764
    %7766 = vst [vmem:[#allocation2 + $0x88] sm:$0x1f] %v7765
    %v7767 = vmax.bf16 %v7112, %v7116
    %v7768 = vmax.bf16 %v7113, %v7117
    %v7769 = vmax.bf16 %v7114, %v7118
    %v7770 = vmax.bf16 %v7115, %v7119
    %v7772 = vshrl.u32 %v7767, 16
    %v7774 = vrot.slane %v7772, 4
    %v7775 = vshll.u32 %v7767, 16
    %v7777 = vrot.slane %v7775, 5
    %v7778 = vor.u32 %v7774, %v7777
    %v7779 = vrot.slane %v7778, 4
    %v7781 = vshll.u32 %v7768, 16
    %v7783 = vrot.slane %v7781, 5
    %v7784 = vsel %vm416, %v7779, %v7783
    %v7785 = vshrl.u32 %v7768, 16
    %v7787 = vrot.slane %v7785, 4
    %v7788 = vor.u32 %v7787, %v7783
    %v7789 = vrot.slane %v7788, 4
    %v7791 = vshll.u32 %v7769, 16
    %v7793 = vrot.slane %v7791, 5
    %v7794 = vsel %vm416, %v7789, %v7793
    %v7795 = vshrl.u32 %v7769, 16
    %v7797 = vrot.slane %v7795, 4
    %v7798 = vor.u32 %v7797, %v7793
    %v7799 = vrot.slane %v7798, 4
    %v7801 = vshll.u32 %v7770, 16
    %v7803 = vrot.slane %v7801, 5
    %v7804 = vsel %vm416, %v7799, %v7803
    %v7805 = vshrl.u32 %v7770, 16
    %v7807 = vrot.slane %v7805, 4
    %v7808 = vrot.slane %v7807, 4
    %v7813 = vmax.bf16 %v7767, %v7784
    %v7814 = vmax.bf16 %v7768, %v7794
    %v7815 = vmax.bf16 %v7769, %v7804
    %v7816 = vmax.bf16 %v7770, %v7808
    %v7821 = vunpack.c.l.b16 %v7813
    %v7822 = vunpack.c.l.b16 %v7814
    %v7823 = vunpack.c.l.b16 %v7815
    %v7824 = vunpack.c.l.b16 %v7816
    %v7825 = vpack.c.b16 %v7822, %v7821
    %v7826 = vpack.c.b16 %v7824, %v7823
    %7829 = vst [vmem:[#allocation2 + $0x90] sm:$0xff] %v7825
    %v7830 = vld [vmem:[#allocation2 + $0x98] sm:$0x1f]
    %v7831 = vsel %vm7235, %v7826, %v7830
    %7832 = vst [vmem:[#allocation2 + $0x98] sm:$0x1f] %v7831
    %v7833 = vmax.bf16 %v7120, %v7124
    %v7834 = vmax.bf16 %v7121, %v7125
    %v7835 = vmax.bf16 %v7122, %v7126
    %v7836 = vmax.bf16 %v7123, %v7127
    %v7838 = vshrl.u32 %v7833, 16
    %v7840 = vrot.slane %v7838, 4
    %v7841 = vshll.u32 %v7833, 16
    %v7843 = vrot.slane %v7841, 5
    %v7844 = vor.u32 %v7840, %v7843
    %v7845 = vrot.slane %v7844, 4
    %v7847 = vshll.u32 %v7834, 16
    %v7849 = vrot.slane %v7847, 5
    %v7850 = vsel %vm416, %v7845, %v7849
    %v7851 = vshrl.u32 %v7834, 16
    %v7853 = vrot.slane %v7851, 4
    %v7854 = vor.u32 %v7853, %v7849
    %v7855 = vrot.slane %v7854, 4
    %v7857 = vshll.u32 %v7835, 16
    %v7859 = vrot.slane %v7857, 5
    %v7860 = vsel %vm416, %v7855, %v7859
    %v7861 = vshrl.u32 %v7835, 16
    %v7863 = vrot.slane %v7861, 4
    %v7864 = vor.u32 %v7863, %v7859
    %v7865 = vrot.slane %v7864, 4
    %v7867 = vshll.u32 %v7836, 16
    %v7869 = vrot.slane %v7867, 5
    %v7870 = vsel %vm416, %v7865, %v7869
    %v7871 = vshrl.u32 %v7836, 16
    %v7873 = vrot.slane %v7871, 4
    %v7874 = vrot.slane %v7873, 4
    %v7879 = vmax.bf16 %v7833, %v7850
    %v7880 = vmax.bf16 %v7834, %v7860
    %v7881 = vmax.bf16 %v7835, %v7870
    %v7882 = vmax.bf16 %v7836, %v7874
    %v7887 = vunpack.c.l.b16 %v7879
    %v7888 = vunpack.c.l.b16 %v7880
    %v7889 = vunpack.c.l.b16 %v7881
    %v7890 = vunpack.c.l.b16 %v7882
    %v7891 = vpack.c.b16 %v7888, %v7887
    %v7892 = vpack.c.b16 %v7890, %v7889
    %7895 = vst [vmem:[#allocation2 + $0xa0] sm:$0xff] %v7891
    %v7896 = vld [vmem:[#allocation2 + $0xa8] sm:$0x1f]
    %v7897 = vsel %vm7235, %v7892, %v7896
    %7898 = vst [vmem:[#allocation2 + $0xa8] sm:$0x1f] %v7897
    %v7899 = vmax.bf16 %v7128, %v7132
    %v7900 = vmax.bf16 %v7129, %v7133
    %v7901 = vmax.bf16 %v7130, %v7134
    %v7902 = vmax.bf16 %v7131, %v7135
    %v7904 = vshrl.u32 %v7899, 16
    %v7906 = vrot.slane %v7904, 4
    %v7907 = vshll.u32 %v7899, 16
    %v7909 = vrot.slane %v7907, 5
    %v7910 = vor.u32 %v7906, %v7909
    %v7911 = vrot.slane %v7910, 4
    %v7913 = vshll.u32 %v7900, 16
    %v7915 = vrot.slane %v7913, 5
    %v7916 = vsel %vm416, %v7911, %v7915
    %v7917 = vshrl.u32 %v7900, 16
    %v7919 = vrot.slane %v7917, 4
    %v7920 = vor.u32 %v7919, %v7915
    %v7921 = vrot.slane %v7920, 4
    %v7923 = vshll.u32 %v7901, 16
    %v7925 = vrot.slane %v7923, 5
    %v7926 = vsel %vm416, %v7921, %v7925
    %v7927 = vshrl.u32 %v7901, 16
    %v7929 = vrot.slane %v7927, 4
    %v7930 = vor.u32 %v7929, %v7925
    %v7931 = vrot.slane %v7930, 4
    %v7933 = vshll.u32 %v7902, 16
    %v7935 = vrot.slane %v7933, 5
    %v7936 = vsel %vm416, %v7931, %v7935
    %v7937 = vshrl.u32 %v7902, 16
    %v7939 = vrot.slane %v7937, 4
    %v7940 = vrot.slane %v7939, 4
    %v7945 = vmax.bf16 %v7899, %v7916
    %v7946 = vmax.bf16 %v7900, %v7926
    %v7947 = vmax.bf16 %v7901, %v7936
    %v7948 = vmax.bf16 %v7902, %v7940
    %v7953 = vunpack.c.l.b16 %v7945
    %v7954 = vunpack.c.l.b16 %v7946
    %v7955 = vunpack.c.l.b16 %v7947
    %v7956 = vunpack.c.l.b16 %v7948
    %v7957 = vpack.c.b16 %v7954, %v7953
    %v7958 = vpack.c.b16 %v7956, %v7955
    %7961 = vst [vmem:[#allocation2 + $0xb0] sm:$0xff] %v7957
    %v7962 = vld [vmem:[#allocation2 + $0xb8] sm:$0x1f]
    %v7963 = vsel %vm7235, %v7958, %v7962
    %7964 = vst [vmem:[#allocation2 + $0xb8] sm:$0x1f] %v7963
    %v7965 = vmax.bf16 %v7136, %v7140
    %v7966 = vmax.bf16 %v7137, %v7141
    %v7967 = vmax.bf16 %v7138, %v7142
    %v7968 = vmax.bf16 %v7139, %v7143
    %v7970 = vshrl.u32 %v7965, 16
    %v7972 = vrot.slane %v7970, 4
    %v7973 = vshll.u32 %v7965, 16
    %v7975 = vrot.slane %v7973, 5
    %v7976 = vor.u32 %v7972, %v7975
    %v7977 = vrot.slane %v7976, 4
    %v7979 = vshll.u32 %v7966, 16
    %v7981 = vrot.slane %v7979, 5
    %v7982 = vsel %vm416, %v7977, %v7981
    %v7983 = vshrl.u32 %v7966, 16
    %v7985 = vrot.slane %v7983, 4
    %v7986 = vor.u32 %v7985, %v7981
    %v7987 = vrot.slane %v7986, 4
    %v7989 = vshll.u32 %v7967, 16
    %v7991 = vrot.slane %v7989, 5
    %v7992 = vsel %vm416, %v7987, %v7991
    %v7993 = vshrl.u32 %v7967, 16
    %v7995 = vrot.slane %v7993, 4
    %v7996 = vor.u32 %v7995, %v7991
    %v7997 = vrot.slane %v7996, 4
    %v7999 = vshll.u32 %v7968, 16
    %v8001 = vrot.slane %v7999, 5
    %v8002 = vsel %vm416, %v7997, %v8001
    %v8003 = vshrl.u32 %v7968, 16
    %v8005 = vrot.slane %v8003, 4
    %v8006 = vrot.slane %v8005, 4
    %v8011 = vmax.bf16 %v7965, %v7982
    %v8012 = vmax.bf16 %v7966, %v7992
    %v8013 = vmax.bf16 %v7967, %v8002
    %v8014 = vmax.bf16 %v7968, %v8006
    %v8019 = vunpack.c.l.b16 %v8011
    %v8020 = vunpack.c.l.b16 %v8012
    %v8021 = vunpack.c.l.b16 %v8013
    %v8022 = vunpack.c.l.b16 %v8014
    %v8023 = vpack.c.b16 %v8020, %v8019
    %v8024 = vpack.c.b16 %v8022, %v8021
    %8027 = vst [vmem:[#allocation2 + $0xc0] sm:$0xff] %v8023
    %v8028 = vld [vmem:[#allocation2 + $0xc8] sm:$0x1f]
    %v8029 = vsel %vm7235, %v8024, %v8028
    %8030 = vst [vmem:[#allocation2 + $0xc8] sm:$0x1f] %v8029
    %v8031 = vld [vmem:[#allocation9] sm:$0xff]
    %v8032 = vld [vmem:[#allocation9 + $0x8] sm:$0xff]
    %v8033 = vld [vmem:[#allocation9 + $0x10] sm:$0x11]
    %v8034 = vld [vmem:[#allocation9 + $0x18] sm:$0x11]
    %v8035 = vld [vmem:[#allocation2] sm:$0xff]
    %v8036 = vld [vmem:[#allocation2 + $0x8] sm:$0xff]
    %v8037 = vld [vmem:[#allocation2 + $0x10] sm:$0xff]
    %v8038 = vld [vmem:[#allocation2 + $0x18] sm:$0xff]
    %v8039 = vld [vmem:[#allocation2 + $0x20] sm:$0xff]
    %v8040 = vld [vmem:[#allocation2 + $0x28] sm:$0xff]
    %v8041 = vld [vmem:[#allocation2 + $0x30] sm:$0xff]
    %v8042 = vld [vmem:[#allocation2 + $0x38] sm:$0xff]
    %v8043 = vld [vmem:[#allocation2 + $0x40] sm:$0xff]
    %v8044 = vld [vmem:[#allocation2 + $0x48] sm:$0xff]
    %v8045 = vld [vmem:[#allocation2 + $0x50] sm:$0xff]
    %v8046 = vld [vmem:[#allocation2 + $0x58] sm:$0xff]
    %v8047 = vld [vmem:[#allocation2 + $0x60] sm:$0xff]
    %v8048 = vld [vmem:[#allocation2 + $0x68] sm:$0xff]
    %v8049 = vld [vmem:[#allocation2 + $0x70] sm:$0xff]
    %v8050 = vld [vmem:[#allocation2 + $0x78] sm:$0xff]
    %v8051 = vld [vmem:[#allocation2 + $0x80] sm:$0xff]
    %v8052 = vld [vmem:[#allocation2 + $0x88] sm:$0xff]
    %v8053 = vld [vmem:[#allocation2 + $0x90] sm:$0xff]
    %v8054 = vld [vmem:[#allocation2 + $0x98] sm:$0xff]
    %v8055 = vld [vmem:[#allocation2 + $0xa0] sm:$0xff]
    %v8056 = vld [vmem:[#allocation2 + $0xa8] sm:$0xff]
    %v8057 = vld [vmem:[#allocation2 + $0xb0] sm:$0xff]
    %v8058 = vld [vmem:[#allocation2 + $0xb8] sm:$0xff]
    %v8059 = vld [vmem:[#allocation2 + $0xc0] sm:$0xff]
    %v8060 = vld [vmem:[#allocation2 + $0xc8] sm:$0xff]
    %v8061 = vld [vmem:[%s4] sm:$0xff]
    %v8062 = vld [vmem:[%s4 + $0x8] sm:$0x3]
    %8064 = vset.pattern.permute.xlu0 0
    %8065 = vperm.xlu0 %8064, %v8061
    %v8066 = vpop.permute.xlu0 %8065
    %8069 = vset.pattern.permute.xlu0 0
    %8070 = vperm.xlu0 %8069, %v8062
    %v8071 = vpop.permute.xlu0 %8070
    %v8077 = vunpack.c.l.b16 %v8031
    %v8078 = vunpack.c.h.b16 %v8031
    %v8079 = vunpack.c.l.b16 %v8032
    %v8080 = vunpack.c.h.b16 %v8032
    %v8081 = vunpack.c.l.b16 %v8033
    %v8082 = vunpack.c.h.b16 %v8033
    %v8083 = vunpack.c.l.b16 %v8034
    %v8084 = vunpack.c.h.b16 %v8034
    %v8085 = vpack.c.b16 %v8081, %v8077
    %v8086 = vpack.c.b16 %v8082, %v8078
    %v8087 = vpack.c.b16 %v8083, %v8079
    %v8088 = vpack.c.b16 %v8084, %v8080
    %vm8092 = vcmask 261120
    %v8094 = vsel %vm8092, %v8088, 0
    %8096 = vmatprep.subr.bf16.mxu0 0
    %8097 = vmatpush1.bf16.msra.mxu0 %v8035
    %8098 = vmatprep.subr.bf16.mxu0 0
    %8099 = vmatpush1.bf16.msra.mxu0 %v8036
    %8100 = vmatprep.subr.bf16.mxu0 0
    %8101 = vmatpush1.bf16.msra.mxu0 %v8037
    %8102 = vmatprep.subr.bf16.mxu0 0
    %8103 = vmatpush1.bf16.msra.mxu0 %v8038
    %8104 = vmatprep.subr.bf16.mxu0 0
    %8105 = vmatpush1.bf16.msra.mxu0 %v8039
    %8106 = vmatprep.subr.bf16.mxu0 0
    %8107 = vmatpush1.bf16.msra.mxu0 %v8040
    %8108 = vmatprep.subr.bf16.mxu0 0
    %8109 = vmatpush1.bf16.msra.mxu0 %v8041
    %8110 = vmatprep.subr.bf16.mxu0 0
    %8111 = vmatpush1.bf16.msra.mxu0 %v8042
    %8112 = vmatprep.subr.bf16.mxu0 0
    %8113 = vmatpush1.bf16.msra.mxu0 %v8043
    %8114 = vmatprep.subr.bf16.mxu0 0
    %8115 = vmatpush1.bf16.msra.mxu0 %v8044
    %8116 = vmatprep.subr.bf16.mxu0 0
    %8117 = vmatpush1.bf16.msra.mxu0 %v8045
    %8118 = vmatprep.subr.bf16.mxu0 0
    %8119 = vmatpush1.bf16.msra.mxu0 %v8046
    %8120 = vmatprep.subr.bf16.mxu0 0
    %8121 = vmatpush1.bf16.msra.mxu0 %v8047
    %8122 = vmatprep.subr.bf16.mxu0 0
    %8123 = vmatpush1.bf16.msra.mxu0 %v8048
    %8124 = vmatprep.subr.bf16.mxu0 0
    %8125 = vmatpush1.bf16.msra.mxu0 %v8049
    %8126 = vmatprep.subr.bf16.mxu0 0
    %8127 = vmatpush1.bf16.msra.mxu0 %v8050
    %8128 = vmatprep.mubr.bf16.mxu0 %v8086
    %8129 = vmatmul.mubr.bf16.gmra.mrb[0].mxu0 %v8085
    %v8130 = vpop.f32.mrb[0].mxu0
    %v8131 = vadd.f32 %v8066, %v8130
    %v8132 = vpop.f32.mrb[0].mxu0
    %v8133 = vpop.f32.mrb[0].mxu0
    %v8134 = vadd.f32 %v8071, %v8133
    %v8135 = vpop.f32.mrb[0].mxu0
    %8136 = vdwg.mxu0
    %8137 = vmatprep.subr.bf16.mxu0 0
    %8138 = vmatpush1.bf16.msra.mxu0 %v8051
    %8139 = vmatprep.subr.bf16.mxu0 0
    %8140 = vmatpush1.bf16.msra.mxu0 %v8052
    %8141 = vmatprep.subr.bf16.mxu0 0
    %8142 = vmatpush1.bf16.msra.mxu0 %v8053
    %8143 = vmatprep.subr.bf16.mxu0 0
    %8144 = vmatpush1.bf16.msra.mxu0 %v8054
    %8145 = vmatprep.subr.bf16.mxu0 0
    %8146 = vmatpush1.bf16.msra.mxu0 %v8055
    %8147 = vmatprep.subr.bf16.mxu0 0
    %8148 = vmatpush1.bf16.msra.mxu0 %v8056
    %8149 = vmatprep.subr.bf16.mxu0 0
    %8150 = vmatpush1.bf16.msra.mxu0 %v8057
    %8151 = vmatprep.subr.bf16.mxu0 0
    %8152 = vmatpush1.bf16.msra.mxu0 %v8058
    %8153 = vmatprep.subr.bf16.mxu0 0
    %8154 = vmatpush1.bf16.msra.mxu0 %v8059
    %8155 = vmatprep.subr.bf16.mxu0 0
    %8156 = vmatpush1.bf16.msra.mxu0 %v8060
    %8157 = vmatprep.subr.bf16.mxu0 0
    %8158 = vmatpush1.bf16.msra.mxu0 0
    %8159 = vmatprep.subr.bf16.mxu0 0
    %8160 = vmatpush1.bf16.msra.mxu0 0
    %8161 = vmatprep.subr.bf16.mxu0 0
    %8162 = vmatpush1.bf16.msra.mxu0 0
    %8163 = vmatprep.subr.bf16.mxu0 0
    %8164 = vmatpush1.bf16.msra.mxu0 0
    %8165 = vmatprep.subr.bf16.mxu0 0
    %8166 = vmatpush1.bf16.msra.mxu0 0
    %8167 = vmatprep.subr.bf16.mxu0 0
    %8168 = vmatpush1.bf16.msra.mxu0 0
    %8169 = vmatprep.mubr.bf16.mxu0 %v8094
    %8170 = vmatmul.mubr.bf16.gmra.mrb[0].mxu0 %v8087
    %v8171 = vpop.f32.mrb[0].mxu0
    %v8172 = vadd.f32 %v8131, %v8171
    %v8173 = vpop.f32.mrb[0].mxu0
    %v8174 = vpop.f32.mrb[0].mxu0
    %v8175 = vadd.f32 %v8134, %v8174
    %v8176 = vpop.f32.mrb[0].mxu0
    %8177 = vdwg.mxu0
    %8178 = vst [vmem:[#allocation11] sm:$0xff] %v8172
    %8179 = vst [vmem:[#allocation11 + $0x8] sm:$0x3] %v8175
    // Predicated region
    $region34: #{tpu_custom_call.1} parent=1 // pred_check
      _
    $region35: #{tpu_custom_call.1} parent=1 // pred_check_branch
      %8181 = sbr.rel (0) target = $region37
    $region36: #{tpu_custom_call.1} parent=1 // pred_region
      %s8183 = ssub.s32 256, 256
      %8184 = vsyncadd [#allocation6], %s8183
      %s8185 = sshll.u32 [#allocation11], 4
      %s8186 = int_to_ptr.vmem [resolvable:$true] %s8185
      %8191 = dma.vmem_to_hbm [thread:$0]  %s8186, 256, %s5, [#allocation6], 128, 128, 8
    $region37: #{tpu_custom_call.1} parent=1 // pred_fallthru
      _
    // Predicated region
    $region38: #{tpu_custom_call.1} parent=1 // pred_check
      _
    $region39: #{tpu_custom_call.1} parent=1 // pred_check_branch
      %8193 = sbr.rel (0) target = $region41
    $region40: #{tpu_custom_call.1} parent=1 // pred_region
      %8194 = dma.done [#allocation6], 256
    $region41: #{tpu_custom_call.1} parent=1 // pred_fallthru
      _
    %8195 = vsyncpa [#allocation5], 1
    %8196 = vsyncpa [#allocation10], 1
    %8197 = vsyncpa [#allocation6], 1
    %8198 = vsyncpa [#allocation7], 1

// kernel: tpu_custom_call.1
$region0: #{tpu_custom_call.1}
  #allocation0 [shape = 'u32[]', space=smem, size = 0x4, offset = 0x4, fixed_abs, tag = 'smem constant byte address 0x4 - core index']
  #allocation1 [shape = 'u32[144,128]{1,0:T(1,128)}', space=vmem, size = 0x12000, scoped, tag = 'internal scratch']
  #allocation2 [shape = 'bf16[416,128]{1,0:T(16,128)(2,1)}', space=vmem, size = 0x1a000, scoped, tag = 'scratch operand']
  #allocation3 [shape = 'f32[1]{0:T(128)S(6)}', space=smem, size = 0x200, scoped, tag = 'scoped memory for tpu_custom_call.1']
  %s0 = inlined_call_operand.hbm [shape: bf16[28,28,128], index: 0, kind: input, shape index: {}]
  %s1 = inlined_call_operand.vmem [shape: f32[3,3], index: 1, kind: input, shape index: {}]
  %s2 = inlined_call_operand.<no memory space> [shape: f32[1], index: 2, kind: input, shape index: {}]
  %s3 = inlined_call_operand.hbm [shape: bf16[10,416], index: 3, kind: input, shape index: {}]
  %s4 = inlined_call_operand.vmem [shape: f32[10,1], index: 4, kind: input, shape index: {}]
  %s5 = inlined_call_operand.hbm [shape: f32[10,128], index: 5, kind: output, shape index: {}]
  %s6 = sld [smem:[#allocation0]]
  $region42: #{tpu_custom_call.1} parent=0
    _
  %s8 = ssub.s32 1, %s6
  %s9 = scalar_select 0, %s8, %s6
  %10 = sst [smem:[#allocation3]] %s2
  $region1: #{tpu_custom_call.1} parent=0
    #allocation4 [shape = 'u8[229376]{0}', space=vmem, size = 0x38000, scoped, tag = 'input window, operand 0, single buffered']
    #allocation5 [shape = 's32[1]{0}', space=sflag, size = 0x4, scoped, tag = 'scoped memory for tpu_custom_call.1']
    #allocation6 [shape = 's32[1]{0}', space=sflag, size = 0x4, scoped, tag = 'scoped memory for tpu_custom_call.1']
    #allocation7 [shape = 's32[1]{0}', space=sflag, size = 0x4, scoped, tag = 'scoped memory for tpu_custom_call.1']
    #allocation8 [shape = 'u8[2048]{0}', space=smem, size = 0x800, scoped, tag = 'input window, operand 1, single buffered']
    #allocation9 [shape = 'u8[16384]{0}', space=vmem, size = 0x4000, scoped, tag = 'input window, operand 3, single buffered']
    #allocation10 [shape = 's32[1]{0}', space=sflag, size = 0x4, scoped, tag = 'scoped memory for tpu_custom_call.1']
    #allocation11 [shape = 'u8[8192]{0}', space=vmem, size = 0x2000, scoped, tag = 'output window, operand 0, single buffered']
    %11 = vsyncpa [#allocation5], 0
    %12 = vsyncpa [#allocation7], 0
    %13 = vsyncpa [#allocation10], 0
    %14 = vsyncpa [#allocation6], 0
    // Predicated region
    $region2: #{tpu_custom_call.1} parent=1 // pred_check
      _
    $region3: #{tpu_custom_call.1} parent=1 // pred_check_branch
      %16 = sbr.rel (0) target = $region5
    $region4: #{tpu_custom_call.1} parent=1 // pred_region
      %s18 = ssub.s32 7168, 7168
      %19 = vsyncadd [#allocation5], %s18
      %s20 = sshll.u32 [#allocation4], 4
      %s21 = int_to_ptr.vmem [resolvable:$true] %s20
      %26 = dma.hbm_to_vmem [thread:$0]  %s0, 7168, %s21, [#allocation5], 64, 64, 4
    $region5: #{tpu_custom_call.1} parent=1 // pred_fallthru
      _
    // Predicated region
    $region6: #{tpu_custom_call.1} parent=1 // pred_check
      _
    $region7: #{tpu_custom_call.1} parent=1 // pred_check_branch
      %28 = sbr.rel (0) target = $region9
    $region8: #{tpu_custom_call.1} parent=1 // pred_region
      %s30 = ssub.s32 64, 64
      %31 = vsyncadd [#allocation7], %s30
      %s33 = sshll.u32 %s1, 4
      %s34 = int_to_ptr.vmem [resolvable:$true] %s33
      %36 = dma.vmem_to_smem %s34, 64, [#allocation8], [#allocation7]
    $region9: #{tpu_custom_call.1} parent=1 // pred_fallthru
      _
    // Predicated region
    $region10: #{tpu_custom_call.1} parent=1 // pred_check
      _
    $region11: #{tpu_custom_call.1} parent=1 // pred_check_branch
      %38 = sbr.rel (0) target = $region13
    $region12: #{tpu_custom_call.1} parent=1 // pred_region
      _
    $region13: #{tpu_custom_call.1} parent=1 // pred_fallthru
      _
    // Predicated region
    $region14: #{tpu_custom_call.1} parent=1 // pred_check
      _
    $region15: #{tpu_custom_call.1} parent=1 // pred_check_branch
      %40 = sbr.rel (0) target = $region17
    $region16: #{tpu_custom_call.1} parent=1 // pred_region
      %s42 = ssub.s32 512, 512
      %43 = vsyncadd [#allocation10], %s42
      %s44 = sshll.u32 [#allocation9], 4
      %s45 = int_to_ptr.vmem [resolvable:$true] %s44
      %50 = dma.hbm_to_vmem [thread:$0]  %s3, 512, %s45, [#allocation10], 256, 256, 16
    $region17: #{tpu_custom_call.1} parent=1 // pred_fallthru
      _
    // Predicated region
    $region18: #{tpu_custom_call.1} parent=1 // pred_check
      _
    $region19: #{tpu_custom_call.1} parent=1 // pred_check_branch
      %52 = sbr.rel (0) target = $region21
    $region20: #{tpu_custom_call.1} parent=1 // pred_region
      _
    $region21: #{tpu_custom_call.1} parent=1 // pred_fallthru
      _
    // Predicated region
    $region22: #{tpu_custom_call.1} parent=1 // pred_check
      _
    $region23: #{tpu_custom_call.1} parent=1 // pred_check_branch
      %54 = sbr.rel (0) target = $region25
    $region24: #{tpu_custom_call.1} parent=1 // pred_region
      %55 = dma.done [#allocation5], 7168
    $region25: #{tpu_custom_call.1} parent=1 // pred_fallthru
      _
    // Predicated region
    $region26: #{tpu_custom_call.1} parent=1 // pred_check
      _
    $region27: #{tpu_custom_call.1} parent=1 // pred_check_branch
      %57 = sbr.rel (0) target = $region29
    $region28: #{tpu_custom_call.1} parent=1 // pred_region
      %58 = dma.done [#allocation7], 64
    $region29: #{tpu_custom_call.1} parent=1 // pred_fallthru
      _
    // Predicated region
    $region30: #{tpu_custom_call.1} parent=1 // pred_check
      _
    $region31: #{tpu_custom_call.1} parent=1 // pred_check_branch
      %60 = sbr.rel (0) target = $region33
    $region32: #{tpu_custom_call.1} parent=1 // pred_region
      %61 = dma.done [#allocation10], 512
    $region33: #{tpu_custom_call.1} parent=1 // pred_fallthru
      _
    %62 = sfence
    %v64 = vld [vmem:[#allocation4] sm:$0xf]
    %v65 = vld [vmem:[#allocation4 + $0x4] sm:$0xf]
    %v66 = vld [vmem:[#allocation4 + $0x8] sm:$0xf]
    %v67 = vld [vmem:[#allocation4 + $0xc] sm:$0x3]
    %v68 = vld [vmem:[#allocation4 + $0x10] sm:$0xf]
    %v69 = vld [vmem:[#allocation4 + $0x14] sm:$0xf]
    %v70 = vld [vmem:[#allocation4 + $0x18] sm:$0xf]
    %v71 = vld [vmem:[#allocation4 + $0x1c] sm:$0x3]
    %v72 = vld [vmem:[#allocation4 + $0x20] sm:$0xf]
    %v73 = vld [vmem:[#allocation4 + $0x24] sm:$0xf]
    %v74 = vld [vmem:[#allocation4 + $0x28] sm:$0xf]
    %v75 = vld [vmem:[#allocation4 + $0x2c] sm:$0x3]
    %v76 = vld [vmem:[#allocation4 + $0x30] sm:$0xf]
    %v77 = vld [vmem:[#allocation4 + $0x34] sm:$0xf]
    %v78 = vld [vmem:[#allocation4 + $0x38] sm:$0xf]
    %v79 = vld [vmem:[#allocation4 + $0x3c] sm:$0x3]
    %v80 = vld [vmem:[#allocation4 + $0x40] sm:$0xf]
    %v81 = vld [vmem:[#allocation4 + $0x44] sm:$0xf]
    %v82 = vld [vmem:[#allocation4 + $0x48] sm:$0xf]
    %v83 = vld [vmem:[#allocation4 + $0x4c] sm:$0x3]
    %v84 = vld [vmem:[#allocation4 + $0x50] sm:$0xf]
    %v85 = vld [vmem:[#allocation4 + $0x54] sm:$0xf]
    %v86 = vld [vmem:[#allocation4 + $0x58] sm:$0xf]
    %v87 = vld [vmem:[#allocation4 + $0x5c] sm:$0x3]
    %v88 = vld [vmem:[#allocation4 + $0x60] sm:$0xf]
    %v89 = vld [vmem:[#allocation4 + $0x64] sm:$0xf]
    %v90 = vld [vmem:[#allocation4 + $0x68] sm:$0xf]
    %v91 = vld [vmem:[#allocation4 + $0x6c] sm:$0x3]
    %v92 = vld [vmem:[#allocation4 + $0x70] sm:$0xf]
    %v93 = vld [vmem:[#allocation4 + $0x74] sm:$0xf]
    %v94 = vld [vmem:[#allocation4 + $0x78] sm:$0xf]
    %v95 = vld [vmem:[#allocation4 + $0x7c] sm:$0x3]
    %v96 = vld [vmem:[#allocation4 + $0x80] sm:$0xf]
    %v97 = vld [vmem:[#allocation4 + $0x84] sm:$0xf]
    %v98 = vld [vmem:[#allocation4 + $0x88] sm:$0xf]
    %v99 = vld [vmem:[#allocation4 + $0x8c] sm:$0x3]
    %v100 = vld [vmem:[#allocation4 + $0x90] sm:$0xf]
    %v101 = vld [vmem:[#allocation4 + $0x94] sm:$0xf]
    %v102 = vld [vmem:[#allocation4 + $0x98] sm:$0xf]
    %v103 = vld [vmem:[#allocation4 + $0x9c] sm:$0x3]
    %v104 = vld [vmem:[#allocation4 + $0xa0] sm:$0xf]
    %v105 = vld [vmem:[#allocation4 + $0xa4] sm:$0xf]
    %v106 = vld [vmem:[#allocation4 + $0xa8] sm:$0xf]
    %v107 = vld [vmem:[#allocation4 + $0xac] sm:$0x3]
    %v108 = vld [vmem:[#allocation4 + $0xb0] sm:$0xf]
    %v109 = vld [vmem:[#allocation4 + $0xb4] sm:$0xf]
    %v110 = vld [vmem:[#allocation4 + $0xb8] sm:$0xf]
    %v111 = vld [vmem:[#allocation4 + $0xbc] sm:$0x3]
    %v112 = vld [vmem:[#allocation4 + $0xc0] sm:$0xf]
    %v113 = vld [vmem:[#allocation4 + $0xc4] sm:$0xf]
    %v114 = vld [vmem:[#allocation4 + $0xc8] sm:$0xf]
    %v115 = vld [vmem:[#allocation4 + $0xcc] sm:$0x3]
    %v116 = vld [vmem:[#allocation4 + $0xd0] sm:$0xf]
    %v117 = vld [vmem:[#allocation4 + $0xd4] sm:$0xf]
    %v118 = vld [vmem:[#allocation4 + $0xd8] sm:$0xf]
    %v119 = vld [vmem:[#allocation4 + $0xdc] sm:$0x3]
    %v120 = vld [vmem:[#allocation4 + $0xe0] sm:$0xf]
    %v121 = vld [vmem:[#allocation4 + $0xe4] sm:$0xf]
    %v122 = vld [vmem:[#allocation4 + $0xe8] sm:$0xf]
    %v123 = vld [vmem:[#allocation4 + $0xec] sm:$0x3]
    %v124 = vld [vmem:[#allocation4 + $0xf0] sm:$0xf]
    %v125 = vld [vmem:[#allocation4 + $0xf4] sm:$0xf]
    %v126 = vld [vmem:[#allocation4 + $0xf8] sm:$0xf]
    %v127 = vld [vmem:[#allocation4 + $0xfc] sm:$0x3]
    %v128 = vld [vmem:[#allocation4 + $0x100] sm:$0xf]
    %v129 = vld [vmem:[#allocation4 + $0x104] sm:$0xf]
    %v130 = vld [vmem:[#allocation4 + $0x108] sm:$0xf]
    %v131 = vld [vmem:[#allocation4 + $0x10c] sm:$0x3]
    %v132 = vld [vmem:[#allocation4 + $0x110] sm:$0xf]
    %v133 = vld [vmem:[#allocation4 + $0x114] sm:$0xf]
    %v134 = vld [vmem:[#allocation4 + $0x118] sm:$0xf]
    %v135 = vld [vmem:[#allocation4 + $0x11c] sm:$0x3]
    %v136 = vld [vmem:[#allocation4 + $0x120] sm:$0xf]
    %v137 = vld [vmem:[#allocation4 + $0x124] sm:$0xf]
    %v138 = vld [vmem:[#allocation4 + $0x128] sm:$0xf]
    %v139 = vld [vmem:[#allocation4 + $0x12c] sm:$0x3]
    %v140 = vld [vmem:[#allocation4 + $0x130] sm:$0xf]
    %v141 = vld [vmem:[#allocation4 + $0x134] sm:$0xf]
    %v142 = vld [vmem:[#allocation4 + $0x138] sm:$0xf]
    %v143 = vld [vmem:[#allocation4 + $0x13c] sm:$0x3]
    %v144 = vld [vmem:[#allocation4 + $0x140] sm:$0xf]
    %v145 = vld [vmem:[#allocation4 + $0x144] sm:$0xf]
    %v146 = vld [vmem:[#allocation4 + $0x148] sm:$0xf]
    %v147 = vld [vmem:[#allocation4 + $0x14c] sm:$0x3]
    %v148 = vld [vmem:[#allocation4 + $0x150] sm:$0xf]
    %v149 = vld [vmem:[#allocation4 + $0x154] sm:$0xf]
    %v150 = vld [vmem:[#allocation4 + $0x158] sm:$0xf]
    %v151 = vld [vmem:[#allocation4 + $0x15c] sm:$0x3]
    %v152 = vld [vmem:[#allocation4 + $0x160] sm:$0xf]
    %v153 = vld [vmem:[#allocation4 + $0x164] sm:$0xf]
    %v154 = vld [vmem:[#allocation4 + $0x168] sm:$0xf]
    %v155 = vld [vmem:[#allocation4 + $0x16c] sm:$0x3]
    %v156 = vld [vmem:[#allocation4 + $0x170] sm:$0xf]
    %v157 = vld [vmem:[#allocation4 + $0x174] sm:$0xf]
    %v158 = vld [vmem:[#allocation4 + $0x178] sm:$0xf]
    %v159 = vld [vmem:[#allocation4 + $0x17c] sm:$0x3]
    %v160 = vld [vmem:[#allocation4 + $0x180] sm:$0xf]
    %v161 = vld [vmem:[#allocation4 + $0x184] sm:$0xf]
    %v162 = vld [vmem:[#allocation4 + $0x188] sm:$0xf]
    %v163 = vld [vmem:[#allocation4 + $0x18c] sm:$0x3]
    %v164 = vld [vmem:[#allocation4 + $0x190] sm:$0xf]
    %v165 = vld [vmem:[#allocation4 + $0x194] sm:$0xf]
    %v166 = vld [vmem:[#allocation4 + $0x198] sm:$0xf]
    %v167 = vld [vmem:[#allocation4 + $0x19c] sm:$0x3]
    %v168 = vld [vmem:[#allocation4 + $0x1a0] sm:$0xf]
    %v169 = vld [vmem:[#allocation4 + $0x1a4] sm:$0xf]
    %v170 = vld [vmem:[#allocation4 + $0x1a8] sm:$0xf]
    %v171 = vld [vmem:[#allocation4 + $0x1ac] sm:$0x3]
    %v172 = vld [vmem:[#allocation4 + $0x1b0] sm:$0xf]
    %v173 = vld [vmem:[#allocation4 + $0x1b4] sm:$0xf]
    %v174 = vld [vmem:[#allocation4 + $0x1b8] sm:$0xf]
    %v175 = vld [vmem:[#allocation4 + $0x1bc] sm:$0x3]
    %v176 = vunpack.c.l.bf16 %v64
    %v177 = vunpack.c.l.bf16 %v65
    %v178 = vunpack.c.l.bf16 %v66
    %v179 = vunpack.c.l.bf16 %v67
    %v180 = vunpack.c.l.bf16 %v68
    %v181 = vunpack.c.l.bf16 %v69
    %v182 = vunpack.c.l.bf16 %v70
    %v183 = vunpack.c.l.bf16 %v71
    %v184 = vunpack.c.l.bf16 %v72
    %v185 = vunpack.c.l.bf16 %v73
    %v186 = vunpack.c.l.bf16 %v74
    %v187 = vunpack.c.l.bf16 %v75
    %v188 = vunpack.c.l.bf16 %v76
    %v189 = vunpack.c.l.bf16 %v77
    %v190 = vunpack.c.l.bf16 %v78
    %v191 = vunpack.c.l.bf16 %v79
    %v192 = vunpack.c.l.bf16 %v80
    %v193 = vunpack.c.l.bf16 %v81
    %v194 = vunpack.c.l.bf16 %v82
    %v195 = vunpack.c.l.bf16 %v83
    %v196 = vunpack.c.l.bf16 %v84
    %v197 = vunpack.c.l.bf16 %v85
    %v198 = vunpack.c.l.bf16 %v86
    %v199 = vunpack.c.l.bf16 %v87
    %v200 = vunpack.c.l.bf16 %v88
    %v201 = vunpack.c.l.bf16 %v89
    %v202 = vunpack.c.l.bf16 %v90
    %v203 = vunpack.c.l.bf16 %v91
    %v204 = vunpack.c.l.bf16 %v92
    %v205 = vunpack.c.l.bf16 %v93
    %v206 = vunpack.c.l.bf16 %v94
    %v207 = vunpack.c.l.bf16 %v95
    %v208 = vunpack.c.l.bf16 %v96
    %v209 = vunpack.c.l.bf16 %v97
    %v210 = vunpack.c.l.bf16 %v98
    %v211 = vunpack.c.l.bf16 %v99
    %v212 = vunpack.c.l.bf16 %v100
    %v213 = vunpack.c.l.bf16 %v101
    %v214 = vunpack.c.l.bf16 %v102
    %v215 = vunpack.c.l.bf16 %v103
    %v216 = vunpack.c.l.bf16 %v104
    %v217 = vunpack.c.l.bf16 %v105
    %v218 = vunpack.c.l.bf16 %v106
    %v219 = vunpack.c.l.bf16 %v107
    %v220 = vunpack.c.l.bf16 %v108
    %v221 = vunpack.c.l.bf16 %v109
    %v222 = vunpack.c.l.bf16 %v110
    %v223 = vunpack.c.l.bf16 %v111
    %v224 = vunpack.c.l.bf16 %v112
    %v225 = vunpack.c.l.bf16 %v113
    %v226 = vunpack.c.l.bf16 %v114
    %v227 = vunpack.c.l.bf16 %v115
    %v228 = vunpack.c.l.bf16 %v116
    %v229 = vunpack.c.l.bf16 %v117
    %v230 = vunpack.c.l.bf16 %v118
    %v231 = vunpack.c.l.bf16 %v119
    %v232 = vunpack.c.l.bf16 %v120
    %v233 = vunpack.c.l.bf16 %v121
    %v234 = vunpack.c.l.bf16 %v122
    %v235 = vunpack.c.l.bf16 %v123
    %v236 = vunpack.c.l.bf16 %v124
    %v237 = vunpack.c.l.bf16 %v125
    %v238 = vunpack.c.l.bf16 %v126
    %v239 = vunpack.c.l.bf16 %v127
    %v240 = vunpack.c.l.bf16 %v128
    %v241 = vunpack.c.l.bf16 %v129
    %v242 = vunpack.c.l.bf16 %v130
    %v243 = vunpack.c.l.bf16 %v131
    %v244 = vunpack.c.l.bf16 %v132
    %v245 = vunpack.c.l.bf16 %v133
    %v246 = vunpack.c.l.bf16 %v134
    %v247 = vunpack.c.l.bf16 %v135
    %v248 = vunpack.c.l.bf16 %v136
    %v249 = vunpack.c.l.bf16 %v137
    %v250 = vunpack.c.l.bf16 %v138
    %v251 = vunpack.c.l.bf16 %v139
    %v252 = vunpack.c.l.bf16 %v140
    %v253 = vunpack.c.l.bf16 %v141
    %v254 = vunpack.c.l.bf16 %v142
    %v255 = vunpack.c.l.bf16 %v143
    %v256 = vunpack.c.l.bf16 %v144
    %v257 = vunpack.c.l.bf16 %v145
    %v258 = vunpack.c.l.bf16 %v146
    %v259 = vunpack.c.l.bf16 %v147
    %v260 = vunpack.c.l.bf16 %v148
    %v261 = vunpack.c.l.bf16 %v149
    %v262 = vunpack.c.l.bf16 %v150
    %v263 = vunpack.c.l.bf16 %v151
    %v264 = vunpack.c.l.bf16 %v152
    %v265 = vunpack.c.l.bf16 %v153
    %v266 = vunpack.c.l.bf16 %v154
    %v267 = vunpack.c.l.bf16 %v155
    %v268 = vunpack.c.l.bf16 %v156
    %v269 = vunpack.c.l.bf16 %v157
    %v270 = vunpack.c.l.bf16 %v158
    %v271 = vunpack.c.l.bf16 %v159
    %v272 = vunpack.c.l.bf16 %v160
    %v273 = vunpack.c.l.bf16 %v161
    %v274 = vunpack.c.l.bf16 %v162
    %v275 = vunpack.c.l.bf16 %v163
    %v276 = vunpack.c.l.bf16 %v164
    %v277 = vunpack.c.l.bf16 %v165
    %v278 = vunpack.c.l.bf16 %v166
    %v279 = vunpack.c.l.bf16 %v167
    %v280 = vunpack.c.l.bf16 %v168
    %v281 = vunpack.c.l.bf16 %v169
    %v282 = vunpack.c.l.bf16 %v170
    %v283 = vunpack.c.l.bf16 %v171
    %v284 = vunpack.c.l.bf16 %v172
    %v285 = vunpack.c.l.bf16 %v173
    %v286 = vunpack.c.l.bf16 %v174
    %v287 = vunpack.c.l.bf16 %v175
    %s288 = sld [smem:[#allocation8]]
    %v289 = vstv %s288
    %v290 = vmul.f32 %v176, %v289
    %v291 = vmul.f32 %v177, %v289
    %v292 = vmul.f32 %v178, %v289
    %v293 = vmul.f32 %v179, %v289
    %v294 = vmul.f32 %v180, %v289
    %v295 = vmul.f32 %v181, %v289
    %v296 = vmul.f32 %v182, %v289
    %v297 = vmul.f32 %v183, %v289
    %v298 = vmul.f32 %v184, %v289
    %v299 = vmul.f32 %v185, %v289
    %v300 = vmul.f32 %v186, %v289
    %v301 = vmul.f32 %v187, %v289
    %v302 = vmul.f32 %v188, %v289
    %v303 = vmul.f32 %v189, %v289
    %v304 = vmul.f32 %v190, %v289
    %v305 = vmul.f32 %v191, %v289
    %v306 = vmul.f32 %v192, %v289
    %v307 = vmul.f32 %v193, %v289
    %v308 = vmul.f32 %v194, %v289
    %v309 = vmul.f32 %v195, %v289
    %v310 = vmul.f32 %v196, %v289
    %v311 = vmul.f32 %v197, %v289
    %v312 = vmul.f32 %v198, %v289
    %v313 = vmul.f32 %v199, %v289
    %v314 = vmul.f32 %v200, %v289
    %v315 = vmul.f32 %v201, %v289
    %v316 = vmul.f32 %v202, %v289
    %v317 = vmul.f32 %v203, %v289
    %v318 = vmul.f32 %v204, %v289
    %v319 = vmul.f32 %v205, %v289
    %v320 = vmul.f32 %v206, %v289
    %v321 = vmul.f32 %v207, %v289
    %v322 = vmul.f32 %v208, %v289
    %v323 = vmul.f32 %v209, %v289
    %v324 = vmul.f32 %v210, %v289
    %v325 = vmul.f32 %v211, %v289
    %v326 = vmul.f32 %v212, %v289
    %v327 = vmul.f32 %v213, %v289
    %v328 = vmul.f32 %v214, %v289
    %v329 = vmul.f32 %v215, %v289
    %v330 = vmul.f32 %v216, %v289
    %v331 = vmul.f32 %v217, %v289
    %v332 = vmul.f32 %v218, %v289
    %v333 = vmul.f32 %v219, %v289
    %v334 = vmul.f32 %v220, %v289
    %v335 = vmul.f32 %v221, %v289
    %v336 = vmul.f32 %v222, %v289
    %v337 = vmul.f32 %v223, %v289
    %v338 = vmul.f32 %v224, %v289
    %v339 = vmul.f32 %v225, %v289
    %v340 = vmul.f32 %v226, %v289
    %v341 = vmul.f32 %v227, %v289
    %v342 = vmul.f32 %v228, %v289
    %v343 = vmul.f32 %v229, %v289
    %v344 = vmul.f32 %v230, %v289
    %v345 = vmul.f32 %v231, %v289
    %v346 = vmul.f32 %v232, %v289
    %v347 = vmul.f32 %v233, %v289
    %v348 = vmul.f32 %v234, %v289
    %v349 = vmul.f32 %v235, %v289
    %v350 = vmul.f32 %v236, %v289
    %v351 = vmul.f32 %v237, %v289
    %v352 = vmul.f32 %v238, %v289
    %v353 = vmul.f32 %v239, %v289
    %v354 = vmul.f32 %v240, %v289
    %v355 = vmul.f32 %v241, %v289
    %v356 = vmul.f32 %v242, %v289
    %v357 = vmul.f32 %v243, %v289
    %v358 = vmul.f32 %v244, %v289
    %v359 = vmul.f32 %v245, %v289
    %v360 = vmul.f32 %v246, %v289
    %v361 = vmul.f32 %v247, %v289
    %v362 = vmul.f32 %v248, %v289
    %v363 = vmul.f32 %v249, %v289
    %v364 = vmul.f32 %v250, %v289
    %v365 = vmul.f32 %v251, %v289
    %v366 = vmul.f32 %v252, %v289
    %v367 = vmul.f32 %v253, %v289
    %v368 = vmul.f32 %v254, %v289
    %v369 = vmul.f32 %v255, %v289
    %v370 = vmul.f32 %v256, %v289
    %v371 = vmul.f32 %v257, %v289
    %v372 = vmul.f32 %v258, %v289
    %v373 = vmul.f32 %v259, %v289
    %v374 = vmul.f32 %v260, %v289
    %v375 = vmul.f32 %v261, %v289
    %v376 = vmul.f32 %v262, %v289
    %v377 = vmul.f32 %v263, %v289
    %v378 = vmul.f32 %v264, %v289
    %v379 = vmul.f32 %v265, %v289
    %v380 = vmul.f32 %v266, %v289
    %v381 = vmul.f32 %v267, %v289
    %v382 = vmul.f32 %v268, %v289
    %v383 = vmul.f32 %v269, %v289
    %v384 = vmul.f32 %v270, %v289
    %v385 = vmul.f32 %v271, %v289
    %v386 = vmul.f32 %v272, %v289
    %v387 = vmul.f32 %v273, %v289
    %v388 = vmul.f32 %v274, %v289
    %v389 = vmul.f32 %v275, %v289
    %v390 = vmul.f32 %v276, %v289
    %v391 = vmul.f32 %v277, %v289
    %v392 = vmul.f32 %v278, %v289
    %v393 = vmul.f32 %v279, %v289
    %s394 = sld [smem:[#allocation8 + $0x1]]
    %v395 = vstv %s394
    %v396 = vmul.f32 %v176, %v395
    %v397 = vmul.f32 %v177, %v395
    %v398 = vmul.f32 %v178, %v395
    %v399 = vmul.f32 %v179, %v395
    %v400 = vmul.f32 %v180, %v395
    %v401 = vmul.f32 %v181, %v395
    %v402 = vmul.f32 %v182, %v395
    %v403 = vmul.f32 %v183, %v395
    %v404 = vmul.f32 %v184, %v395
    %v405 = vmul.f32 %v185, %v395
    %v406 = vmul.f32 %v186, %v395
    %v407 = vmul.f32 %v187, %v395
    %v408 = vmul.f32 %v188, %v395
    %v409 = vmul.f32 %v189, %v395
    %v410 = vmul.f32 %v190, %v395
    %v411 = vmul.f32 %v191, %v395
    %v412 = vmul.f32 %v192, %v395
    %v413 = vmul.f32 %v193, %v395
    %v414 = vmul.f32 %v194, %v395
    %v415 = vmul.f32 %v195, %v395
    %v416 = vmul.f32 %v196, %v395
    %v417 = vmul.f32 %v197, %v395
    %v418 = vmul.f32 %v198, %v395
    %v419 = vmul.f32 %v199, %v395
    %v420 = vmul.f32 %v200, %v395
    %v421 = vmul.f32 %v201, %v395
    %v422 = vmul.f32 %v202, %v395
    %v423 = vmul.f32 %v203, %v395
    %v424 = vmul.f32 %v204, %v395
    %v425 = vmul.f32 %v205, %v395
    %v426 = vmul.f32 %v206, %v395
    %v427 = vmul.f32 %v207, %v395
    %v428 = vmul.f32 %v208, %v395
    %v429 = vmul.f32 %v209, %v395
    %v430 = vmul.f32 %v210, %v395
    %v431 = vmul.f32 %v211, %v395
    %v432 = vmul.f32 %v212, %v395
    %v433 = vmul.f32 %v213, %v395
    %v434 = vmul.f32 %v214, %v395
    %v435 = vmul.f32 %v215, %v395
    %v436 = vmul.f32 %v216, %v395
    %v437 = vmul.f32 %v217, %v395
    %v438 = vmul.f32 %v218, %v395
    %v439 = vmul.f32 %v219, %v395
    %v440 = vmul.f32 %v220, %v395
    %v441 = vmul.f32 %v221, %v395
    %v442 = vmul.f32 %v222, %v395
    %v443 = vmul.f32 %v223, %v395
    %v444 = vmul.f32 %v224, %v395
    %v445 = vmul.f32 %v225, %v395
    %v446 = vmul.f32 %v226, %v395
    %v447 = vmul.f32 %v227, %v395
    %v448 = vmul.f32 %v228, %v395
    %v449 = vmul.f32 %v229, %v395
    %v450 = vmul.f32 %v230, %v395
    %v451 = vmul.f32 %v231, %v395
    %v452 = vmul.f32 %v232, %v395
    %v453 = vmul.f32 %v233, %v395
    %v454 = vmul.f32 %v234, %v395
    %v455 = vmul.f32 %v235, %v395
    %v456 = vmul.f32 %v236, %v395
    %v457 = vmul.f32 %v237, %v395
    %v458 = vmul.f32 %v238, %v395
    %v459 = vmul.f32 %v239, %v395
    %v460 = vmul.f32 %v240, %v395
    %v461 = vmul.f32 %v241, %v395
    %v462 = vmul.f32 %v242, %v395
    %v463 = vmul.f32 %v243, %v395
    %v464 = vmul.f32 %v244, %v395
    %v465 = vmul.f32 %v245, %v395
    %v466 = vmul.f32 %v246, %v395
    %v467 = vmul.f32 %v247, %v395
    %v468 = vmul.f32 %v248, %v395
    %v469 = vmul.f32 %v249, %v395
    %v470 = vmul.f32 %v250, %v395
    %v471 = vmul.f32 %v251, %v395
    %v472 = vmul.f32 %v252, %v395
    %v473 = vmul.f32 %v253, %v395
    %v474 = vmul.f32 %v254, %v395
    %v475 = vmul.f32 %v255, %v395
    %v476 = vmul.f32 %v256, %v395
    %v477 = vmul.f32 %v257, %v395
    %v478 = vmul.f32 %v258, %v395
    %v479 = vmul.f32 %v259, %v395
    %v480 = vmul.f32 %v260, %v395
    %v481 = vmul.f32 %v261, %v395
    %v482 = vmul.f32 %v262, %v395
    %v483 = vmul.f32 %v263, %v395
    %v484 = vmul.f32 %v264, %v395
    %v485 = vmul.f32 %v265, %v395
    %v486 = vmul.f32 %v266, %v395
    %v487 = vmul.f32 %v267, %v395
    %v488 = vmul.f32 %v268, %v395
    %v489 = vmul.f32 %v269, %v395
    %v490 = vmul.f32 %v270, %v395
    %v491 = vmul.f32 %v271, %v395
    %v492 = vmul.f32 %v272, %v395
    %v493 = vmul.f32 %v273, %v395
    %v494 = vmul.f32 %v274, %v395
    %v495 = vmul.f32 %v275, %v395
    %v496 = vmul.f32 %v276, %v395
    %v497 = vmul.f32 %v277, %v395
    %v498 = vmul.f32 %v278, %v395
    %v499 = vmul.f32 %v279, %v395
    %vm604 = vcmask 1046528
    %v605 = vrot.slane %v396, 1
    %v606 = vrot.slane %v397, 1
    %v607 = vsel %vm604, %v605, %v606
    %v608 = vrot.slane %v398, 1
    %v609 = vsel %vm604, %v606, %v608
    %v610 = vrot.slane %v399, 1
    %v611 = vsel %vm604, %v608, %v610
    %v612 = vrot.slane %v400, 1
    %v613 = vrot.slane %v401, 1
    %v614 = vsel %vm604, %v612, %v613
    %v615 = vrot.slane %v402, 1
    %v616 = vsel %vm604, %v613, %v615
    %v617 = vrot.slane %v403, 1
    %v618 = vsel %vm604, %v615, %v617
    %v619 = vrot.slane %v404, 1
    %v620 = vrot.slane %v405, 1
    %v621 = vsel %vm604, %v619, %v620
    %v622 = vrot.slane %v406, 1
    %v623 = vsel %vm604, %v620, %v622
    %v624 = vrot.slane %v407, 1
    %v625 = vsel %vm604, %v622, %v624
    %v626 = vrot.slane %v408, 1
    %v627 = vrot.slane %v409, 1
    %v628 = vsel %vm604, %v626, %v627
    %v629 = vrot.slane %v410, 1
    %v630 = vsel %vm604, %v627, %v629
    %v631 = vrot.slane %v411, 1
    %v632 = vsel %vm604, %v629, %v631
    %v633 = vrot.slane %v412, 1
    %v634 = vrot.slane %v413, 1
    %v635 = vsel %vm604, %v633, %v634
    %v636 = vrot.slane %v414, 1
    %v637 = vsel %vm604, %v634, %v636
    %v638 = vrot.slane %v415, 1
    %v639 = vsel %vm604, %v636, %v638
    %v640 = vrot.slane %v416, 1
    %v641 = vrot.slane %v417, 1
    %v642 = vsel %vm604, %v640, %v641
    %v643 = vrot.slane %v418, 1
    %v644 = vsel %vm604, %v641, %v643
    %v645 = vrot.slane %v419, 1
    %v646 = vsel %vm604, %v643, %v645
    %v647 = vrot.slane %v420, 1
    %v648 = vrot.slane %v421, 1
    %v649 = vsel %vm604, %v647, %v648
    %v650 = vrot.slane %v422, 1
    %v651 = vsel %vm604, %v648, %v650
    %v652 = vrot.slane %v423, 1
    %v653 = vsel %vm604, %v650, %v652
    %v654 = vrot.slane %v424, 1
    %v655 = vrot.slane %v425, 1
    %v656 = vsel %vm604, %v654, %v655
    %v657 = vrot.slane %v426, 1
    %v658 = vsel %vm604, %v655, %v657
    %v659 = vrot.slane %v427, 1
    %v660 = vsel %vm604, %v657, %v659
    %v661 = vrot.slane %v428, 1
    %v662 = vrot.slane %v429, 1
    %v663 = vsel %vm604, %v661, %v662
    %v664 = vrot.slane %v430, 1
    %v665 = vsel %vm604, %v662, %v664
    %v666 = vrot.slane %v431, 1
    %v667 = vsel %vm604, %v664, %v666
    %v668 = vrot.slane %v432, 1
    %v669 = vrot.slane %v433, 1
    %v670 = vsel %vm604, %v668, %v669
    %v671 = vrot.slane %v434, 1
    %v672 = vsel %vm604, %v669, %v671
    %v673 = vrot.slane %v435, 1
    %v674 = vsel %vm604, %v671, %v673
    %v675 = vrot.slane %v436, 1
    %v676 = vrot.slane %v437, 1
    %v677 = vsel %vm604, %v675, %v676
    %v678 = vrot.slane %v438, 1
    %v679 = vsel %vm604, %v676, %v678
    %v680 = vrot.slane %v439, 1
    %v681 = vsel %vm604, %v678, %v680
    %v682 = vrot.slane %v440, 1
    %v683 = vrot.slane %v441, 1
    %v684 = vsel %vm604, %v682, %v683
    %v685 = vrot.slane %v442, 1
    %v686 = vsel %vm604, %v683, %v685
    %v687 = vrot.slane %v443, 1
    %v688 = vsel %vm604, %v685, %v687
    %v689 = vrot.slane %v444, 1
    %v690 = vrot.slane %v445, 1
    %v691 = vsel %vm604, %v689, %v690
    %v692 = vrot.slane %v446, 1
    %v693 = vsel %vm604, %v690, %v692
    %v694 = vrot.slane %v447, 1
    %v695 = vsel %vm604, %v692, %v694
    %v696 = vrot.slane %v448, 1
    %v697 = vrot.slane %v449, 1
    %v698 = vsel %vm604, %v696, %v697
    %v699 = vrot.slane %v450, 1
    %v700 = vsel %vm604, %v697, %v699
    %v701 = vrot.slane %v451, 1
    %v702 = vsel %vm604, %v699, %v701
    %v703 = vrot.slane %v452, 1
    %v704 = vrot.slane %v453, 1
    %v705 = vsel %vm604, %v703, %v704
    %v706 = vrot.slane %v454, 1
    %v707 = vsel %vm604, %v704, %v706
    %v708 = vrot.slane %v455, 1
    %v709 = vsel %vm604, %v706, %v708
    %v710 = vrot.slane %v456, 1
    %v711 = vrot.slane %v457, 1
    %v712 = vsel %vm604, %v710, %v711
    %v713 = vrot.slane %v458, 1
    %v714 = vsel %vm604, %v711, %v713
    %v715 = vrot.slane %v459, 1
    %v716 = vsel %vm604, %v713, %v715
    %v717 = vrot.slane %v460, 1
    %v718 = vrot.slane %v461, 1
    %v719 = vsel %vm604, %v717, %v718
    %v720 = vrot.slane %v462, 1
    %v721 = vsel %vm604, %v718, %v720
    %v722 = vrot.slane %v463, 1
    %v723 = vsel %vm604, %v720, %v722
    %v724 = vrot.slane %v464, 1
    %v725 = vrot.slane %v465, 1
    %v726 = vsel %vm604, %v724, %v725
    %v727 = vrot.slane %v466, 1
    %v728 = vsel %vm604, %v725, %v727
    %v729 = vrot.slane %v467, 1
    %v730 = vsel %vm604, %v727, %v729
    %v731 = vrot.slane %v468, 1
    %v732 = vrot.slane %v469, 1
    %v733 = vsel %vm604, %v731, %v732
    %v734 = vrot.slane %v470, 1
    %v735 = vsel %vm604, %v732, %v734
    %v736 = vrot.slane %v471, 1
    %v737 = vsel %vm604, %v734, %v736
    %v738 = vrot.slane %v472, 1
    %v739 = vrot.slane %v473, 1
    %v740 = vsel %vm604, %v738, %v739
    %v741 = vrot.slane %v474, 1
    %v742 = vsel %vm604, %v739, %v741
    %v743 = vrot.slane %v475, 1
    %v744 = vsel %vm604, %v741, %v743
    %v745 = vrot.slane %v476, 1
    %v746 = vrot.slane %v477, 1
    %v747 = vsel %vm604, %v745, %v746
    %v748 = vrot.slane %v478, 1
    %v749 = vsel %vm604, %v746, %v748
    %v750 = vrot.slane %v479, 1
    %v751 = vsel %vm604, %v748, %v750
    %v752 = vrot.slane %v480, 1
    %v753 = vrot.slane %v481, 1
    %v754 = vsel %vm604, %v752, %v753
    %v755 = vrot.slane %v482, 1
    %v756 = vsel %vm604, %v753, %v755
    %v757 = vrot.slane %v483, 1
    %v758 = vsel %vm604, %v755, %v757
    %v759 = vrot.slane %v484, 1
    %v760 = vrot.slane %v485, 1
    %v761 = vsel %vm604, %v759, %v760
    %v762 = vrot.slane %v486, 1
    %v763 = vsel %vm604, %v760, %v762
    %v764 = vrot.slane %v487, 1
    %v765 = vsel %vm604, %v762, %v764
    %v766 = vrot.slane %v488, 1
    %v767 = vrot.slane %v489, 1
    %v768 = vsel %vm604, %v766, %v767
    %v769 = vrot.slane %v490, 1
    %v770 = vsel %vm604, %v767, %v769
    %v771 = vrot.slane %v491, 1
    %v772 = vsel %vm604, %v769, %v771
    %v773 = vrot.slane %v492, 1
    %v774 = vrot.slane %v493, 1
    %v775 = vsel %vm604, %v773, %v774
    %v776 = vrot.slane %v494, 1
    %v777 = vsel %vm604, %v774, %v776
    %v778 = vrot.slane %v495, 1
    %v779 = vsel %vm604, %v776, %v778
    %v780 = vrot.slane %v496, 1
    %v781 = vrot.slane %v497, 1
    %v782 = vsel %vm604, %v780, %v781
    %v783 = vrot.slane %v498, 1
    %v784 = vsel %vm604, %v781, %v783
    %v785 = vrot.slane %v499, 1
    %v786 = vsel %vm604, %v783, %v785
    %v891 = vadd.f32 %v290, %v607
    %v892 = vadd.f32 %v291, %v609
    %v893 = vadd.f32 %v292, %v611
    %v894 = vadd.f32 %v293, %v610
    %v895 = vadd.f32 %v294, %v614
    %v896 = vadd.f32 %v295, %v616
    %v897 = vadd.f32 %v296, %v618
    %v898 = vadd.f32 %v297, %v617
    %v899 = vadd.f32 %v298, %v621
    %v900 = vadd.f32 %v299, %v623
    %v901 = vadd.f32 %v300, %v625
    %v902 = vadd.f32 %v301, %v624
    %v903 = vadd.f32 %v302, %v628
    %v904 = vadd.f32 %v303, %v630
    %v905 = vadd.f32 %v304, %v632
    %v906 = vadd.f32 %v305, %v631
    %v907 = vadd.f32 %v306, %v635
    %v908 = vadd.f32 %v307, %v637
    %v909 = vadd.f32 %v308, %v639
    %v910 = vadd.f32 %v309, %v638
    %v911 = vadd.f32 %v310, %v642
    %v912 = vadd.f32 %v311, %v644
    %v913 = vadd.f32 %v312, %v646
    %v914 = vadd.f32 %v313, %v645
    %v915 = vadd.f32 %v314, %v649
    %v916 = vadd.f32 %v315, %v651
    %v917 = vadd.f32 %v316, %v653
    %v918 = vadd.f32 %v317, %v652
    %v919 = vadd.f32 %v318, %v656
    %v920 = vadd.f32 %v319, %v658
    %v921 = vadd.f32 %v320, %v660
    %v922 = vadd.f32 %v321, %v659
    %v923 = vadd.f32 %v322, %v663
    %v924 = vadd.f32 %v323, %v665
    %v925 = vadd.f32 %v324, %v667
    %v926 = vadd.f32 %v325, %v666
    %v927 = vadd.f32 %v326, %v670
    %v928 = vadd.f32 %v327, %v672
    %v929 = vadd.f32 %v328, %v674
    %v930 = vadd.f32 %v329, %v673
    %v931 = vadd.f32 %v330, %v677
    %v932 = vadd.f32 %v331, %v679
    %v933 = vadd.f32 %v332, %v681
    %v934 = vadd.f32 %v333, %v680
    %v935 = vadd.f32 %v334, %v684
    %v936 = vadd.f32 %v335, %v686
    %v937 = vadd.f32 %v336, %v688
    %v938 = vadd.f32 %v337, %v687
    %v939 = vadd.f32 %v338, %v691
    %v940 = vadd.f32 %v339, %v693
    %v941 = vadd.f32 %v340, %v695
    %v942 = vadd.f32 %v341, %v694
    %v943 = vadd.f32 %v342, %v698
    %v944 = vadd.f32 %v343, %v700
    %v945 = vadd.f32 %v344, %v702
    %v946 = vadd.f32 %v345, %v701
    %v947 = vadd.f32 %v346, %v705
    %v948 = vadd.f32 %v347, %v707
    %v949 = vadd.f32 %v348, %v709
    %v950 = vadd.f32 %v349, %v708
    %v951 = vadd.f32 %v350, %v712
    %v952 = vadd.f32 %v351, %v714
    %v953 = vadd.f32 %v352, %v716
    %v954 = vadd.f32 %v353, %v715
    %v955 = vadd.f32 %v354, %v719
    %v956 = vadd.f32 %v355, %v721
    %v957 = vadd.f32 %v356, %v723
    %v958 = vadd.f32 %v357, %v722
    %v959 = vadd.f32 %v358, %v726
    %v960 = vadd.f32 %v359, %v728
    %v961 = vadd.f32 %v360, %v730
    %v962 = vadd.f32 %v361, %v729
    %v963 = vadd.f32 %v362, %v733
    %v964 = vadd.f32 %v363, %v735
    %v965 = vadd.f32 %v364, %v737
    %v966 = vadd.f32 %v365, %v736
    %v967 = vadd.f32 %v366, %v740
    %v968 = vadd.f32 %v367, %v742
    %v969 = vadd.f32 %v368, %v744
    %v970 = vadd.f32 %v369, %v743
    %v971 = vadd.f32 %v370, %v747
    %v972 = vadd.f32 %v371, %v749
    %v973 = vadd.f32 %v372, %v751
    %v974 = vadd.f32 %v373, %v750
    %v975 = vadd.f32 %v374, %v754
    %v976 = vadd.f32 %v375, %v756
    %v977 = vadd.f32 %v376, %v758
    %v978 = vadd.f32 %v377, %v757
    %v979 = vadd.f32 %v378, %v761
    %v980 = vadd.f32 %v379, %v763
    %v981 = vadd.f32 %v380, %v765
    %v982 = vadd.f32 %v381, %v764
    %v983 = vadd.f32 %v382, %v768
    %v984 = vadd.f32 %v383, %v770
    %v985 = vadd.f32 %v384, %v772
    %v986 = vadd.f32 %v385, %v771
    %v987 = vadd.f32 %v386, %v775
    %v988 = vadd.f32 %v387, %v777
    %v989 = vadd.f32 %v388, %v779
    %v990 = vadd.f32 %v389, %v778
    %v991 = vadd.f32 %v390, %v782
    %v992 = vadd.f32 %v391, %v784
    %v993 = vadd.f32 %v392, %v786
    %v994 = vadd.f32 %v393, %v785
    %s995 = sld [smem:[#allocation8 + $0x2]]
    %v996 = vstv %s995
    %v997 = vmul.f32 %v176, %v996
    %v998 = vmul.f32 %v177, %v996
    %v999 = vmul.f32 %v178, %v996
    %v1000 = vmul.f32 %v179, %v996
    %v1001 = vmul.f32 %v180, %v996
    %v1002 = vmul.f32 %v181, %v996
    %v1003 = vmul.f32 %v182, %v996
    %v1004 = vmul.f32 %v183, %v996
    %v1005 = vmul.f32 %v184, %v996
    %v1006 = vmul.f32 %v185, %v996
    %v1007 = vmul.f32 %v186, %v996
    %v1008 = vmul.f32 %v187, %v996
    %v1009 = vmul.f32 %v188, %v996
    %v1010 = vmul.f32 %v189, %v996
    %v1011 = vmul.f32 %v190, %v996
    %v1012 = vmul.f32 %v191, %v996
    %v1013 = vmul.f32 %v192, %v996
    %v1014 = vmul.f32 %v193, %v996
    %v1015 = vmul.f32 %v194, %v996
    %v1016 = vmul.f32 %v195, %v996
    %v1017 = vmul.f32 %v196, %v996
    %v1018 = vmul.f32 %v197, %v996
    %v1019 = vmul.f32 %v198, %v996
    %v1020 = vmul.f32 %v199, %v996
    %v1021 = vmul.f32 %v200, %v996
    %v1022 = vmul.f32 %v201, %v996
    %v1023 = vmul.f32 %v202, %v996
    %v1024 = vmul.f32 %v203, %v996
    %v1025 = vmul.f32 %v204, %v996
    %v1026 = vmul.f32 %v205, %v996
    %v1027 = vmul.f32 %v206, %v996
    %v1028 = vmul.f32 %v207, %v996
    %v1029 = vmul.f32 %v208, %v996
    %v1030 = vmul.f32 %v209, %v996
    %v1031 = vmul.f32 %v210, %v996
    %v1032 = vmul.f32 %v211, %v996
    %v1033 = vmul.f32 %v212, %v996
    %v1034 = vmul.f32 %v213, %v996
    %v1035 = vmul.f32 %v214, %v996
    %v1036 = vmul.f32 %v215, %v996
    %v1037 = vmul.f32 %v216, %v996
    %v1038 = vmul.f32 %v217, %v996
    %v1039 = vmul.f32 %v218, %v996
    %v1040 = vmul.f32 %v219, %v996
    %v1041 = vmul.f32 %v220, %v996
    %v1042 = vmul.f32 %v221, %v996
    %v1043 = vmul.f32 %v222, %v996
    %v1044 = vmul.f32 %v223, %v996
    %v1045 = vmul.f32 %v224, %v996
    %v1046 = vmul.f32 %v225, %v996
    %v1047 = vmul.f32 %v226, %v996
    %v1048 = vmul.f32 %v227, %v996
    %v1049 = vmul.f32 %v228, %v996
    %v1050 = vmul.f32 %v229, %v996
    %v1051 = vmul.f32 %v230, %v996
    %v1052 = vmul.f32 %v231, %v996
    %v1053 = vmul.f32 %v232, %v996
    %v1054 = vmul.f32 %v233, %v996
    %v1055 = vmul.f32 %v234, %v996
    %v1056 = vmul.f32 %v235, %v996
    %v1057 = vmul.f32 %v236, %v996
    %v1058 = vmul.f32 %v237, %v996
    %v1059 = vmul.f32 %v238, %v996
    %v1060 = vmul.f32 %v239, %v996
    %v1061 = vmul.f32 %v240, %v996
    %v1062 = vmul.f32 %v241, %v996
    %v1063 = vmul.f32 %v242, %v996
    %v1064 = vmul.f32 %v243, %v996
    %v1065 = vmul.f32 %v244, %v996
    %v1066 = vmul.f32 %v245, %v996
    %v1067 = vmul.f32 %v246, %v996
    %v1068 = vmul.f32 %v247, %v996
    %v1069 = vmul.f32 %v248, %v996
    %v1070 = vmul.f32 %v249, %v996
    %v1071 = vmul.f32 %v250, %v996
    %v1072 = vmul.f32 %v251, %v996
    %v1073 = vmul.f32 %v252, %v996
    %v1074 = vmul.f32 %v253, %v996
    %v1075 = vmul.f32 %v254, %v996
    %v1076 = vmul.f32 %v255, %v996
    %v1077 = vmul.f32 %v256, %v996
    %v1078 = vmul.f32 %v257, %v996
    %v1079 = vmul.f32 %v258, %v996
    %v1080 = vmul.f32 %v259, %v996
    %v1081 = vmul.f32 %v260, %v996
    %v1082 = vmul.f32 %v261, %v996
    %v1083 = vmul.f32 %v262, %v996
    %v1084 = vmul.f32 %v263, %v996
    %v1085 = vmul.f32 %v264, %v996
    %v1086 = vmul.f32 %v265, %v996
    %v1087 = vmul.f32 %v266, %v996
    %v1088 = vmul.f32 %v267, %v996
    %v1089 = vmul.f32 %v268, %v996
    %v1090 = vmul.f32 %v269, %v996
    %v1091 = vmul.f32 %v270, %v996
    %v1092 = vmul.f32 %v271, %v996
    %v1093 = vmul.f32 %v272, %v996
    %v1094 = vmul.f32 %v273, %v996
    %v1095 = vmul.f32 %v274, %v996
    %v1096 = vmul.f32 %v275, %v996
    %v1097 = vmul.f32 %v276, %v996
    %v1098 = vmul.f32 %v277, %v996
    %v1099 = vmul.f32 %v278, %v996
    %v1100 = vmul.f32 %v279, %v996
    %vm1205 = vcmask 1045504
    %v1206 = vrot.slane %v997, 2
    %v1207 = vrot.slane %v998, 2
    %v1208 = vsel %vm1205, %v1206, %v1207
    %v1209 = vrot.slane %v999, 2
    %v1210 = vsel %vm1205, %v1207, %v1209
    %v1211 = vrot.slane %v1000, 2
    %v1212 = vsel %vm1205, %v1209, %v1211
    %v1213 = vrot.slane %v1001, 2
    %v1214 = vrot.slane %v1002, 2
    %v1215 = vsel %vm1205, %v1213, %v1214
    %v1216 = vrot.slane %v1003, 2
    %v1217 = vsel %vm1205, %v1214, %v1216
    %v1218 = vrot.slane %v1004, 2
    %v1219 = vsel %vm1205, %v1216, %v1218
    %v1220 = vrot.slane %v1005, 2
    %v1221 = vrot.slane %v1006, 2
    %v1222 = vsel %vm1205, %v1220, %v1221
    %v1223 = vrot.slane %v1007, 2
    %v1224 = vsel %vm1205, %v1221, %v1223
    %v1225 = vrot.slane %v1008, 2
    %v1226 = vsel %vm1205, %v1223, %v1225
    %v1227 = vrot.slane %v1009, 2
    %v1228 = vrot.slane %v1010, 2
    %v1229 = vsel %vm1205, %v1227, %v1228
    %v1230 = vrot.slane %v1011, 2
    %v1231 = vsel %vm1205, %v1228, %v1230
    %v1232 = vrot.slane %v1012, 2
    %v1233 = vsel %vm1205, %v1230, %v1232
    %v1234 = vrot.slane %v1013, 2
    %v1235 = vrot.slane %v1014, 2
    %v1236 = vsel %vm1205, %v1234, %v1235
    %v1237 = vrot.slane %v1015, 2
    %v1238 = vsel %vm1205, %v1235, %v1237
    %v1239 = vrot.slane %v1016, 2
    %v1240 = vsel %vm1205, %v1237, %v1239
    %v1241 = vrot.slane %v1017, 2
    %v1242 = vrot.slane %v1018, 2
    %v1243 = vsel %vm1205, %v1241, %v1242
    %v1244 = vrot.slane %v1019, 2
    %v1245 = vsel %vm1205, %v1242, %v1244
    %v1246 = vrot.slane %v1020, 2
    %v1247 = vsel %vm1205, %v1244, %v1246
    %v1248 = vrot.slane %v1021, 2
    %v1249 = vrot.slane %v1022, 2
    %v1250 = vsel %vm1205, %v1248, %v1249
    %v1251 = vrot.slane %v1023, 2
    %v1252 = vsel %vm1205, %v1249, %v1251
    %v1253 = vrot.slane %v1024, 2
    %v1254 = vsel %vm1205, %v1251, %v1253
    %v1255 = vrot.slane %v1025, 2
    %v1256 = vrot.slane %v1026, 2
    %v1257 = vsel %vm1205, %v1255, %v1256
    %v1258 = vrot.slane %v1027, 2
    %v1259 = vsel %vm1205, %v1256, %v1258
    %v1260 = vrot.slane %v1028, 2
    %v1261 = vsel %vm1205, %v1258, %v1260
    %v1262 = vrot.slane %v1029, 2
    %v1263 = vrot.slane %v1030, 2
    %v1264 = vsel %vm1205, %v1262, %v1263
    %v1265 = vrot.slane %v1031, 2
    %v1266 = vsel %vm1205, %v1263, %v1265
    %v1267 = vrot.slane %v1032, 2
    %v1268 = vsel %vm1205, %v1265, %v1267
    %v1269 = vrot.slane %v1033, 2
    %v1270 = vrot.slane %v1034, 2
    %v1271 = vsel %vm1205, %v1269, %v1270
    %v1272 = vrot.slane %v1035, 2
    %v1273 = vsel %vm1205, %v1270, %v1272
    %v1274 = vrot.slane %v1036, 2
    %v1275 = vsel %vm1205, %v1272, %v1274
    %v1276 = vrot.slane %v1037, 2
    %v1277 = vrot.slane %v1038, 2
    %v1278 = vsel %vm1205, %v1276, %v1277
    %v1279 = vrot.slane %v1039, 2
    %v1280 = vsel %vm1205, %v1277, %v1279
    %v1281 = vrot.slane %v1040, 2
    %v1282 = vsel %vm1205, %v1279, %v1281
    %v1283 = vrot.slane %v1041, 2
    %v1284 = vrot.slane %v1042, 2
    %v1285 = vsel %vm1205, %v1283, %v1284
    %v1286 = vrot.slane %v1043, 2
    %v1287 = vsel %vm1205, %v1284, %v1286
    %v1288 = vrot.slane %v1044, 2
    %v1289 = vsel %vm1205, %v1286, %v1288
    %v1290 = vrot.slane %v1045, 2
    %v1291 = vrot.slane %v1046, 2
    %v1292 = vsel %vm1205, %v1290, %v1291
    %v1293 = vrot.slane %v1047, 2
    %v1294 = vsel %vm1205, %v1291, %v1293
    %v1295 = vrot.slane %v1048, 2
    %v1296 = vsel %vm1205, %v1293, %v1295
    %v1297 = vrot.slane %v1049, 2
    %v1298 = vrot.slane %v1050, 2
    %v1299 = vsel %vm1205, %v1297, %v1298
    %v1300 = vrot.slane %v1051, 2
    %v1301 = vsel %vm1205, %v1298, %v1300
    %v1302 = vrot.slane %v1052, 2
    %v1303 = vsel %vm1205, %v1300, %v1302
    %v1304 = vrot.slane %v1053, 2
    %v1305 = vrot.slane %v1054, 2
    %v1306 = vsel %vm1205, %v1304, %v1305
    %v1307 = vrot.slane %v1055, 2
    %v1308 = vsel %vm1205, %v1305, %v1307
    %v1309 = vrot.slane %v1056, 2
    %v1310 = vsel %vm1205, %v1307, %v1309
    %v1311 = vrot.slane %v1057, 2
    %v1312 = vrot.slane %v1058, 2
    %v1313 = vsel %vm1205, %v1311, %v1312
    %v1314 = vrot.slane %v1059, 2
    %v1315 = vsel %vm1205, %v1312, %v1314
    %v1316 = vrot.slane %v1060, 2
    %v1317 = vsel %vm1205, %v1314, %v1316
    %v1318 = vrot.slane %v1061, 2
    %v1319 = vrot.slane %v1062, 2
    %v1320 = vsel %vm1205, %v1318, %v1319
    %v1321 = vrot.slane %v1063, 2
    %v1322 = vsel %vm1205, %v1319, %v1321
    %v1323 = vrot.slane %v1064, 2
    %v1324 = vsel %vm1205, %v1321, %v1323
    %v1325 = vrot.slane %v1065, 2
    %v1326 = vrot.slane %v1066, 2
    %v1327 = vsel %vm1205, %v1325, %v1326
    %v1328 = vrot.slane %v1067, 2
    %v1329 = vsel %vm1205, %v1326, %v1328
    %v1330 = vrot.slane %v1068, 2
    %v1331 = vsel %vm1205, %v1328, %v1330
    %v1332 = vrot.slane %v1069, 2
    %v1333 = vrot.slane %v1070, 2
    %v1334 = vsel %vm1205, %v1332, %v1333
    %v1335 = vrot.slane %v1071, 2
    %v1336 = vsel %vm1205, %v1333, %v1335
    %v1337 = vrot.slane %v1072, 2
    %v1338 = vsel %vm1205, %v1335, %v1337
    %v1339 = vrot.slane %v1073, 2
    %v1340 = vrot.slane %v1074, 2
    %v1341 = vsel %vm1205, %v1339, %v1340
    %v1342 = vrot.slane %v1075, 2
    %v1343 = vsel %vm1205, %v1340, %v1342
    %v1344 = vrot.slane %v1076, 2
    %v1345 = vsel %vm1205, %v1342, %v1344
    %v1346 = vrot.slane %v1077, 2
    %v1347 = vrot.slane %v1078, 2
    %v1348 = vsel %vm1205, %v1346, %v1347
    %v1349 = vrot.slane %v1079, 2
    %v1350 = vsel %vm1205, %v1347, %v1349
    %v1351 = vrot.slane %v1080, 2
    %v1352 = vsel %vm1205, %v1349, %v1351
    %v1353 = vrot.slane %v1081, 2
    %v1354 = vrot.slane %v1082, 2
    %v1355 = vsel %vm1205, %v1353, %v1354
    %v1356 = vrot.slane %v1083, 2
    %v1357 = vsel %vm1205, %v1354, %v1356
    %v1358 = vrot.slane %v1084, 2
    %v1359 = vsel %vm1205, %v1356, %v1358
    %v1360 = vrot.slane %v1085, 2
    %v1361 = vrot.slane %v1086, 2
    %v1362 = vsel %vm1205, %v1360, %v1361
    %v1363 = vrot.slane %v1087, 2
    %v1364 = vsel %vm1205, %v1361, %v1363
    %v1365 = vrot.slane %v1088, 2
    %v1366 = vsel %vm1205, %v1363, %v1365
    %v1367 = vrot.slane %v1089, 2
    %v1368 = vrot.slane %v1090, 2
    %v1369 = vsel %vm1205, %v1367, %v1368
    %v1370 = vrot.slane %v1091, 2
    %v1371 = vsel %vm1205, %v1368, %v1370
    %v1372 = vrot.slane %v1092, 2
    %v1373 = vsel %vm1205, %v1370, %v1372
    %v1374 = vrot.slane %v1093, 2
    %v1375 = vrot.slane %v1094, 2
    %v1376 = vsel %vm1205, %v1374, %v1375
    %v1377 = vrot.slane %v1095, 2
    %v1378 = vsel %vm1205, %v1375, %v1377
    %v1379 = vrot.slane %v1096, 2
    %v1380 = vsel %vm1205, %v1377, %v1379
    %v1381 = vrot.slane %v1097, 2
    %v1382 = vrot.slane %v1098, 2
    %v1383 = vsel %vm1205, %v1381, %v1382
    %v1384 = vrot.slane %v1099, 2
    %v1385 = vsel %vm1205, %v1382, %v1384
    %v1386 = vrot.slane %v1100, 2
    %v1387 = vsel %vm1205, %v1384, %v1386
    %v1492 = vadd.f32 %v891, %v1208
    %v1493 = vadd.f32 %v892, %v1210
    %v1494 = vadd.f32 %v893, %v1212
    %v1495 = vadd.f32 %v894, %v1211
    %v1496 = vadd.f32 %v895, %v1215
    %v1497 = vadd.f32 %v896, %v1217
    %v1498 = vadd.f32 %v897, %v1219
    %v1499 = vadd.f32 %v898, %v1218
    %v1500 = vadd.f32 %v899, %v1222
    %v1501 = vadd.f32 %v900, %v1224
    %v1502 = vadd.f32 %v901, %v1226
    %v1503 = vadd.f32 %v902, %v1225
    %v1504 = vadd.f32 %v903, %v1229
    %v1505 = vadd.f32 %v904, %v1231
    %v1506 = vadd.f32 %v905, %v1233
    %v1507 = vadd.f32 %v906, %v1232
    %v1508 = vadd.f32 %v907, %v1236
    %v1509 = vadd.f32 %v908, %v1238
    %v1510 = vadd.f32 %v909, %v1240
    %v1511 = vadd.f32 %v910, %v1239
    %v1512 = vadd.f32 %v911, %v1243
    %v1513 = vadd.f32 %v912, %v1245
    %v1514 = vadd.f32 %v913, %v1247
    %v1515 = vadd.f32 %v914, %v1246
    %v1516 = vadd.f32 %v915, %v1250
    %v1517 = vadd.f32 %v916, %v1252
    %v1518 = vadd.f32 %v917, %v1254
    %v1519 = vadd.f32 %v918, %v1253
    %v1520 = vadd.f32 %v919, %v1257
    %v1521 = vadd.f32 %v920, %v1259
    %v1522 = vadd.f32 %v921, %v1261
    %v1523 = vadd.f32 %v922, %v1260
    %v1524 = vadd.f32 %v923, %v1264
    %v1525 = vadd.f32 %v924, %v1266
    %v1526 = vadd.f32 %v925, %v1268
    %v1527 = vadd.f32 %v926, %v1267
    %v1528 = vadd.f32 %v927, %v1271
    %v1529 = vadd.f32 %v928, %v1273
    %v1530 = vadd.f32 %v929, %v1275
    %v1531 = vadd.f32 %v930, %v1274
    %v1532 = vadd.f32 %v931, %v1278
    %v1533 = vadd.f32 %v932, %v1280
    %v1534 = vadd.f32 %v933, %v1282
    %v1535 = vadd.f32 %v934, %v1281
    %v1536 = vadd.f32 %v935, %v1285
    %v1537 = vadd.f32 %v936, %v1287
    %v1538 = vadd.f32 %v937, %v1289
    %v1539 = vadd.f32 %v938, %v1288
    %v1540 = vadd.f32 %v939, %v1292
    %v1541 = vadd.f32 %v940, %v1294
    %v1542 = vadd.f32 %v941, %v1296
    %v1543 = vadd.f32 %v942, %v1295
    %v1544 = vadd.f32 %v943, %v1299
    %v1545 = vadd.f32 %v944, %v1301
    %v1546 = vadd.f32 %v945, %v1303
    %v1547 = vadd.f32 %v946, %v1302
    %v1548 = vadd.f32 %v947, %v1306
    %v1549 = vadd.f32 %v948, %v1308
    %v1550 = vadd.f32 %v949, %v1310
    %v1551 = vadd.f32 %v950, %v1309
    %v1552 = vadd.f32 %v951, %v1313
    %v1553 = vadd.f32 %v952, %v1315
    %v1554 = vadd.f32 %v953, %v1317
    %v1555 = vadd.f32 %v954, %v1316
    %v1556 = vadd.f32 %v955, %v1320
    %v1557 = vadd.f32 %v956, %v1322
    %v1558 = vadd.f32 %v957, %v1324
    %v1559 = vadd.f32 %v958, %v1323
    %v1560 = vadd.f32 %v959, %v1327
    %v1561 = vadd.f32 %v960, %v1329
    %v1562 = vadd.f32 %v961, %v1331
    %v1563 = vadd.f32 %v962, %v1330
    %v1564 = vadd.f32 %v963, %v1334
    %v1565 = vadd.f32 %v964, %v1336
    %v1566 = vadd.f32 %v965, %v1338
    %v1567 = vadd.f32 %v966, %v1337
    %v1568 = vadd.f32 %v967, %v1341
    %v1569 = vadd.f32 %v968, %v1343
    %v1570 = vadd.f32 %v969, %v1345
    %v1571 = vadd.f32 %v970, %v1344
    %v1572 = vadd.f32 %v971, %v1348
    %v1573 = vadd.f32 %v972, %v1350
    %v1574 = vadd.f32 %v973, %v1352
    %v1575 = vadd.f32 %v974, %v1351
    %v1576 = vadd.f32 %v975, %v1355
    %v1577 = vadd.f32 %v976, %v1357
    %v1578 = vadd.f32 %v977, %v1359
    %v1579 = vadd.f32 %v978, %v1358
    %v1580 = vadd.f32 %v979, %v1362
    %v1581 = vadd.f32 %v980, %v1364
    %v1582 = vadd.f32 %v981, %v1366
    %v1583 = vadd.f32 %v982, %v1365
    %v1584 = vadd.f32 %v983, %v1369
    %v1585 = vadd.f32 %v984, %v1371
    %v1586 = vadd.f32 %v985, %v1373
    %v1587 = vadd.f32 %v986, %v1372
    %v1588 = vadd.f32 %v987, %v1376
    %v1589 = vadd.f32 %v988, %v1378
    %v1590 = vadd.f32 %v989, %v1380
    %v1591 = vadd.f32 %v990, %v1379
    %v1592 = vadd.f32 %v991, %v1383
    %v1593 = vadd.f32 %v992, %v1385
    %v1594 = vadd.f32 %v993, %v1387
    %v1595 = vadd.f32 %v994, %v1386
    %s1596 = sld [smem:[#allocation8 + $0x80]]
    %v1597 = vstv %s1596
    %v1598 = vmul.f32 %v180, %v1597
    %v1599 = vmul.f32 %v181, %v1597
    %v1600 = vmul.f32 %v182, %v1597
    %v1601 = vmul.f32 %v183, %v1597
    %v1602 = vmul.f32 %v184, %v1597
    %v1603 = vmul.f32 %v185, %v1597
    %v1604 = vmul.f32 %v186, %v1597
    %v1605 = vmul.f32 %v187, %v1597
    %v1606 = vmul.f32 %v188, %v1597
    %v1607 = vmul.f32 %v189, %v1597
    %v1608 = vmul.f32 %v190, %v1597
    %v1609 = vmul.f32 %v191, %v1597
    %v1610 = vmul.f32 %v192, %v1597
    %v1611 = vmul.f32 %v193, %v1597
    %v1612 = vmul.f32 %v194, %v1597
    %v1613 = vmul.f32 %v195, %v1597
    %v1614 = vmul.f32 %v196, %v1597
    %v1615 = vmul.f32 %v197, %v1597
    %v1616 = vmul.f32 %v198, %v1597
    %v1617 = vmul.f32 %v199, %v1597
    %v1618 = vmul.f32 %v200, %v1597
    %v1619 = vmul.f32 %v201, %v1597
    %v1620 = vmul.f32 %v202, %v1597
    %v1621 = vmul.f32 %v203, %v1597
    %v1622 = vmul.f32 %v204, %v1597
    %v1623 = vmul.f32 %v205, %v1597
    %v1624 = vmul.f32 %v206, %v1597
    %v1625 = vmul.f32 %v207, %v1597
    %v1626 = vmul.f32 %v208, %v1597
    %v1627 = vmul.f32 %v209, %v1597
    %v1628 = vmul.f32 %v210, %v1597
    %v1629 = vmul.f32 %v211, %v1597
    %v1630 = vmul.f32 %v212, %v1597
    %v1631 = vmul.f32 %v213, %v1597
    %v1632 = vmul.f32 %v214, %v1597
    %v1633 = vmul.f32 %v215, %v1597
    %v1634 = vmul.f32 %v216, %v1597
    %v1635 = vmul.f32 %v217, %v1597
    %v1636 = vmul.f32 %v218, %v1597
    %v1637 = vmul.f32 %v219, %v1597
    %v1638 = vmul.f32 %v220, %v1597
    %v1639 = vmul.f32 %v221, %v1597
    %v1640 = vmul.f32 %v222, %v1597
    %v1641 = vmul.f32 %v223, %v1597
    %v1642 = vmul.f32 %v224, %v1597
    %v1643 = vmul.f32 %v225, %v1597
    %v1644 = vmul.f32 %v226, %v1597
    %v1645 = vmul.f32 %v227, %v1597
    %v1646 = vmul.f32 %v228, %v1597
    %v1647 = vmul.f32 %v229, %v1597
    %v1648 = vmul.f32 %v230, %v1597
    %v1649 = vmul.f32 %v231, %v1597
    %v1650 = vmul.f32 %v232, %v1597
    %v1651 = vmul.f32 %v233, %v1597
    %v1652 = vmul.f32 %v234, %v1597
    %v1653 = vmul.f32 %v235, %v1597
    %v1654 = vmul.f32 %v236, %v1597
    %v1655 = vmul.f32 %v237, %v1597
    %v1656 = vmul.f32 %v238, %v1597
    %v1657 = vmul.f32 %v239, %v1597
    %v1658 = vmul.f32 %v240, %v1597
    %v1659 = vmul.f32 %v241, %v1597
    %v1660 = vmul.f32 %v242, %v1597
    %v1661 = vmul.f32 %v243, %v1597
    %v1662 = vmul.f32 %v244, %v1597
    %v1663 = vmul.f32 %v245, %v1597
    %v1664 = vmul.f32 %v246, %v1597
    %v1665 = vmul.f32 %v247, %v1597
    %v1666 = vmul.f32 %v248, %v1597
    %v1667 = vmul.f32 %v249, %v1597
    %v1668 = vmul.f32 %v250, %v1597
    %v1669 = vmul.f32 %v251, %v1597
    %v1670 = vmul.f32 %v252, %v1597
    %v1671 = vmul.f32 %v253, %v1597
    %v1672 = vmul.f32 %v254, %v1597
    %v1673 = vmul.f32 %v255, %v1597
    %v1674 = vmul.f32 %v256, %v1597
    %v1675 = vmul.f32 %v257, %v1597
    %v1676 = vmul.f32 %v258, %v1597
    %v1677 = vmul.f32 %v259, %v1597
    %v1678 = vmul.f32 %v260, %v1597
    %v1679 = vmul.f32 %v261, %v1597
    %v1680 = vmul.f32 %v262, %v1597
    %v1681 = vmul.f32 %v263, %v1597
    %v1682 = vmul.f32 %v264, %v1597
    %v1683 = vmul.f32 %v265, %v1597
    %v1684 = vmul.f32 %v266, %v1597
    %v1685 = vmul.f32 %v267, %v1597
    %v1686 = vmul.f32 %v268, %v1597
    %v1687 = vmul.f32 %v269, %v1597
    %v1688 = vmul.f32 %v270, %v1597
    %v1689 = vmul.f32 %v271, %v1597
    %v1690 = vmul.f32 %v272, %v1597
    %v1691 = vmul.f32 %v273, %v1597
    %v1692 = vmul.f32 %v274, %v1597
    %v1693 = vmul.f32 %v275, %v1597
    %v1694 = vmul.f32 %v276, %v1597
    %v1695 = vmul.f32 %v277, %v1597
    %v1696 = vmul.f32 %v278, %v1597
    %v1697 = vmul.f32 %v279, %v1597
    %v1698 = vmul.f32 %v280, %v1597
    %v1699 = vmul.f32 %v281, %v1597
    %v1700 = vmul.f32 %v282, %v1597
    %v1701 = vmul.f32 %v283, %v1597
    %v1702 = vadd.f32 %v1492, %v1598
    %v1703 = vadd.f32 %v1493, %v1599
    %v1704 = vadd.f32 %v1494, %v1600
    %v1705 = vadd.f32 %v1495, %v1601
    %v1706 = vadd.f32 %v1496, %v1602
    %v1707 = vadd.f32 %v1497, %v1603
    %v1708 = vadd.f32 %v1498, %v1604
    %v1709 = vadd.f32 %v1499, %v1605
    %v1710 = vadd.f32 %v1500, %v1606
    %v1711 = vadd.f32 %v1501, %v1607
    %v1712 = vadd.f32 %v1502, %v1608
    %v1713 = vadd.f32 %v1503, %v1609
    %v1714 = vadd.f32 %v1504, %v1610
    %v1715 = vadd.f32 %v1505, %v1611
    %v1716 = vadd.f32 %v1506, %v1612
    %v1717 = vadd.f32 %v1507, %v1613
    %v1718 = vadd.f32 %v1508, %v1614
    %v1719 = vadd.f32 %v1509, %v1615
    %v1720 = vadd.f32 %v1510, %v1616
    %v1721 = vadd.f32 %v1511, %v1617
    %v1722 = vadd.f32 %v1512, %v1618
    %v1723 = vadd.f32 %v1513, %v1619
    %v1724 = vadd.f32 %v1514, %v1620
    %v1725 = vadd.f32 %v1515, %v1621
    %v1726 = vadd.f32 %v1516, %v1622
    %v1727 = vadd.f32 %v1517, %v1623
    %v1728 = vadd.f32 %v1518, %v1624
    %v1729 = vadd.f32 %v1519, %v1625
    %v1730 = vadd.f32 %v1520, %v1626
    %v1731 = vadd.f32 %v1521, %v1627
    %v1732 = vadd.f32 %v1522, %v1628
    %v1733 = vadd.f32 %v1523, %v1629
    %v1734 = vadd.f32 %v1524, %v1630
    %v1735 = vadd.f32 %v1525, %v1631
    %v1736 = vadd.f32 %v1526, %v1632
    %v1737 = vadd.f32 %v1527, %v1633
    %v1738 = vadd.f32 %v1528, %v1634
    %v1739 = vadd.f32 %v1529, %v1635
    %v1740 = vadd.f32 %v1530, %v1636
    %v1741 = vadd.f32 %v1531, %v1637
    %v1742 = vadd.f32 %v1532, %v1638
    %v1743 = vadd.f32 %v1533, %v1639
    %v1744 = vadd.f32 %v1534, %v1640
    %v1745 = vadd.f32 %v1535, %v1641
    %v1746 = vadd.f32 %v1536, %v1642
    %v1747 = vadd.f32 %v1537, %v1643
    %v1748 = vadd.f32 %v1538, %v1644
    %v1749 = vadd.f32 %v1539, %v1645
    %v1750 = vadd.f32 %v1540, %v1646
    %v1751 = vadd.f32 %v1541, %v1647
    %v1752 = vadd.f32 %v1542, %v1648
    %v1753 = vadd.f32 %v1543, %v1649
    %v1754 = vadd.f32 %v1544, %v1650
    %v1755 = vadd.f32 %v1545, %v1651
    %v1756 = vadd.f32 %v1546, %v1652
    %v1757 = vadd.f32 %v1547, %v1653
    %v1758 = vadd.f32 %v1548, %v1654
    %v1759 = vadd.f32 %v1549, %v1655
    %v1760 = vadd.f32 %v1550, %v1656
    %v1761 = vadd.f32 %v1551, %v1657
    %v1762 = vadd.f32 %v1552, %v1658
    %v1763 = vadd.f32 %v1553, %v1659
    %v1764 = vadd.f32 %v1554, %v1660
    %v1765 = vadd.f32 %v1555, %v1661
    %v1766 = vadd.f32 %v1556, %v1662
    %v1767 = vadd.f32 %v1557, %v1663
    %v1768 = vadd.f32 %v1558, %v1664
    %v1769 = vadd.f32 %v1559, %v1665
    %v1770 = vadd.f32 %v1560, %v1666
    %v1771 = vadd.f32 %v1561, %v1667
    %v1772 = vadd.f32 %v1562, %v1668
    %v1773 = vadd.f32 %v1563, %v1669
    %v1774 = vadd.f32 %v1564, %v1670
    %v1775 = vadd.f32 %v1565, %v1671
    %v1776 = vadd.f32 %v1566, %v1672
    %v1777 = vadd.f32 %v1567, %v1673
    %v1778 = vadd.f32 %v1568, %v1674
    %v1779 = vadd.f32 %v1569, %v1675
    %v1780 = vadd.f32 %v1570, %v1676
    %v1781 = vadd.f32 %v1571, %v1677
    %v1782 = vadd.f32 %v1572, %v1678
    %v1783 = vadd.f32 %v1573, %v1679
    %v1784 = vadd.f32 %v1574, %v1680
    %v1785 = vadd.f32 %v1575, %v1681
    %v1786 = vadd.f32 %v1576, %v1682
    %v1787 = vadd.f32 %v1577, %v1683
    %v1788 = vadd.f32 %v1578, %v1684
    %v1789 = vadd.f32 %v1579, %v1685
    %v1790 = vadd.f32 %v1580, %v1686
    %v1791 = vadd.f32 %v1581, %v1687
    %v1792 = vadd.f32 %v1582, %v1688
    %v1793 = vadd.f32 %v1583, %v1689
    %v1794 = vadd.f32 %v1584, %v1690
    %v1795 = vadd.f32 %v1585, %v1691
    %v1796 = vadd.f32 %v1586, %v1692
    %v1797 = vadd.f32 %v1587, %v1693
    %v1798 = vadd.f32 %v1588, %v1694
    %v1799 = vadd.f32 %v1589, %v1695
    %v1800 = vadd.f32 %v1590, %v1696
    %v1801 = vadd.f32 %v1591, %v1697
    %v1802 = vadd.f32 %v1592, %v1698
    %v1803 = vadd.f32 %v1593, %v1699
    %v1804 = vadd.f32 %v1594, %v1700
    %v1805 = vadd.f32 %v1595, %v1701
    %s1806 = sld [smem:[#allocation8 + $0x81]]
    %v1807 = vstv %s1806
    %v1808 = vmul.f32 %v180, %v1807
    %v1809 = vmul.f32 %v181, %v1807
    %v1810 = vmul.f32 %v182, %v1807
    %v1811 = vmul.f32 %v183, %v1807
    %v1812 = vmul.f32 %v184, %v1807
    %v1813 = vmul.f32 %v185, %v1807
    %v1814 = vmul.f32 %v186, %v1807
    %v1815 = vmul.f32 %v187, %v1807
    %v1816 = vmul.f32 %v188, %v1807
    %v1817 = vmul.f32 %v189, %v1807
    %v1818 = vmul.f32 %v190, %v1807
    %v1819 = vmul.f32 %v191, %v1807
    %v1820 = vmul.f32 %v192, %v1807
    %v1821 = vmul.f32 %v193, %v1807
    %v1822 = vmul.f32 %v194, %v1807
    %v1823 = vmul.f32 %v195, %v1807
    %v1824 = vmul.f32 %v196, %v1807
    %v1825 = vmul.f32 %v197, %v1807
    %v1826 = vmul.f32 %v198, %v1807
    %v1827 = vmul.f32 %v199, %v1807
    %v1828 = vmul.f32 %v200, %v1807
    %v1829 = vmul.f32 %v201, %v1807
    %v1830 = vmul.f32 %v202, %v1807
    %v1831 = vmul.f32 %v203, %v1807
    %v1832 = vmul.f32 %v204, %v1807
    %v1833 = vmul.f32 %v205, %v1807
    %v1834 = vmul.f32 %v206, %v1807
    %v1835 = vmul.f32 %v207, %v1807
    %v1836 = vmul.f32 %v208, %v1807
    %v1837 = vmul.f32 %v209, %v1807
    %v1838 = vmul.f32 %v210, %v1807
    %v1839 = vmul.f32 %v211, %v1807
    %v1840 = vmul.f32 %v212, %v1807
    %v1841 = vmul.f32 %v213, %v1807
    %v1842 = vmul.f32 %v214, %v1807
    %v1843 = vmul.f32 %v215, %v1807
    %v1844 = vmul.f32 %v216, %v1807
    %v1845 = vmul.f32 %v217, %v1807
    %v1846 = vmul.f32 %v218, %v1807
    %v1847 = vmul.f32 %v219, %v1807
    %v1848 = vmul.f32 %v220, %v1807
    %v1849 = vmul.f32 %v221, %v1807
    %v1850 = vmul.f32 %v222, %v1807
    %v1851 = vmul.f32 %v223, %v1807
    %v1852 = vmul.f32 %v224, %v1807
    %v1853 = vmul.f32 %v225, %v1807
    %v1854 = vmul.f32 %v226, %v1807
    %v1855 = vmul.f32 %v227, %v1807
    %v1856 = vmul.f32 %v228, %v1807
    %v1857 = vmul.f32 %v229, %v1807
    %v1858 = vmul.f32 %v230, %v1807
    %v1859 = vmul.f32 %v231, %v1807
    %v1860 = vmul.f32 %v232, %v1807
    %v1861 = vmul.f32 %v233, %v1807
    %v1862 = vmul.f32 %v234, %v1807
    %v1863 = vmul.f32 %v235, %v1807
    %v1864 = vmul.f32 %v236, %v1807
    %v1865 = vmul.f32 %v237, %v1807
    %v1866 = vmul.f32 %v238, %v1807
    %v1867 = vmul.f32 %v239, %v1807
    %v1868 = vmul.f32 %v240, %v1807
    %v1869 = vmul.f32 %v241, %v1807
    %v1870 = vmul.f32 %v242, %v1807
    %v1871 = vmul.f32 %v243, %v1807
    %v1872 = vmul.f32 %v244, %v1807
    %v1873 = vmul.f32 %v245, %v1807
    %v1874 = vmul.f32 %v246, %v1807
    %v1875 = vmul.f32 %v247, %v1807
    %v1876 = vmul.f32 %v248, %v1807
    %v1877 = vmul.f32 %v249, %v1807
    %v1878 = vmul.f32 %v250, %v1807
    %v1879 = vmul.f32 %v251, %v1807
    %v1880 = vmul.f32 %v252, %v1807
    %v1881 = vmul.f32 %v253, %v1807
    %v1882 = vmul.f32 %v254, %v1807
    %v1883 = vmul.f32 %v255, %v1807
    %v1884 = vmul.f32 %v256, %v1807
    %v1885 = vmul.f32 %v257, %v1807
    %v1886 = vmul.f32 %v258, %v1807
    %v1887 = vmul.f32 %v259, %v1807
    %v1888 = vmul.f32 %v260, %v1807
    %v1889 = vmul.f32 %v261, %v1807
    %v1890 = vmul.f32 %v262, %v1807
    %v1891 = vmul.f32 %v263, %v1807
    %v1892 = vmul.f32 %v264, %v1807
    %v1893 = vmul.f32 %v265, %v1807
    %v1894 = vmul.f32 %v266, %v1807
    %v1895 = vmul.f32 %v267, %v1807
    %v1896 = vmul.f32 %v268, %v1807
    %v1897 = vmul.f32 %v269, %v1807
    %v1898 = vmul.f32 %v270, %v1807
    %v1899 = vmul.f32 %v271, %v1807
    %v1900 = vmul.f32 %v272, %v1807
    %v1901 = vmul.f32 %v273, %v1807
    %v1902 = vmul.f32 %v274, %v1807
    %v1903 = vmul.f32 %v275, %v1807
    %v1904 = vmul.f32 %v276, %v1807
    %v1905 = vmul.f32 %v277, %v1807
    %v1906 = vmul.f32 %v278, %v1807
    %v1907 = vmul.f32 %v279, %v1807
    %v1908 = vmul.f32 %v280, %v1807
    %v1909 = vmul.f32 %v281, %v1807
    %v1910 = vmul.f32 %v282, %v1807
    %v1911 = vmul.f32 %v283, %v1807
    %v2016 = vrot.slane %v1808, 1
    %v2017 = vrot.slane %v1809, 1
    %v2018 = vsel %vm604, %v2016, %v2017
    %v2019 = vrot.slane %v1810, 1
    %v2020 = vsel %vm604, %v2017, %v2019
    %v2021 = vrot.slane %v1811, 1
    %v2022 = vsel %vm604, %v2019, %v2021
    %v2023 = vrot.slane %v1812, 1
    %v2024 = vrot.slane %v1813, 1
    %v2025 = vsel %vm604, %v2023, %v2024
    %v2026 = vrot.slane %v1814, 1
    %v2027 = vsel %vm604, %v2024, %v2026
    %v2028 = vrot.slane %v1815, 1
    %v2029 = vsel %vm604, %v2026, %v2028
    %v2030 = vrot.slane %v1816, 1
    %v2031 = vrot.slane %v1817, 1
    %v2032 = vsel %vm604, %v2030, %v2031
    %v2033 = vrot.slane %v1818, 1
    %v2034 = vsel %vm604, %v2031, %v2033
    %v2035 = vrot.slane %v1819, 1
    %v2036 = vsel %vm604, %v2033, %v2035
    %v2037 = vrot.slane %v1820, 1
    %v2038 = vrot.slane %v1821, 1
    %v2039 = vsel %vm604, %v2037, %v2038
    %v2040 = vrot.slane %v1822, 1
    %v2041 = vsel %vm604, %v2038, %v2040
    %v2042 = vrot.slane %v1823, 1
    %v2043 = vsel %vm604, %v2040, %v2042
    %v2044 = vrot.slane %v1824, 1
    %v2045 = vrot.slane %v1825, 1
    %v2046 = vsel %vm604, %v2044, %v2045
    %v2047 = vrot.slane %v1826, 1
    %v2048 = vsel %vm604, %v2045, %v2047
    %v2049 = vrot.slane %v1827, 1
    %v2050 = vsel %vm604, %v2047, %v2049
    %v2051 = vrot.slane %v1828, 1
    %v2052 = vrot.slane %v1829, 1
    %v2053 = vsel %vm604, %v2051, %v2052
    %v2054 = vrot.slane %v1830, 1
    %v2055 = vsel %vm604, %v2052, %v2054
    %v2056 = vrot.slane %v1831, 1
    %v2057 = vsel %vm604, %v2054, %v2056
    %v2058 = vrot.slane %v1832, 1
    %v2059 = vrot.slane %v1833, 1
    %v2060 = vsel %vm604, %v2058, %v2059
    %v2061 = vrot.slane %v1834, 1
    %v2062 = vsel %vm604, %v2059, %v2061
    %v2063 = vrot.slane %v1835, 1
    %v2064 = vsel %vm604, %v2061, %v2063
    %v2065 = vrot.slane %v1836, 1
    %v2066 = vrot.slane %v1837, 1
    %v2067 = vsel %vm604, %v2065, %v2066
    %v2068 = vrot.slane %v1838, 1
    %v2069 = vsel %vm604, %v2066, %v2068
    %v2070 = vrot.slane %v1839, 1
    %v2071 = vsel %vm604, %v2068, %v2070
    %v2072 = vrot.slane %v1840, 1
    %v2073 = vrot.slane %v1841, 1
    %v2074 = vsel %vm604, %v2072, %v2073
    %v2075 = vrot.slane %v1842, 1
    %v2076 = vsel %vm604, %v2073, %v2075
    %v2077 = vrot.slane %v1843, 1
    %v2078 = vsel %vm604, %v2075, %v2077
    %v2079 = vrot.slane %v1844, 1
    %v2080 = vrot.slane %v1845, 1
    %v2081 = vsel %vm604, %v2079, %v2080
    %v2082 = vrot.slane %v1846, 1
    %v2083 = vsel %vm604, %v2080, %v2082
    %v2084 = vrot.slane %v1847, 1
    %v2085 = vsel %vm604, %v2082, %v2084
    %v2086 = vrot.slane %v1848, 1
    %v2087 = vrot.slane %v1849, 1
    %v2088 = vsel %vm604, %v2086, %v2087
    %v2089 = vrot.slane %v1850, 1
    %v2090 = vsel %vm604, %v2087, %v2089
    %v2091 = vrot.slane %v1851, 1
    %v2092 = vsel %vm604, %v2089, %v2091
    %v2093 = vrot.slane %v1852, 1
    %v2094 = vrot.slane %v1853, 1
    %v2095 = vsel %vm604, %v2093, %v2094
    %v2096 = vrot.slane %v1854, 1
    %v2097 = vsel %vm604, %v2094, %v2096
    %v2098 = vrot.slane %v1855, 1
    %v2099 = vsel %vm604, %v2096, %v2098
    %v2100 = vrot.slane %v1856, 1
    %v2101 = vrot.slane %v1857, 1
    %v2102 = vsel %vm604, %v2100, %v2101
    %v2103 = vrot.slane %v1858, 1
    %v2104 = vsel %vm604, %v2101, %v2103
    %v2105 = vrot.slane %v1859, 1
    %v2106 = vsel %vm604, %v2103, %v2105
    %v2107 = vrot.slane %v1860, 1
    %v2108 = vrot.slane %v1861, 1
    %v2109 = vsel %vm604, %v2107, %v2108
    %v2110 = vrot.slane %v1862, 1
    %v2111 = vsel %vm604, %v2108, %v2110
    %v2112 = vrot.slane %v1863, 1
    %v2113 = vsel %vm604, %v2110, %v2112
    %v2114 = vrot.slane %v1864, 1
    %v2115 = vrot.slane %v1865, 1
    %v2116 = vsel %vm604, %v2114, %v2115
    %v2117 = vrot.slane %v1866, 1
    %v2118 = vsel %vm604, %v2115, %v2117
    %v2119 = vrot.slane %v1867, 1
    %v2120 = vsel %vm604, %v2117, %v2119
    %v2121 = vrot.slane %v1868, 1
    %v2122 = vrot.slane %v1869, 1
    %v2123 = vsel %vm604, %v2121, %v2122
    %v2124 = vrot.slane %v1870, 1
    %v2125 = vsel %vm604, %v2122, %v2124
    %v2126 = vrot.slane %v1871, 1
    %v2127 = vsel %vm604, %v2124, %v2126
    %v2128 = vrot.slane %v1872, 1
    %v2129 = vrot.slane %v1873, 1
    %v2130 = vsel %vm604, %v2128, %v2129
    %v2131 = vrot.slane %v1874, 1
    %v2132 = vsel %vm604, %v2129, %v2131
    %v2133 = vrot.slane %v1875, 1
    %v2134 = vsel %vm604, %v2131, %v2133
    %v2135 = vrot.slane %v1876, 1
    %v2136 = vrot.slane %v1877, 1
    %v2137 = vsel %vm604, %v2135, %v2136
    %v2138 = vrot.slane %v1878, 1
    %v2139 = vsel %vm604, %v2136, %v2138
    %v2140 = vrot.slane %v1879, 1
    %v2141 = vsel %vm604, %v2138, %v2140
    %v2142 = vrot.slane %v1880, 1
    %v2143 = vrot.slane %v1881, 1
    %v2144 = vsel %vm604, %v2142, %v2143
    %v2145 = vrot.slane %v1882, 1
    %v2146 = vsel %vm604, %v2143, %v2145
    %v2147 = vrot.slane %v1883, 1
    %v2148 = vsel %vm604, %v2145, %v2147
    %v2149 = vrot.slane %v1884, 1
    %v2150 = vrot.slane %v1885, 1
    %v2151 = vsel %vm604, %v2149, %v2150
    %v2152 = vrot.slane %v1886, 1
    %v2153 = vsel %vm604, %v2150, %v2152
    %v2154 = vrot.slane %v1887, 1
    %v2155 = vsel %vm604, %v2152, %v2154
    %v2156 = vrot.slane %v1888, 1
    %v2157 = vrot.slane %v1889, 1
    %v2158 = vsel %vm604, %v2156, %v2157
    %v2159 = vrot.slane %v1890, 1
    %v2160 = vsel %vm604, %v2157, %v2159
    %v2161 = vrot.slane %v1891, 1
    %v2162 = vsel %vm604, %v2159, %v2161
    %v2163 = vrot.slane %v1892, 1
    %v2164 = vrot.slane %v1893, 1
    %v2165 = vsel %vm604, %v2163, %v2164
    %v2166 = vrot.slane %v1894, 1
    %v2167 = vsel %vm604, %v2164, %v2166
    %v2168 = vrot.slane %v1895, 1
    %v2169 = vsel %vm604, %v2166, %v2168
    %v2170 = vrot.slane %v1896, 1
    %v2171 = vrot.slane %v1897, 1
    %v2172 = vsel %vm604, %v2170, %v2171
    %v2173 = vrot.slane %v1898, 1
    %v2174 = vsel %vm604, %v2171, %v2173
    %v2175 = vrot.slane %v1899, 1
    %v2176 = vsel %vm604, %v2173, %v2175
    %v2177 = vrot.slane %v1900, 1
    %v2178 = vrot.slane %v1901, 1
    %v2179 = vsel %vm604, %v2177, %v2178
    %v2180 = vrot.slane %v1902, 1
    %v2181 = vsel %vm604, %v2178, %v2180
    %v2182 = vrot.slane %v1903, 1
    %v2183 = vsel %vm604, %v2180, %v2182
    %v2184 = vrot.slane %v1904, 1
    %v2185 = vrot.slane %v1905, 1
    %v2186 = vsel %vm604, %v2184, %v2185
    %v2187 = vrot.slane %v1906, 1
    %v2188 = vsel %vm604, %v2185, %v2187
    %v2189 = vrot.slane %v1907, 1
    %v2190 = vsel %vm604, %v2187, %v2189
    %v2191 = vrot.slane %v1908, 1
    %v2192 = vrot.slane %v1909, 1
    %v2193 = vsel %vm604, %v2191, %v2192
    %v2194 = vrot.slane %v1910, 1
    %v2195 = vsel %vm604, %v2192, %v2194
    %v2196 = vrot.slane %v1911, 1
    %v2197 = vsel %vm604, %v2194, %v2196
    %v2302 = vadd.f32 %v1702, %v2018
    %v2303 = vadd.f32 %v1703, %v2020
    %v2304 = vadd.f32 %v1704, %v2022
    %v2305 = vadd.f32 %v1705, %v2021
    %v2306 = vadd.f32 %v1706, %v2025
    %v2307 = vadd.f32 %v1707, %v2027
    %v2308 = vadd.f32 %v1708, %v2029
    %v2309 = vadd.f32 %v1709, %v2028
    %v2310 = vadd.f32 %v1710, %v2032
    %v2311 = vadd.f32 %v1711, %v2034
    %v2312 = vadd.f32 %v1712, %v2036
    %v2313 = vadd.f32 %v1713, %v2035
    %v2314 = vadd.f32 %v1714, %v2039
    %v2315 = vadd.f32 %v1715, %v2041
    %v2316 = vadd.f32 %v1716, %v2043
    %v2317 = vadd.f32 %v1717, %v2042
    %v2318 = vadd.f32 %v1718, %v2046
    %v2319 = vadd.f32 %v1719, %v2048
    %v2320 = vadd.f32 %v1720, %v2050
    %v2321 = vadd.f32 %v1721, %v2049
    %v2322 = vadd.f32 %v1722, %v2053
    %v2323 = vadd.f32 %v1723, %v2055
    %v2324 = vadd.f32 %v1724, %v2057
    %v2325 = vadd.f32 %v1725, %v2056
    %v2326 = vadd.f32 %v1726, %v2060
    %v2327 = vadd.f32 %v1727, %v2062
    %v2328 = vadd.f32 %v1728, %v2064
    %v2329 = vadd.f32 %v1729, %v2063
    %v2330 = vadd.f32 %v1730, %v2067
    %v2331 = vadd.f32 %v1731, %v2069
    %v2332 = vadd.f32 %v1732, %v2071
    %v2333 = vadd.f32 %v1733, %v2070
    %v2334 = vadd.f32 %v1734, %v2074
    %v2335 = vadd.f32 %v1735, %v2076
    %v2336 = vadd.f32 %v1736, %v2078
    %v2337 = vadd.f32 %v1737, %v2077
    %v2338 = vadd.f32 %v1738, %v2081
    %v2339 = vadd.f32 %v1739, %v2083
    %v2340 = vadd.f32 %v1740, %v2085
    %v2341 = vadd.f32 %v1741, %v2084
    %v2342 = vadd.f32 %v1742, %v2088
    %v2343 = vadd.f32 %v1743, %v2090
    %v2344 = vadd.f32 %v1744, %v2092
    %v2345 = vadd.f32 %v1745, %v2091
    %v2346 = vadd.f32 %v1746, %v2095
    %v2347 = vadd.f32 %v1747, %v2097
    %v2348 = vadd.f32 %v1748, %v2099
    %v2349 = vadd.f32 %v1749, %v2098
    %v2350 = vadd.f32 %v1750, %v2102
    %v2351 = vadd.f32 %v1751, %v2104
    %v2352 = vadd.f32 %v1752, %v2106
    %v2353 = vadd.f32 %v1753, %v2105
    %v2354 = vadd.f32 %v1754, %v2109
    %v2355 = vadd.f32 %v1755, %v2111
    %v2356 = vadd.f32 %v1756, %v2113
    %v2357 = vadd.f32 %v1757, %v2112
    %v2358 = vadd.f32 %v1758, %v2116
    %v2359 = vadd.f32 %v1759, %v2118
    %v2360 = vadd.f32 %v1760, %v2120
    %v2361 = vadd.f32 %v1761, %v2119
    %v2362 = vadd.f32 %v1762, %v2123
    %v2363 = vadd.f32 %v1763, %v2125
    %v2364 = vadd.f32 %v1764, %v2127
    %v2365 = vadd.f32 %v1765, %v2126
    %v2366 = vadd.f32 %v1766, %v2130
    %v2367 = vadd.f32 %v1767, %v2132
    %v2368 = vadd.f32 %v1768, %v2134
    %v2369 = vadd.f32 %v1769, %v2133
    %v2370 = vadd.f32 %v1770, %v2137
    %v2371 = vadd.f32 %v1771, %v2139
    %v2372 = vadd.f32 %v1772, %v2141
    %v2373 = vadd.f32 %v1773, %v2140
    %v2374 = vadd.f32 %v1774, %v2144
    %v2375 = vadd.f32 %v1775, %v2146
    %v2376 = vadd.f32 %v1776, %v2148
    %v2377 = vadd.f32 %v1777, %v2147
    %v2378 = vadd.f32 %v1778, %v2151
    %v2379 = vadd.f32 %v1779, %v2153
    %v2380 = vadd.f32 %v1780, %v2155
    %v2381 = vadd.f32 %v1781, %v2154
    %v2382 = vadd.f32 %v1782, %v2158
    %v2383 = vadd.f32 %v1783, %v2160
    %v2384 = vadd.f32 %v1784, %v2162
    %v2385 = vadd.f32 %v1785, %v2161
    %v2386 = vadd.f32 %v1786, %v2165
    %v2387 = vadd.f32 %v1787, %v2167
    %v2388 = vadd.f32 %v1788, %v2169
    %v2389 = vadd.f32 %v1789, %v2168
    %v2390 = vadd.f32 %v1790, %v2172
    %v2391 = vadd.f32 %v1791, %v2174
    %v2392 = vadd.f32 %v1792, %v2176
    %v2393 = vadd.f32 %v1793, %v2175
    %v2394 = vadd.f32 %v1794, %v2179
    %v2395 = vadd.f32 %v1795, %v2181
    %v2396 = vadd.f32 %v1796, %v2183
    %v2397 = vadd.f32 %v1797, %v2182
    %v2398 = vadd.f32 %v1798, %v2186
    %v2399 = vadd.f32 %v1799, %v2188
    %v2400 = vadd.f32 %v1800, %v2190
    %v2401 = vadd.f32 %v1801, %v2189
    %v2402 = vadd.f32 %v1802, %v2193
    %v2403 = vadd.f32 %v1803, %v2195
    %v2404 = vadd.f32 %v1804, %v2197
    %v2405 = vadd.f32 %v1805, %v2196
    %s2406 = sld [smem:[#allocation8 + $0x82]]
    %v2407 = vstv %s2406
    %v2408 = vmul.f32 %v180, %v2407
    %v2409 = vmul.f32 %v181, %v2407
    %v2410 = vmul.f32 %v182, %v2407
    %v2411 = vmul.f32 %v183, %v2407
    %v2412 = vmul.f32 %v184, %v2407
    %v2413 = vmul.f32 %v185, %v2407
    %v2414 = vmul.f32 %v186, %v2407
    %v2415 = vmul.f32 %v187, %v2407
    %v2416 = vmul.f32 %v188, %v2407
    %v2417 = vmul.f32 %v189, %v2407
    %v2418 = vmul.f32 %v190, %v2407
    %v2419 = vmul.f32 %v191, %v2407
    %v2420 = vmul.f32 %v192, %v2407
    %v2421 = vmul.f32 %v193, %v2407
    %v2422 = vmul.f32 %v194, %v2407
    %v2423 = vmul.f32 %v195, %v2407
    %v2424 = vmul.f32 %v196, %v2407
    %v2425 = vmul.f32 %v197, %v2407
    %v2426 = vmul.f32 %v198, %v2407
    %v2427 = vmul.f32 %v199, %v2407
    %v2428 = vmul.f32 %v200, %v2407
    %v2429 = vmul.f32 %v201, %v2407
    %v2430 = vmul.f32 %v202, %v2407
    %v2431 = vmul.f32 %v203, %v2407
    %v2432 = vmul.f32 %v204, %v2407
    %v2433 = vmul.f32 %v205, %v2407
    %v2434 = vmul.f32 %v206, %v2407
    %v2435 = vmul.f32 %v207, %v2407
    %v2436 = vmul.f32 %v208, %v2407
    %v2437 = vmul.f32 %v209, %v2407
    %v2438 = vmul.f32 %v210, %v2407
    %v2439 = vmul.f32 %v211, %v2407
    %v2440 = vmul.f32 %v212, %v2407
    %v2441 = vmul.f32 %v213, %v2407
    %v2442 = vmul.f32 %v214, %v2407
    %v2443 = vmul.f32 %v215, %v2407
    %v2444 = vmul.f32 %v216, %v2407
    %v2445 = vmul.f32 %v217, %v2407
    %v2446 = vmul.f32 %v218, %v2407
    %v2447 = vmul.f32 %v219, %v2407
    %v2448 = vmul.f32 %v220, %v2407
    %v2449 = vmul.f32 %v221, %v2407
    %v2450 = vmul.f32 %v222, %v2407
    %v2451 = vmul.f32 %v223, %v2407
    %v2452 = vmul.f32 %v224, %v2407
    %v2453 = vmul.f32 %v225, %v2407
    %v2454 = vmul.f32 %v226, %v2407
    %v2455 = vmul.f32 %v227, %v2407
    %v2456 = vmul.f32 %v228, %v2407
    %v2457 = vmul.f32 %v229, %v2407
    %v2458 = vmul.f32 %v230, %v2407
    %v2459 = vmul.f32 %v231, %v2407
    %v2460 = vmul.f32 %v232, %v2407
    %v2461 = vmul.f32 %v233, %v2407
    %v2462 = vmul.f32 %v234, %v2407
    %v2463 = vmul.f32 %v235, %v2407
    %v2464 = vmul.f32 %v236, %v2407
    %v2465 = vmul.f32 %v237, %v2407
    %v2466 = vmul.f32 %v238, %v2407
    %v2467 = vmul.f32 %v239, %v2407
    %v2468 = vmul.f32 %v240, %v2407
    %v2469 = vmul.f32 %v241, %v2407
    %v2470 = vmul.f32 %v242, %v2407
    %v2471 = vmul.f32 %v243, %v2407
    %v2472 = vmul.f32 %v244, %v2407
    %v2473 = vmul.f32 %v245, %v2407
    %v2474 = vmul.f32 %v246, %v2407
    %v2475 = vmul.f32 %v247, %v2407
    %v2476 = vmul.f32 %v248, %v2407
    %v2477 = vmul.f32 %v249, %v2407
    %v2478 = vmul.f32 %v250, %v2407
    %v2479 = vmul.f32 %v251, %v2407
    %v2480 = vmul.f32 %v252, %v2407
    %v2481 = vmul.f32 %v253, %v2407
    %v2482 = vmul.f32 %v254, %v2407
    %v2483 = vmul.f32 %v255, %v2407
    %v2484 = vmul.f32 %v256, %v2407
    %v2485 = vmul.f32 %v257, %v2407
    %v2486 = vmul.f32 %v258, %v2407
    %v2487 = vmul.f32 %v259, %v2407
    %v2488 = vmul.f32 %v260, %v2407
    %v2489 = vmul.f32 %v261, %v2407
    %v2490 = vmul.f32 %v262, %v2407
    %v2491 = vmul.f32 %v263, %v2407
    %v2492 = vmul.f32 %v264, %v2407
    %v2493 = vmul.f32 %v265, %v2407
    %v2494 = vmul.f32 %v266, %v2407
    %v2495 = vmul.f32 %v267, %v2407
    %v2496 = vmul.f32 %v268, %v2407
    %v2497 = vmul.f32 %v269, %v2407
    %v2498 = vmul.f32 %v270, %v2407
    %v2499 = vmul.f32 %v271, %v2407
    %v2500 = vmul.f32 %v272, %v2407
    %v2501 = vmul.f32 %v273, %v2407
    %v2502 = vmul.f32 %v274, %v2407
    %v2503 = vmul.f32 %v275, %v2407
    %v2504 = vmul.f32 %v276, %v2407
    %v2505 = vmul.f32 %v277, %v2407
    %v2506 = vmul.f32 %v278, %v2407
    %v2507 = vmul.f32 %v279, %v2407
    %v2508 = vmul.f32 %v280, %v2407
    %v2509 = vmul.f32 %v281, %v2407
    %v2510 = vmul.f32 %v282, %v2407
    %v2511 = vmul.f32 %v283, %v2407
    %v2616 = vrot.slane %v2408, 2
    %v2617 = vrot.slane %v2409, 2
    %v2618 = vsel %vm1205, %v2616, %v2617
    %v2619 = vrot.slane %v2410, 2
    %v2620 = vsel %vm1205, %v2617, %v2619
    %v2621 = vrot.slane %v2411, 2
    %v2622 = vsel %vm1205, %v2619, %v2621
    %v2623 = vrot.slane %v2412, 2
    %v2624 = vrot.slane %v2413, 2
    %v2625 = vsel %vm1205, %v2623, %v2624
    %v2626 = vrot.slane %v2414, 2
    %v2627 = vsel %vm1205, %v2624, %v2626
    %v2628 = vrot.slane %v2415, 2
    %v2629 = vsel %vm1205, %v2626, %v2628
    %v2630 = vrot.slane %v2416, 2
    %v2631 = vrot.slane %v2417, 2
    %v2632 = vsel %vm1205, %v2630, %v2631
    %v2633 = vrot.slane %v2418, 2
    %v2634 = vsel %vm1205, %v2631, %v2633
    %v2635 = vrot.slane %v2419, 2
    %v2636 = vsel %vm1205, %v2633, %v2635
    %v2637 = vrot.slane %v2420, 2
    %v2638 = vrot.slane %v2421, 2
    %v2639 = vsel %vm1205, %v2637, %v2638
    %v2640 = vrot.slane %v2422, 2
    %v2641 = vsel %vm1205, %v2638, %v2640
    %v2642 = vrot.slane %v2423, 2
    %v2643 = vsel %vm1205, %v2640, %v2642
    %v2644 = vrot.slane %v2424, 2
    %v2645 = vrot.slane %v2425, 2
    %v2646 = vsel %vm1205, %v2644, %v2645
    %v2647 = vrot.slane %v2426, 2
    %v2648 = vsel %vm1205, %v2645, %v2647
    %v2649 = vrot.slane %v2427, 2
    %v2650 = vsel %vm1205, %v2647, %v2649
    %v2651 = vrot.slane %v2428, 2
    %v2652 = vrot.slane %v2429, 2
    %v2653 = vsel %vm1205, %v2651, %v2652
    %v2654 = vrot.slane %v2430, 2
    %v2655 = vsel %vm1205, %v2652, %v2654
    %v2656 = vrot.slane %v2431, 2
    %v2657 = vsel %vm1205, %v2654, %v2656
    %v2658 = vrot.slane %v2432, 2
    %v2659 = vrot.slane %v2433, 2
    %v2660 = vsel %vm1205, %v2658, %v2659
    %v2661 = vrot.slane %v2434, 2
    %v2662 = vsel %vm1205, %v2659, %v2661
    %v2663 = vrot.slane %v2435, 2
    %v2664 = vsel %vm1205, %v2661, %v2663
    %v2665 = vrot.slane %v2436, 2
    %v2666 = vrot.slane %v2437, 2
    %v2667 = vsel %vm1205, %v2665, %v2666
    %v2668 = vrot.slane %v2438, 2
    %v2669 = vsel %vm1205, %v2666, %v2668
    %v2670 = vrot.slane %v2439, 2
    %v2671 = vsel %vm1205, %v2668, %v2670
    %v2672 = vrot.slane %v2440, 2
    %v2673 = vrot.slane %v2441, 2
    %v2674 = vsel %vm1205, %v2672, %v2673
    %v2675 = vrot.slane %v2442, 2
    %v2676 = vsel %vm1205, %v2673, %v2675
    %v2677 = vrot.slane %v2443, 2
    %v2678 = vsel %vm1205, %v2675, %v2677
    %v2679 = vrot.slane %v2444, 2
    %v2680 = vrot.slane %v2445, 2
    %v2681 = vsel %vm1205, %v2679, %v2680
    %v2682 = vrot.slane %v2446, 2
    %v2683 = vsel %vm1205, %v2680, %v2682
    %v2684 = vrot.slane %v2447, 2
    %v2685 = vsel %vm1205, %v2682, %v2684
    %v2686 = vrot.slane %v2448, 2
    %v2687 = vrot.slane %v2449, 2
    %v2688 = vsel %vm1205, %v2686, %v2687
    %v2689 = vrot.slane %v2450, 2
    %v2690 = vsel %vm1205, %v2687, %v2689
    %v2691 = vrot.slane %v2451, 2
    %v2692 = vsel %vm1205, %v2689, %v2691
    %v2693 = vrot.slane %v2452, 2
    %v2694 = vrot.slane %v2453, 2
    %v2695 = vsel %vm1205, %v2693, %v2694
    %v2696 = vrot.slane %v2454, 2
    %v2697 = vsel %vm1205, %v2694, %v2696
    %v2698 = vrot.slane %v2455, 2
    %v2699 = vsel %vm1205, %v2696, %v2698
    %v2700 = vrot.slane %v2456, 2
    %v2701 = vrot.slane %v2457, 2
    %v2702 = vsel %vm1205, %v2700, %v2701
    %v2703 = vrot.slane %v2458, 2
    %v2704 = vsel %vm1205, %v2701, %v2703
    %v2705 = vrot.slane %v2459, 2
    %v2706 = vsel %vm1205, %v2703, %v2705
    %v2707 = vrot.slane %v2460, 2
    %v2708 = vrot.slane %v2461, 2
    %v2709 = vsel %vm1205, %v2707, %v2708
    %v2710 = vrot.slane %v2462, 2
    %v2711 = vsel %vm1205, %v2708, %v2710
    %v2712 = vrot.slane %v2463, 2
    %v2713 = vsel %vm1205, %v2710, %v2712
    %v2714 = vrot.slane %v2464, 2
    %v2715 = vrot.slane %v2465, 2
    %v2716 = vsel %vm1205, %v2714, %v2715
    %v2717 = vrot.slane %v2466, 2
    %v2718 = vsel %vm1205, %v2715, %v2717
    %v2719 = vrot.slane %v2467, 2
    %v2720 = vsel %vm1205, %v2717, %v2719
    %v2721 = vrot.slane %v2468, 2
    %v2722 = vrot.slane %v2469, 2
    %v2723 = vsel %vm1205, %v2721, %v2722
    %v2724 = vrot.slane %v2470, 2
    %v2725 = vsel %vm1205, %v2722, %v2724
    %v2726 = vrot.slane %v2471, 2
    %v2727 = vsel %vm1205, %v2724, %v2726
    %v2728 = vrot.slane %v2472, 2
    %v2729 = vrot.slane %v2473, 2
    %v2730 = vsel %vm1205, %v2728, %v2729
    %v2731 = vrot.slane %v2474, 2
    %v2732 = vsel %vm1205, %v2729, %v2731
    %v2733 = vrot.slane %v2475, 2
    %v2734 = vsel %vm1205, %v2731, %v2733
    %v2735 = vrot.slane %v2476, 2
    %v2736 = vrot.slane %v2477, 2
    %v2737 = vsel %vm1205, %v2735, %v2736
    %v2738 = vrot.slane %v2478, 2
    %v2739 = vsel %vm1205, %v2736, %v2738
    %v2740 = vrot.slane %v2479, 2
    %v2741 = vsel %vm1205, %v2738, %v2740
    %v2742 = vrot.slane %v2480, 2
    %v2743 = vrot.slane %v2481, 2
    %v2744 = vsel %vm1205, %v2742, %v2743
    %v2745 = vrot.slane %v2482, 2
    %v2746 = vsel %vm1205, %v2743, %v2745
    %v2747 = vrot.slane %v2483, 2
    %v2748 = vsel %vm1205, %v2745, %v2747
    %v2749 = vrot.slane %v2484, 2
    %v2750 = vrot.slane %v2485, 2
    %v2751 = vsel %vm1205, %v2749, %v2750
    %v2752 = vrot.slane %v2486, 2
    %v2753 = vsel %vm1205, %v2750, %v2752
    %v2754 = vrot.slane %v2487, 2
    %v2755 = vsel %vm1205, %v2752, %v2754
    %v2756 = vrot.slane %v2488, 2
    %v2757 = vrot.slane %v2489, 2
    %v2758 = vsel %vm1205, %v2756, %v2757
    %v2759 = vrot.slane %v2490, 2
    %v2760 = vsel %vm1205, %v2757, %v2759
    %v2761 = vrot.slane %v2491, 2
    %v2762 = vsel %vm1205, %v2759, %v2761
    %v2763 = vrot.slane %v2492, 2
    %v2764 = vrot.slane %v2493, 2
    %v2765 = vsel %vm1205, %v2763, %v2764
    %v2766 = vrot.slane %v2494, 2
    %v2767 = vsel %vm1205, %v2764, %v2766
    %v2768 = vrot.slane %v2495, 2
    %v2769 = vsel %vm1205, %v2766, %v2768
    %v2770 = vrot.slane %v2496, 2
    %v2771 = vrot.slane %v2497, 2
    %v2772 = vsel %vm1205, %v2770, %v2771
    %v2773 = vrot.slane %v2498, 2
    %v2774 = vsel %vm1205, %v2771, %v2773
    %v2775 = vrot.slane %v2499, 2
    %v2776 = vsel %vm1205, %v2773, %v2775
    %v2777 = vrot.slane %v2500, 2
    %v2778 = vrot.slane %v2501, 2
    %v2779 = vsel %vm1205, %v2777, %v2778
    %v2780 = vrot.slane %v2502, 2
    %v2781 = vsel %vm1205, %v2778, %v2780
    %v2782 = vrot.slane %v2503, 2
    %v2783 = vsel %vm1205, %v2780, %v2782
    %v2784 = vrot.slane %v2504, 2
    %v2785 = vrot.slane %v2505, 2
    %v2786 = vsel %vm1205, %v2784, %v2785
    %v2787 = vrot.slane %v2506, 2
    %v2788 = vsel %vm1205, %v2785, %v2787
    %v2789 = vrot.slane %v2507, 2
    %v2790 = vsel %vm1205, %v2787, %v2789
    %v2791 = vrot.slane %v2508, 2
    %v2792 = vrot.slane %v2509, 2
    %v2793 = vsel %vm1205, %v2791, %v2792
    %v2794 = vrot.slane %v2510, 2
    %v2795 = vsel %vm1205, %v2792, %v2794
    %v2796 = vrot.slane %v2511, 2
    %v2797 = vsel %vm1205, %v2794, %v2796
    %v2902 = vadd.f32 %v2302, %v2618
    %v2903 = vadd.f32 %v2303, %v2620
    %v2904 = vadd.f32 %v2304, %v2622
    %v2905 = vadd.f32 %v2305, %v2621
    %v2906 = vadd.f32 %v2306, %v2625
    %v2907 = vadd.f32 %v2307, %v2627
    %v2908 = vadd.f32 %v2308, %v2629
    %v2909 = vadd.f32 %v2309, %v2628
    %v2910 = vadd.f32 %v2310, %v2632
    %v2911 = vadd.f32 %v2311, %v2634
    %v2912 = vadd.f32 %v2312, %v2636
    %v2913 = vadd.f32 %v2313, %v2635
    %v2914 = vadd.f32 %v2314, %v2639
    %v2915 = vadd.f32 %v2315, %v2641
    %v2916 = vadd.f32 %v2316, %v2643
    %v2917 = vadd.f32 %v2317, %v2642
    %v2918 = vadd.f32 %v2318, %v2646
    %v2919 = vadd.f32 %v2319, %v2648
    %v2920 = vadd.f32 %v2320, %v2650
    %v2921 = vadd.f32 %v2321, %v2649
    %v2922 = vadd.f32 %v2322, %v2653
    %v2923 = vadd.f32 %v2323, %v2655
    %v2924 = vadd.f32 %v2324, %v2657
    %v2925 = vadd.f32 %v2325, %v2656
    %v2926 = vadd.f32 %v2326, %v2660
    %v2927 = vadd.f32 %v2327, %v2662
    %v2928 = vadd.f32 %v2328, %v2664
    %v2929 = vadd.f32 %v2329, %v2663
    %v2930 = vadd.f32 %v2330, %v2667
    %v2931 = vadd.f32 %v2331, %v2669
    %v2932 = vadd.f32 %v2332, %v2671
    %v2933 = vadd.f32 %v2333, %v2670
    %v2934 = vadd.f32 %v2334, %v2674
    %v2935 = vadd.f32 %v2335, %v2676
    %v2936 = vadd.f32 %v2336, %v2678
    %v2937 = vadd.f32 %v2337, %v2677
    %v2938 = vadd.f32 %v2338, %v2681
    %v2939 = vadd.f32 %v2339, %v2683
    %v2940 = vadd.f32 %v2340, %v2685
    %v2941 = vadd.f32 %v2341, %v2684
    %v2942 = vadd.f32 %v2342, %v2688
    %v2943 = vadd.f32 %v2343, %v2690
    %v2944 = vadd.f32 %v2344, %v2692
    %v2945 = vadd.f32 %v2345, %v2691
    %v2946 = vadd.f32 %v2346, %v2695
    %v2947 = vadd.f32 %v2347, %v2697
    %v2948 = vadd.f32 %v2348, %v2699
    %v2949 = vadd.f32 %v2349, %v2698
    %v2950 = vadd.f32 %v2350, %v2702
    %v2951 = vadd.f32 %v2351, %v2704
    %v2952 = vadd.f32 %v2352, %v2706
    %v2953 = vadd.f32 %v2353, %v2705
    %v2954 = vadd.f32 %v2354, %v2709
    %v2955 = vadd.f32 %v2355, %v2711
    %v2956 = vadd.f32 %v2356, %v2713
    %v2957 = vadd.f32 %v2357, %v2712
    %v2958 = vadd.f32 %v2358, %v2716
    %v2959 = vadd.f32 %v2359, %v2718
    %v2960 = vadd.f32 %v2360, %v2720
    %v2961 = vadd.f32 %v2361, %v2719
    %v2962 = vadd.f32 %v2362, %v2723
    %v2963 = vadd.f32 %v2363, %v2725
    %v2964 = vadd.f32 %v2364, %v2727
    %v2965 = vadd.f32 %v2365, %v2726
    %v2966 = vadd.f32 %v2366, %v2730
    %v2967 = vadd.f32 %v2367, %v2732
    %v2968 = vadd.f32 %v2368, %v2734
    %v2969 = vadd.f32 %v2369, %v2733
    %v2970 = vadd.f32 %v2370, %v2737
    %v2971 = vadd.f32 %v2371, %v2739
    %v2972 = vadd.f32 %v2372, %v2741
    %v2973 = vadd.f32 %v2373, %v2740
    %v2974 = vadd.f32 %v2374, %v2744
    %v2975 = vadd.f32 %v2375, %v2746
    %v2976 = vadd.f32 %v2376, %v2748
    %v2977 = vadd.f32 %v2377, %v2747
    %v2978 = vadd.f32 %v2378, %v2751
    %v2979 = vadd.f32 %v2379, %v2753
    %v2980 = vadd.f32 %v2380, %v2755
    %v2981 = vadd.f32 %v2381, %v2754
    %v2982 = vadd.f32 %v2382, %v2758
    %v2983 = vadd.f32 %v2383, %v2760
    %v2984 = vadd.f32 %v2384, %v2762
    %v2985 = vadd.f32 %v2385, %v2761
    %v2986 = vadd.f32 %v2386, %v2765
    %v2987 = vadd.f32 %v2387, %v2767
    %v2988 = vadd.f32 %v2388, %v2769
    %v2989 = vadd.f32 %v2389, %v2768
    %v2990 = vadd.f32 %v2390, %v2772
    %v2991 = vadd.f32 %v2391, %v2774
    %v2992 = vadd.f32 %v2392, %v2776
    %v2993 = vadd.f32 %v2393, %v2775
    %v2994 = vadd.f32 %v2394, %v2779
    %v2995 = vadd.f32 %v2395, %v2781
    %v2996 = vadd.f32 %v2396, %v2783
    %v2997 = vadd.f32 %v2397, %v2782
    %v2998 = vadd.f32 %v2398, %v2786
    %v2999 = vadd.f32 %v2399, %v2788
    %v3000 = vadd.f32 %v2400, %v2790
    %v3001 = vadd.f32 %v2401, %v2789
    %v3002 = vadd.f32 %v2402, %v2793
    %v3003 = vadd.f32 %v2403, %v2795
    %v3004 = vadd.f32 %v2404, %v2797
    %v3005 = vadd.f32 %v2405, %v2796
    %s3006 = sld [smem:[#allocation8 + $0x100]]
    %v3007 = vstv %s3006
    %v3008 = vmul.f32 %v184, %v3007
    %v3009 = vmul.f32 %v185, %v3007
    %v3010 = vmul.f32 %v186, %v3007
    %v3011 = vmul.f32 %v187, %v3007
    %v3012 = vmul.f32 %v188, %v3007
    %v3013 = vmul.f32 %v189, %v3007
    %v3014 = vmul.f32 %v190, %v3007
    %v3015 = vmul.f32 %v191, %v3007
    %v3016 = vmul.f32 %v192, %v3007
    %v3017 = vmul.f32 %v193, %v3007
    %v3018 = vmul.f32 %v194, %v3007
    %v3019 = vmul.f32 %v195, %v3007
    %v3020 = vmul.f32 %v196, %v3007
    %v3021 = vmul.f32 %v197, %v3007
    %v3022 = vmul.f32 %v198, %v3007
    %v3023 = vmul.f32 %v199, %v3007
    %v3024 = vmul.f32 %v200, %v3007
    %v3025 = vmul.f32 %v201, %v3007
    %v3026 = vmul.f32 %v202, %v3007
    %v3027 = vmul.f32 %v203, %v3007
    %v3028 = vmul.f32 %v204, %v3007
    %v3029 = vmul.f32 %v205, %v3007
    %v3030 = vmul.f32 %v206, %v3007
    %v3031 = vmul.f32 %v207, %v3007
    %v3032 = vmul.f32 %v208, %v3007
    %v3033 = vmul.f32 %v209, %v3007
    %v3034 = vmul.f32 %v210, %v3007
    %v3035 = vmul.f32 %v211, %v3007
    %v3036 = vmul.f32 %v212, %v3007
    %v3037 = vmul.f32 %v213, %v3007
    %v3038 = vmul.f32 %v214, %v3007
    %v3039 = vmul.f32 %v215, %v3007
    %v3040 = vmul.f32 %v216, %v3007
    %v3041 = vmul.f32 %v217, %v3007
    %v3042 = vmul.f32 %v218, %v3007
    %v3043 = vmul.f32 %v219, %v3007
    %v3044 = vmul.f32 %v220, %v3007
    %v3045 = vmul.f32 %v221, %v3007
    %v3046 = vmul.f32 %v222, %v3007
    %v3047 = vmul.f32 %v223, %v3007
    %v3048 = vmul.f32 %v224, %v3007
    %v3049 = vmul.f32 %v225, %v3007
    %v3050 = vmul.f32 %v226, %v3007
    %v3051 = vmul.f32 %v227, %v3007
    %v3052 = vmul.f32 %v228, %v3007
    %v3053 = vmul.f32 %v229, %v3007
    %v3054 = vmul.f32 %v230, %v3007
    %v3055 = vmul.f32 %v231, %v3007
    %v3056 = vmul.f32 %v232, %v3007
    %v3057 = vmul.f32 %v233, %v3007
    %v3058 = vmul.f32 %v234, %v3007
    %v3059 = vmul.f32 %v235, %v3007
    %v3060 = vmul.f32 %v236, %v3007
    %v3061 = vmul.f32 %v237, %v3007
    %v3062 = vmul.f32 %v238, %v3007
    %v3063 = vmul.f32 %v239, %v3007
    %v3064 = vmul.f32 %v240, %v3007
    %v3065 = vmul.f32 %v241, %v3007
    %v3066 = vmul.f32 %v242, %v3007
    %v3067 = vmul.f32 %v243, %v3007
    %v3068 = vmul.f32 %v244, %v3007
    %v3069 = vmul.f32 %v245, %v3007
    %v3070 = vmul.f32 %v246, %v3007
    %v3071 = vmul.f32 %v247, %v3007
    %v3072 = vmul.f32 %v248, %v3007
    %v3073 = vmul.f32 %v249, %v3007
    %v3074 = vmul.f32 %v250, %v3007
    %v3075 = vmul.f32 %v251, %v3007
    %v3076 = vmul.f32 %v252, %v3007
    %v3077 = vmul.f32 %v253, %v3007
    %v3078 = vmul.f32 %v254, %v3007
    %v3079 = vmul.f32 %v255, %v3007
    %v3080 = vmul.f32 %v256, %v3007
    %v3081 = vmul.f32 %v257, %v3007
    %v3082 = vmul.f32 %v258, %v3007
    %v3083 = vmul.f32 %v259, %v3007
    %v3084 = vmul.f32 %v260, %v3007
    %v3085 = vmul.f32 %v261, %v3007
    %v3086 = vmul.f32 %v262, %v3007
    %v3087 = vmul.f32 %v263, %v3007
    %v3088 = vmul.f32 %v264, %v3007
    %v3089 = vmul.f32 %v265, %v3007
    %v3090 = vmul.f32 %v266, %v3007
    %v3091 = vmul.f32 %v267, %v3007
    %v3092 = vmul.f32 %v268, %v3007
    %v3093 = vmul.f32 %v269, %v3007
    %v3094 = vmul.f32 %v270, %v3007
    %v3095 = vmul.f32 %v271, %v3007
    %v3096 = vmul.f32 %v272, %v3007
    %v3097 = vmul.f32 %v273, %v3007
    %v3098 = vmul.f32 %v274, %v3007
    %v3099 = vmul.f32 %v275, %v3007
    %v3100 = vmul.f32 %v276, %v3007
    %v3101 = vmul.f32 %v277, %v3007
    %v3102 = vmul.f32 %v278, %v3007
    %v3103 = vmul.f32 %v279, %v3007
    %v3104 = vmul.f32 %v280, %v3007
    %v3105 = vmul.f32 %v281, %v3007
    %v3106 = vmul.f32 %v282, %v3007
    %v3107 = vmul.f32 %v283, %v3007
    %v3108 = vmul.f32 %v284, %v3007
    %v3109 = vmul.f32 %v285, %v3007
    %v3110 = vmul.f32 %v286, %v3007
    %v3111 = vmul.f32 %v287, %v3007
    %v3112 = vadd.f32 %v2902, %v3008
    %v3113 = vadd.f32 %v2903, %v3009
    %v3114 = vadd.f32 %v2904, %v3010
    %v3115 = vadd.f32 %v2905, %v3011
    %v3116 = vadd.f32 %v2906, %v3012
    %v3117 = vadd.f32 %v2907, %v3013
    %v3118 = vadd.f32 %v2908, %v3014
    %v3119 = vadd.f32 %v2909, %v3015
    %v3120 = vadd.f32 %v2910, %v3016
    %v3121 = vadd.f32 %v2911, %v3017
    %v3122 = vadd.f32 %v2912, %v3018
    %v3123 = vadd.f32 %v2913, %v3019
    %v3124 = vadd.f32 %v2914, %v3020
    %v3125 = vadd.f32 %v2915, %v3021
    %v3126 = vadd.f32 %v2916, %v3022
    %v3127 = vadd.f32 %v2917, %v3023
    %v3128 = vadd.f32 %v2918, %v3024
    %v3129 = vadd.f32 %v2919, %v3025
    %v3130 = vadd.f32 %v2920, %v3026
    %v3131 = vadd.f32 %v2921, %v3027
    %v3132 = vadd.f32 %v2922, %v3028
    %v3133 = vadd.f32 %v2923, %v3029
    %v3134 = vadd.f32 %v2924, %v3030
    %v3135 = vadd.f32 %v2925, %v3031
    %v3136 = vadd.f32 %v2926, %v3032
    %v3137 = vadd.f32 %v2927, %v3033
    %v3138 = vadd.f32 %v2928, %v3034
    %v3139 = vadd.f32 %v2929, %v3035
    %v3140 = vadd.f32 %v2930, %v3036
    %v3141 = vadd.f32 %v2931, %v3037
    %v3142 = vadd.f32 %v2932, %v3038
    %v3143 = vadd.f32 %v2933, %v3039
    %v3144 = vadd.f32 %v2934, %v3040
    %v3145 = vadd.f32 %v2935, %v3041
    %v3146 = vadd.f32 %v2936, %v3042
    %v3147 = vadd.f32 %v2937, %v3043
    %v3148 = vadd.f32 %v2938, %v3044
    %v3149 = vadd.f32 %v2939, %v3045
    %v3150 = vadd.f32 %v2940, %v3046
    %v3151 = vadd.f32 %v2941, %v3047
    %v3152 = vadd.f32 %v2942, %v3048
    %v3153 = vadd.f32 %v2943, %v3049
    %v3154 = vadd.f32 %v2944, %v3050
    %v3155 = vadd.f32 %v2945, %v3051
    %v3156 = vadd.f32 %v2946, %v3052
    %v3157 = vadd.f32 %v2947, %v3053
    %v3158 = vadd.f32 %v2948, %v3054
    %v3159 = vadd.f32 %v2949, %v3055
    %v3160 = vadd.f32 %v2950, %v3056
    %v3161 = vadd.f32 %v2951, %v3057
    %v3162 = vadd.f32 %v2952, %v3058
    %v3163 = vadd.f32 %v2953, %v3059
    %v3164 = vadd.f32 %v2954, %v3060
    %v3165 = vadd.f32 %v2955, %v3061
    %v3166 = vadd.f32 %v2956, %v3062
    %v3167 = vadd.f32 %v2957, %v3063
    %v3168 = vadd.f32 %v2958, %v3064
    %v3169 = vadd.f32 %v2959, %v3065
    %v3170 = vadd.f32 %v2960, %v3066
    %v3171 = vadd.f32 %v2961, %v3067
    %v3172 = vadd.f32 %v2962, %v3068
    %v3173 = vadd.f32 %v2963, %v3069
    %v3174 = vadd.f32 %v2964, %v3070
    %v3175 = vadd.f32 %v2965, %v3071
    %v3176 = vadd.f32 %v2966, %v3072
    %v3177 = vadd.f32 %v2967, %v3073
    %v3178 = vadd.f32 %v2968, %v3074
    %v3179 = vadd.f32 %v2969, %v3075
    %v3180 = vadd.f32 %v2970, %v3076
    %v3181 = vadd.f32 %v2971, %v3077
    %v3182 = vadd.f32 %v2972, %v3078
    %v3183 = vadd.f32 %v2973, %v3079
    %v3184 = vadd.f32 %v2974, %v3080
    %v3185 = vadd.f32 %v2975, %v3081
    %v3186 = vadd.f32 %v2976, %v3082
    %v3187 = vadd.f32 %v2977, %v3083
    %v3188 = vadd.f32 %v2978, %v3084
    %v3189 = vadd.f32 %v2979, %v3085
    %v3190 = vadd.f32 %v2980, %v3086
    %v3191 = vadd.f32 %v2981, %v3087
    %v3192 = vadd.f32 %v2982, %v3088
    %v3193 = vadd.f32 %v2983, %v3089
    %v3194 = vadd.f32 %v2984, %v3090
    %v3195 = vadd.f32 %v2985, %v3091
    %v3196 = vadd.f32 %v2986, %v3092
    %v3197 = vadd.f32 %v2987, %v3093
    %v3198 = vadd.f32 %v2988, %v3094
    %v3199 = vadd.f32 %v2989, %v3095
    %v3200 = vadd.f32 %v2990, %v3096
    %v3201 = vadd.f32 %v2991, %v3097
    %v3202 = vadd.f32 %v2992, %v3098
    %v3203 = vadd.f32 %v2993, %v3099
    %v3204 = vadd.f32 %v2994, %v3100
    %v3205 = vadd.f32 %v2995, %v3101
    %v3206 = vadd.f32 %v2996, %v3102
    %v3207 = vadd.f32 %v2997, %v3103
    %v3208 = vadd.f32 %v2998, %v3104
    %v3209 = vadd.f32 %v2999, %v3105
    %v3210 = vadd.f32 %v3000, %v3106
    %v3211 = vadd.f32 %v3001, %v3107
    %v3212 = vadd.f32 %v3002, %v3108
    %v3213 = vadd.f32 %v3003, %v3109
    %v3214 = vadd.f32 %v3004, %v3110
    %v3215 = vadd.f32 %v3005, %v3111
    %s3216 = sld [smem:[#allocation8 + $0x101]]
    %v3217 = vstv %s3216
    %v3218 = vmul.f32 %v184, %v3217
    %v3219 = vmul.f32 %v185, %v3217
    %v3220 = vmul.f32 %v186, %v3217
    %v3221 = vmul.f32 %v187, %v3217
    %v3222 = vmul.f32 %v188, %v3217
    %v3223 = vmul.f32 %v189, %v3217
    %v3224 = vmul.f32 %v190, %v3217
    %v3225 = vmul.f32 %v191, %v3217
    %v3226 = vmul.f32 %v192, %v3217
    %v3227 = vmul.f32 %v193, %v3217
    %v3228 = vmul.f32 %v194, %v3217
    %v3229 = vmul.f32 %v195, %v3217
    %v3230 = vmul.f32 %v196, %v3217
    %v3231 = vmul.f32 %v197, %v3217
    %v3232 = vmul.f32 %v198, %v3217
    %v3233 = vmul.f32 %v199, %v3217
    %v3234 = vmul.f32 %v200, %v3217
    %v3235 = vmul.f32 %v201, %v3217
    %v3236 = vmul.f32 %v202, %v3217
    %v3237 = vmul.f32 %v203, %v3217
    %v3238 = vmul.f32 %v204, %v3217
    %v3239 = vmul.f32 %v205, %v3217
    %v3240 = vmul.f32 %v206, %v3217
    %v3241 = vmul.f32 %v207, %v3217
    %v3242 = vmul.f32 %v208, %v3217
    %v3243 = vmul.f32 %v209, %v3217
    %v3244 = vmul.f32 %v210, %v3217
    %v3245 = vmul.f32 %v211, %v3217
    %v3246 = vmul.f32 %v212, %v3217
    %v3247 = vmul.f32 %v213, %v3217
    %v3248 = vmul.f32 %v214, %v3217
    %v3249 = vmul.f32 %v215, %v3217
    %v3250 = vmul.f32 %v216, %v3217
    %v3251 = vmul.f32 %v217, %v3217
    %v3252 = vmul.f32 %v218, %v3217
    %v3253 = vmul.f32 %v219, %v3217
    %v3254 = vmul.f32 %v220, %v3217
    %v3255 = vmul.f32 %v221, %v3217
    %v3256 = vmul.f32 %v222, %v3217
    %v3257 = vmul.f32 %v223, %v3217
    %v3258 = vmul.f32 %v224, %v3217
    %v3259 = vmul.f32 %v225, %v3217
    %v3260 = vmul.f32 %v226, %v3217
    %v3261 = vmul.f32 %v227, %v3217
    %v3262 = vmul.f32 %v228, %v3217
    %v3263 = vmul.f32 %v229, %v3217
    %v3264 = vmul.f32 %v230, %v3217
    %v3265 = vmul.f32 %v231, %v3217
    %v3266 = vmul.f32 %v232, %v3217
    %v3267 = vmul.f32 %v233, %v3217
    %v3268 = vmul.f32 %v234, %v3217
    %v3269 = vmul.f32 %v235, %v3217
    %v3270 = vmul.f32 %v236, %v3217
    %v3271 = vmul.f32 %v237, %v3217
    %v3272 = vmul.f32 %v238, %v3217
    %v3273 = vmul.f32 %v239, %v3217
    %v3274 = vmul.f32 %v240, %v3217
    %v3275 = vmul.f32 %v241, %v3217
    %v3276 = vmul.f32 %v242, %v3217
    %v3277 = vmul.f32 %v243, %v3217
    %v3278 = vmul.f32 %v244, %v3217
    %v3279 = vmul.f32 %v245, %v3217
    %v3280 = vmul.f32 %v246, %v3217
    %v3281 = vmul.f32 %v247, %v3217
    %v3282 = vmul.f32 %v248, %v3217
    %v3283 = vmul.f32 %v249, %v3217
    %v3284 = vmul.f32 %v250, %v3217
    %v3285 = vmul.f32 %v251, %v3217
    %v3286 = vmul.f32 %v252, %v3217
    %v3287 = vmul.f32 %v253, %v3217
    %v3288 = vmul.f32 %v254, %v3217
    %v3289 = vmul.f32 %v255, %v3217
    %v3290 = vmul.f32 %v256, %v3217
    %v3291 = vmul.f32 %v257, %v3217
    %v3292 = vmul.f32 %v258, %v3217
    %v3293 = vmul.f32 %v259, %v3217
    %v3294 = vmul.f32 %v260, %v3217
    %v3295 = vmul.f32 %v261, %v3217
    %v3296 = vmul.f32 %v262, %v3217
    %v3297 = vmul.f32 %v263, %v3217
    %v3298 = vmul.f32 %v264, %v3217
    %v3299 = vmul.f32 %v265, %v3217
    %v3300 = vmul.f32 %v266, %v3217
    %v3301 = vmul.f32 %v267, %v3217
    %v3302 = vmul.f32 %v268, %v3217
    %v3303 = vmul.f32 %v269, %v3217
    %v3304 = vmul.f32 %v270, %v3217
    %v3305 = vmul.f32 %v271, %v3217
    %v3306 = vmul.f32 %v272, %v3217
    %v3307 = vmul.f32 %v273, %v3217
    %v3308 = vmul.f32 %v274, %v3217
    %v3309 = vmul.f32 %v275, %v3217
    %v3310 = vmul.f32 %v276, %v3217
    %v3311 = vmul.f32 %v277, %v3217
    %v3312 = vmul.f32 %v278, %v3217
    %v3313 = vmul.f32 %v279, %v3217
    %v3314 = vmul.f32 %v280, %v3217
    %v3315 = vmul.f32 %v281, %v3217
    %v3316 = vmul.f32 %v282, %v3217
    %v3317 = vmul.f32 %v283, %v3217
    %v3318 = vmul.f32 %v284, %v3217
    %v3319 = vmul.f32 %v285, %v3217
    %v3320 = vmul.f32 %v286, %v3217
    %v3321 = vmul.f32 %v287, %v3217
    %v3426 = vrot.slane %v3218, 1
    %v3427 = vrot.slane %v3219, 1
    %v3428 = vsel %vm604, %v3426, %v3427
    %v3429 = vrot.slane %v3220, 1
    %v3430 = vsel %vm604, %v3427, %v3429
    %v3431 = vrot.slane %v3221, 1
    %v3432 = vsel %vm604, %v3429, %v3431
    %v3433 = vrot.slane %v3222, 1
    %v3434 = vrot.slane %v3223, 1
    %v3435 = vsel %vm604, %v3433, %v3434
    %v3436 = vrot.slane %v3224, 1
    %v3437 = vsel %vm604, %v3434, %v3436
    %v3438 = vrot.slane %v3225, 1
    %v3439 = vsel %vm604, %v3436, %v3438
    %v3440 = vrot.slane %v3226, 1
    %v3441 = vrot.slane %v3227, 1
    %v3442 = vsel %vm604, %v3440, %v3441
    %v3443 = vrot.slane %v3228, 1
    %v3444 = vsel %vm604, %v3441, %v3443
    %v3445 = vrot.slane %v3229, 1
    %v3446 = vsel %vm604, %v3443, %v3445
    %v3447 = vrot.slane %v3230, 1
    %v3448 = vrot.slane %v3231, 1
    %v3449 = vsel %vm604, %v3447, %v3448
    %v3450 = vrot.slane %v3232, 1
    %v3451 = vsel %vm604, %v3448, %v3450
    %v3452 = vrot.slane %v3233, 1
    %v3453 = vsel %vm604, %v3450, %v3452
    %v3454 = vrot.slane %v3234, 1
    %v3455 = vrot.slane %v3235, 1
    %v3456 = vsel %vm604, %v3454, %v3455
    %v3457 = vrot.slane %v3236, 1
    %v3458 = vsel %vm604, %v3455, %v3457
    %v3459 = vrot.slane %v3237, 1
    %v3460 = vsel %vm604, %v3457, %v3459
    %v3461 = vrot.slane %v3238, 1
    %v3462 = vrot.slane %v3239, 1
    %v3463 = vsel %vm604, %v3461, %v3462
    %v3464 = vrot.slane %v3240, 1
    %v3465 = vsel %vm604, %v3462, %v3464
    %v3466 = vrot.slane %v3241, 1
    %v3467 = vsel %vm604, %v3464, %v3466
    %v3468 = vrot.slane %v3242, 1
    %v3469 = vrot.slane %v3243, 1
    %v3470 = vsel %vm604, %v3468, %v3469
    %v3471 = vrot.slane %v3244, 1
    %v3472 = vsel %vm604, %v3469, %v3471
    %v3473 = vrot.slane %v3245, 1
    %v3474 = vsel %vm604, %v3471, %v3473
    %v3475 = vrot.slane %v3246, 1
    %v3476 = vrot.slane %v3247, 1
    %v3477 = vsel %vm604, %v3475, %v3476
    %v3478 = vrot.slane %v3248, 1
    %v3479 = vsel %vm604, %v3476, %v3478
    %v3480 = vrot.slane %v3249, 1
    %v3481 = vsel %vm604, %v3478, %v3480
    %v3482 = vrot.slane %v3250, 1
    %v3483 = vrot.slane %v3251, 1
    %v3484 = vsel %vm604, %v3482, %v3483
    %v3485 = vrot.slane %v3252, 1
    %v3486 = vsel %vm604, %v3483, %v3485
    %v3487 = vrot.slane %v3253, 1
    %v3488 = vsel %vm604, %v3485, %v3487
    %v3489 = vrot.slane %v3254, 1
    %v3490 = vrot.slane %v3255, 1
    %v3491 = vsel %vm604, %v3489, %v3490
    %v3492 = vrot.slane %v3256, 1
    %v3493 = vsel %vm604, %v3490, %v3492
    %v3494 = vrot.slane %v3257, 1
    %v3495 = vsel %vm604, %v3492, %v3494
    %v3496 = vrot.slane %v3258, 1
    %v3497 = vrot.slane %v3259, 1
    %v3498 = vsel %vm604, %v3496, %v3497
    %v3499 = vrot.slane %v3260, 1
    %v3500 = vsel %vm604, %v3497, %v3499
    %v3501 = vrot.slane %v3261, 1
    %v3502 = vsel %vm604, %v3499, %v3501
    %v3503 = vrot.slane %v3262, 1
    %v3504 = vrot.slane %v3263, 1
    %v3505 = vsel %vm604, %v3503, %v3504
    %v3506 = vrot.slane %v3264, 1
    %v3507 = vsel %vm604, %v3504, %v3506
    %v3508 = vrot.slane %v3265, 1
    %v3509 = vsel %vm604, %v3506, %v3508
    %v3510 = vrot.slane %v3266, 1
    %v3511 = vrot.slane %v3267, 1
    %v3512 = vsel %vm604, %v3510, %v3511
    %v3513 = vrot.slane %v3268, 1
    %v3514 = vsel %vm604, %v3511, %v3513
    %v3515 = vrot.slane %v3269, 1
    %v3516 = vsel %vm604, %v3513, %v3515
    %v3517 = vrot.slane %v3270, 1
    %v3518 = vrot.slane %v3271, 1
    %v3519 = vsel %vm604, %v3517, %v3518
    %v3520 = vrot.slane %v3272, 1
    %v3521 = vsel %vm604, %v3518, %v3520
    %v3522 = vrot.slane %v3273, 1
    %v3523 = vsel %vm604, %v3520, %v3522
    %v3524 = vrot.slane %v3274, 1
    %v3525 = vrot.slane %v3275, 1
    %v3526 = vsel %vm604, %v3524, %v3525
    %v3527 = vrot.slane %v3276, 1
    %v3528 = vsel %vm604, %v3525, %v3527
    %v3529 = vrot.slane %v3277, 1
    %v3530 = vsel %vm604, %v3527, %v3529
    %v3531 = vrot.slane %v3278, 1
    %v3532 = vrot.slane %v3279, 1
    %v3533 = vsel %vm604, %v3531, %v3532
    %v3534 = vrot.slane %v3280, 1
    %v3535 = vsel %vm604, %v3532, %v3534
    %v3536 = vrot.slane %v3281, 1
    %v3537 = vsel %vm604, %v3534, %v3536
    %v3538 = vrot.slane %v3282, 1
    %v3539 = vrot.slane %v3283, 1
    %v3540 = vsel %vm604, %v3538, %v3539
    %v3541 = vrot.slane %v3284, 1
    %v3542 = vsel %vm604, %v3539, %v3541
    %v3543 = vrot.slane %v3285, 1
    %v3544 = vsel %vm604, %v3541, %v3543
    %v3545 = vrot.slane %v3286, 1
    %v3546 = vrot.slane %v3287, 1
    %v3547 = vsel %vm604, %v3545, %v3546
    %v3548 = vrot.slane %v3288, 1
    %v3549 = vsel %vm604, %v3546, %v3548
    %v3550 = vrot.slane %v3289, 1
    %v3551 = vsel %vm604, %v3548, %v3550
    %v3552 = vrot.slane %v3290, 1
    %v3553 = vrot.slane %v3291, 1
    %v3554 = vsel %vm604, %v3552, %v3553
    %v3555 = vrot.slane %v3292, 1
    %v3556 = vsel %vm604, %v3553, %v3555
    %v3557 = vrot.slane %v3293, 1
    %v3558 = vsel %vm604, %v3555, %v3557
    %v3559 = vrot.slane %v3294, 1
    %v3560 = vrot.slane %v3295, 1
    %v3561 = vsel %vm604, %v3559, %v3560
    %v3562 = vrot.slane %v3296, 1
    %v3563 = vsel %vm604, %v3560, %v3562
    %v3564 = vrot.slane %v3297, 1
    %v3565 = vsel %vm604, %v3562, %v3564
    %v3566 = vrot.slane %v3298, 1
    %v3567 = vrot.slane %v3299, 1
    %v3568 = vsel %vm604, %v3566, %v3567
    %v3569 = vrot.slane %v3300, 1
    %v3570 = vsel %vm604, %v3567, %v3569
    %v3571 = vrot.slane %v3301, 1
    %v3572 = vsel %vm604, %v3569, %v3571
    %v3573 = vrot.slane %v3302, 1
    %v3574 = vrot.slane %v3303, 1
    %v3575 = vsel %vm604, %v3573, %v3574
    %v3576 = vrot.slane %v3304, 1
    %v3577 = vsel %vm604, %v3574, %v3576
    %v3578 = vrot.slane %v3305, 1
    %v3579 = vsel %vm604, %v3576, %v3578
    %v3580 = vrot.slane %v3306, 1
    %v3581 = vrot.slane %v3307, 1
    %v3582 = vsel %vm604, %v3580, %v3581
    %v3583 = vrot.slane %v3308, 1
    %v3584 = vsel %vm604, %v3581, %v3583
    %v3585 = vrot.slane %v3309, 1
    %v3586 = vsel %vm604, %v3583, %v3585
    %v3587 = vrot.slane %v3310, 1
    %v3588 = vrot.slane %v3311, 1
    %v3589 = vsel %vm604, %v3587, %v3588
    %v3590 = vrot.slane %v3312, 1
    %v3591 = vsel %vm604, %v3588, %v3590
    %v3592 = vrot.slane %v3313, 1
    %v3593 = vsel %vm604, %v3590, %v3592
    %v3594 = vrot.slane %v3314, 1
    %v3595 = vrot.slane %v3315, 1
    %v3596 = vsel %vm604, %v3594, %v3595
    %v3597 = vrot.slane %v3316, 1
    %v3598 = vsel %vm604, %v3595, %v3597
    %v3599 = vrot.slane %v3317, 1
    %v3600 = vsel %vm604, %v3597, %v3599
    %v3601 = vrot.slane %v3318, 1
    %v3602 = vrot.slane %v3319, 1
    %v3603 = vsel %vm604, %v3601, %v3602
    %v3604 = vrot.slane %v3320, 1
    %v3605 = vsel %vm604, %v3602, %v3604
    %v3606 = vrot.slane %v3321, 1
    %v3607 = vsel %vm604, %v3604, %v3606
    %v3712 = vadd.f32 %v3112, %v3428
    %v3713 = vadd.f32 %v3113, %v3430
    %v3714 = vadd.f32 %v3114, %v3432
    %v3715 = vadd.f32 %v3115, %v3431
    %v3716 = vadd.f32 %v3116, %v3435
    %v3717 = vadd.f32 %v3117, %v3437
    %v3718 = vadd.f32 %v3118, %v3439
    %v3719 = vadd.f32 %v3119, %v3438
    %v3720 = vadd.f32 %v3120, %v3442
    %v3721 = vadd.f32 %v3121, %v3444
    %v3722 = vadd.f32 %v3122, %v3446
    %v3723 = vadd.f32 %v3123, %v3445
    %v3724 = vadd.f32 %v3124, %v3449
    %v3725 = vadd.f32 %v3125, %v3451
    %v3726 = vadd.f32 %v3126, %v3453
    %v3727 = vadd.f32 %v3127, %v3452
    %v3728 = vadd.f32 %v3128, %v3456
    %v3729 = vadd.f32 %v3129, %v3458
    %v3730 = vadd.f32 %v3130, %v3460
    %v3731 = vadd.f32 %v3131, %v3459
    %v3732 = vadd.f32 %v3132, %v3463
    %v3733 = vadd.f32 %v3133, %v3465
    %v3734 = vadd.f32 %v3134, %v3467
    %v3735 = vadd.f32 %v3135, %v3466
    %v3736 = vadd.f32 %v3136, %v3470
    %v3737 = vadd.f32 %v3137, %v3472
    %v3738 = vadd.f32 %v3138, %v3474
    %v3739 = vadd.f32 %v3139, %v3473
    %v3740 = vadd.f32 %v3140, %v3477
    %v3741 = vadd.f32 %v3141, %v3479
    %v3742 = vadd.f32 %v3142, %v3481
    %v3743 = vadd.f32 %v3143, %v3480
    %v3744 = vadd.f32 %v3144, %v3484
    %v3745 = vadd.f32 %v3145, %v3486
    %v3746 = vadd.f32 %v3146, %v3488
    %v3747 = vadd.f32 %v3147, %v3487
    %v3748 = vadd.f32 %v3148, %v3491
    %v3749 = vadd.f32 %v3149, %v3493
    %v3750 = vadd.f32 %v3150, %v3495
    %v3751 = vadd.f32 %v3151, %v3494
    %v3752 = vadd.f32 %v3152, %v3498
    %v3753 = vadd.f32 %v3153, %v3500
    %v3754 = vadd.f32 %v3154, %v3502
    %v3755 = vadd.f32 %v3155, %v3501
    %v3756 = vadd.f32 %v3156, %v3505
    %v3757 = vadd.f32 %v3157, %v3507
    %v3758 = vadd.f32 %v3158, %v3509
    %v3759 = vadd.f32 %v3159, %v3508
    %v3760 = vadd.f32 %v3160, %v3512
    %v3761 = vadd.f32 %v3161, %v3514
    %v3762 = vadd.f32 %v3162, %v3516
    %v3763 = vadd.f32 %v3163, %v3515
    %v3764 = vadd.f32 %v3164, %v3519
    %v3765 = vadd.f32 %v3165, %v3521
    %v3766 = vadd.f32 %v3166, %v3523
    %v3767 = vadd.f32 %v3167, %v3522
    %v3768 = vadd.f32 %v3168, %v3526
    %v3769 = vadd.f32 %v3169, %v3528
    %v3770 = vadd.f32 %v3170, %v3530
    %v3771 = vadd.f32 %v3171, %v3529
    %v3772 = vadd.f32 %v3172, %v3533
    %v3773 = vadd.f32 %v3173, %v3535
    %v3774 = vadd.f32 %v3174, %v3537
    %v3775 = vadd.f32 %v3175, %v3536
    %v3776 = vadd.f32 %v3176, %v3540
    %v3777 = vadd.f32 %v3177, %v3542
    %v3778 = vadd.f32 %v3178, %v3544
    %v3779 = vadd.f32 %v3179, %v3543
    %v3780 = vadd.f32 %v3180, %v3547
    %v3781 = vadd.f32 %v3181, %v3549
    %v3782 = vadd.f32 %v3182, %v3551
    %v3783 = vadd.f32 %v3183, %v3550
    %v3784 = vadd.f32 %v3184, %v3554
    %v3785 = vadd.f32 %v3185, %v3556
    %v3786 = vadd.f32 %v3186, %v3558
    %v3787 = vadd.f32 %v3187, %v3557
    %v3788 = vadd.f32 %v3188, %v3561
    %v3789 = vadd.f32 %v3189, %v3563
    %v3790 = vadd.f32 %v3190, %v3565
    %v3791 = vadd.f32 %v3191, %v3564
    %v3792 = vadd.f32 %v3192, %v3568
    %v3793 = vadd.f32 %v3193, %v3570
    %v3794 = vadd.f32 %v3194, %v3572
    %v3795 = vadd.f32 %v3195, %v3571
    %v3796 = vadd.f32 %v3196, %v3575
    %v3797 = vadd.f32 %v3197, %v3577
    %v3798 = vadd.f32 %v3198, %v3579
    %v3799 = vadd.f32 %v3199, %v3578
    %v3800 = vadd.f32 %v3200, %v3582
    %v3801 = vadd.f32 %v3201, %v3584
    %v3802 = vadd.f32 %v3202, %v3586
    %v3803 = vadd.f32 %v3203, %v3585
    %v3804 = vadd.f32 %v3204, %v3589
    %v3805 = vadd.f32 %v3205, %v3591
    %v3806 = vadd.f32 %v3206, %v3593
    %v3807 = vadd.f32 %v3207, %v3592
    %v3808 = vadd.f32 %v3208, %v3596
    %v3809 = vadd.f32 %v3209, %v3598
    %v3810 = vadd.f32 %v3210, %v3600
    %v3811 = vadd.f32 %v3211, %v3599
    %v3812 = vadd.f32 %v3212, %v3603
    %v3813 = vadd.f32 %v3213, %v3605
    %v3814 = vadd.f32 %v3214, %v3607
    %v3815 = vadd.f32 %v3215, %v3606
    %s3816 = sld [smem:[#allocation8 + $0x102]]
    %v3817 = vstv %s3816
    %v3818 = vmul.f32 %v184, %v3817
    %v3819 = vmul.f32 %v185, %v3817
    %v3820 = vmul.f32 %v186, %v3817
    %v3821 = vmul.f32 %v187, %v3817
    %v3822 = vmul.f32 %v188, %v3817
    %v3823 = vmul.f32 %v189, %v3817
    %v3824 = vmul.f32 %v190, %v3817
    %v3825 = vmul.f32 %v191, %v3817
    %v3826 = vmul.f32 %v192, %v3817
    %v3827 = vmul.f32 %v193, %v3817
    %v3828 = vmul.f32 %v194, %v3817
    %v3829 = vmul.f32 %v195, %v3817
    %v3830 = vmul.f32 %v196, %v3817
    %v3831 = vmul.f32 %v197, %v3817
    %v3832 = vmul.f32 %v198, %v3817
    %v3833 = vmul.f32 %v199, %v3817
    %v3834 = vmul.f32 %v200, %v3817
    %v3835 = vmul.f32 %v201, %v3817
    %v3836 = vmul.f32 %v202, %v3817
    %v3837 = vmul.f32 %v203, %v3817
    %v3838 = vmul.f32 %v204, %v3817
    %v3839 = vmul.f32 %v205, %v3817
    %v3840 = vmul.f32 %v206, %v3817
    %v3841 = vmul.f32 %v207, %v3817
    %v3842 = vmul.f32 %v208, %v3817
    %v3843 = vmul.f32 %v209, %v3817
    %v3844 = vmul.f32 %v210, %v3817
    %v3845 = vmul.f32 %v211, %v3817
    %v3846 = vmul.f32 %v212, %v3817
    %v3847 = vmul.f32 %v213, %v3817
    %v3848 = vmul.f32 %v214, %v3817
    %v3849 = vmul.f32 %v215, %v3817
    %v3850 = vmul.f32 %v216, %v3817
    %v3851 = vmul.f32 %v217, %v3817
    %v3852 = vmul.f32 %v218, %v3817
    %v3853 = vmul.f32 %v219, %v3817
    %v3854 = vmul.f32 %v220, %v3817
    %v3855 = vmul.f32 %v221, %v3817
    %v3856 = vmul.f32 %v222, %v3817
    %v3857 = vmul.f32 %v223, %v3817
    %v3858 = vmul.f32 %v224, %v3817
    %v3859 = vmul.f32 %v225, %v3817
    %v3860 = vmul.f32 %v226, %v3817
    %v3861 = vmul.f32 %v227, %v3817
    %v3862 = vmul.f32 %v228, %v3817
    %v3863 = vmul.f32 %v229, %v3817
    %v3864 = vmul.f32 %v230, %v3817
    %v3865 = vmul.f32 %v231, %v3817
    %v3866 = vmul.f32 %v232, %v3817
    %v3867 = vmul.f32 %v233, %v3817
    %v3868 = vmul.f32 %v234, %v3817
    %v3869 = vmul.f32 %v235, %v3817
    %v3870 = vmul.f32 %v236, %v3817
    %v3871 = vmul.f32 %v237, %v3817
    %v3872 = vmul.f32 %v238, %v3817
    %v3873 = vmul.f32 %v239, %v3817
    %v3874 = vmul.f32 %v240, %v3817
    %v3875 = vmul.f32 %v241, %v3817
    %v3876 = vmul.f32 %v242, %v3817
    %v3877 = vmul.f32 %v243, %v3817
    %v3878 = vmul.f32 %v244, %v3817
    %v3879 = vmul.f32 %v245, %v3817
    %v3880 = vmul.f32 %v246, %v3817
    %v3881 = vmul.f32 %v247, %v3817
    %v3882 = vmul.f32 %v248, %v3817
    %v3883 = vmul.f32 %v249, %v3817
    %v3884 = vmul.f32 %v250, %v3817
    %v3885 = vmul.f32 %v251, %v3817
    %v3886 = vmul.f32 %v252, %v3817
    %v3887 = vmul.f32 %v253, %v3817
    %v3888 = vmul.f32 %v254, %v3817
    %v3889 = vmul.f32 %v255, %v3817
    %v3890 = vmul.f32 %v256, %v3817
    %v3891 = vmul.f32 %v257, %v3817
    %v3892 = vmul.f32 %v258, %v3817
    %v3893 = vmul.f32 %v259, %v3817
    %v3894 = vmul.f32 %v260, %v3817
    %v3895 = vmul.f32 %v261, %v3817
    %v3896 = vmul.f32 %v262, %v3817
    %v3897 = vmul.f32 %v263, %v3817
    %v3898 = vmul.f32 %v264, %v3817
    %v3899 = vmul.f32 %v265, %v3817
    %v3900 = vmul.f32 %v266, %v3817
    %v3901 = vmul.f32 %v267, %v3817
    %v3902 = vmul.f32 %v268, %v3817
    %v3903 = vmul.f32 %v269, %v3817
    %v3904 = vmul.f32 %v270, %v3817
    %v3905 = vmul.f32 %v271, %v3817
    %v3906 = vmul.f32 %v272, %v3817
    %v3907 = vmul.f32 %v273, %v3817
    %v3908 = vmul.f32 %v274, %v3817
    %v3909 = vmul.f32 %v275, %v3817
    %v3910 = vmul.f32 %v276, %v3817
    %v3911 = vmul.f32 %v277, %v3817
    %v3912 = vmul.f32 %v278, %v3817
    %v3913 = vmul.f32 %v279, %v3817
    %v3914 = vmul.f32 %v280, %v3817
    %v3915 = vmul.f32 %v281, %v3817
    %v3916 = vmul.f32 %v282, %v3817
    %v3917 = vmul.f32 %v283, %v3817
    %v3918 = vmul.f32 %v284, %v3817
    %v3919 = vmul.f32 %v285, %v3817
    %v3920 = vmul.f32 %v286, %v3817
    %v3921 = vmul.f32 %v287, %v3817
    %v4026 = vrot.slane %v3818, 2
    %v4027 = vrot.slane %v3819, 2
    %v4028 = vsel %vm1205, %v4026, %v4027
    %v4029 = vrot.slane %v3820, 2
    %v4030 = vsel %vm1205, %v4027, %v4029
    %v4031 = vrot.slane %v3821, 2
    %v4032 = vsel %vm1205, %v4029, %v4031
    %v4033 = vrot.slane %v3822, 2
    %v4034 = vrot.slane %v3823, 2
    %v4035 = vsel %vm1205, %v4033, %v4034
    %v4036 = vrot.slane %v3824, 2
    %v4037 = vsel %vm1205, %v4034, %v4036
    %v4038 = vrot.slane %v3825, 2
    %v4039 = vsel %vm1205, %v4036, %v4038
    %v4040 = vrot.slane %v3826, 2
    %v4041 = vrot.slane %v3827, 2
    %v4042 = vsel %vm1205, %v4040, %v4041
    %v4043 = vrot.slane %v3828, 2
    %v4044 = vsel %vm1205, %v4041, %v4043
    %v4045 = vrot.slane %v3829, 2
    %v4046 = vsel %vm1205, %v4043, %v4045
    %v4047 = vrot.slane %v3830, 2
    %v4048 = vrot.slane %v3831, 2
    %v4049 = vsel %vm1205, %v4047, %v4048
    %v4050 = vrot.slane %v3832, 2
    %v4051 = vsel %vm1205, %v4048, %v4050
    %v4052 = vrot.slane %v3833, 2
    %v4053 = vsel %vm1205, %v4050, %v4052
    %v4054 = vrot.slane %v3834, 2
    %v4055 = vrot.slane %v3835, 2
    %v4056 = vsel %vm1205, %v4054, %v4055
    %v4057 = vrot.slane %v3836, 2
    %v4058 = vsel %vm1205, %v4055, %v4057
    %v4059 = vrot.slane %v3837, 2
    %v4060 = vsel %vm1205, %v4057, %v4059
    %v4061 = vrot.slane %v3838, 2
    %v4062 = vrot.slane %v3839, 2
    %v4063 = vsel %vm1205, %v4061, %v4062
    %v4064 = vrot.slane %v3840, 2
    %v4065 = vsel %vm1205, %v4062, %v4064
    %v4066 = vrot.slane %v3841, 2
    %v4067 = vsel %vm1205, %v4064, %v4066
    %v4068 = vrot.slane %v3842, 2
    %v4069 = vrot.slane %v3843, 2
    %v4070 = vsel %vm1205, %v4068, %v4069
    %v4071 = vrot.slane %v3844, 2
    %v4072 = vsel %vm1205, %v4069, %v4071
    %v4073 = vrot.slane %v3845, 2
    %v4074 = vsel %vm1205, %v4071, %v4073
    %v4075 = vrot.slane %v3846, 2
    %v4076 = vrot.slane %v3847, 2
    %v4077 = vsel %vm1205, %v4075, %v4076
    %v4078 = vrot.slane %v3848, 2
    %v4079 = vsel %vm1205, %v4076, %v4078
    %v4080 = vrot.slane %v3849, 2
    %v4081 = vsel %vm1205, %v4078, %v4080
    %v4082 = vrot.slane %v3850, 2
    %v4083 = vrot.slane %v3851, 2
    %v4084 = vsel %vm1205, %v4082, %v4083
    %v4085 = vrot.slane %v3852, 2
    %v4086 = vsel %vm1205, %v4083, %v4085
    %v4087 = vrot.slane %v3853, 2
    %v4088 = vsel %vm1205, %v4085, %v4087
    %v4089 = vrot.slane %v3854, 2
    %v4090 = vrot.slane %v3855, 2
    %v4091 = vsel %vm1205, %v4089, %v4090
    %v4092 = vrot.slane %v3856, 2
    %v4093 = vsel %vm1205, %v4090, %v4092
    %v4094 = vrot.slane %v3857, 2
    %v4095 = vsel %vm1205, %v4092, %v4094
    %v4096 = vrot.slane %v3858, 2
    %v4097 = vrot.slane %v3859, 2
    %v4098 = vsel %vm1205, %v4096, %v4097
    %v4099 = vrot.slane %v3860, 2
    %v4100 = vsel %vm1205, %v4097, %v4099
    %v4101 = vrot.slane %v3861, 2
    %v4102 = vsel %vm1205, %v4099, %v4101
    %v4103 = vrot.slane %v3862, 2
    %v4104 = vrot.slane %v3863, 2
    %v4105 = vsel %vm1205, %v4103, %v4104
    %v4106 = vrot.slane %v3864, 2
    %v4107 = vsel %vm1205, %v4104, %v4106
    %v4108 = vrot.slane %v3865, 2
    %v4109 = vsel %vm1205, %v4106, %v4108
    %v4110 = vrot.slane %v3866, 2
    %v4111 = vrot.slane %v3867, 2
    %v4112 = vsel %vm1205, %v4110, %v4111
    %v4113 = vrot.slane %v3868, 2
    %v4114 = vsel %vm1205, %v4111, %v4113
    %v4115 = vrot.slane %v3869, 2
    %v4116 = vsel %vm1205, %v4113, %v4115
    %v4117 = vrot.slane %v3870, 2
    %v4118 = vrot.slane %v3871, 2
    %v4119 = vsel %vm1205, %v4117, %v4118
    %v4120 = vrot.slane %v3872, 2
    %v4121 = vsel %vm1205, %v4118, %v4120
    %v4122 = vrot.slane %v3873, 2
    %v4123 = vsel %vm1205, %v4120, %v4122
    %v4124 = vrot.slane %v3874, 2
    %v4125 = vrot.slane %v3875, 2
    %v4126 = vsel %vm1205, %v4124, %v4125
    %v4127 = vrot.slane %v3876, 2
    %v4128 = vsel %vm1205, %v4125, %v4127
    %v4129 = vrot.slane %v3877, 2
    %v4130 = vsel %vm1205, %v4127, %v4129
    %v4131 = vrot.slane %v3878, 2
    %v4132 = vrot.slane %v3879, 2
    %v4133 = vsel %vm1205, %v4131, %v4132
    %v4134 = vrot.slane %v3880, 2
    %v4135 = vsel %vm1205, %v4132, %v4134
    %v4136 = vrot.slane %v3881, 2
    %v4137 = vsel %vm1205, %v4134, %v4136
    %v4138 = vrot.slane %v3882, 2
    %v4139 = vrot.slane %v3883, 2
    %v4140 = vsel %vm1205, %v4138, %v4139
    %v4141 = vrot.slane %v3884, 2
    %v4142 = vsel %vm1205, %v4139, %v4141
    %v4143 = vrot.slane %v3885, 2
    %v4144 = vsel %vm1205, %v4141, %v4143
    %v4145 = vrot.slane %v3886, 2
    %v4146 = vrot.slane %v3887, 2
    %v4147 = vsel %vm1205, %v4145, %v4146
    %v4148 = vrot.slane %v3888, 2
    %v4149 = vsel %vm1205, %v4146, %v4148
    %v4150 = vrot.slane %v3889, 2
    %v4151 = vsel %vm1205, %v4148, %v4150
    %v4152 = vrot.slane %v3890, 2
    %v4153 = vrot.slane %v3891, 2
    %v4154 = vsel %vm1205, %v4152, %v4153
    %v4155 = vrot.slane %v3892, 2
    %v4156 = vsel %vm1205, %v4153, %v4155
    %v4157 = vrot.slane %v3893, 2
    %v4158 = vsel %vm1205, %v4155, %v4157
    %v4159 = vrot.slane %v3894, 2
    %v4160 = vrot.slane %v3895, 2
    %v4161 = vsel %vm1205, %v4159, %v4160
    %v4162 = vrot.slane %v3896, 2
    %v4163 = vsel %vm1205, %v4160, %v4162
    %v4164 = vrot.slane %v3897, 2
    %v4165 = vsel %vm1205, %v4162, %v4164
    %v4166 = vrot.slane %v3898, 2
    %v4167 = vrot.slane %v3899, 2
    %v4168 = vsel %vm1205, %v4166, %v4167
    %v4169 = vrot.slane %v3900, 2
    %v4170 = vsel %vm1205, %v4167, %v4169
    %v4171 = vrot.slane %v3901, 2
    %v4172 = vsel %vm1205, %v4169, %v4171
    %v4173 = vrot.slane %v3902, 2
    %v4174 = vrot.slane %v3903, 2
    %v4175 = vsel %vm1205, %v4173, %v4174
    %v4176 = vrot.slane %v3904, 2
    %v4177 = vsel %vm1205, %v4174, %v4176
    %v4178 = vrot.slane %v3905, 2
    %v4179 = vsel %vm1205, %v4176, %v4178
    %v4180 = vrot.slane %v3906, 2
    %v4181 = vrot.slane %v3907, 2
    %v4182 = vsel %vm1205, %v4180, %v4181
    %v4183 = vrot.slane %v3908, 2
    %v4184 = vsel %vm1205, %v4181, %v4183
    %v4185 = vrot.slane %v3909, 2
    %v4186 = vsel %vm1205, %v4183, %v4185
    %v4187 = vrot.slane %v3910, 2
    %v4188 = vrot.slane %v3911, 2
    %v4189 = vsel %vm1205, %v4187, %v4188
    %v4190 = vrot.slane %v3912, 2
    %v4191 = vsel %vm1205, %v4188, %v4190
    %v4192 = vrot.slane %v3913, 2
    %v4193 = vsel %vm1205, %v4190, %v4192
    %v4194 = vrot.slane %v3914, 2
    %v4195 = vrot.slane %v3915, 2
    %v4196 = vsel %vm1205, %v4194, %v4195
    %v4197 = vrot.slane %v3916, 2
    %v4198 = vsel %vm1205, %v4195, %v4197
    %v4199 = vrot.slane %v3917, 2
    %v4200 = vsel %vm1205, %v4197, %v4199
    %v4201 = vrot.slane %v3918, 2
    %v4202 = vrot.slane %v3919, 2
    %v4203 = vsel %vm1205, %v4201, %v4202
    %v4204 = vrot.slane %v3920, 2
    %v4205 = vsel %vm1205, %v4202, %v4204
    %v4206 = vrot.slane %v3921, 2
    %v4207 = vsel %vm1205, %v4204, %v4206
    %v4312 = vadd.f32 %v3712, %v4028
    %v4313 = vadd.f32 %v3713, %v4030
    %v4314 = vadd.f32 %v3714, %v4032
    %v4315 = vadd.f32 %v3715, %v4031
    %v4316 = vadd.f32 %v3716, %v4035
    %v4317 = vadd.f32 %v3717, %v4037
    %v4318 = vadd.f32 %v3718, %v4039
    %v4319 = vadd.f32 %v3719, %v4038
    %v4320 = vadd.f32 %v3720, %v4042
    %v4321 = vadd.f32 %v3721, %v4044
    %v4322 = vadd.f32 %v3722, %v4046
    %v4323 = vadd.f32 %v3723, %v4045
    %v4324 = vadd.f32 %v3724, %v4049
    %v4325 = vadd.f32 %v3725, %v4051
    %v4326 = vadd.f32 %v3726, %v4053
    %v4327 = vadd.f32 %v3727, %v4052
    %v4328 = vadd.f32 %v3728, %v4056
    %v4329 = vadd.f32 %v3729, %v4058
    %v4330 = vadd.f32 %v3730, %v4060
    %v4331 = vadd.f32 %v3731, %v4059
    %v4332 = vadd.f32 %v3732, %v4063
    %v4333 = vadd.f32 %v3733, %v4065
    %v4334 = vadd.f32 %v3734, %v4067
    %v4335 = vadd.f32 %v3735, %v4066
    %v4336 = vadd.f32 %v3736, %v4070
    %v4337 = vadd.f32 %v3737, %v4072
    %v4338 = vadd.f32 %v3738, %v4074
    %v4339 = vadd.f32 %v3739, %v4073
    %v4340 = vadd.f32 %v3740, %v4077
    %v4341 = vadd.f32 %v3741, %v4079
    %v4342 = vadd.f32 %v3742, %v4081
    %v4343 = vadd.f32 %v3743, %v4080
    %v4344 = vadd.f32 %v3744, %v4084
    %v4345 = vadd.f32 %v3745, %v4086
    %v4346 = vadd.f32 %v3746, %v4088
    %v4347 = vadd.f32 %v3747, %v4087
    %v4348 = vadd.f32 %v3748, %v4091
    %v4349 = vadd.f32 %v3749, %v4093
    %v4350 = vadd.f32 %v3750, %v4095
    %v4351 = vadd.f32 %v3751, %v4094
    %v4352 = vadd.f32 %v3752, %v4098
    %v4353 = vadd.f32 %v3753, %v4100
    %v4354 = vadd.f32 %v3754, %v4102
    %v4355 = vadd.f32 %v3755, %v4101
    %v4356 = vadd.f32 %v3756, %v4105
    %v4357 = vadd.f32 %v3757, %v4107
    %v4358 = vadd.f32 %v3758, %v4109
    %v4359 = vadd.f32 %v3759, %v4108
    %v4360 = vadd.f32 %v3760, %v4112
    %v4361 = vadd.f32 %v3761, %v4114
    %v4362 = vadd.f32 %v3762, %v4116
    %v4363 = vadd.f32 %v3763, %v4115
    %v4364 = vadd.f32 %v3764, %v4119
    %v4365 = vadd.f32 %v3765, %v4121
    %v4366 = vadd.f32 %v3766, %v4123
    %v4367 = vadd.f32 %v3767, %v4122
    %v4368 = vadd.f32 %v3768, %v4126
    %v4369 = vadd.f32 %v3769, %v4128
    %v4370 = vadd.f32 %v3770, %v4130
    %v4371 = vadd.f32 %v3771, %v4129
    %v4372 = vadd.f32 %v3772, %v4133
    %v4373 = vadd.f32 %v3773, %v4135
    %v4374 = vadd.f32 %v3774, %v4137
    %v4375 = vadd.f32 %v3775, %v4136
    %v4376 = vadd.f32 %v3776, %v4140
    %v4377 = vadd.f32 %v3777, %v4142
    %v4378 = vadd.f32 %v3778, %v4144
    %v4379 = vadd.f32 %v3779, %v4143
    %v4380 = vadd.f32 %v3780, %v4147
    %v4381 = vadd.f32 %v3781, %v4149
    %v4382 = vadd.f32 %v3782, %v4151
    %v4383 = vadd.f32 %v3783, %v4150
    %v4384 = vadd.f32 %v3784, %v4154
    %v4385 = vadd.f32 %v3785, %v4156
    %v4386 = vadd.f32 %v3786, %v4158
    %v4387 = vadd.f32 %v3787, %v4157
    %v4388 = vadd.f32 %v3788, %v4161
    %v4389 = vadd.f32 %v3789, %v4163
    %v4390 = vadd.f32 %v3790, %v4165
    %v4391 = vadd.f32 %v3791, %v4164
    %v4392 = vadd.f32 %v3792, %v4168
    %v4393 = vadd.f32 %v3793, %v4170
    %v4394 = vadd.f32 %v3794, %v4172
    %v4395 = vadd.f32 %v3795, %v4171
    %v4396 = vadd.f32 %v3796, %v4175
    %v4397 = vadd.f32 %v3797, %v4177
    %v4398 = vadd.f32 %v3798, %v4179
    %v4399 = vadd.f32 %v3799, %v4178
    %v4400 = vadd.f32 %v3800, %v4182
    %v4401 = vadd.f32 %v3801, %v4184
    %v4402 = vadd.f32 %v3802, %v4186
    %v4403 = vadd.f32 %v3803, %v4185
    %v4404 = vadd.f32 %v3804, %v4189
    %v4405 = vadd.f32 %v3805, %v4191
    %v4406 = vadd.f32 %v3806, %v4193
    %v4407 = vadd.f32 %v3807, %v4192
    %v4408 = vadd.f32 %v3808, %v4196
    %v4409 = vadd.f32 %v3809, %v4198
    %v4410 = vadd.f32 %v3810, %v4200
    %v4411 = vadd.f32 %v3811, %v4199
    %v4412 = vadd.f32 %v3812, %v4203
    %v4413 = vadd.f32 %v3813, %v4205
    %v4414 = vadd.f32 %v3814, %v4207
    %v4415 = vadd.f32 %v3815, %v4206
    %s4416 = sld [smem:[#allocation3]]
    %v4417 = vstv %s4416
    %v4418 = vadd.f32 %v4312, %v4417
    %v4419 = vadd.f32 %v4313, %v4417
    %v4420 = vadd.f32 %v4314, %v4417
    %v4421 = vadd.f32 %v4315, %v4417
    %v4422 = vadd.f32 %v4316, %v4417
    %v4423 = vadd.f32 %v4317, %v4417
    %v4424 = vadd.f32 %v4318, %v4417
    %v4425 = vadd.f32 %v4319, %v4417
    %v4426 = vadd.f32 %v4320, %v4417
    %v4427 = vadd.f32 %v4321, %v4417
    %v4428 = vadd.f32 %v4322, %v4417
    %v4429 = vadd.f32 %v4323, %v4417
    %v4430 = vadd.f32 %v4324, %v4417
    %v4431 = vadd.f32 %v4325, %v4417
    %v4432 = vadd.f32 %v4326, %v4417
    %v4433 = vadd.f32 %v4327, %v4417
    %v4434 = vadd.f32 %v4328, %v4417
    %v4435 = vadd.f32 %v4329, %v4417
    %v4436 = vadd.f32 %v4330, %v4417
    %v4437 = vadd.f32 %v4331, %v4417
    %v4438 = vadd.f32 %v4332, %v4417
    %v4439 = vadd.f32 %v4333, %v4417
    %v4440 = vadd.f32 %v4334, %v4417
    %v4441 = vadd.f32 %v4335, %v4417
    %v4442 = vadd.f32 %v4336, %v4417
    %v4443 = vadd.f32 %v4337, %v4417
    %v4444 = vadd.f32 %v4338, %v4417
    %v4445 = vadd.f32 %v4339, %v4417
    %v4446 = vadd.f32 %v4340, %v4417
    %v4447 = vadd.f32 %v4341, %v4417
    %v4448 = vadd.f32 %v4342, %v4417
    %v4449 = vadd.f32 %v4343, %v4417
    %v4450 = vadd.f32 %v4344, %v4417
    %v4451 = vadd.f32 %v4345, %v4417
    %v4452 = vadd.f32 %v4346, %v4417
    %v4453 = vadd.f32 %v4347, %v4417
    %v4454 = vadd.f32 %v4348, %v4417
    %v4455 = vadd.f32 %v4349, %v4417
    %v4456 = vadd.f32 %v4350, %v4417
    %v4457 = vadd.f32 %v4351, %v4417
    %v4458 = vadd.f32 %v4352, %v4417
    %v4459 = vadd.f32 %v4353, %v4417
    %v4460 = vadd.f32 %v4354, %v4417
    %v4461 = vadd.f32 %v4355, %v4417
    %v4462 = vadd.f32 %v4356, %v4417
    %v4463 = vadd.f32 %v4357, %v4417
    %v4464 = vadd.f32 %v4358, %v4417
    %v4465 = vadd.f32 %v4359, %v4417
    %v4466 = vadd.f32 %v4360, %v4417
    %v4467 = vadd.f32 %v4361, %v4417
    %v4468 = vadd.f32 %v4362, %v4417
    %v4469 = vadd.f32 %v4363, %v4417
    %v4470 = vadd.f32 %v4364, %v4417
    %v4471 = vadd.f32 %v4365, %v4417
    %v4472 = vadd.f32 %v4366, %v4417
    %v4473 = vadd.f32 %v4367, %v4417
    %v4474 = vadd.f32 %v4368, %v4417
    %v4475 = vadd.f32 %v4369, %v4417
    %v4476 = vadd.f32 %v4370, %v4417
    %v4477 = vadd.f32 %v4371, %v4417
    %v4478 = vadd.f32 %v4372, %v4417
    %v4479 = vadd.f32 %v4373, %v4417
    %v4480 = vadd.f32 %v4374, %v4417
    %v4481 = vadd.f32 %v4375, %v4417
    %v4482 = vadd.f32 %v4376, %v4417
    %v4483 = vadd.f32 %v4377, %v4417
    %v4484 = vadd.f32 %v4378, %v4417
    %v4485 = vadd.f32 %v4379, %v4417
    %v4486 = vadd.f32 %v4380, %v4417
    %v4487 = vadd.f32 %v4381, %v4417
    %v4488 = vadd.f32 %v4382, %v4417
    %v4489 = vadd.f32 %v4383, %v4417
    %v4490 = vadd.f32 %v4384, %v4417
    %v4491 = vadd.f32 %v4385, %v4417
    %v4492 = vadd.f32 %v4386, %v4417
    %v4493 = vadd.f32 %v4387, %v4417
    %v4494 = vadd.f32 %v4388, %v4417
    %v4495 = vadd.f32 %v4389, %v4417
    %v4496 = vadd.f32 %v4390, %v4417
    %v4497 = vadd.f32 %v4391, %v4417
    %v4498 = vadd.f32 %v4392, %v4417
    %v4499 = vadd.f32 %v4393, %v4417
    %v4500 = vadd.f32 %v4394, %v4417
    %v4501 = vadd.f32 %v4395, %v4417
    %v4502 = vadd.f32 %v4396, %v4417
    %v4503 = vadd.f32 %v4397, %v4417
    %v4504 = vadd.f32 %v4398, %v4417
    %v4505 = vadd.f32 %v4399, %v4417
    %v4506 = vadd.f32 %v4400, %v4417
    %v4507 = vadd.f32 %v4401, %v4417
    %v4508 = vadd.f32 %v4402, %v4417
    %v4509 = vadd.f32 %v4403, %v4417
    %v4510 = vadd.f32 %v4404, %v4417
    %v4511 = vadd.f32 %v4405, %v4417
    %v4512 = vadd.f32 %v4406, %v4417
    %v4513 = vadd.f32 %v4407, %v4417
    %v4514 = vadd.f32 %v4408, %v4417
    %v4515 = vadd.f32 %v4409, %v4417
    %v4516 = vadd.f32 %v4410, %v4417
    %v4517 = vadd.f32 %v4411, %v4417
    %v4518 = vadd.f32 %v4412, %v4417
    %v4519 = vadd.f32 %v4413, %v4417
    %v4520 = vadd.f32 %v4414, %v4417
    %v4521 = vadd.f32 %v4415, %v4417
    %v4522 = vmax.f32 %v4418, 0.0
    %v4523 = vmax.f32 %v4419, 0.0
    %v4524 = vmax.f32 %v4420, 0.0
    %v4525 = vmax.f32 %v4421, 0.0
    %v4526 = vmax.f32 %v4422, 0.0
    %v4527 = vmax.f32 %v4423, 0.0
    %v4528 = vmax.f32 %v4424, 0.0
    %v4529 = vmax.f32 %v4425, 0.0
    %v4530 = vmax.f32 %v4426, 0.0
    %v4531 = vmax.f32 %v4427, 0.0
    %v4532 = vmax.f32 %v4428, 0.0
    %v4533 = vmax.f32 %v4429, 0.0
    %v4534 = vmax.f32 %v4430, 0.0
    %v4535 = vmax.f32 %v4431, 0.0
    %v4536 = vmax.f32 %v4432, 0.0
    %v4537 = vmax.f32 %v4433, 0.0
    %v4538 = vmax.f32 %v4434, 0.0
    %v4539 = vmax.f32 %v4435, 0.0
    %v4540 = vmax.f32 %v4436, 0.0
    %v4541 = vmax.f32 %v4437, 0.0
    %v4542 = vmax.f32 %v4438, 0.0
    %v4543 = vmax.f32 %v4439, 0.0
    %v4544 = vmax.f32 %v4440, 0.0
    %v4545 = vmax.f32 %v4441, 0.0
    %v4546 = vmax.f32 %v4442, 0.0
    %v4547 = vmax.f32 %v4443, 0.0
    %v4548 = vmax.f32 %v4444, 0.0
    %v4549 = vmax.f32 %v4445, 0.0
    %v4550 = vmax.f32 %v4446, 0.0
    %v4551 = vmax.f32 %v4447, 0.0
    %v4552 = vmax.f32 %v4448, 0.0
    %v4553 = vmax.f32 %v4449, 0.0
    %v4554 = vmax.f32 %v4450, 0.0
    %v4555 = vmax.f32 %v4451, 0.0
    %v4556 = vmax.f32 %v4452, 0.0
    %v4557 = vmax.f32 %v4453, 0.0
    %v4558 = vmax.f32 %v4454, 0.0
    %v4559 = vmax.f32 %v4455, 0.0
    %v4560 = vmax.f32 %v4456, 0.0
    %v4561 = vmax.f32 %v4457, 0.0
    %v4562 = vmax.f32 %v4458, 0.0
    %v4563 = vmax.f32 %v4459, 0.0
    %v4564 = vmax.f32 %v4460, 0.0
    %v4565 = vmax.f32 %v4461, 0.0
    %v4566 = vmax.f32 %v4462, 0.0
    %v4567 = vmax.f32 %v4463, 0.0
    %v4568 = vmax.f32 %v4464, 0.0
    %v4569 = vmax.f32 %v4465, 0.0
    %v4570 = vmax.f32 %v4466, 0.0
    %v4571 = vmax.f32 %v4467, 0.0
    %v4572 = vmax.f32 %v4468, 0.0
    %v4573 = vmax.f32 %v4469, 0.0
    %v4574 = vmax.f32 %v4470, 0.0
    %v4575 = vmax.f32 %v4471, 0.0
    %v4576 = vmax.f32 %v4472, 0.0
    %v4577 = vmax.f32 %v4473, 0.0
    %v4578 = vmax.f32 %v4474, 0.0
    %v4579 = vmax.f32 %v4475, 0.0
    %v4580 = vmax.f32 %v4476, 0.0
    %v4581 = vmax.f32 %v4477, 0.0
    %v4582 = vmax.f32 %v4478, 0.0
    %v4583 = vmax.f32 %v4479, 0.0
    %v4584 = vmax.f32 %v4480, 0.0
    %v4585 = vmax.f32 %v4481, 0.0
    %v4586 = vmax.f32 %v4482, 0.0
    %v4587 = vmax.f32 %v4483, 0.0
    %v4588 = vmax.f32 %v4484, 0.0
    %v4589 = vmax.f32 %v4485, 0.0
    %v4590 = vmax.f32 %v4486, 0.0
    %v4591 = vmax.f32 %v4487, 0.0
    %v4592 = vmax.f32 %v4488, 0.0
    %v4593 = vmax.f32 %v4489, 0.0
    %v4594 = vmax.f32 %v4490, 0.0
    %v4595 = vmax.f32 %v4491, 0.0
    %v4596 = vmax.f32 %v4492, 0.0
    %v4597 = vmax.f32 %v4493, 0.0
    %v4598 = vmax.f32 %v4494, 0.0
    %v4599 = vmax.f32 %v4495, 0.0
    %v4600 = vmax.f32 %v4496, 0.0
    %v4601 = vmax.f32 %v4497, 0.0
    %v4602 = vmax.f32 %v4498, 0.0
    %v4603 = vmax.f32 %v4499, 0.0
    %v4604 = vmax.f32 %v4500, 0.0
    %v4605 = vmax.f32 %v4501, 0.0
    %v4606 = vmax.f32 %v4502, 0.0
    %v4607 = vmax.f32 %v4503, 0.0
    %v4608 = vmax.f32 %v4504, 0.0
    %v4609 = vmax.f32 %v4505, 0.0
    %v4610 = vmax.f32 %v4506, 0.0
    %v4611 = vmax.f32 %v4507, 0.0
    %v4612 = vmax.f32 %v4508, 0.0
    %v4613 = vmax.f32 %v4509, 0.0
    %v4614 = vmax.f32 %v4510, 0.0
    %v4615 = vmax.f32 %v4511, 0.0
    %v4616 = vmax.f32 %v4512, 0.0
    %v4617 = vmax.f32 %v4513, 0.0
    %v4618 = vmax.f32 %v4514, 0.0
    %v4619 = vmax.f32 %v4515, 0.0
    %v4620 = vmax.f32 %v4516, 0.0
    %v4621 = vmax.f32 %v4517, 0.0
    %v4622 = vmax.f32 %v4518, 0.0
    %v4623 = vmax.f32 %v4519, 0.0
    %v4624 = vmax.f32 %v4520, 0.0
    %v4625 = vmax.f32 %v4521, 0.0
    %4626 = vst [vmem:[#allocation2] sm:$0xff] 0
    %4627 = vst [vmem:[#allocation2 + $0x8] sm:$0xff] 0
    %4628 = vst [vmem:[#allocation2 + $0x10] sm:$0xff] 0
    %4629 = vst [vmem:[#allocation2 + $0x18] sm:$0xff] 0
    %4630 = vst [vmem:[#allocation2 + $0x20] sm:$0xff] 0
    %4631 = vst [vmem:[#allocation2 + $0x28] sm:$0xff] 0
    %4632 = vst [vmem:[#allocation2 + $0x30] sm:$0xff] 0
    %4633 = vst [vmem:[#allocation2 + $0x38] sm:$0xff] 0
    %4634 = vst [vmem:[#allocation2 + $0x40] sm:$0xff] 0
    %4635 = vst [vmem:[#allocation2 + $0x48] sm:$0xff] 0
    %4636 = vst [vmem:[#allocation2 + $0x50] sm:$0xff] 0
    %4637 = vst [vmem:[#allocation2 + $0x58] sm:$0xff] 0
    %4638 = vst [vmem:[#allocation2 + $0x60] sm:$0xff] 0
    %4639 = vst [vmem:[#allocation2 + $0x68] sm:$0xff] 0
    %4640 = vst [vmem:[#allocation2 + $0x70] sm:$0xff] 0
    %4641 = vst [vmem:[#allocation2 + $0x78] sm:$0xff] 0
    %4642 = vst [vmem:[#allocation2 + $0x80] sm:$0xff] 0
    %4643 = vst [vmem:[#allocation2 + $0x88] sm:$0xff] 0
    %4644 = vst [vmem:[#allocation2 + $0x90] sm:$0xff] 0
    %4645 = vst [vmem:[#allocation2 + $0x98] sm:$0xff] 0
    %4646 = vst [vmem:[#allocation2 + $0xa0] sm:$0xff] 0
    %4647 = vst [vmem:[#allocation2 + $0xa8] sm:$0xff] 0
    %4648 = vst [vmem:[#allocation2 + $0xb0] sm:$0xff] 0
    %4649 = vst [vmem:[#allocation2 + $0xb8] sm:$0xff] 0
    %4650 = vst [vmem:[#allocation2 + $0xc0] sm:$0xff] 0
    %4651 = vst [vmem:[#allocation2 + $0xc8] sm:$0xff] 0
    %v4652 = vmax.f32 %v4522, %v4526
    %v4653 = vmax.f32 %v4523, %v4527
    %v4654 = vmax.f32 %v4524, %v4528
    %v4655 = vmax.f32 %v4525, %v4529
    %v4660 = vrot.slane %v4652, 1
    %v4661 = vrot.slane %v4653, 1
    %v4662 = vsel %vm604, %v4660, %v4661
    %v4663 = vrot.slane %v4654, 1
    %v4664 = vsel %vm604, %v4661, %v4663
    %v4665 = vrot.slane %v4655, 1
    %v4666 = vsel %vm604, %v4663, %v4665
    %v4671 = vmax.f32 %v4652, %v4662
    %v4672 = vmax.f32 %v4653, %v4664
    %v4673 = vmax.f32 %v4654, %v4666
    %v4674 = vmax.f32 %v4655, %v4665
    %v4675 = vpack.c.bf16 %v4672, %v4671
    %v4676 = vpack.c.bf16 %v4674, %v4673
    %4677 = vst [vmem:[#allocation2] sm:$0xff] %v4675
    %vm4678 = vcmask 1044480
    %vm4679 = vsmask.f32 4352
    %vm4680 = vmand %vm4678, %vm4679
    %v4681 = vld [vmem:[#allocation2 + $0x8] sm:$0x1f]
    %v4682 = vsel %vm4680, %v4676, %v4681
    %4683 = vst [vmem:[#allocation2 + $0x8] sm:$0x1f] %v4682
    %v4684 = vmax.f32 %v4530, %v4534
    %v4685 = vmax.f32 %v4531, %v4535
    %v4686 = vmax.f32 %v4532, %v4536
    %v4687 = vmax.f32 %v4533, %v4537
    %v4692 = vrot.slane %v4684, 1
    %v4693 = vrot.slane %v4685, 1
    %v4694 = vsel %vm604, %v4692, %v4693
    %v4695 = vrot.slane %v4686, 1
    %v4696 = vsel %vm604, %v4693, %v4695
    %v4697 = vrot.slane %v4687, 1
    %v4698 = vsel %vm604, %v4695, %v4697
    %v4703 = vmax.f32 %v4684, %v4694
    %v4704 = vmax.f32 %v4685, %v4696
    %v4705 = vmax.f32 %v4686, %v4698
    %v4706 = vmax.f32 %v4687, %v4697
    %v4707 = vpack.c.bf16 %v4704, %v4703
    %v4708 = vpack.c.bf16 %v4706, %v4705
    %4709 = vst [vmem:[#allocation2 + $0x10] sm:$0xff] %v4707
    %v4710 = vld [vmem:[#allocation2 + $0x18] sm:$0x1f]
    %v4711 = vsel %vm4680, %v4708, %v4710
    %4712 = vst [vmem:[#allocation2 + $0x18] sm:$0x1f] %v4711
    %v4713 = vmax.f32 %v4538, %v4542
    %v4714 = vmax.f32 %v4539, %v4543
    %v4715 = vmax.f32 %v4540, %v4544
    %v4716 = vmax.f32 %v4541, %v4545
    %v4721 = vrot.slane %v4713, 1
    %v4722 = vrot.slane %v4714, 1
    %v4723 = vsel %vm604, %v4721, %v4722
    %v4724 = vrot.slane %v4715, 1
    %v4725 = vsel %vm604, %v4722, %v4724
    %v4726 = vrot.slane %v4716, 1
    %v4727 = vsel %vm604, %v4724, %v4726
    %v4732 = vmax.f32 %v4713, %v4723
    %v4733 = vmax.f32 %v4714, %v4725
    %v4734 = vmax.f32 %v4715, %v4727
    %v4735 = vmax.f32 %v4716, %v4726
    %v4736 = vpack.c.bf16 %v4733, %v4732
    %v4737 = vpack.c.bf16 %v4735, %v4734
    %4738 = vst [vmem:[#allocation2 + $0x20] sm:$0xff] %v4736
    %v4739 = vld [vmem:[#allocation2 + $0x28] sm:$0x1f]
    %v4740 = vsel %vm4680, %v4737, %v4739
    %4741 = vst [vmem:[#allocation2 + $0x28] sm:$0x1f] %v4740
    %v4742 = vmax.f32 %v4546, %v4550
    %v4743 = vmax.f32 %v4547, %v4551
    %v4744 = vmax.f32 %v4548, %v4552
    %v4745 = vmax.f32 %v4549, %v4553
    %v4750 = vrot.slane %v4742, 1
    %v4751 = vrot.slane %v4743, 1
    %v4752 = vsel %vm604, %v4750, %v4751
    %v4753 = vrot.slane %v4744, 1
    %v4754 = vsel %vm604, %v4751, %v4753
    %v4755 = vrot.slane %v4745, 1
    %v4756 = vsel %vm604, %v4753, %v4755
    %v4761 = vmax.f32 %v4742, %v4752
    %v4762 = vmax.f32 %v4743, %v4754
    %v4763 = vmax.f32 %v4744, %v4756
    %v4764 = vmax.f32 %v4745, %v4755
    %v4765 = vpack.c.bf16 %v4762, %v4761
    %v4766 = vpack.c.bf16 %v4764, %v4763
    %4767 = vst [vmem:[#allocation2 + $0x30] sm:$0xff] %v4765
    %v4768 = vld [vmem:[#allocation2 + $0x38] sm:$0x1f]
    %v4769 = vsel %vm4680, %v4766, %v4768
    %4770 = vst [vmem:[#allocation2 + $0x38] sm:$0x1f] %v4769
    %v4771 = vmax.f32 %v4554, %v4558
    %v4772 = vmax.f32 %v4555, %v4559
    %v4773 = vmax.f32 %v4556, %v4560
    %v4774 = vmax.f32 %v4557, %v4561
    %v4779 = vrot.slane %v4771, 1
    %v4780 = vrot.slane %v4772, 1
    %v4781 = vsel %vm604, %v4779, %v4780
    %v4782 = vrot.slane %v4773, 1
    %v4783 = vsel %vm604, %v4780, %v4782
    %v4784 = vrot.slane %v4774, 1
    %v4785 = vsel %vm604, %v4782, %v4784
    %v4790 = vmax.f32 %v4771, %v4781
    %v4791 = vmax.f32 %v4772, %v4783
    %v4792 = vmax.f32 %v4773, %v4785
    %v4793 = vmax.f32 %v4774, %v4784
    %v4794 = vpack.c.bf16 %v4791, %v4790
    %v4795 = vpack.c.bf16 %v4793, %v4792
    %4796 = vst [vmem:[#allocation2 + $0x40] sm:$0xff] %v4794
    %v4797 = vld [vmem:[#allocation2 + $0x48] sm:$0x1f]
    %v4798 = vsel %vm4680, %v4795, %v4797
    %4799 = vst [vmem:[#allocation2 + $0x48] sm:$0x1f] %v4798
    %v4800 = vmax.f32 %v4562, %v4566
    %v4801 = vmax.f32 %v4563, %v4567
    %v4802 = vmax.f32 %v4564, %v4568
    %v4803 = vmax.f32 %v4565, %v4569
    %v4808 = vrot.slane %v4800, 1
    %v4809 = vrot.slane %v4801, 1
    %v4810 = vsel %vm604, %v4808, %v4809
    %v4811 = vrot.slane %v4802, 1
    %v4812 = vsel %vm604, %v4809, %v4811
    %v4813 = vrot.slane %v4803, 1
    %v4814 = vsel %vm604, %v4811, %v4813
    %v4819 = vmax.f32 %v4800, %v4810
    %v4820 = vmax.f32 %v4801, %v4812
    %v4821 = vmax.f32 %v4802, %v4814
    %v4822 = vmax.f32 %v4803, %v4813
    %v4823 = vpack.c.bf16 %v4820, %v4819
    %v4824 = vpack.c.bf16 %v4822, %v4821
    %4825 = vst [vmem:[#allocation2 + $0x50] sm:$0xff] %v4823
    %v4826 = vld [vmem:[#allocation2 + $0x58] sm:$0x1f]
    %v4827 = vsel %vm4680, %v4824, %v4826
    %4828 = vst [vmem:[#allocation2 + $0x58] sm:$0x1f] %v4827
    %v4829 = vmax.f32 %v4570, %v4574
    %v4830 = vmax.f32 %v4571, %v4575
    %v4831 = vmax.f32 %v4572, %v4576
    %v4832 = vmax.f32 %v4573, %v4577
    %v4837 = vrot.slane %v4829, 1
    %v4838 = vrot.slane %v4830, 1
    %v4839 = vsel %vm604, %v4837, %v4838
    %v4840 = vrot.slane %v4831, 1
    %v4841 = vsel %vm604, %v4838, %v4840
    %v4842 = vrot.slane %v4832, 1
    %v4843 = vsel %vm604, %v4840, %v4842
    %v4848 = vmax.f32 %v4829, %v4839
    %v4849 = vmax.f32 %v4830, %v4841
    %v4850 = vmax.f32 %v4831, %v4843
    %v4851 = vmax.f32 %v4832, %v4842
    %v4852 = vpack.c.bf16 %v4849, %v4848
    %v4853 = vpack.c.bf16 %v4851, %v4850
    %4854 = vst [vmem:[#allocation2 + $0x60] sm:$0xff] %v4852
    %v4855 = vld [vmem:[#allocation2 + $0x68] sm:$0x1f]
    %v4856 = vsel %vm4680, %v4853, %v4855
    %4857 = vst [vmem:[#allocation2 + $0x68] sm:$0x1f] %v4856
    %v4858 = vmax.f32 %v4578, %v4582
    %v4859 = vmax.f32 %v4579, %v4583
    %v4860 = vmax.f32 %v4580, %v4584
    %v4861 = vmax.f32 %v4581, %v4585
    %v4866 = vrot.slane %v4858, 1
    %v4867 = vrot.slane %v4859, 1
    %v4868 = vsel %vm604, %v4866, %v4867
    %v4869 = vrot.slane %v4860, 1
    %v4870 = vsel %vm604, %v4867, %v4869
    %v4871 = vrot.slane %v4861, 1
    %v4872 = vsel %vm604, %v4869, %v4871
    %v4877 = vmax.f32 %v4858, %v4868
    %v4878 = vmax.f32 %v4859, %v4870
    %v4879 = vmax.f32 %v4860, %v4872
    %v4880 = vmax.f32 %v4861, %v4871
    %v4881 = vpack.c.bf16 %v4878, %v4877
    %v4882 = vpack.c.bf16 %v4880, %v4879
    %4883 = vst [vmem:[#allocation2 + $0x70] sm:$0xff] %v4881
    %v4884 = vld [vmem:[#allocation2 + $0x78] sm:$0x1f]
    %v4885 = vsel %vm4680, %v4882, %v4884
    %4886 = vst [vmem:[#allocation2 + $0x78] sm:$0x1f] %v4885
    %v4887 = vmax.f32 %v4586, %v4590
    %v4888 = vmax.f32 %v4587, %v4591
    %v4889 = vmax.f32 %v4588, %v4592
    %v4890 = vmax.f32 %v4589, %v4593
    %v4895 = vrot.slane %v4887, 1
    %v4896 = vrot.slane %v4888, 1
    %v4897 = vsel %vm604, %v4895, %v4896
    %v4898 = vrot.slane %v4889, 1
    %v4899 = vsel %vm604, %v4896, %v4898
    %v4900 = vrot.slane %v4890, 1
    %v4901 = vsel %vm604, %v4898, %v4900
    %v4906 = vmax.f32 %v4887, %v4897
    %v4907 = vmax.f32 %v4888, %v4899
    %v4908 = vmax.f32 %v4889, %v4901
    %v4909 = vmax.f32 %v4890, %v4900
    %v4910 = vpack.c.bf16 %v4907, %v4906
    %v4911 = vpack.c.bf16 %v4909, %v4908
    %4912 = vst [vmem:[#allocation2 + $0x80] sm:$0xff] %v4910
    %v4913 = vld [vmem:[#allocation2 + $0x88] sm:$0x1f]
    %v4914 = vsel %vm4680, %v4911, %v4913
    %4915 = vst [vmem:[#allocation2 + $0x88] sm:$0x1f] %v4914
    %v4916 = vmax.f32 %v4594, %v4598
    %v4917 = vmax.f32 %v4595, %v4599
    %v4918 = vmax.f32 %v4596, %v4600
    %v4919 = vmax.f32 %v4597, %v4601
    %v4924 = vrot.slane %v4916, 1
    %v4925 = vrot.slane %v4917, 1
    %v4926 = vsel %vm604, %v4924, %v4925
    %v4927 = vrot.slane %v4918, 1
    %v4928 = vsel %vm604, %v4925, %v4927
    %v4929 = vrot.slane %v4919, 1
    %v4930 = vsel %vm604, %v4927, %v4929
    %v4935 = vmax.f32 %v4916, %v4926
    %v4936 = vmax.f32 %v4917, %v4928
    %v4937 = vmax.f32 %v4918, %v4930
    %v4938 = vmax.f32 %v4919, %v4929
    %v4939 = vpack.c.bf16 %v4936, %v4935
    %v4940 = vpack.c.bf16 %v4938, %v4937
    %4941 = vst [vmem:[#allocation2 + $0x90] sm:$0xff] %v4939
    %v4942 = vld [vmem:[#allocation2 + $0x98] sm:$0x1f]
    %v4943 = vsel %vm4680, %v4940, %v4942
    %4944 = vst [vmem:[#allocation2 + $0x98] sm:$0x1f] %v4943
    %v4945 = vmax.f32 %v4602, %v4606
    %v4946 = vmax.f32 %v4603, %v4607
    %v4947 = vmax.f32 %v4604, %v4608
    %v4948 = vmax.f32 %v4605, %v4609
    %v4953 = vrot.slane %v4945, 1
    %v4954 = vrot.slane %v4946, 1
    %v4955 = vsel %vm604, %v4953, %v4954
    %v4956 = vrot.slane %v4947, 1
    %v4957 = vsel %vm604, %v4954, %v4956
    %v4958 = vrot.slane %v4948, 1
    %v4959 = vsel %vm604, %v4956, %v4958
    %v4964 = vmax.f32 %v4945, %v4955
    %v4965 = vmax.f32 %v4946, %v4957
    %v4966 = vmax.f32 %v4947, %v4959
    %v4967 = vmax.f32 %v4948, %v4958
    %v4968 = vpack.c.bf16 %v4965, %v4964
    %v4969 = vpack.c.bf16 %v4967, %v4966
    %4970 = vst [vmem:[#allocation2 + $0xa0] sm:$0xff] %v4968
    %v4971 = vld [vmem:[#allocation2 + $0xa8] sm:$0x1f]
    %v4972 = vsel %vm4680, %v4969, %v4971
    %4973 = vst [vmem:[#allocation2 + $0xa8] sm:$0x1f] %v4972
    %v4974 = vmax.f32 %v4610, %v4614
    %v4975 = vmax.f32 %v4611, %v4615
    %v4976 = vmax.f32 %v4612, %v4616
    %v4977 = vmax.f32 %v4613, %v4617
    %v4982 = vrot.slane %v4974, 1
    %v4983 = vrot.slane %v4975, 1
    %v4984 = vsel %vm604, %v4982, %v4983
    %v4985 = vrot.slane %v4976, 1
    %v4986 = vsel %vm604, %v4983, %v4985
    %v4987 = vrot.slane %v4977, 1
    %v4988 = vsel %vm604, %v4985, %v4987
    %v4993 = vmax.f32 %v4974, %v4984
    %v4994 = vmax.f32 %v4975, %v4986
    %v4995 = vmax.f32 %v4976, %v4988
    %v4996 = vmax.f32 %v4977, %v4987
    %v4997 = vpack.c.bf16 %v4994, %v4993
    %v4998 = vpack.c.bf16 %v4996, %v4995
    %4999 = vst [vmem:[#allocation2 + $0xb0] sm:$0xff] %v4997
    %v5000 = vld [vmem:[#allocation2 + $0xb8] sm:$0x1f]
    %v5001 = vsel %vm4680, %v4998, %v5000
    %5002 = vst [vmem:[#allocation2 + $0xb8] sm:$0x1f] %v5001
    %v5003 = vmax.f32 %v4618, %v4622
    %v5004 = vmax.f32 %v4619, %v4623
    %v5005 = vmax.f32 %v4620, %v4624
    %v5006 = vmax.f32 %v4621, %v4625
    %v5011 = vrot.slane %v5003, 1
    %v5012 = vrot.slane %v5004, 1
    %v5013 = vsel %vm604, %v5011, %v5012
    %v5014 = vrot.slane %v5005, 1
    %v5015 = vsel %vm604, %v5012, %v5014
    %v5016 = vrot.slane %v5006, 1
    %v5017 = vsel %vm604, %v5014, %v5016
    %v5022 = vmax.f32 %v5003, %v5013
    %v5023 = vmax.f32 %v5004, %v5015
    %v5024 = vmax.f32 %v5005, %v5017
    %v5025 = vmax.f32 %v5006, %v5016
    %v5026 = vpack.c.bf16 %v5023, %v5022
    %v5027 = vpack.c.bf16 %v5025, %v5024
    %5028 = vst [vmem:[#allocation2 + $0xc0] sm:$0xff] %v5026
    %v5029 = vld [vmem:[#allocation2 + $0xc8] sm:$0x1f]
    %v5030 = vsel %vm4680, %v5027, %v5029
    %5031 = vst [vmem:[#allocation2 + $0xc8] sm:$0x1f] %v5030
    %v5032 = vld [vmem:[#allocation9] sm:$0xff]
    %v5033 = vld [vmem:[#allocation9 + $0x8] sm:$0xff]
    %v5034 = vld [vmem:[#allocation9 + $0x10] sm:$0x11]
    %v5035 = vld [vmem:[#allocation9 + $0x18] sm:$0x11]
    %v5036 = vld [vmem:[#allocation2] sm:$0xff]
    %v5037 = vld [vmem:[#allocation2 + $0x8] sm:$0xff]
    %v5038 = vld [vmem:[#allocation2 + $0x10] sm:$0xff]
    %v5039 = vld [vmem:[#allocation2 + $0x18] sm:$0xff]
    %v5040 = vld [vmem:[#allocation2 + $0x20] sm:$0xff]
    %v5041 = vld [vmem:[#allocation2 + $0x28] sm:$0xff]
    %v5042 = vld [vmem:[#allocation2 + $0x30] sm:$0xff]
    %v5043 = vld [vmem:[#allocation2 + $0x38] sm:$0xff]
    %v5044 = vld [vmem:[#allocation2 + $0x40] sm:$0xff]
    %v5045 = vld [vmem:[#allocation2 + $0x48] sm:$0xff]
    %v5046 = vld [vmem:[#allocation2 + $0x50] sm:$0xff]
    %v5047 = vld [vmem:[#allocation2 + $0x58] sm:$0xff]
    %v5048 = vld [vmem:[#allocation2 + $0x60] sm:$0xff]
    %v5049 = vld [vmem:[#allocation2 + $0x68] sm:$0xff]
    %v5050 = vld [vmem:[#allocation2 + $0x70] sm:$0xff]
    %v5051 = vld [vmem:[#allocation2 + $0x78] sm:$0xff]
    %v5052 = vld [vmem:[#allocation2 + $0x80] sm:$0xff]
    %v5053 = vld [vmem:[#allocation2 + $0x88] sm:$0xff]
    %v5054 = vld [vmem:[#allocation2 + $0x90] sm:$0xff]
    %v5055 = vld [vmem:[#allocation2 + $0x98] sm:$0xff]
    %v5056 = vld [vmem:[#allocation2 + $0xa0] sm:$0xff]
    %v5057 = vld [vmem:[#allocation2 + $0xa8] sm:$0xff]
    %v5058 = vld [vmem:[#allocation2 + $0xb0] sm:$0xff]
    %v5059 = vld [vmem:[#allocation2 + $0xb8] sm:$0xff]
    %v5060 = vld [vmem:[#allocation2 + $0xc0] sm:$0xff]
    %v5061 = vld [vmem:[#allocation2 + $0xc8] sm:$0xff]
    %v5062 = vld [vmem:[%s4] sm:$0xff]
    %v5063 = vld [vmem:[%s4 + $0x8] sm:$0x3]
    %5065 = vset.pattern.permute.xlu0 0
    %5066 = vperm.xlu0 %5065, %v5062
    %v5067 = vpop.permute.xlu0 %5066
    %5070 = vset.pattern.permute.xlu0 0
    %5071 = vperm.xlu0 %5070, %v5063
    %v5072 = vpop.permute.xlu0 %5071
    %v5078 = vunpack.c.l.b16 %v5032
    %v5079 = vunpack.c.h.b16 %v5032
    %v5080 = vunpack.c.l.b16 %v5033
    %v5081 = vunpack.c.h.b16 %v5033
    %v5082 = vunpack.c.l.b16 %v5034
    %v5083 = vunpack.c.h.b16 %v5034
    %v5084 = vunpack.c.l.b16 %v5035
    %v5085 = vunpack.c.h.b16 %v5035
    %v5086 = vpack.c.b16 %v5082, %v5078
    %v5087 = vpack.c.b16 %v5083, %v5079
    %v5088 = vpack.c.b16 %v5084, %v5080
    %v5089 = vpack.c.b16 %v5085, %v5081
    %vm5093 = vcmask 261120
    %v5095 = vsel %vm5093, %v5089, 0
    %5097 = vmatprep.subr.bf16.mxu0 0
    %5098 = vmatpush1.bf16.msra.mxu0 %v5036
    %5099 = vmatprep.subr.bf16.mxu0 0
    %5100 = vmatpush1.bf16.msra.mxu0 %v5037
    %5101 = vmatprep.subr.bf16.mxu0 0
    %5102 = vmatpush1.bf16.msra.mxu0 %v5038
    %5103 = vmatprep.subr.bf16.mxu0 0
    %5104 = vmatpush1.bf16.msra.mxu0 %v5039
    %5105 = vmatprep.subr.bf16.mxu0 0
    %5106 = vmatpush1.bf16.msra.mxu0 %v5040
    %5107 = vmatprep.subr.bf16.mxu0 0
    %5108 = vmatpush1.bf16.msra.mxu0 %v5041
    %5109 = vmatprep.subr.bf16.mxu0 0
    %5110 = vmatpush1.bf16.msra.mxu0 %v5042
    %5111 = vmatprep.subr.bf16.mxu0 0
    %5112 = vmatpush1.bf16.msra.mxu0 %v5043
    %5113 = vmatprep.subr.bf16.mxu0 0
    %5114 = vmatpush1.bf16.msra.mxu0 %v5044
    %5115 = vmatprep.subr.bf16.mxu0 0
    %5116 = vmatpush1.bf16.msra.mxu0 %v5045
    %5117 = vmatprep.subr.bf16.mxu0 0
    %5118 = vmatpush1.bf16.msra.mxu0 %v5046
    %5119 = vmatprep.subr.bf16.mxu0 0
    %5120 = vmatpush1.bf16.msra.mxu0 %v5047
    %5121 = vmatprep.subr.bf16.mxu0 0
    %5122 = vmatpush1.bf16.msra.mxu0 %v5048
    %5123 = vmatprep.subr.bf16.mxu0 0
    %5124 = vmatpush1.bf16.msra.mxu0 %v5049
    %5125 = vmatprep.subr.bf16.mxu0 0
    %5126 = vmatpush1.bf16.msra.mxu0 %v5050
    %5127 = vmatprep.subr.bf16.mxu0 0
    %5128 = vmatpush1.bf16.msra.mxu0 %v5051
    %5129 = vmatprep.mubr.bf16.mxu0 %v5087
    %5130 = vmatmul.mubr.bf16.gmra.mrb[0].mxu0 %v5086
    %v5131 = vpop.f32.mrb[0].mxu0
    %v5132 = vadd.f32 %v5067, %v5131
    %v5133 = vpop.f32.mrb[0].mxu0
    %v5134 = vpop.f32.mrb[0].mxu0
    %v5135 = vadd.f32 %v5072, %v5134
    %v5136 = vpop.f32.mrb[0].mxu0
    %5137 = vdwg.mxu0
    %5138 = vmatprep.subr.bf16.mxu0 0
    %5139 = vmatpush1.bf16.msra.mxu0 %v5052
    %5140 = vmatprep.subr.bf16.mxu0 0
    %5141 = vmatpush1.bf16.msra.mxu0 %v5053
    %5142 = vmatprep.subr.bf16.mxu0 0
    %5143 = vmatpush1.bf16.msra.mxu0 %v5054
    %5144 = vmatprep.subr.bf16.mxu0 0
    %5145 = vmatpush1.bf16.msra.mxu0 %v5055
    %5146 = vmatprep.subr.bf16.mxu0 0
    %5147 = vmatpush1.bf16.msra.mxu0 %v5056
    %5148 = vmatprep.subr.bf16.mxu0 0
    %5149 = vmatpush1.bf16.msra.mxu0 %v5057
    %5150 = vmatprep.subr.bf16.mxu0 0
    %5151 = vmatpush1.bf16.msra.mxu0 %v5058
    %5152 = vmatprep.subr.bf16.mxu0 0
    %5153 = vmatpush1.bf16.msra.mxu0 %v5059
    %5154 = vmatprep.subr.bf16.mxu0 0
    %5155 = vmatpush1.bf16.msra.mxu0 %v5060
    %5156 = vmatprep.subr.bf16.mxu0 0
    %5157 = vmatpush1.bf16.msra.mxu0 %v5061
    %5158 = vmatprep.subr.bf16.mxu0 0
    %5159 = vmatpush1.bf16.msra.mxu0 0
    %5160 = vmatprep.subr.bf16.mxu0 0
    %5161 = vmatpush1.bf16.msra.mxu0 0
    %5162 = vmatprep.subr.bf16.mxu0 0
    %5163 = vmatpush1.bf16.msra.mxu0 0
    %5164 = vmatprep.subr.bf16.mxu0 0
    %5165 = vmatpush1.bf16.msra.mxu0 0
    %5166 = vmatprep.subr.bf16.mxu0 0
    %5167 = vmatpush1.bf16.msra.mxu0 0
    %5168 = vmatprep.subr.bf16.mxu0 0
    %5169 = vmatpush1.bf16.msra.mxu0 0
    %5170 = vmatprep.mubr.bf16.mxu0 %v5095
    %5171 = vmatmul.mubr.bf16.gmra.mrb[0].mxu0 %v5088
    %v5172 = vpop.f32.mrb[0].mxu0
    %v5173 = vadd.f32 %v5132, %v5172
    %v5174 = vpop.f32.mrb[0].mxu0
    %v5175 = vpop.f32.mrb[0].mxu0
    %v5176 = vadd.f32 %v5135, %v5175
    %v5177 = vpop.f32.mrb[0].mxu0
    %5178 = vdwg.mxu0
    %5179 = vst [vmem:[#allocation11] sm:$0xff] %v5173
    %5180 = vst [vmem:[#allocation11 + $0x8] sm:$0x3] %v5176
    // Predicated region
    $region34: #{tpu_custom_call.1} parent=1 // pred_check
      _
    $region35: #{tpu_custom_call.1} parent=1 // pred_check_branch
      %5182 = sbr.rel (0) target = $region37
    $region36: #{tpu_custom_call.1} parent=1 // pred_region
      %s5184 = ssub.s32 256, 256
      %5185 = vsyncadd [#allocation6], %s5184
      %s5186 = sshll.u32 [#allocation11], 4
      %s5187 = int_to_ptr.vmem [resolvable:$true] %s5186
      %5192 = dma.vmem_to_hbm [thread:$0]  %s5187, 256, %s5, [#allocation6], 128, 128, 8
    $region37: #{tpu_custom_call.1} parent=1 // pred_fallthru
      _
    // Predicated region
    $region38: #{tpu_custom_call.1} parent=1 // pred_check
      _
    $region39: #{tpu_custom_call.1} parent=1 // pred_check_branch
      %5194 = sbr.rel (0) target = $region41
    $region40: #{tpu_custom_call.1} parent=1 // pred_region
      %5195 = dma.done [#allocation6], 256
    $region41: #{tpu_custom_call.1} parent=1 // pred_fallthru
      _
    %5196 = vsyncpa [#allocation5], 1
    %5197 = vsyncpa [#allocation10], 1
    %5198 = vsyncpa [#allocation6], 1
    %5199 = vsyncpa [#allocation7], 1

</llo_original>
